<compile_context>
chip_gen: v5e
topology: v5e:2x2
jax: 0.10.0
libtpu: 0.0.40
codegen_flags: <defaults>
</compile_context>

<pallas_src>
import jax
import jax.numpy as jnp
from jax.experimental import pallas as pl
from jax.experimental.pallas import tpu as pltpu

BATCH_TILE = 16      # rows per grid step; keeps bf16 operands sublane-dense.
                     # (32-64 can be better on single-TC v5e/v6e; keep Bp/BATCH_TILE>=2
                     #  on v7x so both TensorCores get work.)
LEAKY_SLOPE = 0.2    # nn.LeakyReLU(0.2)


# ----------------------------------------------------------------------------
# In-kernel helpers.  Encoder / dec1 / dec2 use a (H, W, BATCH_TILE, C) layout:
# spatial dims are untiled leading axes so every tap is a static leading slice.
# ----------------------------------------------------------------------------
def _leaky(t):
    return jnp.maximum(t, LEAKY_SLOPE * t)


def _pad_hw(v, top, bottom, left, right):
    """Zero-pad the two spatial dims (axes 0, 1) of a (H, W, BM, C) value."""
    H, W, BM, C = v.shape
    dt = v.dtype
    if left or right:
        parts = []
        if left:
            parts.append(jnp.zeros((H, left, BM, C), dt))
        parts.append(v)
        if right:
            parts.append(jnp.zeros((H, right, BM, C), dt))
        v = jnp.concatenate(parts, axis=1)
        W = W + left + right
    if top or bottom:
        parts = []
        if top:
            parts.append(jnp.zeros((top, W, BM, C), dt))
        parts.append(v)
        if bottom:
            parts.append(jnp.zeros((bottom, W, BM, C), dt))
        v = jnp.concatenate(parts, axis=0)
    return v


def _maxpool(x, k, s):
    """MaxPool2d(k, stride=s) on (H, W, BM, C) via elementwise max of shifted slices."""
    H, W, BM, C = x.shape
    OH = (H - k) // s + 1
    if s == 1:
        taps = [x[di:di + OH, dj:dj + OH] for di in range(k) for dj in range(k)]
    else:  # s == k (phase split with leading-dim reshapes only)
        x = x[:OH * s, :OH * s]
        resh = x.reshape(OH, s, OH, s, BM, C)
        taps = [resh[:, di, :, dj] for di in range(k) for dj in range(k)]
    out = taps[0]
    for t in taps[1:]:
        out = jnp.maximum(out, t)
    return out


def _conv_stride(x, w, b_row, K, s, p):
    """Strided Conv2d + LeakyReLU on (H, W, BM, Cin); w: (K, K, Cin, Cout) bf16."""
    Hi, Wi, BM, Cin = x.shape
    Cout = w.shape[-1]
    OH = (Hi + 2 * p - K) // s + 1
    Hp = Hi + 2 * p
    Hp_up = -(-Hp // s) * s
    xp = _pad_hw(x, p, Hp_up - Hi - p, p, Hp_up - Wi - p).astype(jnp.bfloat16)
    resh = xp.reshape(Hp_up // s, s, Hp_up // s, s, BM, Cin)
    acc = jnp.zeros((OH * OH * BM, Cout), jnp.float32)
    for kh in range(K):
        ri, mi = kh % s, kh // s
        for kw in range(K):
            rj, mj = kw % s, kw // s
            sl = resh[:, ri, :, rj][mi:mi + OH, mj:mj + OH]
            acc = acc + jnp.dot(sl.reshape(OH * OH * BM, Cin), w[kh, kw],
                                preferred_element_type=jnp.float32)
    return _leaky(acc + b_row).reshape(OH, OH, BM, Cout)


def _interleave(phases):
    """phases[ri][rj]: (Q, Q, BM, C) -> (sQ, sQ, BM, C) with
    full[s*qi+ri, s*qj+rj] = phases[ri][rj][qi, qj]; leading stack+reshape only."""
    s = len(phases)
    Q, _, BM, C = phases[0][0].shape
    cols = []
    for rj in range(s):
        col = jnp.stack([phases[ri][rj] for ri in range(s)], axis=1)   # (Q,s,Q,BM,C)
        cols.append(col.reshape(Q * s, Q, BM, C))
    full = jnp.stack(cols, axis=2)                                     # (sQ,Q,s,BM,C)
    return full.reshape(s * Q, s * Q, BM, C)


def _deconv_packed(pairs, b_row, K, s, p):
    """ConvTranspose2d + LeakyReLU via the sub-pixel decomposition with all s*s output
    phases lane-packed into the matmul N dimension (zero columns for invalid taps).

    pairs: [(x, w_packed)] with x: (Hi, Hi, BM, Cin) f32 and
           w_packed: (M0, M0, Cin, s*s*Cout) bf16.
    """
    Hi, _, BM, _ = pairs[0][0].shape
    Np = pairs[0][1].shape[-1]
    M0 = len(range(0, K, s))
    Cout = Np // (s * s)
    Q = Hi - 1 + M0
    pad = M0 - 1
    # pad and cast each input once; each (mi, mj) window is sliced/reshaped once.
    padded = [_pad_hw(x, pad, pad, pad, pad).astype(jnp.bfloat16) for (x, _) in pairs]
    acc = jnp.zeros((Q * Q * BM, Np), jnp.float32)
    for mi in range(M0):
        for mj in range(M0):
            for xp, (_, w) in zip(padded, pairs):
                sl = xp[pad - mi:pad - mi + Q, pad - mj:pad - mj + Q]
                acc = acc + jnp.dot(sl.reshape(Q * Q * BM, xp.shape[-1]), w[mi, mj],
                                    preferred_element_type=jnp.float32)
    acc = _leaky(acc + b_row)
    phases = [[acc[:, (ri * s + rj) * Cout:(ri * s + rj + 1) * Cout]
               .reshape(Q, Q, BM, Cout) for rj in range(s)] for ri in range(s)]
    full = _interleave(phases)
    Ho = (Hi - 1) * s - 2 * p + K
    return full[p:p + Ho, p:p + Ho]


# ----------------------------------------------------------------------------
# The fused kernel
# ----------------------------------------------------------------------------
def _fused_kernel(p1_ref, xres_ref, gum_ref, ti_ref, scal_ref,
                  wc1_ref, wc2_ref, w1_ref, w2_ref, head_ref, zp_ref,
                  wd1v_ref, wd1z_ref, wd2_ref, decb_ref, w3r_ref,
                  out_ref, ent_ref):
    f32, bf16 = jnp.float32, jnp.bfloat16
    BM = gum_ref.shape[0]
    eps = scal_ref[0]
    b3 = scal_ref[1]

    head = head_ref[...]
    b_c1, b_fc1, w1eps = head[0:1, :], head[2:3, :], head[3:4, :]
    b_c2, b_fc2 = head[1:2, :32], head[4:5, :10]

    # ---- encoder: conv1(3x3 s3 p1) + pool(2,2) + conv2(3x3 s2 p1) + pool(2,1) ----
    p1 = p1_ref[...].astype(bf16)                                      # (10,10,BM,9)
    a1 = jnp.dot(p1.reshape(100 * BM, 9), wc1_ref[...],
                 preferred_element_type=f32) + b_c1
    a1 = _leaky(a1).reshape(10, 10, BM, 64)
    h1 = _maxpool(a1, 2, 2)                                            # (5,5,BM,64)
    a2 = _conv_stride(h1, wc2_ref[...], b_c2, K=3, s=2, p=1)           # (3,3,BM,32)
    v = _maxpool(a2, 2, 1)                                             # (2,2,BM,32)

    # ---- fc head (NCHW flatten + eps column folded into packed weights) ----
    hcat = jnp.concatenate([v[0, 0], v[0, 1], v[1, 0], v[1, 1]], axis=-1)  # (BM,128)
    f = _leaky(jnp.dot(hcat, w1_ref[...], preferred_element_type=f32)
               + eps * w1eps + b_fc1)                                  # (BM,64)
    logits = jnp.dot(f, w2_ref[...], preferred_element_type=f32) + b_fc2   # (BM,10)

    # ---- entropy(logits): matches torch helper (per-row sum p*log p; mean in wrapper) ----
    m = jnp.max(logits, axis=1, keepdims=True)
    xs = logits - m
    e = jnp.exp(xs)
    ssum = jnp.sum(e, axis=1, keepdims=True)
    ent_ref[...] = jnp.sum((e / ssum) * (xs - jnp.log(ssum)), axis=1, keepdims=True)

    # ---- straight-through multinomial sample (Gumbel-max; noise from wrapper) ----
    g = logits + gum_ref[...]
    one_hot = (g >= jnp.max(g, axis=1, keepdims=True)).astype(f32)

    # ---- z path: relu(fc_z(one_hot) [+ fc_input(target)]), lane-packed over (i,j) ----
    zp = zp_ref[...]
    z = (jnp.dot(one_hot, zp[0:10], preferred_element_type=f32)
         + jnp.dot(ti_ref[...], zp[10:21], preferred_element_type=f32) + zp[21:22])
    z = jnp.maximum(z, 0.0)
    lane0 = (jax.lax.broadcasted_iota(jnp.int32, (1, 128), 1) == 0).astype(f32)
    z = z + eps * lane0                        # epsilon feature (decoder flat index 128)
    z4 = jnp.stack([jnp.stack([z[:, (2 * i + j) * 32:(2 * i + j + 1) * 32]
                               for j in range(2)], axis=0)
                    for i in range(2)], axis=0)                        # (2,2,BM,32)

    # ---- decoder (phase-packed sub-pixel transposed convs) ----
    decb = decb_ref[...]
    d1 = _deconv_packed([(v, wd1v_ref[...]), (z4, wd1z_ref[...])],
                        decb[0:1, :128], K=3, s=2, p=0)                # (5,5,BM,32)
    d2 = _deconv_packed([(d1, wd2_ref[...])],
                        decb[1:2, :144], K=5, s=3, p=1)                # (15,15,BM,16)

    # ---- dec3 (16->1, 2x2, s=2, p=1) as one lane-dense row-pair matmul:
    #      regroup (qi,qj,b,ci) -> ((qi,b),(qj,ci)) with a lane concat of qj slabs,
    #      matmul against a (240,56) weight emitting two output rows per qi. ----
    rt = jnp.concatenate([d2[:, qj].reshape(15 * BM, 16) for qj in range(15)],
                         axis=-1).astype(bf16)                         # (15*BM, 240)
    rows = jnp.dot(rt, w3r_ref[...], preferred_element_type=f32)       # (15*BM, 56)
    rows = rows.reshape(15, BM, 56)
    pieces = ([rows[0, :, 28:56]]
              + [rows[t] for t in range(1, 14)]
              + [rows[14, :, 0:28]])
    y = jnp.concatenate(pieces, axis=-1) + b3                          # (BM, 784)

    # ---- lane-dense epilogue: out = 0.5*(tanh(y)+1); output = x + eps*(out - x) ----
    x_res = xres_ref[...]                                              # (BM, 784)
    out = 0.5 * (jnp.tanh(y) + 1.0)
    out_ref[...] = x_res + eps * (out - x_res)


# ----------------------------------------------------------------------------
# Parameters (deterministic synthetic init; Linear weights stored (in, out))
# ----------------------------------------------------------------------------
def init_params(key):
    ks = jax.random.split(key, 18)

    def w(k, shape, scale=0.1):
        return (scale * jax.random.normal(k, shape)).astype(jnp.float32)

    return {
        "conv1_w": w(ks[0], (64, 1, 3, 3)),  "conv1_b": w(ks[1], (64,)),
        "conv2_w": w(ks[2], (32, 64, 3, 3)), "conv2_b": w(ks[3], (32,)),
        "fc1_w": w(ks[4], (129, 64)), "fc1_b": w(ks[5], (64,)),
        "fc2_w": w(ks[6], (64, 10)),  "fc2_b": w(ks[7], (10,)),
        "fcz_w": w(ks[8], (10, 127)), "fcz_b": w(ks[9], (127,)),
        "fci_w": w(ks[10], (10, 127)), "fci_b": w(ks[11], (127,)),
        "dec1_w": w(ks[12], (64, 32, 3, 3)), "dec1_b": w(ks[13], (32,)),
        "dec2_w": w(ks[14], (32, 16, 5, 5)), "dec2_b": w(ks[15], (16,)),
        "dec3_w": w(ks[16], (16, 1, 2, 2)),  "dec3_b": w(ks[17], (1,)),
    }


def _zero_map(n):
    return lambda nb: (0,) * n


# ----------------------------------------------------------------------------
# Wrapper: layout plumbing + one pallas_call
# ----------------------------------------------------------------------------
def mnist_generator_forward(params, x_nchw, epsilon, sample_key, target=None):
    f32, bf16 = jnp.float32, jnp.bfloat16
    B = x_nchw.shape[0]
    BM = BATCH_TILE
    Bp = -(-B // BM) * BM
    NB = Bp // BM

    # ----- batch-dependent inputs -----
    x = x_nchw.reshape(B, 28, 28).astype(f32)
    xp = jnp.pad(x, ((0, 0), (1, 1), (1, 1)))
    # conv1 im2col patches (tiny; 9-lane layout acknowledged as low-priority waste)
    taps = [xp[:, kh:kh + 28:3, kw:kw + 28:3] for kh in range(3) for kw in range(3)]
    p1 = jnp.transpose(jnp.stack(taps, axis=-1), (1, 2, 0, 3))         # (10,10,B,9)
    p1 = jnp.pad(p1, ((0, 0), (0, 0), (0, Bp - B), (0, 0)))

    x_res = jnp.pad(x.reshape(B, 784), ((0, Bp - B), (0, 0)))          # (Bp,784) lane-dense

    gum = jax.random.gumbel(sample_key, (Bp, 10), dtype=f32)           # Gumbel-max noise

    if target is None:
        ti = jnp.zeros((Bp, 11), f32)
    else:
        ti = jnp.concatenate([jax.nn.one_hot(target, 10, dtype=f32),
                              jnp.ones((B, 1), f32)], axis=1)
        ti = jnp.pad(ti, ((0, Bp - B), (0, 0)))

    scal = jnp.concatenate([jnp.reshape(epsilon, (1,)).astype(f32),
                            jnp.reshape(params["dec3_b"], (1,)).astype(f32)])

    # ----- weight packing (pure layout transforms of the torch-layout params) -----
    w_c1 = jnp.transpose(params["conv1_w"][:, 0], (1, 2, 0)).reshape(9, 64).astype(bf16)
    w_c2 = jnp.transpose(params["conv2_w"], (2, 3, 1, 0)).astype(bf16)     # (3,3,64,32)

    head = jnp.zeros((5, 64), f32)
    head = head.at[0].set(params["conv1_b"])
    head = head.at[1, :32].set(params["conv2_b"])
    head = head.at[2].set(params["fc1_b"])
    head = head.at[3].set(params["fc1_w"][128])          # epsilon column of fc1
    head = head.at[4, :10].set(params["fc2_b"])

    # NCHW flatten index of channel c at spatial (i,j) is c*4+2i+j; packed order (i,j,c)
    perm = jnp.concatenate([jnp.arange(32) * 4 + 2 * i + j
                            for i in range(2) for j in range(2)])           # (128,)
    w1cat = params["fc1_w"][perm].astype(f32)                               # (128,64)
    w2 = params["fc2_w"].astype(f32)                                        # (64,10)

    Wz_ext = jnp.concatenate([jnp.zeros((10, 1), f32),
                              params["fcz_w"].astype(f32)], axis=1)         # (10,128)
    bz_ext = jnp.concatenate([jnp.zeros((1,), f32), params["fcz_b"].astype(f32)])
    Wi_full = jnp.concatenate([params["fci_w"].astype(f32),
                               params["fci_b"].reshape(1, 127).astype(f32)], axis=0)
    Wi_ext = jnp.concatenate([jnp.zeros((11, 1), f32), Wi_full], axis=1)    # (11,128)
    zpack = jnp.concatenate([Wz_ext[:, perm], Wi_ext[:, perm],
                             bz_ext[perm].reshape(1, 128)], axis=0)         # (22,128)

    def pack_deconv(wt, K, s):
        """(K,K,Cin,Cout) -> (M0,M0,Cin,s*s*Cout); phase p=ri*s+rj, zero invalid taps."""
        Cin, Cout = wt.shape[2], wt.shape[3]
        M0 = len(range(0, K, s))
        rows = []
        for mi in range(M0):
            cols = []
            for mj in range(M0):
                blocks = []
                for ri in range(s):
                    for rj in range(s):
                        kh, kw = s * mi + ri, s * mj + rj
                        if kh < K and kw < K:
                            blocks.append(wt[kh, kw])
                        else:
                            blocks.append(jnp.zeros((Cin, Cout), wt.dtype))
                cols.append(jnp.concatenate(blocks, axis=1))
            rows.append(jnp.stack(cols, axis=0))
        return jnp.stack(rows, axis=0)

    d1w = jnp.transpose(params["dec1_w"], (2, 3, 0, 1))                     # (3,3,64,32)
    wd1v = pack_deconv(d1w[:, :, :32, :], 3, 2).astype(bf16)                # (2,2,32,128)
    wd1z = pack_deconv(d1w[:, :, 32:, :], 3, 2).astype(bf16)                # (2,2,32,128)
    d2w = jnp.transpose(params["dec2_w"], (2, 3, 0, 1))                     # (5,5,32,16)
    wd2 = pack_deconv(d2w, 5, 3).astype(bf16)                               # (2,2,32,144)

    decb = jnp.zeros((2, 144), f32)
    decb = decb.at[0, :128].set(jnp.tile(params["dec1_b"], 4))
    decb = decb.at[1, :].set(jnp.tile(params["dec2_b"], 9))

    # dec3 row-pair weight (240,56): column half*28+ow of image row oh=2*qi-1+half;
    # contraction index k = qj*16 + ci, nonzero only for qj == (ow+1)//2.
    w3 = params["dec3_w"]                                                   # (16,1,2,2)
    w3r = jnp.zeros((240, 56), f32)
    for half in range(2):
        for ow in range(28):
            qj, rj = (ow + 1) // 2, (ow + 1) % 2
            w3r = w3r.at[qj * 16:(qj + 1) * 16, half * 28 + ow].set(w3[:, 0, half, rj])
    w3r = w3r.astype(bf16)

    weights = [w_c1, w_c2, w1cat, w2, head, zpack, wd1v, wd1z, wd2, decb, w3r]

    batch_specs = [
        pl.BlockSpec((10, 10, BM, 9), lambda nb: (0, 0, nb, 0)),
        pl.BlockSpec((BM, 784), lambda nb: (nb, 0)),
        pl.BlockSpec((BM, 10), lambda nb: (nb, 0)),
        pl.BlockSpec((BM, 11), lambda nb: (nb, 0)),
    ]
    smem_spec = pl.BlockSpec(memory_space=pltpu.MemorySpace.SMEM)
    weight_specs = [pl.BlockSpec(w.shape, _zero_map(w.ndim)) for w in weights]

    out_img, ent_rows = pl.pallas_call(
        _fused_kernel,
        out_shape=(jax.ShapeDtypeStruct((Bp, 784), f32),
                   jax.ShapeDtypeStruct((Bp, 1), f32)),
        grid=(NB,),
        in_specs=batch_specs + [smem_spec] + weight_specs,
        out_specs=(pl.BlockSpec((BM, 784), lambda nb: (nb, 0)),
                   pl.BlockSpec((BM, 1), lambda nb: (nb, 0))),
        compiler_params=pltpu.CompilerParams(
            dimension_semantics=("parallel",),
            vmem_limit_bytes=32 * 1024 * 1024),
    )(p1, x_res, gum, ti, scal, *weights)

    output = out_img[:B].reshape(B, 1, 28, 28)
    ent = jnp.sum(ent_rows[:B, 0]) / B          # mean over real rows only
    return output, ent


# ----------------------------------------------------------------------------
if __name__ == "__main__":
    key = jax.random.PRNGKey(0)
    pkey, xkey, skey = jax.random.split(key, 3)

    params = init_params(pkey)

    B = 2   # spatial size is fixed at 28x28 by the architecture (fc expects 32*2*2)
    x = jax.random.uniform(xkey, (B, 1, 28, 28), dtype=jnp.float32)
    epsilon = jnp.array([0.3], dtype=jnp.float32)

    fwd = jax.jit(mnist_generator_forward)
    output, ent = fwd(params, x, epsilon, skey)
    jax.block_until_ready(output)
    jax.block_until_ready(ent)

    assert output.shape == (B, 1, 28, 28)
    assert output.dtype == jnp.float32
    assert ent.shape == ()
    print("KERNEL_OK")
</pallas_src>

<mosaic_0001>
module attributes {stable_mosaic.version = 11 : i64} {
  func.func @_fused_kernel(%arg0: i32, %arg1: memref<10x10x16x9xf32, #tpu.memory_space<vmem>>, %arg2: memref<16x784xf32, #tpu.memory_space<vmem>>, %arg3: memref<16x10xf32, #tpu.memory_space<vmem>>, %arg4: memref<16x11xf32, #tpu.memory_space<vmem>>, %arg5: memref<2xf32, #tpu.memory_space<smem>>, %arg6: memref<9x64xbf16, #tpu.memory_space<vmem>>, %arg7: memref<3x3x64x32xbf16, #tpu.memory_space<vmem>>, %arg8: memref<128x64xf32, #tpu.memory_space<vmem>>, %arg9: memref<64x10xf32, #tpu.memory_space<vmem>>, %arg10: memref<5x64xf32, #tpu.memory_space<vmem>>, %arg11: memref<22x128xf32, #tpu.memory_space<vmem>>, %arg12: memref<2x2x32x128xbf16, #tpu.memory_space<vmem>>, %arg13: memref<2x2x32x128xbf16, #tpu.memory_space<vmem>>, %arg14: memref<2x2x32x144xbf16, #tpu.memory_space<vmem>>, %arg15: memref<2x144xf32, #tpu.memory_space<vmem>>, %arg16: memref<240x56xbf16, #tpu.memory_space<vmem>>, %arg17: memref<16x784xf32, #tpu.memory_space<vmem>>, %arg18: memref<16x1xf32, #tpu.memory_space<vmem>>) attributes {dimension_semantics = [#tpu.dimension_semantics<parallel>], iteration_bounds = array<i64: 1>, scalar_prefetch = 0 : i64, scratch_operands = 0 : i64, tpu.core_type = #tpu.core_type<tc>, window_params = [{transform_indices = @transform_0, window_bounds = array<i64: 10, 10, 16, 9>}, {transform_indices = @transform_1, window_bounds = array<i64: 16, 784>}, {transform_indices = @transform_2, window_bounds = array<i64: 16, 10>}, {transform_indices = @transform_3, window_bounds = array<i64: 16, 11>}, {transform_indices = @transform_4, window_bounds = array<i64: 2>}, {pipeline_mode = #tpu.pipeline_mode<synchronous>, transform_indices = @transform_5, window_bounds = array<i64: 9, 64>}, {pipeline_mode = #tpu.pipeline_mode<synchronous>, transform_indices = @transform_6, window_bounds = array<i64: 3, 3, 64, 32>}, {pipeline_mode = #tpu.pipeline_mode<synchronous>, transform_indices = @transform_7, window_bounds = array<i64: 128, 64>}, {pipeline_mode = #tpu.pipeline_mode<synchronous>, transform_indices = @transform_8, window_bounds = array<i64: 64, 10>}, {pipeline_mode = #tpu.pipeline_mode<synchronous>, transform_indices = @transform_9, window_bounds = array<i64: 5, 64>}, {pipeline_mode = #tpu.pipeline_mode<synchronous>, transform_indices = @transform_10, window_bounds = array<i64: 22, 128>}, {pipeline_mode = #tpu.pipeline_mode<synchronous>, transform_indices = @transform_11, window_bounds = array<i64: 2, 2, 32, 128>}, {pipeline_mode = #tpu.pipeline_mode<synchronous>, transform_indices = @transform_12, window_bounds = array<i64: 2, 2, 32, 128>}, {pipeline_mode = #tpu.pipeline_mode<synchronous>, transform_indices = @transform_13, window_bounds = array<i64: 2, 2, 32, 144>}, {pipeline_mode = #tpu.pipeline_mode<synchronous>, transform_indices = @transform_14, window_bounds = array<i64: 2, 144>}, {pipeline_mode = #tpu.pipeline_mode<synchronous>, transform_indices = @transform_15, window_bounds = array<i64: 240, 56>}, {transform_indices = @transform_16, window_bounds = array<i64: 16, 784>}, {transform_indices = @transform_17, window_bounds = array<i64: 16, 1>}]} {
    %c0 = arith.constant 0 : index
    %0 = memref.load %arg5[%c0] : memref<2xf32, #tpu.memory_space<smem>>
    %c1 = arith.constant 1 : index
    %1 = memref.load %arg5[%c1] : memref<2xf32, #tpu.memory_space<smem>>
    %c0_0 = arith.constant 0 : index
    %c0_1 = arith.constant 0 : index
    %2 = vector.load %arg10[%c0_0, %c0_1] : memref<5x64xf32, #tpu.memory_space<vmem>>, vector<5x64xf32>
    %3 = vector.extract_strided_slice %2 {offsets = [0, 0], sizes = [1, 64], strides = [1, 1]} : vector<5x64xf32> to vector<1x64xf32>
    %4 = vector.extract_strided_slice %2 {offsets = [2, 0], sizes = [1, 64], strides = [1, 1]} : vector<5x64xf32> to vector<1x64xf32>
    %5 = vector.extract_strided_slice %2 {offsets = [3, 0], sizes = [1, 64], strides = [1, 1]} : vector<5x64xf32> to vector<1x64xf32>
    %6 = vector.extract_strided_slice %2 {offsets = [1, 0], sizes = [1, 32], strides = [1, 1]} : vector<5x64xf32> to vector<1x32xf32>
    %7 = vector.extract_strided_slice %2 {offsets = [4, 0], sizes = [1, 10], strides = [1, 1]} : vector<5x64xf32> to vector<1x10xf32>
    %c0_2 = arith.constant 0 : index
    %c0_3 = arith.constant 0 : index
    %c0_4 = arith.constant 0 : index
    %c0_5 = arith.constant 0 : index
    %8 = vector.load %arg1[%c0_2, %c0_3, %c0_4, %c0_5] : memref<10x10x16x9xf32, #tpu.memory_space<vmem>>, vector<10x10x16x9xf32>
    %9 = arith.truncf %8 : vector<10x10x16x9xf32> to vector<10x10x16x9xbf16>
    %10 = vector.shape_cast %9 : vector<10x10x16x9xbf16> to vector<1600x9xbf16>
    %c0_6 = arith.constant 0 : index
    %c0_7 = arith.constant 0 : index
    %11 = vector.load %arg6[%c0_6, %c0_7] : memref<9x64xbf16, #tpu.memory_space<vmem>>, vector<9x64xbf16>
    %cst = arith.constant dense<0.000000e+00> : vector<1600x64xf32>
    %12 = tpu.matmul %10, %11, %cst {dimension_numbers = #tpu.dot_dimension_numbers<[1], [0], [0], [1], [0, 0, 1, 1], [], []>} : vector<1600x9xbf16>, vector<9x64xbf16>, vector<1600x64xf32> -> vector<1600x64xf32>
    %13 = vector.broadcast %3 : vector<1x64xf32> to vector<1600x64xf32>
    %14 = arith.addf %12, %13 : vector<1600x64xf32>
    %cst_8 = arith.constant 2.000000e-01 : f32
    %15 = vector.broadcast %cst_8 : f32 to vector<1600x64xf32>
    %16 = arith.mulf %15, %14 : vector<1600x64xf32>
    %17 = arith.maximumf %14, %16 : vector<1600x64xf32>
    %18 = vector.shape_cast %17 : vector<1600x64xf32> to vector<10x10x16x64xf32>
    %19 = vector.shape_cast %18 : vector<10x10x16x64xf32> to vector<5x2x5x2x16x64xf32>
    %20 = vector.extract_strided_slice %19 {offsets = [0, 0, 0, 0, 0, 0], sizes = [5, 1, 5, 1, 16, 64], strides = [1, 1, 1, 1, 1, 1]} : vector<5x2x5x2x16x64xf32> to vector<5x1x5x1x16x64xf32>
    %21 = vector.shape_cast %20 : vector<5x1x5x1x16x64xf32> to vector<5x5x16x64xf32>
    %22 = vector.extract_strided_slice %19 {offsets = [0, 0, 0, 1, 0, 0], sizes = [5, 1, 5, 1, 16, 64], strides = [1, 1, 1, 1, 1, 1]} : vector<5x2x5x2x16x64xf32> to vector<5x1x5x1x16x64xf32>
    %23 = vector.shape_cast %22 : vector<5x1x5x1x16x64xf32> to vector<5x5x16x64xf32>
    %24 = vector.extract_strided_slice %19 {offsets = [0, 1, 0, 0, 0, 0], sizes = [5, 1, 5, 1, 16, 64], strides = [1, 1, 1, 1, 1, 1]} : vector<5x2x5x2x16x64xf32> to vector<5x1x5x1x16x64xf32>
    %25 = vector.shape_cast %24 : vector<5x1x5x1x16x64xf32> to vector<5x5x16x64xf32>
    %26 = vector.extract_strided_slice %19 {offsets = [0, 1, 0, 1, 0, 0], sizes = [5, 1, 5, 1, 16, 64], strides = [1, 1, 1, 1, 1, 1]} : vector<5x2x5x2x16x64xf32> to vector<5x1x5x1x16x64xf32>
    %27 = vector.shape_cast %26 : vector<5x1x5x1x16x64xf32> to vector<5x5x16x64xf32>
    %28 = arith.maximumf %21, %23 : vector<5x5x16x64xf32>
    %29 = arith.maximumf %28, %25 : vector<5x5x16x64xf32>
    %30 = arith.maximumf %29, %27 : vector<5x5x16x64xf32>
    %c0_9 = arith.constant 0 : index
    %c0_10 = arith.constant 0 : index
    %c0_11 = arith.constant 0 : index
    %c0_12 = arith.constant 0 : index
    %31 = vector.load %arg7[%c0_9, %c0_10, %c0_11, %c0_12] : memref<3x3x64x32xbf16, #tpu.memory_space<vmem>>, vector<3x3x64x32xbf16>
    %cst_13 = arith.constant 0.000000e+00 : f32
    %32 = vector.broadcast %cst_13 : f32 to vector<5x1x16x64xf32>
    %cst_14 = arith.constant 0.000000e+00 : f32
    %33 = vector.broadcast %cst_14 : f32 to vector<5x2x16x64xf32>
    %34 = tpu.concatenate %32, %30, %33 in 1 : vector<5x1x16x64xf32>, vector<5x5x16x64xf32>, vector<5x2x16x64xf32> -> vector<5x8x16x64xf32>
    %cst_15 = arith.constant 0.000000e+00 : f32
    %35 = vector.broadcast %cst_15 : f32 to vector<1x8x16x64xf32>
    %cst_16 = arith.constant 0.000000e+00 : f32
    %36 = vector.broadcast %cst_16 : f32 to vector<2x8x16x64xf32>
    %37 = tpu.concatenate %35, %34, %36 in 0 : vector<1x8x16x64xf32>, vector<5x8x16x64xf32>, vector<2x8x16x64xf32> -> vector<8x8x16x64xf32>
    %38 = arith.truncf %37 : vector<8x8x16x64xf32> to vector<8x8x16x64xbf16>
    %39 = vector.shape_cast %38 : vector<8x8x16x64xbf16> to vector<4x2x4x2x16x64xbf16>
    %cst_17 = arith.constant 0.000000e+00 : f32
    %40 = vector.broadcast %cst_17 : f32 to vector<144x32xf32>
    %41 = vector.extract_strided_slice %39 {offsets = [0, 0, 0, 0, 0, 0], sizes = [4, 1, 4, 1, 16, 64], strides = [1, 1, 1, 1, 1, 1]} : vector<4x2x4x2x16x64xbf16> to vector<4x1x4x1x16x64xbf16>
    %42 = vector.shape_cast %41 : vector<4x1x4x1x16x64xbf16> to vector<4x4x16x64xbf16>
    %43 = vector.extract_strided_slice %42 {offsets = [0, 0, 0, 0], sizes = [3, 3, 16, 64], strides = [1, 1, 1, 1]} : vector<4x4x16x64xbf16> to vector<3x3x16x64xbf16>
    %44 = vector.shape_cast %43 : vector<3x3x16x64xbf16> to vector<144x64xbf16>
    %45 = vector.extract_strided_slice %31 {offsets = [0, 0, 0, 0], sizes = [1, 1, 64, 32], strides = [1, 1, 1, 1]} : vector<3x3x64x32xbf16> to vector<1x1x64x32xbf16>
    %46 = vector.shape_cast %45 : vector<1x1x64x32xbf16> to vector<64x32xbf16>
    %cst_18 = arith.constant dense<0.000000e+00> : vector<144x32xf32>
    %47 = tpu.matmul %44, %46, %cst_18 {dimension_numbers = #tpu.dot_dimension_numbers<[1], [0], [0], [1], [0, 0, 1, 1], [], []>} : vector<144x64xbf16>, vector<64x32xbf16>, vector<144x32xf32> -> vector<144x32xf32>
    %48 = arith.addf %40, %47 : vector<144x32xf32>
    %49 = vector.extract_strided_slice %39 {offsets = [0, 0, 0, 1, 0, 0], sizes = [4, 1, 4, 1, 16, 64], strides = [1, 1, 1, 1, 1, 1]} : vector<4x2x4x2x16x64xbf16> to vector<4x1x4x1x16x64xbf16>
    %50 = vector.shape_cast %49 : vector<4x1x4x1x16x64xbf16> to vector<4x4x16x64xbf16>
    %51 = vector.extract_strided_slice %50 {offsets = [0, 0, 0, 0], sizes = [3, 3, 16, 64], strides = [1, 1, 1, 1]} : vector<4x4x16x64xbf16> to vector<3x3x16x64xbf16>
    %52 = vector.shape_cast %51 : vector<3x3x16x64xbf16> to vector<144x64xbf16>
    %53 = vector.extract_strided_slice %31 {offsets = [0, 1, 0, 0], sizes = [1, 1, 64, 32], strides = [1, 1, 1, 1]} : vector<3x3x64x32xbf16> to vector<1x1x64x32xbf16>
    %54 = vector.shape_cast %53 : vector<1x1x64x32xbf16> to vector<64x32xbf16>
    %cst_19 = arith.constant dense<0.000000e+00> : vector<144x32xf32>
    %55 = tpu.matmul %52, %54, %cst_19 {dimension_numbers = #tpu.dot_dimension_numbers<[1], [0], [0], [1], [0, 0, 1, 1], [], []>} : vector<144x64xbf16>, vector<64x32xbf16>, vector<144x32xf32> -> vector<144x32xf32>
    %56 = arith.addf %48, %55 : vector<144x32xf32>
    %57 = vector.extract_strided_slice %39 {offsets = [0, 0, 0, 0, 0, 0], sizes = [4, 1, 4, 1, 16, 64], strides = [1, 1, 1, 1, 1, 1]} : vector<4x2x4x2x16x64xbf16> to vector<4x1x4x1x16x64xbf16>
    %58 = vector.shape_cast %57 : vector<4x1x4x1x16x64xbf16> to vector<4x4x16x64xbf16>
    %59 = vector.extract_strided_slice %58 {offsets = [0, 1, 0, 0], sizes = [3, 3, 16, 64], strides = [1, 1, 1, 1]} : vector<4x4x16x64xbf16> to vector<3x3x16x64xbf16>
    %60 = vector.shape_cast %59 : vector<3x3x16x64xbf16> to vector<144x64xbf16>
    %61 = vector.extract_strided_slice %31 {offsets = [0, 2, 0, 0], sizes = [1, 1, 64, 32], strides = [1, 1, 1, 1]} : vector<3x3x64x32xbf16> to vector<1x1x64x32xbf16>
    %62 = vector.shape_cast %61 : vector<1x1x64x32xbf16> to vector<64x32xbf16>
    %cst_20 = arith.constant dense<0.000000e+00> : vector<144x32xf32>
    %63 = tpu.matmul %60, %62, %cst_20 {dimension_numbers = #tpu.dot_dimension_numbers<[1], [0], [0], [1], [0, 0, 1, 1], [], []>} : vector<144x64xbf16>, vector<64x32xbf16>, vector<144x32xf32> -> vector<144x32xf32>
    %64 = arith.addf %56, %63 : vector<144x32xf32>
    %65 = vector.extract_strided_slice %39 {offsets = [0, 1, 0, 0, 0, 0], sizes = [4, 1, 4, 1, 16, 64], strides = [1, 1, 1, 1, 1, 1]} : vector<4x2x4x2x16x64xbf16> to vector<4x1x4x1x16x64xbf16>
    %66 = vector.shape_cast %65 : vector<4x1x4x1x16x64xbf16> to vector<4x4x16x64xbf16>
    %67 = vector.extract_strided_slice %66 {offsets = [0, 0, 0, 0], sizes = [3, 3, 16, 64], strides = [1, 1, 1, 1]} : vector<4x4x16x64xbf16> to vector<3x3x16x64xbf16>
    %68 = vector.shape_cast %67 : vector<3x3x16x64xbf16> to vector<144x64xbf16>
    %69 = vector.extract_strided_slice %31 {offsets = [1, 0, 0, 0], sizes = [1, 1, 64, 32], strides = [1, 1, 1, 1]} : vector<3x3x64x32xbf16> to vector<1x1x64x32xbf16>
    %70 = vector.shape_cast %69 : vector<1x1x64x32xbf16> to vector<64x32xbf16>
    %cst_21 = arith.constant dense<0.000000e+00> : vector<144x32xf32>
    %71 = tpu.matmul %68, %70, %cst_21 {dimension_numbers = #tpu.dot_dimension_numbers<[1], [0], [0], [1], [0, 0, 1, 1], [], []>} : vector<144x64xbf16>, vector<64x32xbf16>, vector<144x32xf32> -> vector<144x32xf32>
    %72 = arith.addf %64, %71 : vector<144x32xf32>
    %73 = vector.extract_strided_slice %39 {offsets = [0, 1, 0, 1, 0, 0], sizes = [4, 1, 4, 1, 16, 64], strides = [1, 1, 1, 1, 1, 1]} : vector<4x2x4x2x16x64xbf16> to vector<4x1x4x1x16x64xbf16>
    %74 = vector.shape_cast %73 : vector<4x1x4x1x16x64xbf16> to vector<4x4x16x64xbf16>
    %75 = vector.extract_strided_slice %74 {offsets = [0, 0, 0, 0], sizes = [3, 3, 16, 64], strides = [1, 1, 1, 1]} : vector<4x4x16x64xbf16> to vector<3x3x16x64xbf16>
    %76 = vector.shape_cast %75 : vector<3x3x16x64xbf16> to vector<144x64xbf16>
    %77 = vector.extract_strided_slice %31 {offsets = [1, 1, 0, 0], sizes = [1, 1, 64, 32], strides = [1, 1, 1, 1]} : vector<3x3x64x32xbf16> to vector<1x1x64x32xbf16>
    %78 = vector.shape_cast %77 : vector<1x1x64x32xbf16> to vector<64x32xbf16>
    %cst_22 = arith.constant dense<0.000000e+00> : vector<144x32xf32>
    %79 = tpu.matmul %76, %78, %cst_22 {dimension_numbers = #tpu.dot_dimension_numbers<[1], [0], [0], [1], [0, 0, 1, 1], [], []>} : vector<144x64xbf16>, vector<64x32xbf16>, vector<144x32xf32> -> vector<144x32xf32>
    %80 = arith.addf %72, %79 : vector<144x32xf32>
    %81 = vector.extract_strided_slice %39 {offsets = [0, 1, 0, 0, 0, 0], sizes = [4, 1, 4, 1, 16, 64], strides = [1, 1, 1, 1, 1, 1]} : vector<4x2x4x2x16x64xbf16> to vector<4x1x4x1x16x64xbf16>
    %82 = vector.shape_cast %81 : vector<4x1x4x1x16x64xbf16> to vector<4x4x16x64xbf16>
    %83 = vector.extract_strided_slice %82 {offsets = [0, 1, 0, 0], sizes = [3, 3, 16, 64], strides = [1, 1, 1, 1]} : vector<4x4x16x64xbf16> to vector<3x3x16x64xbf16>
    %84 = vector.shape_cast %83 : vector<3x3x16x64xbf16> to vector<144x64xbf16>
    %85 = vector.extract_strided_slice %31 {offsets = [1, 2, 0, 0], sizes = [1, 1, 64, 32], strides = [1, 1, 1, 1]} : vector<3x3x64x32xbf16> to vector<1x1x64x32xbf16>
    %86 = vector.shape_cast %85 : vector<1x1x64x32xbf16> to vector<64x32xbf16>
    %cst_23 = arith.constant dense<0.000000e+00> : vector<144x32xf32>
    %87 = tpu.matmul %84, %86, %cst_23 {dimension_numbers = #tpu.dot_dimension_numbers<[1], [0], [0], [1], [0, 0, 1, 1], [], []>} : vector<144x64xbf16>, vector<64x32xbf16>, vector<144x32xf32> -> vector<144x32xf32>
    %88 = arith.addf %80, %87 : vector<144x32xf32>
    %89 = vector.extract_strided_slice %39 {offsets = [0, 0, 0, 0, 0, 0], sizes = [4, 1, 4, 1, 16, 64], strides = [1, 1, 1, 1, 1, 1]} : vector<4x2x4x2x16x64xbf16> to vector<4x1x4x1x16x64xbf16>
    %90 = vector.shape_cast %89 : vector<4x1x4x1x16x64xbf16> to vector<4x4x16x64xbf16>
    %91 = vector.extract_strided_slice %90 {offsets = [1, 0, 0, 0], sizes = [3, 3, 16, 64], strides = [1, 1, 1, 1]} : vector<4x4x16x64xbf16> to vector<3x3x16x64xbf16>
    %92 = vector.shape_cast %91 : vector<3x3x16x64xbf16> to vector<144x64xbf16>
    %93 = vector.extract_strided_slice %31 {offsets = [2, 0, 0, 0], sizes = [1, 1, 64, 32], strides = [1, 1, 1, 1]} : vector<3x3x64x32xbf16> to vector<1x1x64x32xbf16>
    %94 = vector.shape_cast %93 : vector<1x1x64x32xbf16> to vector<64x32xbf16>
    %cst_24 = arith.constant dense<0.000000e+00> : vector<144x32xf32>
    %95 = tpu.matmul %92, %94, %cst_24 {dimension_numbers = #tpu.dot_dimension_numbers<[1], [0], [0], [1], [0, 0, 1, 1], [], []>} : vector<144x64xbf16>, vector<64x32xbf16>, vector<144x32xf32> -> vector<144x32xf32>
    %96 = arith.addf %88, %95 : vector<144x32xf32>
    %97 = vector.extract_strided_slice %39 {offsets = [0, 0, 0, 1, 0, 0], sizes = [4, 1, 4, 1, 16, 64], strides = [1, 1, 1, 1, 1, 1]} : vector<4x2x4x2x16x64xbf16> to vector<4x1x4x1x16x64xbf16>
    %98 = vector.shape_cast %97 : vector<4x1x4x1x16x64xbf16> to vector<4x4x16x64xbf16>
    %99 = vector.extract_strided_slice %98 {offsets = [1, 0, 0, 0], sizes = [3, 3, 16, 64], strides = [1, 1, 1, 1]} : vector<4x4x16x64xbf16> to vector<3x3x16x64xbf16>
    %100 = vector.shape_cast %99 : vector<3x3x16x64xbf16> to vector<144x64xbf16>
    %101 = vector.extract_strided_slice %31 {offsets = [2, 1, 0, 0], sizes = [1, 1, 64, 32], strides = [1, 1, 1, 1]} : vector<3x3x64x32xbf16> to vector<1x1x64x32xbf16>
    %102 = vector.shape_cast %101 : vector<1x1x64x32xbf16> to vector<64x32xbf16>
    %cst_25 = arith.constant dense<0.000000e+00> : vector<144x32xf32>
    %103 = tpu.matmul %100, %102, %cst_25 {dimension_numbers = #tpu.dot_dimension_numbers<[1], [0], [0], [1], [0, 0, 1, 1], [], []>} : vector<144x64xbf16>, vector<64x32xbf16>, vector<144x32xf32> -> vector<144x32xf32>
    %104 = arith.addf %96, %103 : vector<144x32xf32>
    %105 = vector.extract_strided_slice %39 {offsets = [0, 0, 0, 0, 0, 0], sizes = [4, 1, 4, 1, 16, 64], strides = [1, 1, 1, 1, 1, 1]} : vector<4x2x4x2x16x64xbf16> to vector<4x1x4x1x16x64xbf16>
    %106 = vector.shape_cast %105 : vector<4x1x4x1x16x64xbf16> to vector<4x4x16x64xbf16>
    %107 = vector.extract_strided_slice %106 {offsets = [1, 1, 0, 0], sizes = [3, 3, 16, 64], strides = [1, 1, 1, 1]} : vector<4x4x16x64xbf16> to vector<3x3x16x64xbf16>
    %108 = vector.shape_cast %107 : vector<3x3x16x64xbf16> to vector<144x64xbf16>
    %109 = vector.extract_strided_slice %31 {offsets = [2, 2, 0, 0], sizes = [1, 1, 64, 32], strides = [1, 1, 1, 1]} : vector<3x3x64x32xbf16> to vector<1x1x64x32xbf16>
    %110 = vector.shape_cast %109 : vector<1x1x64x32xbf16> to vector<64x32xbf16>
    %cst_26 = arith.constant dense<0.000000e+00> : vector<144x32xf32>
    %111 = tpu.matmul %108, %110, %cst_26 {dimension_numbers = #tpu.dot_dimension_numbers<[1], [0], [0], [1], [0, 0, 1, 1], [], []>} : vector<144x64xbf16>, vector<64x32xbf16>, vector<144x32xf32> -> vector<144x32xf32>
    %112 = arith.addf %104, %111 : vector<144x32xf32>
    %113 = vector.broadcast %6 : vector<1x32xf32> to vector<144x32xf32>
    %114 = arith.addf %112, %113 : vector<144x32xf32>
    %cst_27 = arith.constant 2.000000e-01 : f32
    %115 = vector.broadcast %cst_27 : f32 to vector<144x32xf32>
    %116 = arith.mulf %115, %114 : vector<144x32xf32>
    %117 = arith.maximumf %114, %116 : vector<144x32xf32>
    %118 = vector.shape_cast %117 : vector<144x32xf32> to vector<3x3x16x32xf32>
    %119 = vector.extract_strided_slice %118 {offsets = [0, 0, 0, 0], sizes = [2, 2, 16, 32], strides = [1, 1, 1, 1]} : vector<3x3x16x32xf32> to vector<2x2x16x32xf32>
    %120 = vector.extract_strided_slice %118 {offsets = [0, 1, 0, 0], sizes = [2, 2, 16, 32], strides = [1, 1, 1, 1]} : vector<3x3x16x32xf32> to vector<2x2x16x32xf32>
    %121 = vector.extract_strided_slice %118 {offsets = [1, 0, 0, 0], sizes = [2, 2, 16, 32], strides = [1, 1, 1, 1]} : vector<3x3x16x32xf32> to vector<2x2x16x32xf32>
    %122 = vector.extract_strided_slice %118 {offsets = [1, 1, 0, 0], sizes = [2, 2, 16, 32], strides = [1, 1, 1, 1]} : vector<3x3x16x32xf32> to vector<2x2x16x32xf32>
    %123 = arith.maximumf %119, %120 : vector<2x2x16x32xf32>
    %124 = arith.maximumf %123, %121 : vector<2x2x16x32xf32>
    %125 = arith.maximumf %124, %122 : vector<2x2x16x32xf32>
    %126 = vector.extract_strided_slice %125 {offsets = [0, 0, 0, 0], sizes = [1, 1, 16, 32], strides = [1, 1, 1, 1]} : vector<2x2x16x32xf32> to vector<1x1x16x32xf32>
    %127 = vector.shape_cast %126 : vector<1x1x16x32xf32> to vector<16x32xf32>
    %128 = vector.extract_strided_slice %125 {offsets = [0, 1, 0, 0], sizes = [1, 1, 16, 32], strides = [1, 1, 1, 1]} : vector<2x2x16x32xf32> to vector<1x1x16x32xf32>
    %129 = vector.shape_cast %128 : vector<1x1x16x32xf32> to vector<16x32xf32>
    %130 = vector.extract_strided_slice %125 {offsets = [1, 0, 0, 0], sizes = [1, 1, 16, 32], strides = [1, 1, 1, 1]} : vector<2x2x16x32xf32> to vector<1x1x16x32xf32>
    %131 = vector.shape_cast %130 : vector<1x1x16x32xf32> to vector<16x32xf32>
    %132 = vector.extract_strided_slice %125 {offsets = [1, 1, 0, 0], sizes = [1, 1, 16, 32], strides = [1, 1, 1, 1]} : vector<2x2x16x32xf32> to vector<1x1x16x32xf32>
    %133 = vector.shape_cast %132 : vector<1x1x16x32xf32> to vector<16x32xf32>
    %134 = tpu.concatenate %127, %129, %131, %133 in 1 : vector<16x32xf32>, vector<16x32xf32>, vector<16x32xf32>, vector<16x32xf32> -> vector<16x128xf32>
    %c0_28 = arith.constant 0 : index
    %c0_29 = arith.constant 0 : index
    %135 = vector.load %arg8[%c0_28, %c0_29] : memref<128x64xf32, #tpu.memory_space<vmem>>, vector<128x64xf32>
    %cst_30 = arith.constant dense<0.000000e+00> : vector<16x64xf32>
    %136 = tpu.matmul %134, %135, %cst_30 {dimension_numbers = #tpu.dot_dimension_numbers<[1], [0], [0], [1], [0, 0, 1, 1], [], []>} : vector<16x128xf32>, vector<128x64xf32>, vector<16x64xf32> -> vector<16x64xf32>
    %137 = vector.broadcast %0 : f32 to vector<1x64xf32>
    %138 = arith.mulf %137, %5 : vector<1x64xf32>
    %139 = vector.broadcast %138 : vector<1x64xf32> to vector<16x64xf32>
    %140 = arith.addf %136, %139 : vector<16x64xf32>
    %141 = vector.broadcast %4 : vector<1x64xf32> to vector<16x64xf32>
    %142 = arith.addf %140, %141 : vector<16x64xf32>
    %cst_31 = arith.constant 2.000000e-01 : f32
    %143 = vector.broadcast %cst_31 : f32 to vector<16x64xf32>
    %144 = arith.mulf %143, %142 : vector<16x64xf32>
    %145 = arith.maximumf %142, %144 : vector<16x64xf32>
    %c0_32 = arith.constant 0 : index
    %c0_33 = arith.constant 0 : index
    %146 = vector.load %arg9[%c0_32, %c0_33] : memref<64x10xf32, #tpu.memory_space<vmem>>, vector<64x10xf32>
    %cst_34 = arith.constant dense<0.000000e+00> : vector<16x10xf32>
    %147 = tpu.matmul %145, %146, %cst_34 {dimension_numbers = #tpu.dot_dimension_numbers<[1], [0], [0], [1], [0, 0, 1, 1], [], []>} : vector<16x64xf32>, vector<64x10xf32>, vector<16x10xf32> -> vector<16x10xf32>
    %148 = vector.broadcast %7 : vector<1x10xf32> to vector<16x10xf32>
    %149 = arith.addf %147, %148 : vector<16x10xf32>
    %cst_35 = arith.constant dense<0xFF800000> : vector<16xf32>
    %150 = vector.multi_reduction <maximumf>, %149, %cst_35 [1] : vector<16x10xf32> to vector<16xf32>
    %151 = vector.shape_cast %150 : vector<16xf32> to vector<16x1xf32>
    %152 = vector.broadcast %151 : vector<16x1xf32> to vector<16x10xf32>
    %153 = arith.subf %149, %152 : vector<16x10xf32>
    %154 = math.exp %153 : vector<16x10xf32>
    %cst_36 = arith.constant dense<0.000000e+00> : vector<16xf32>
    %155 = vector.multi_reduction <add>, %154, %cst_36 [1] : vector<16x10xf32> to vector<16xf32>
    %156 = vector.shape_cast %155 : vector<16xf32> to vector<16x1xf32>
    %157 = vector.broadcast %156 : vector<16x1xf32> to vector<16x10xf32>
    %158 = arith.divf %154, %157 : vector<16x10xf32>
    %159 = math.log %156 : vector<16x1xf32>
    %160 = vector.broadcast %159 : vector<16x1xf32> to vector<16x10xf32>
    %161 = arith.subf %153, %160 : vector<16x10xf32>
    %162 = arith.mulf %158, %161 : vector<16x10xf32>
    %cst_37 = arith.constant dense<0.000000e+00> : vector<16xf32>
    %163 = vector.multi_reduction <add>, %162, %cst_37 [1] : vector<16x10xf32> to vector<16xf32>
    %164 = vector.shape_cast %163 : vector<16xf32> to vector<16x1xf32>
    %c0_38 = arith.constant 0 : index
    %c0_39 = arith.constant 0 : index
    %165 = vector.load %arg18[%c0_38, %c0_39] : memref<16x1xf32, #tpu.memory_space<vmem>>, vector<16x1xf32>
    tpu.vector_store %arg18[%c0_38, %c0_39], %164 {strides = array<i32>} : memref<16x1xf32, #tpu.memory_space<vmem>>, vector<16x1xf32>,
    %c0_40 = arith.constant 0 : index
    %c0_41 = arith.constant 0 : index
    %166 = vector.load %arg3[%c0_40, %c0_41] : memref<16x10xf32, #tpu.memory_space<vmem>>, vector<16x10xf32>
    %167 = arith.addf %149, %166 : vector<16x10xf32>
    %cst_42 = arith.constant dense<0xFF800000> : vector<16xf32>
    %168 = vector.multi_reduction <maximumf>, %167, %cst_42 [1] : vector<16x10xf32> to vector<16xf32>
    %169 = vector.shape_cast %168 : vector<16xf32> to vector<16x1xf32>
    %170 = vector.broadcast %169 : vector<16x1xf32> to vector<16x10xf32>
    %171 = arith.cmpf oge, %167, %170 : vector<16x10xf32>
    %172 = arith.extui %171 : vector<16x10xi1> to vector<16x10xi32>
    %173 = arith.sitofp %172 : vector<16x10xi32> to vector<16x10xf32>
    %c0_43 = arith.constant 0 : index
    %c0_44 = arith.constant 0 : index
    %174 = vector.load %arg11[%c0_43, %c0_44] : memref<22x128xf32, #tpu.memory_space<vmem>>, vector<22x128xf32>
    %175 = vector.extract_strided_slice %174 {offsets = [0, 0], sizes = [10, 128], strides = [1, 1]} : vector<22x128xf32> to vector<10x128xf32>
    %cst_45 = arith.constant dense<0.000000e+00> : vector<16x128xf32>
    %176 = tpu.matmul %173, %175, %cst_45 {dimension_numbers = #tpu.dot_dimension_numbers<[1], [0], [0], [1], [0, 0, 1, 1], [], []>} : vector<16x10xf32>, vector<10x128xf32>, vector<16x128xf32> -> vector<16x128xf32>
    %c0_46 = arith.constant 0 : index
    %c0_47 = arith.constant 0 : index
    %177 = vector.load %arg4[%c0_46, %c0_47] : memref<16x11xf32, #tpu.memory_space<vmem>>, vector<16x11xf32>
    %178 = vector.extract_strided_slice %174 {offsets = [10, 0], sizes = [11, 128], strides = [1, 1]} : vector<22x128xf32> to vector<11x128xf32>
    %cst_48 = arith.constant dense<0.000000e+00> : vector<16x128xf32>
    %179 = tpu.matmul %177, %178, %cst_48 {dimension_numbers = #tpu.dot_dimension_numbers<[1], [0], [0], [1], [0, 0, 1, 1], [], []>} : vector<16x11xf32>, vector<11x128xf32>, vector<16x128xf32> -> vector<16x128xf32>
    %180 = arith.addf %176, %179 : vector<16x128xf32>
    %181 = vector.extract_strided_slice %174 {offsets = [21, 0], sizes = [1, 128], strides = [1, 1]} : vector<22x128xf32> to vector<1x128xf32>
    %182 = vector.broadcast %181 : vector<1x128xf32> to vector<16x128xf32>
    %183 = arith.addf %180, %182 : vector<16x128xf32>
    %cst_49 = arith.constant 0.000000e+00 : f32
    %184 = vector.broadcast %cst_49 : f32 to vector<16x128xf32>
    %185 = arith.maximumf %183, %184 : vector<16x128xf32>
    %186 = tpu.iota {dimensions = array<i32: 1>} : vector<1x128xi32>
    %c0_i32 = arith.constant 0 : i32
    %187 = vector.broadcast %c0_i32 : i32 to vector<1x128xi32>
    %188 = arith.cmpi eq, %186, %187 : vector<1x128xi32>
    %189 = arith.extui %188 : vector<1x128xi1> to vector<1x128xi32>
    %190 = arith.sitofp %189 : vector<1x128xi32> to vector<1x128xf32>
    %191 = vector.broadcast %0 : f32 to vector<1x128xf32>
    %192 = arith.mulf %191, %190 : vector<1x128xf32>
    %193 = vector.broadcast %192 : vector<1x128xf32> to vector<16x128xf32>
    %194 = arith.addf %185, %193 : vector<16x128xf32>
    %195 = vector.extract_strided_slice %194 {offsets = [0, 0], sizes = [16, 32], strides = [1, 1]} : vector<16x128xf32> to vector<16x32xf32>
    %196 = vector.extract_strided_slice %194 {offsets = [0, 32], sizes = [16, 32], strides = [1, 1]} : vector<16x128xf32> to vector<16x32xf32>
    %197 = vector.shape_cast %195 : vector<16x32xf32> to vector<1x16x32xf32>
    %198 = vector.shape_cast %196 : vector<16x32xf32> to vector<1x16x32xf32>
    %199 = tpu.concatenate %197, %198 in 0 : vector<1x16x32xf32>, vector<1x16x32xf32> -> vector<2x16x32xf32>
    %200 = vector.extract_strided_slice %194 {offsets = [0, 64], sizes = [16, 32], strides = [1, 1]} : vector<16x128xf32> to vector<16x32xf32>
    %201 = vector.extract_strided_slice %194 {offsets = [0, 96], sizes = [16, 32], strides = [1, 1]} : vector<16x128xf32> to vector<16x32xf32>
    %202 = vector.shape_cast %200 : vector<16x32xf32> to vector<1x16x32xf32>
    %203 = vector.shape_cast %201 : vector<16x32xf32> to vector<1x16x32xf32>
    %204 = tpu.concatenate %202, %203 in 0 : vector<1x16x32xf32>, vector<1x16x32xf32> -> vector<2x16x32xf32>
    %205 = vector.shape_cast %199 : vector<2x16x32xf32> to vector<1x2x16x32xf32>
    %206 = vector.shape_cast %204 : vector<2x16x32xf32> to vector<1x2x16x32xf32>
    %207 = tpu.concatenate %205, %206 in 0 : vector<1x2x16x32xf32>, vector<1x2x16x32xf32> -> vector<2x2x16x32xf32>
    %c0_50 = arith.constant 0 : index
    %c0_51 = arith.constant 0 : index
    %208 = vector.load %arg15[%c0_50, %c0_51] : memref<2x144xf32, #tpu.memory_space<vmem>>, vector<2x144xf32>
    %c0_52 = arith.constant 0 : index
    %c0_53 = arith.constant 0 : index
    %c0_54 = arith.constant 0 : index
    %c0_55 = arith.constant 0 : index
    %209 = vector.load %arg12[%c0_52, %c0_53, %c0_54, %c0_55] : memref<2x2x32x128xbf16, #tpu.memory_space<vmem>>, vector<2x2x32x128xbf16>
    %c0_56 = arith.constant 0 : index
    %c0_57 = arith.constant 0 : index
    %c0_58 = arith.constant 0 : index
    %c0_59 = arith.constant 0 : index
    %210 = vector.load %arg13[%c0_56, %c0_57, %c0_58, %c0_59] : memref<2x2x32x128xbf16, #tpu.memory_space<vmem>>, vector<2x2x32x128xbf16>
    %211 = vector.extract_strided_slice %208 {offsets = [0, 0], sizes = [1, 128], strides = [1, 1]} : vector<2x144xf32> to vector<1x128xf32>
    %cst_60 = arith.constant 0.000000e+00 : f32
    %212 = vector.broadcast %cst_60 : f32 to vector<2x1x16x32xf32>
    %cst_61 = arith.constant 0.000000e+00 : f32
    %213 = vector.broadcast %cst_61 : f32 to vector<2x1x16x32xf32>
    %214 = tpu.concatenate %212, %125, %213 in 1 : vector<2x1x16x32xf32>, vector<2x2x16x32xf32>, vector<2x1x16x32xf32> -> vector<2x4x16x32xf32>
    %cst_62 = arith.constant 0.000000e+00 : f32
    %215 = vector.broadcast %cst_62 : f32 to vector<1x4x16x32xf32>
    %cst_63 = arith.constant 0.000000e+00 : f32
    %216 = vector.broadcast %cst_63 : f32 to vector<1x4x16x32xf32>
    %217 = tpu.concatenate %215, %214, %216 in 0 : vector<1x4x16x32xf32>, vector<2x4x16x32xf32>, vector<1x4x16x32xf32> -> vector<4x4x16x32xf32>
    %218 = arith.truncf %217 : vector<4x4x16x32xf32> to vector<4x4x16x32xbf16>
    %cst_64 = arith.constant 0.000000e+00 : f32
    %219 = vector.broadcast %cst_64 : f32 to vector<2x1x16x32xf32>
    %cst_65 = arith.constant 0.000000e+00 : f32
    %220 = vector.broadcast %cst_65 : f32 to vector<2x1x16x32xf32>
    %221 = tpu.concatenate %219, %207, %220 in 1 : vector<2x1x16x32xf32>, vector<2x2x16x32xf32>, vector<2x1x16x32xf32> -> vector<2x4x16x32xf32>
    %cst_66 = arith.constant 0.000000e+00 : f32
    %222 = vector.broadcast %cst_66 : f32 to vector<1x4x16x32xf32>
    %cst_67 = arith.constant 0.000000e+00 : f32
    %223 = vector.broadcast %cst_67 : f32 to vector<1x4x16x32xf32>
    %224 = tpu.concatenate %222, %221, %223 in 0 : vector<1x4x16x32xf32>, vector<2x4x16x32xf32>, vector<1x4x16x32xf32> -> vector<4x4x16x32xf32>
    %225 = arith.truncf %224 : vector<4x4x16x32xf32> to vector<4x4x16x32xbf16>
    %cst_68 = arith.constant 0.000000e+00 : f32
    %226 = vector.broadcast %cst_68 : f32 to vector<144x128xf32>
    %227 = vector.extract_strided_slice %218 {offsets = [1, 1, 0, 0], sizes = [3, 3, 16, 32], strides = [1, 1, 1, 1]} : vector<4x4x16x32xbf16> to vector<3x3x16x32xbf16>
    %228 = vector.shape_cast %227 : vector<3x3x16x32xbf16> to vector<144x32xbf16>
    %229 = vector.extract_strided_slice %209 {offsets = [0, 0, 0, 0], sizes = [1, 1, 32, 128], strides = [1, 1, 1, 1]} : vector<2x2x32x128xbf16> to vector<1x1x32x128xbf16>
    %230 = vector.shape_cast %229 : vector<1x1x32x128xbf16> to vector<32x128xbf16>
    %cst_69 = arith.constant dense<0.000000e+00> : vector<144x128xf32>
    %231 = tpu.matmul %228, %230, %cst_69 {dimension_numbers = #tpu.dot_dimension_numbers<[1], [0], [0], [1], [0, 0, 1, 1], [], []>} : vector<144x32xbf16>, vector<32x128xbf16>, vector<144x128xf32> -> vector<144x128xf32>
    %232 = arith.addf %226, %231 : vector<144x128xf32>
    %233 = vector.extract_strided_slice %225 {offsets = [1, 1, 0, 0], sizes = [3, 3, 16, 32], strides = [1, 1, 1, 1]} : vector<4x4x16x32xbf16> to vector<3x3x16x32xbf16>
    %234 = vector.shape_cast %233 : vector<3x3x16x32xbf16> to vector<144x32xbf16>
    %235 = vector.extract_strided_slice %210 {offsets = [0, 0, 0, 0], sizes = [1, 1, 32, 128], strides = [1, 1, 1, 1]} : vector<2x2x32x128xbf16> to vector<1x1x32x128xbf16>
    %236 = vector.shape_cast %235 : vector<1x1x32x128xbf16> to vector<32x128xbf16>
    %cst_70 = arith.constant dense<0.000000e+00> : vector<144x128xf32>
    %237 = tpu.matmul %234, %236, %cst_70 {dimension_numbers = #tpu.dot_dimension_numbers<[1], [0], [0], [1], [0, 0, 1, 1], [], []>} : vector<144x32xbf16>, vector<32x128xbf16>, vector<144x128xf32> -> vector<144x128xf32>
    %238 = arith.addf %232, %237 : vector<144x128xf32>
    %239 = vector.extract_strided_slice %218 {offsets = [1, 0, 0, 0], sizes = [3, 3, 16, 32], strides = [1, 1, 1, 1]} : vector<4x4x16x32xbf16> to vector<3x3x16x32xbf16>
    %240 = vector.shape_cast %239 : vector<3x3x16x32xbf16> to vector<144x32xbf16>
    %241 = vector.extract_strided_slice %209 {offsets = [0, 1, 0, 0], sizes = [1, 1, 32, 128], strides = [1, 1, 1, 1]} : vector<2x2x32x128xbf16> to vector<1x1x32x128xbf16>
    %242 = vector.shape_cast %241 : vector<1x1x32x128xbf16> to vector<32x128xbf16>
    %cst_71 = arith.constant dense<0.000000e+00> : vector<144x128xf32>
    %243 = tpu.matmul %240, %242, %cst_71 {dimension_numbers = #tpu.dot_dimension_numbers<[1], [0], [0], [1], [0, 0, 1, 1], [], []>} : vector<144x32xbf16>, vector<32x128xbf16>, vector<144x128xf32> -> vector<144x128xf32>
    %244 = arith.addf %238, %243 : vector<144x128xf32>
    %245 = vector.extract_strided_slice %225 {offsets = [1, 0, 0, 0], sizes = [3, 3, 16, 32], strides = [1, 1, 1, 1]} : vector<4x4x16x32xbf16> to vector<3x3x16x32xbf16>
    %246 = vector.shape_cast %245 : vector<3x3x16x32xbf16> to vector<144x32xbf16>
    %247 = vector.extract_strided_slice %210 {offsets = [0, 1, 0, 0], sizes = [1, 1, 32, 128], strides = [1, 1, 1, 1]} : vector<2x2x32x128xbf16> to vector<1x1x32x128xbf16>
    %248 = vector.shape_cast %247 : vector<1x1x32x128xbf16> to vector<32x128xbf16>
    %cst_72 = arith.constant dense<0.000000e+00> : vector<144x128xf32>
    %249 = tpu.matmul %246, %248, %cst_72 {dimension_numbers = #tpu.dot_dimension_numbers<[1], [0], [0], [1], [0, 0, 1, 1], [], []>} : vector<144x32xbf16>, vector<32x128xbf16>, vector<144x128xf32> -> vector<144x128xf32>
    %250 = arith.addf %244, %249 : vector<144x128xf32>
    %251 = vector.extract_strided_slice %218 {offsets = [0, 1, 0, 0], sizes = [3, 3, 16, 32], strides = [1, 1, 1, 1]} : vector<4x4x16x32xbf16> to vector<3x3x16x32xbf16>
    %252 = vector.shape_cast %251 : vector<3x3x16x32xbf16> to vector<144x32xbf16>
    %253 = vector.extract_strided_slice %209 {offsets = [1, 0, 0, 0], sizes = [1, 1, 32, 128], strides = [1, 1, 1, 1]} : vector<2x2x32x128xbf16> to vector<1x1x32x128xbf16>
    %254 = vector.shape_cast %253 : vector<1x1x32x128xbf16> to vector<32x128xbf16>
    %cst_73 = arith.constant dense<0.000000e+00> : vector<144x128xf32>
    %255 = tpu.matmul %252, %254, %cst_73 {dimension_numbers = #tpu.dot_dimension_numbers<[1], [0], [0], [1], [0, 0, 1, 1], [], []>} : vector<144x32xbf16>, vector<32x128xbf16>, vector<144x128xf32> -> vector<144x128xf32>
    %256 = arith.addf %250, %255 : vector<144x128xf32>
    %257 = vector.extract_strided_slice %225 {offsets = [0, 1, 0, 0], sizes = [3, 3, 16, 32], strides = [1, 1, 1, 1]} : vector<4x4x16x32xbf16> to vector<3x3x16x32xbf16>
    %258 = vector.shape_cast %257 : vector<3x3x16x32xbf16> to vector<144x32xbf16>
    %259 = vector.extract_strided_slice %210 {offsets = [1, 0, 0, 0], sizes = [1, 1, 32, 128], strides = [1, 1, 1, 1]} : vector<2x2x32x128xbf16> to vector<1x1x32x128xbf16>
    %260 = vector.shape_cast %259 : vector<1x1x32x128xbf16> to vector<32x128xbf16>
    %cst_74 = arith.constant dense<0.000000e+00> : vector<144x128xf32>
    %261 = tpu.matmul %258, %260, %cst_74 {dimension_numbers = #tpu.dot_dimension_numbers<[1], [0], [0], [1], [0, 0, 1, 1], [], []>} : vector<144x32xbf16>, vector<32x128xbf16>, vector<144x128xf32> -> vector<144x128xf32>
    %262 = arith.addf %256, %261 : vector<144x128xf32>
    %263 = vector.extract_strided_slice %218 {offsets = [0, 0, 0, 0], sizes = [3, 3, 16, 32], strides = [1, 1, 1, 1]} : vector<4x4x16x32xbf16> to vector<3x3x16x32xbf16>
    %264 = vector.shape_cast %263 : vector<3x3x16x32xbf16> to vector<144x32xbf16>
    %265 = vector.extract_strided_slice %209 {offsets = [1, 1, 0, 0], sizes = [1, 1, 32, 128], strides = [1, 1, 1, 1]} : vector<2x2x32x128xbf16> to vector<1x1x32x128xbf16>
    %266 = vector.shape_cast %265 : vector<1x1x32x128xbf16> to vector<32x128xbf16>
    %cst_75 = arith.constant dense<0.000000e+00> : vector<144x128xf32>
    %267 = tpu.matmul %264, %266, %cst_75 {dimension_numbers = #tpu.dot_dimension_numbers<[1], [0], [0], [1], [0, 0, 1, 1], [], []>} : vector<144x32xbf16>, vector<32x128xbf16>, vector<144x128xf32> -> vector<144x128xf32>
    %268 = arith.addf %262, %267 : vector<144x128xf32>
    %269 = vector.extract_strided_slice %225 {offsets = [0, 0, 0, 0], sizes = [3, 3, 16, 32], strides = [1, 1, 1, 1]} : vector<4x4x16x32xbf16> to vector<3x3x16x32xbf16>
    %270 = vector.shape_cast %269 : vector<3x3x16x32xbf16> to vector<144x32xbf16>
    %271 = vector.extract_strided_slice %210 {offsets = [1, 1, 0, 0], sizes = [1, 1, 32, 128], strides = [1, 1, 1, 1]} : vector<2x2x32x128xbf16> to vector<1x1x32x128xbf16>
    %272 = vector.shape_cast %271 : vector<1x1x32x128xbf16> to vector<32x128xbf16>
    %cst_76 = arith.constant dense<0.000000e+00> : vector<144x128xf32>
    %273 = tpu.matmul %270, %272, %cst_76 {dimension_numbers = #tpu.dot_dimension_numbers<[1], [0], [0], [1], [0, 0, 1, 1], [], []>} : vector<144x32xbf16>, vector<32x128xbf16>, vector<144x128xf32> -> vector<144x128xf32>
    %274 = arith.addf %268, %273 : vector<144x128xf32>
    %275 = vector.broadcast %211 : vector<1x128xf32> to vector<144x128xf32>
    %276 = arith.addf %274, %275 : vector<144x128xf32>
    %cst_77 = arith.constant 2.000000e-01 : f32
    %277 = vector.broadcast %cst_77 : f32 to vector<144x128xf32>
    %278 = arith.mulf %277, %276 : vector<144x128xf32>
    %279 = arith.maximumf %276, %278 : vector<144x128xf32>
    %280 = vector.extract_strided_slice %279 {offsets = [0, 0], sizes = [144, 32], strides = [1, 1]} : vector<144x128xf32> to vector<144x32xf32>
    %281 = vector.shape_cast %280 : vector<144x32xf32> to vector<3x3x16x32xf32>
    %282 = vector.extract_strided_slice %279 {offsets = [0, 32], sizes = [144, 32], strides = [1, 1]} : vector<144x128xf32> to vector<144x32xf32>
    %283 = vector.shape_cast %282 : vector<144x32xf32> to vector<3x3x16x32xf32>
    %284 = vector.extract_strided_slice %279 {offsets = [0, 64], sizes = [144, 32], strides = [1, 1]} : vector<144x128xf32> to vector<144x32xf32>
    %285 = vector.shape_cast %284 : vector<144x32xf32> to vector<3x3x16x32xf32>
    %286 = vector.extract_strided_slice %279 {offsets = [0, 96], sizes = [144, 32], strides = [1, 1]} : vector<144x128xf32> to vector<144x32xf32>
    %287 = vector.shape_cast %286 : vector<144x32xf32> to vector<3x3x16x32xf32>
    %288 = vector.shape_cast %281 : vector<3x3x16x32xf32> to vector<3x1x3x16x32xf32>
    %289 = vector.shape_cast %285 : vector<3x3x16x32xf32> to vector<3x1x3x16x32xf32>
    %290 = tpu.concatenate %288, %289 in 1 : vector<3x1x3x16x32xf32>, vector<3x1x3x16x32xf32> -> vector<3x2x3x16x32xf32>
    %291 = vector.shape_cast %290 : vector<3x2x3x16x32xf32> to vector<6x3x16x32xf32>
    %292 = vector.shape_cast %283 : vector<3x3x16x32xf32> to vector<3x1x3x16x32xf32>
    %293 = vector.shape_cast %287 : vector<3x3x16x32xf32> to vector<3x1x3x16x32xf32>
    %294 = tpu.concatenate %292, %293 in 1 : vector<3x1x3x16x32xf32>, vector<3x1x3x16x32xf32> -> vector<3x2x3x16x32xf32>
    %295 = vector.shape_cast %294 : vector<3x2x3x16x32xf32> to vector<6x3x16x32xf32>
    %296 = vector.shape_cast %291 : vector<6x3x16x32xf32> to vector<6x3x1x16x32xf32>
    %297 = vector.shape_cast %295 : vector<6x3x16x32xf32> to vector<6x3x1x16x32xf32>
    %298 = tpu.concatenate %296, %297 in 2 : vector<6x3x1x16x32xf32>, vector<6x3x1x16x32xf32> -> vector<6x3x2x16x32xf32>
    %299 = vector.shape_cast %298 : vector<6x3x2x16x32xf32> to vector<6x6x16x32xf32>
    %300 = vector.extract_strided_slice %299 {offsets = [0, 0, 0, 0], sizes = [5, 5, 16, 32], strides = [1, 1, 1, 1]} : vector<6x6x16x32xf32> to vector<5x5x16x32xf32>
    %c0_78 = arith.constant 0 : index
    %c0_79 = arith.constant 0 : index
    %c0_80 = arith.constant 0 : index
    %c0_81 = arith.constant 0 : index
    %301 = vector.load %arg14[%c0_78, %c0_79, %c0_80, %c0_81] : memref<2x2x32x144xbf16, #tpu.memory_space<vmem>>, vector<2x2x32x144xbf16>
    %302 = vector.extract_strided_slice %208 {offsets = [1, 0], sizes = [1, 144], strides = [1, 1]} : vector<2x144xf32> to vector<1x144xf32>
    %cst_82 = arith.constant 0.000000e+00 : f32
    %303 = vector.broadcast %cst_82 : f32 to vector<5x1x16x32xf32>
    %cst_83 = arith.constant 0.000000e+00 : f32
    %304 = vector.broadcast %cst_83 : f32 to vector<5x1x16x32xf32>
    %305 = tpu.concatenate %303, %300, %304 in 1 : vector<5x1x16x32xf32>, vector<5x5x16x32xf32>, vector<5x1x16x32xf32> -> vector<5x7x16x32xf32>
    %cst_84 = arith.constant 0.000000e+00 : f32
    %306 = vector.broadcast %cst_84 : f32 to vector<1x7x16x32xf32>
    %cst_85 = arith.constant 0.000000e+00 : f32
    %307 = vector.broadcast %cst_85 : f32 to vector<1x7x16x32xf32>
    %308 = tpu.concatenate %306, %305, %307 in 0 : vector<1x7x16x32xf32>, vector<5x7x16x32xf32>, vector<1x7x16x32xf32> -> vector<7x7x16x32xf32>
    %309 = arith.truncf %308 : vector<7x7x16x32xf32> to vector<7x7x16x32xbf16>
    %cst_86 = arith.constant 0.000000e+00 : f32
    %310 = vector.broadcast %cst_86 : f32 to vector<576x144xf32>
    %311 = vector.extract_strided_slice %309 {offsets = [1, 1, 0, 0], sizes = [6, 6, 16, 32], strides = [1, 1, 1, 1]} : vector<7x7x16x32xbf16> to vector<6x6x16x32xbf16>
    %312 = vector.shape_cast %311 : vector<6x6x16x32xbf16> to vector<576x32xbf16>
    %313 = vector.extract_strided_slice %301 {offsets = [0, 0, 0, 0], sizes = [1, 1, 32, 144], strides = [1, 1, 1, 1]} : vector<2x2x32x144xbf16> to vector<1x1x32x144xbf16>
    %314 = vector.shape_cast %313 : vector<1x1x32x144xbf16> to vector<32x144xbf16>
    %cst_87 = arith.constant dense<0.000000e+00> : vector<576x144xf32>
    %315 = tpu.matmul %312, %314, %cst_87 {dimension_numbers = #tpu.dot_dimension_numbers<[1], [0], [0], [1], [0, 0, 1, 1], [], []>} : vector<576x32xbf16>, vector<32x144xbf16>, vector<576x144xf32> -> vector<576x144xf32>
    %316 = arith.addf %310, %315 : vector<576x144xf32>
    %317 = vector.extract_strided_slice %309 {offsets = [1, 0, 0, 0], sizes = [6, 6, 16, 32], strides = [1, 1, 1, 1]} : vector<7x7x16x32xbf16> to vector<6x6x16x32xbf16>
    %318 = vector.shape_cast %317 : vector<6x6x16x32xbf16> to vector<576x32xbf16>
    %319 = vector.extract_strided_slice %301 {offsets = [0, 1, 0, 0], sizes = [1, 1, 32, 144], strides = [1, 1, 1, 1]} : vector<2x2x32x144xbf16> to vector<1x1x32x144xbf16>
    %320 = vector.shape_cast %319 : vector<1x1x32x144xbf16> to vector<32x144xbf16>
    %cst_88 = arith.constant dense<0.000000e+00> : vector<576x144xf32>
    %321 = tpu.matmul %318, %320, %cst_88 {dimension_numbers = #tpu.dot_dimension_numbers<[1], [0], [0], [1], [0, 0, 1, 1], [], []>} : vector<576x32xbf16>, vector<32x144xbf16>, vector<576x144xf32> -> vector<576x144xf32>
    %322 = arith.addf %316, %321 : vector<576x144xf32>
    %323 = vector.extract_strided_slice %309 {offsets = [0, 1, 0, 0], sizes = [6, 6, 16, 32], strides = [1, 1, 1, 1]} : vector<7x7x16x32xbf16> to vector<6x6x16x32xbf16>
    %324 = vector.shape_cast %323 : vector<6x6x16x32xbf16> to vector<576x32xbf16>
    %325 = vector.extract_strided_slice %301 {offsets = [1, 0, 0, 0], sizes = [1, 1, 32, 144], strides = [1, 1, 1, 1]} : vector<2x2x32x144xbf16> to vector<1x1x32x144xbf16>
    %326 = vector.shape_cast %325 : vector<1x1x32x144xbf16> to vector<32x144xbf16>
    %cst_89 = arith.constant dense<0.000000e+00> : vector<576x144xf32>
    %327 = tpu.matmul %324, %326, %cst_89 {dimension_numbers = #tpu.dot_dimension_numbers<[1], [0], [0], [1], [0, 0, 1, 1], [], []>} : vector<576x32xbf16>, vector<32x144xbf16>, vector<576x144xf32> -> vector<576x144xf32>
    %328 = arith.addf %322, %327 : vector<576x144xf32>
    %329 = vector.extract_strided_slice %309 {offsets = [0, 0, 0, 0], sizes = [6, 6, 16, 32], strides = [1, 1, 1, 1]} : vector<7x7x16x32xbf16> to vector<6x6x16x32xbf16>
    %330 = vector.shape_cast %329 : vector<6x6x16x32xbf16> to vector<576x32xbf16>
    %331 = vector.extract_strided_slice %301 {offsets = [1, 1, 0, 0], sizes = [1, 1, 32, 144], strides = [1, 1, 1, 1]} : vector<2x2x32x144xbf16> to vector<1x1x32x144xbf16>
    %332 = vector.shape_cast %331 : vector<1x1x32x144xbf16> to vector<32x144xbf16>
    %cst_90 = arith.constant dense<0.000000e+00> : vector<576x144xf32>
    %333 = tpu.matmul %330, %332, %cst_90 {dimension_numbers = #tpu.dot_dimension_numbers<[1], [0], [0], [1], [0, 0, 1, 1], [], []>} : vector<576x32xbf16>, vector<32x144xbf16>, vector<576x144xf32> -> vector<576x144xf32>
    %334 = arith.addf %328, %333 : vector<576x144xf32>
    %335 = vector.broadcast %302 : vector<1x144xf32> to vector<576x144xf32>
    %336 = arith.addf %334, %335 : vector<576x144xf32>
    %cst_91 = arith.constant 2.000000e-01 : f32
    %337 = vector.broadcast %cst_91 : f32 to vector<576x144xf32>
    %338 = arith.mulf %337, %336 : vector<576x144xf32>
    %339 = arith.maximumf %336, %338 : vector<576x144xf32>
    %340 = vector.extract_strided_slice %339 {offsets = [0, 0], sizes = [576, 16], strides = [1, 1]} : vector<576x144xf32> to vector<576x16xf32>
    %341 = vector.shape_cast %340 : vector<576x16xf32> to vector<6x6x16x16xf32>
    %342 = vector.extract_strided_slice %339 {offsets = [0, 16], sizes = [576, 16], strides = [1, 1]} : vector<576x144xf32> to vector<576x16xf32>
    %343 = vector.shape_cast %342 : vector<576x16xf32> to vector<6x6x16x16xf32>
    %344 = vector.extract_strided_slice %339 {offsets = [0, 32], sizes = [576, 16], strides = [1, 1]} : vector<576x144xf32> to vector<576x16xf32>
    %345 = vector.shape_cast %344 : vector<576x16xf32> to vector<6x6x16x16xf32>
    %346 = vector.extract_strided_slice %339 {offsets = [0, 48], sizes = [576, 16], strides = [1, 1]} : vector<576x144xf32> to vector<576x16xf32>
    %347 = vector.shape_cast %346 : vector<576x16xf32> to vector<6x6x16x16xf32>
    %348 = vector.extract_strided_slice %339 {offsets = [0, 64], sizes = [576, 16], strides = [1, 1]} : vector<576x144xf32> to vector<576x16xf32>
    %349 = vector.shape_cast %348 : vector<576x16xf32> to vector<6x6x16x16xf32>
    %350 = vector.extract_strided_slice %339 {offsets = [0, 80], sizes = [576, 16], strides = [1, 1]} : vector<576x144xf32> to vector<576x16xf32>
    %351 = vector.shape_cast %350 : vector<576x16xf32> to vector<6x6x16x16xf32>
    %352 = vector.extract_strided_slice %339 {offsets = [0, 96], sizes = [576, 16], strides = [1, 1]} : vector<576x144xf32> to vector<576x16xf32>
    %353 = vector.shape_cast %352 : vector<576x16xf32> to vector<6x6x16x16xf32>
    %354 = vector.extract_strided_slice %339 {offsets = [0, 112], sizes = [576, 16], strides = [1, 1]} : vector<576x144xf32> to vector<576x16xf32>
    %355 = vector.shape_cast %354 : vector<576x16xf32> to vector<6x6x16x16xf32>
    %356 = vector.extract_strided_slice %339 {offsets = [0, 128], sizes = [576, 16], strides = [1, 1]} : vector<576x144xf32> to vector<576x16xf32>
    %357 = vector.shape_cast %356 : vector<576x16xf32> to vector<6x6x16x16xf32>
    %358 = vector.shape_cast %341 : vector<6x6x16x16xf32> to vector<6x1x6x16x16xf32>
    %359 = vector.shape_cast %347 : vector<6x6x16x16xf32> to vector<6x1x6x16x16xf32>
    %360 = vector.shape_cast %353 : vector<6x6x16x16xf32> to vector<6x1x6x16x16xf32>
    %361 = tpu.concatenate %358, %359, %360 in 1 : vector<6x1x6x16x16xf32>, vector<6x1x6x16x16xf32>, vector<6x1x6x16x16xf32> -> vector<6x3x6x16x16xf32>
    %362 = vector.shape_cast %361 : vector<6x3x6x16x16xf32> to vector<18x6x16x16xf32>
    %363 = vector.shape_cast %343 : vector<6x6x16x16xf32> to vector<6x1x6x16x16xf32>
    %364 = vector.shape_cast %349 : vector<6x6x16x16xf32> to vector<6x1x6x16x16xf32>
    %365 = vector.shape_cast %355 : vector<6x6x16x16xf32> to vector<6x1x6x16x16xf32>
    %366 = tpu.concatenate %363, %364, %365 in 1 : vector<6x1x6x16x16xf32>, vector<6x1x6x16x16xf32>, vector<6x1x6x16x16xf32> -> vector<6x3x6x16x16xf32>
    %367 = vector.shape_cast %366 : vector<6x3x6x16x16xf32> to vector<18x6x16x16xf32>
    %368 = vector.shape_cast %345 : vector<6x6x16x16xf32> to vector<6x1x6x16x16xf32>
    %369 = vector.shape_cast %351 : vector<6x6x16x16xf32> to vector<6x1x6x16x16xf32>
    %370 = vector.shape_cast %357 : vector<6x6x16x16xf32> to vector<6x1x6x16x16xf32>
    %371 = tpu.concatenate %368, %369, %370 in 1 : vector<6x1x6x16x16xf32>, vector<6x1x6x16x16xf32>, vector<6x1x6x16x16xf32> -> vector<6x3x6x16x16xf32>
    %372 = vector.shape_cast %371 : vector<6x3x6x16x16xf32> to vector<18x6x16x16xf32>
    %373 = vector.shape_cast %362 : vector<18x6x16x16xf32> to vector<18x6x1x16x16xf32>
    %374 = vector.shape_cast %367 : vector<18x6x16x16xf32> to vector<18x6x1x16x16xf32>
    %375 = vector.shape_cast %372 : vector<18x6x16x16xf32> to vector<18x6x1x16x16xf32>
    %376 = tpu.concatenate %373, %374, %375 in 2 : vector<18x6x1x16x16xf32>, vector<18x6x1x16x16xf32>, vector<18x6x1x16x16xf32> -> vector<18x6x3x16x16xf32>
    %377 = vector.shape_cast %376 : vector<18x6x3x16x16xf32> to vector<18x18x16x16xf32>
    %378 = vector.extract_strided_slice %377 {offsets = [1, 1, 0, 0], sizes = [15, 15, 16, 16], strides = [1, 1, 1, 1]} : vector<18x18x16x16xf32> to vector<15x15x16x16xf32>
    %379 = vector.extract_strided_slice %378 {offsets = [0, 0, 0, 0], sizes = [15, 1, 16, 16], strides = [1, 1, 1, 1]} : vector<15x15x16x16xf32> to vector<15x1x16x16xf32>
    %380 = vector.shape_cast %379 : vector<15x1x16x16xf32> to vector<15x16x16xf32>
    %381 = vector.shape_cast %380 : vector<15x16x16xf32> to vector<240x16xf32>
    %382 = vector.extract_strided_slice %378 {offsets = [0, 1, 0, 0], sizes = [15, 1, 16, 16], strides = [1, 1, 1, 1]} : vector<15x15x16x16xf32> to vector<15x1x16x16xf32>
    %383 = vector.shape_cast %382 : vector<15x1x16x16xf32> to vector<15x16x16xf32>
    %384 = vector.shape_cast %383 : vector<15x16x16xf32> to vector<240x16xf32>
    %385 = vector.extract_strided_slice %378 {offsets = [0, 2, 0, 0], sizes = [15, 1, 16, 16], strides = [1, 1, 1, 1]} : vector<15x15x16x16xf32> to vector<15x1x16x16xf32>
    %386 = vector.shape_cast %385 : vector<15x1x16x16xf32> to vector<15x16x16xf32>
    %387 = vector.shape_cast %386 : vector<15x16x16xf32> to vector<240x16xf32>
    %388 = vector.extract_strided_slice %378 {offsets = [0, 3, 0, 0], sizes = [15, 1, 16, 16], strides = [1, 1, 1, 1]} : vector<15x15x16x16xf32> to vector<15x1x16x16xf32>
    %389 = vector.shape_cast %388 : vector<15x1x16x16xf32> to vector<15x16x16xf32>
    %390 = vector.shape_cast %389 : vector<15x16x16xf32> to vector<240x16xf32>
    %391 = vector.extract_strided_slice %378 {offsets = [0, 4, 0, 0], sizes = [15, 1, 16, 16], strides = [1, 1, 1, 1]} : vector<15x15x16x16xf32> to vector<15x1x16x16xf32>
    %392 = vector.shape_cast %391 : vector<15x1x16x16xf32> to vector<15x16x16xf32>
    %393 = vector.shape_cast %392 : vector<15x16x16xf32> to vector<240x16xf32>
    %394 = vector.extract_strided_slice %378 {offsets = [0, 5, 0, 0], sizes = [15, 1, 16, 16], strides = [1, 1, 1, 1]} : vector<15x15x16x16xf32> to vector<15x1x16x16xf32>
    %395 = vector.shape_cast %394 : vector<15x1x16x16xf32> to vector<15x16x16xf32>
    %396 = vector.shape_cast %395 : vector<15x16x16xf32> to vector<240x16xf32>
    %397 = vector.extract_strided_slice %378 {offsets = [0, 6, 0, 0], sizes = [15, 1, 16, 16], strides = [1, 1, 1, 1]} : vector<15x15x16x16xf32> to vector<15x1x16x16xf32>
    %398 = vector.shape_cast %397 : vector<15x1x16x16xf32> to vector<15x16x16xf32>
    %399 = vector.shape_cast %398 : vector<15x16x16xf32> to vector<240x16xf32>
    %400 = vector.extract_strided_slice %378 {offsets = [0, 7, 0, 0], sizes = [15, 1, 16, 16], strides = [1, 1, 1, 1]} : vector<15x15x16x16xf32> to vector<15x1x16x16xf32>
    %401 = vector.shape_cast %400 : vector<15x1x16x16xf32> to vector<15x16x16xf32>
    %402 = vector.shape_cast %401 : vector<15x16x16xf32> to vector<240x16xf32>
    %403 = vector.extract_strided_slice %378 {offsets = [0, 8, 0, 0], sizes = [15, 1, 16, 16], strides = [1, 1, 1, 1]} : vector<15x15x16x16xf32> to vector<15x1x16x16xf32>
    %404 = vector.shape_cast %403 : vector<15x1x16x16xf32> to vector<15x16x16xf32>
    %405 = vector.shape_cast %404 : vector<15x16x16xf32> to vector<240x16xf32>
    %406 = vector.extract_strided_slice %378 {offsets = [0, 9, 0, 0], sizes = [15, 1, 16, 16], strides = [1, 1, 1, 1]} : vector<15x15x16x16xf32> to vector<15x1x16x16xf32>
    %407 = vector.shape_cast %406 : vector<15x1x16x16xf32> to vector<15x16x16xf32>
    %408 = vector.shape_cast %407 : vector<15x16x16xf32> to vector<240x16xf32>
    %409 = vector.extract_strided_slice %378 {offsets = [0, 10, 0, 0], sizes = [15, 1, 16, 16], strides = [1, 1, 1, 1]} : vector<15x15x16x16xf32> to vector<15x1x16x16xf32>
    %410 = vector.shape_cast %409 : vector<15x1x16x16xf32> to vector<15x16x16xf32>
    %411 = vector.shape_cast %410 : vector<15x16x16xf32> to vector<240x16xf32>
    %412 = vector.extract_strided_slice %378 {offsets = [0, 11, 0, 0], sizes = [15, 1, 16, 16], strides = [1, 1, 1, 1]} : vector<15x15x16x16xf32> to vector<15x1x16x16xf32>
    %413 = vector.shape_cast %412 : vector<15x1x16x16xf32> to vector<15x16x16xf32>
    %414 = vector.shape_cast %413 : vector<15x16x16xf32> to vector<240x16xf32>
    %415 = vector.extract_strided_slice %378 {offsets = [0, 12, 0, 0], sizes = [15, 1, 16, 16], strides = [1, 1, 1, 1]} : vector<15x15x16x16xf32> to vector<15x1x16x16xf32>
    %416 = vector.shape_cast %415 : vector<15x1x16x16xf32> to vector<15x16x16xf32>
    %417 = vector.shape_cast %416 : vector<15x16x16xf32> to vector<240x16xf32>
    %418 = vector.extract_strided_slice %378 {offsets = [0, 13, 0, 0], sizes = [15, 1, 16, 16], strides = [1, 1, 1, 1]} : vector<15x15x16x16xf32> to vector<15x1x16x16xf32>
    %419 = vector.shape_cast %418 : vector<15x1x16x16xf32> to vector<15x16x16xf32>
    %420 = vector.shape_cast %419 : vector<15x16x16xf32> to vector<240x16xf32>
    %421 = vector.extract_strided_slice %378 {offsets = [0, 14, 0, 0], sizes = [15, 1, 16, 16], strides = [1, 1, 1, 1]} : vector<15x15x16x16xf32> to vector<15x1x16x16xf32>
    %422 = vector.shape_cast %421 : vector<15x1x16x16xf32> to vector<15x16x16xf32>
    %423 = vector.shape_cast %422 : vector<15x16x16xf32> to vector<240x16xf32>
    %424 = tpu.concatenate %381, %384, %387, %390, %393, %396, %399, %402, %405, %408, %411, %414, %417, %420, %423 in 1 : vector<240x16xf32>, vector<240x16xf32>, vector<240x16xf32>, vector<240x16xf32>, vector<240x16xf32>, vector<240x16xf32>, vector<240x16xf32>, vector<240x16xf32>, vector<240x16xf32>, vector<240x16xf32>, vector<240x16xf32>, vector<240x16xf32>, vector<240x16xf32>, vector<240x16xf32>, vector<240x16xf32> -> vector<240x240xf32>
    %425 = arith.truncf %424 : vector<240x240xf32> to vector<240x240xbf16>
    %c0_92 = arith.constant 0 : index
    %c0_93 = arith.constant 0 : index
    %426 = vector.load %arg16[%c0_92, %c0_93] : memref<240x56xbf16, #tpu.memory_space<vmem>>, vector<240x56xbf16>
    %cst_94 = arith.constant dense<0.000000e+00> : vector<240x56xf32>
    %427 = tpu.matmul %425, %426, %cst_94 {dimension_numbers = #tpu.dot_dimension_numbers<[1], [0], [0], [1], [0, 0, 1, 1], [], []>} : vector<240x240xbf16>, vector<240x56xbf16>, vector<240x56xf32> -> vector<240x56xf32>
    %428 = vector.shape_cast %427 : vector<240x56xf32> to vector<15x16x56xf32>
    %429 = vector.extract_strided_slice %428 {offsets = [0, 0, 28], sizes = [1, 16, 28], strides = [1, 1, 1]} : vector<15x16x56xf32> to vector<1x16x28xf32>
    %430 = vector.shape_cast %429 : vector<1x16x28xf32> to vector<16x28xf32>
    %431 = vector.extract_strided_slice %428 {offsets = [1, 0, 0], sizes = [1, 16, 56], strides = [1, 1, 1]} : vector<15x16x56xf32> to vector<1x16x56xf32>
    %432 = vector.shape_cast %431 : vector<1x16x56xf32> to vector<16x56xf32>
    %433 = vector.extract_strided_slice %428 {offsets = [2, 0, 0], sizes = [1, 16, 56], strides = [1, 1, 1]} : vector<15x16x56xf32> to vector<1x16x56xf32>
    %434 = vector.shape_cast %433 : vector<1x16x56xf32> to vector<16x56xf32>
    %435 = vector.extract_strided_slice %428 {offsets = [3, 0, 0], sizes = [1, 16, 56], strides = [1, 1, 1]} : vector<15x16x56xf32> to vector<1x16x56xf32>
    %436 = vector.shape_cast %435 : vector<1x16x56xf32> to vector<16x56xf32>
    %437 = vector.extract_strided_slice %428 {offsets = [4, 0, 0], sizes = [1, 16, 56], strides = [1, 1, 1]} : vector<15x16x56xf32> to vector<1x16x56xf32>
    %438 = vector.shape_cast %437 : vector<1x16x56xf32> to vector<16x56xf32>
    %439 = vector.extract_strided_slice %428 {offsets = [5, 0, 0], sizes = [1, 16, 56], strides = [1, 1, 1]} : vector<15x16x56xf32> to vector<1x16x56xf32>
    %440 = vector.shape_cast %439 : vector<1x16x56xf32> to vector<16x56xf32>
    %441 = vector.extract_strided_slice %428 {offsets = [6, 0, 0], sizes = [1, 16, 56], strides = [1, 1, 1]} : vector<15x16x56xf32> to vector<1x16x56xf32>
    %442 = vector.shape_cast %441 : vector<1x16x56xf32> to vector<16x56xf32>
    %443 = vector.extract_strided_slice %428 {offsets = [7, 0, 0], sizes = [1, 16, 56], strides = [1, 1, 1]} : vector<15x16x56xf32> to vector<1x16x56xf32>
    %444 = vector.shape_cast %443 : vector<1x16x56xf32> to vector<16x56xf32>
    %445 = vector.extract_strided_slice %428 {offsets = [8, 0, 0], sizes = [1, 16, 56], strides = [1, 1, 1]} : vector<15x16x56xf32> to vector<1x16x56xf32>
    %446 = vector.shape_cast %445 : vector<1x16x56xf32> to vector<16x56xf32>
    %447 = vector.extract_strided_slice %428 {offsets = [9, 0, 0], sizes = [1, 16, 56], strides = [1, 1, 1]} : vector<15x16x56xf32> to vector<1x16x56xf32>
    %448 = vector.shape_cast %447 : vector<1x16x56xf32> to vector<16x56xf32>
    %449 = vector.extract_strided_slice %428 {offsets = [10, 0, 0], sizes = [1, 16, 56], strides = [1, 1, 1]} : vector<15x16x56xf32> to vector<1x16x56xf32>
    %450 = vector.shape_cast %449 : vector<1x16x56xf32> to vector<16x56xf32>
    %451 = vector.extract_strided_slice %428 {offsets = [11, 0, 0], sizes = [1, 16, 56], strides = [1, 1, 1]} : vector<15x16x56xf32> to vector<1x16x56xf32>
    %452 = vector.shape_cast %451 : vector<1x16x56xf32> to vector<16x56xf32>
    %453 = vector.extract_strided_slice %428 {offsets = [12, 0, 0], sizes = [1, 16, 56], strides = [1, 1, 1]} : vector<15x16x56xf32> to vector<1x16x56xf32>
    %454 = vector.shape_cast %453 : vector<1x16x56xf32> to vector<16x56xf32>
    %455 = vector.extract_strided_slice %428 {offsets = [13, 0, 0], sizes = [1, 16, 56], strides = [1, 1, 1]} : vector<15x16x56xf32> to vector<1x16x56xf32>
    %456 = vector.shape_cast %455 : vector<1x16x56xf32> to vector<16x56xf32>
    %457 = vector.extract_strided_slice %428 {offsets = [14, 0, 0], sizes = [1, 16, 28], strides = [1, 1, 1]} : vector<15x16x56xf32> to vector<1x16x28xf32>
    %458 = vector.shape_cast %457 : vector<1x16x28xf32> to vector<16x28xf32>
    %459 = tpu.concatenate %430, %432, %434, %436, %438, %440, %442, %444, %446, %448, %450, %452, %454, %456, %458 in 1 : vector<16x28xf32>, vector<16x56xf32>, vector<16x56xf32>, vector<16x56xf32>, vector<16x56xf32>, vector<16x56xf32>, vector<16x56xf32>, vector<16x56xf32>, vector<16x56xf32>, vector<16x56xf32>, vector<16x56xf32>, vector<16x56xf32>, vector<16x56xf32>, vector<16x56xf32>, vector<16x28xf32> -> vector<16x784xf32>
    %460 = vector.broadcast %1 : f32 to vector<16x784xf32>
    %461 = arith.addf %459, %460 : vector<16x784xf32>
    %c0_95 = arith.constant 0 : index
    %c0_96 = arith.constant 0 : index
    %462 = vector.load %arg2[%c0_95, %c0_96] : memref<16x784xf32, #tpu.memory_space<vmem>>, vector<16x784xf32>
    %463 = math.tanh %461 : vector<16x784xf32>
    %cst_97 = arith.constant 1.000000e+00 : f32
    %464 = vector.broadcast %cst_97 : f32 to vector<16x784xf32>
    %465 = arith.addf %463, %464 : vector<16x784xf32>
    %cst_98 = arith.constant 5.000000e-01 : f32
    %466 = vector.broadcast %cst_98 : f32 to vector<16x784xf32>
    %467 = arith.mulf %466, %465 : vector<16x784xf32>
    %468 = arith.subf %467, %462 : vector<16x784xf32>
    %469 = vector.broadcast %0 : f32 to vector<16x784xf32>
    %470 = arith.mulf %469, %468 : vector<16x784xf32>
    %471 = arith.addf %462, %470 : vector<16x784xf32>
    %c0_99 = arith.constant 0 : index
    %c0_100 = arith.constant 0 : index
    %472 = vector.load %arg17[%c0_99, %c0_100] : memref<16x784xf32, #tpu.memory_space<vmem>>, vector<16x784xf32>
    tpu.vector_store %arg17[%c0_99, %c0_100], %471 {strides = array<i32>} : memref<16x784xf32, #tpu.memory_space<vmem>>, vector<16x784xf32>,
    return
  }
  func.func @transform_0(%arg0: i32) -> (i32, i32, i32, i32) {
    %c0_i32 = arith.constant 0 : i32
    %c0_i32_0 = arith.constant 0 : i32
    %c0_i32_1 = arith.constant 0 : i32
    %c0_i32_2 = arith.constant 0 : i32
    return %c0_i32, %c0_i32_0, %arg0, %c0_i32_1 : i32, i32, i32, i32
  }
  func.func @transform_1(%arg0: i32) -> (i32, i32) {
    %c0_i32 = arith.constant 0 : i32
    %c0_i32_0 = arith.constant 0 : i32
    return %arg0, %c0_i32 : i32, i32
  }
  func.func @transform_2(%arg0: i32) -> (i32, i32) {
    %c0_i32 = arith.constant 0 : i32
    %c0_i32_0 = arith.constant 0 : i32
    return %arg0, %c0_i32 : i32, i32
  }
  func.func @transform_3(%arg0: i32) -> (i32, i32) {
    %c0_i32 = arith.constant 0 : i32
    %c0_i32_0 = arith.constant 0 : i32
    return %arg0, %c0_i32 : i32, i32
  }
  func.func @transform_4(%arg0: i32) -> i32 {
    %c0_i32 = arith.constant 0 : i32
    %c0_i32_0 = arith.constant 0 : i32
    return %c0_i32 : i32
  }
  func.func @transform_5(%arg0: i32) -> (i32, i32) {
    %c0_i32 = arith.constant 0 : i32
    %c0_i32_0 = arith.constant 0 : i32
    %c0_i32_1 = arith.constant 0 : i32
    return %c0_i32, %c0_i32_0 : i32, i32
  }
  func.func @transform_6(%arg0: i32) -> (i32, i32, i32, i32) {
    %c0_i32 = arith.constant 0 : i32
    %c0_i32_0 = arith.constant 0 : i32
    %c0_i32_1 = arith.constant 0 : i32
    %c0_i32_2 = arith.constant 0 : i32
    %c0_i32_3 = arith.constant 0 : i32
    return %c0_i32, %c0_i32_0, %c0_i32_1, %c0_i32_2 : i32, i32, i32, i32
  }
  func.func @transform_7(%arg0: i32) -> (i32, i32) {
    %c0_i32 = arith.constant 0 : i32
    %c0_i32_0 = arith.constant 0 : i32
    %c0_i32_1 = arith.constant 0 : i32
    return %c0_i32, %c0_i32_0 : i32, i32
  }
  func.func @transform_8(%arg0: i32) -> (i32, i32) {
    %c0_i32 = arith.constant 0 : i32
    %c0_i32_0 = arith.constant 0 : i32
    %c0_i32_1 = arith.constant 0 : i32
    return %c0_i32, %c0_i32_0 : i32, i32
  }
  func.func @transform_9(%arg0: i32) -> (i32, i32) {
    %c0_i32 = arith.constant 0 : i32
    %c0_i32_0 = arith.constant 0 : i32
    %c0_i32_1 = arith.constant 0 : i32
    return %c0_i32, %c0_i32_0 : i32, i32
  }
  func.func @transform_10(%arg0: i32) -> (i32, i32) {
    %c0_i32 = arith.constant 0 : i32
    %c0_i32_0 = arith.constant 0 : i32
    %c0_i32_1 = arith.constant 0 : i32
    return %c0_i32, %c0_i32_0 : i32, i32
  }
  func.func @transform_11(%arg0: i32) -> (i32, i32, i32, i32) {
    %c0_i32 = arith.constant 0 : i32
    %c0_i32_0 = arith.constant 0 : i32
    %c0_i32_1 = arith.constant 0 : i32
    %c0_i32_2 = arith.constant 0 : i32
    %c0_i32_3 = arith.constant 0 : i32
    return %c0_i32, %c0_i32_0, %c0_i32_1, %c0_i32_2 : i32, i32, i32, i32
  }
  func.func @transform_12(%arg0: i32) -> (i32, i32, i32, i32) {
    %c0_i32 = arith.constant 0 : i32
    %c0_i32_0 = arith.constant 0 : i32
    %c0_i32_1 = arith.constant 0 : i32
    %c0_i32_2 = arith.constant 0 : i32
    %c0_i32_3 = arith.constant 0 : i32
    return %c0_i32, %c0_i32_0, %c0_i32_1, %c0_i32_2 : i32, i32, i32, i32
  }
  func.func @transform_13(%arg0: i32) -> (i32, i32, i32, i32) {
    %c0_i32 = arith.constant 0 : i32
    %c0_i32_0 = arith.constant 0 : i32
    %c0_i32_1 = arith.constant 0 : i32
    %c0_i32_2 = arith.constant 0 : i32
    %c0_i32_3 = arith.constant 0 : i32
    return %c0_i32, %c0_i32_0, %c0_i32_1, %c0_i32_2 : i32, i32, i32, i32
  }
  func.func @transform_14(%arg0: i32) -> (i32, i32) {
    %c0_i32 = arith.constant 0 : i32
    %c0_i32_0 = arith.constant 0 : i32
    %c0_i32_1 = arith.constant 0 : i32
    return %c0_i32, %c0_i32_0 : i32, i32
  }
  func.func @transform_15(%arg0: i32) -> (i32, i32) {
    %c0_i32 = arith.constant 0 : i32
    %c0_i32_0 = arith.constant 0 : i32
    %c0_i32_1 = arith.constant 0 : i32
    return %c0_i32, %c0_i32_0 : i32, i32
  }
  func.func @transform_16(%arg0: i32) -> (i32, i32) {
    %c0_i32 = arith.constant 0 : i32
    %c0_i32_0 = arith.constant 0 : i32
    return %arg0, %c0_i32 : i32, i32
  }
  func.func @transform_17(%arg0: i32) -> (i32, i32) {
    %c0_i32 = arith.constant 0 : i32
    %c0_i32_0 = arith.constant 0 : i32
    return %arg0, %c0_i32 : i32, i32
  }
}

</mosaic_0001>

<llo_original>
// kernel: tile.18
$region0: #{tile.18}
  #allocation0 [shape = 's32[1]{0}', space=sflag, size = 0x4, scoped, tag = 'scoped memory for tile.18']
  %s0 = inlined_call_operand.vmem [shape: f32[16], index: 0, kind: input, shape index: {}]
  %s1 = inlined_call_operand.vmem [shape: f32[9,16], index: 1, kind: output, shape index: {}]
  // Predicated region
  $region2: #{tile.18} parent=0 // pred_check
    _
  $region3: #{tile.18} parent=0 // pred_check_branch
    %3 = sbr.rel (0) target = $region5
  $region4: #{tile.18} parent=0 // pred_region
    _
  $region5: #{tile.18} parent=0 // pred_fallthru
    _
  %v4 = vld [vmem:[%s0] ss:$0 sm:$0xff]
  %5 = vst [vmem:[%s1] sm:$0xff] %v4
  %s6 = scalar_lea.vmem %s1, 8
  %7 = vst [vmem:[%s6] sm:$0xff] %v4

// kernel: tile.13
$region0: #{tile.13}
  #allocation0 [shape = 's32[1]{0}', space=sflag, size = 0x4, scoped, tag = 'scoped memory for tile.13']
  %s0 = inlined_call_operand.vmem [shape: f32[32], index: 0, kind: input, shape index: {}]
  %s1 = inlined_call_operand.vmem [shape: f32[4,32], index: 1, kind: output, shape index: {}]
  // Predicated region
  $region2: #{tile.13} parent=0 // pred_check
    _
  $region3: #{tile.13} parent=0 // pred_check_branch
    %3 = sbr.rel (0) target = $region5
  $region4: #{tile.13} parent=0 // pred_region
    _
  $region5: #{tile.13} parent=0 // pred_fallthru
    _
  %v4 = vld [vmem:[%s0] ss:$0 sm:$0xff]
  %5 = vst [vmem:[%s1] sm:$0xf] %v4

// kernel: mnist_generator_forward.1
$region0: #{mnist_generator_forward.1}
  #allocation0 [shape = 'u32[]', space=smem, size = 0x4, offset = 0x4, fixed_abs, tag = 'smem constant byte address 0x4 - core index']
  #allocation1 [shape = 'u32[72,128]{1,0:T(1,128)}', space=vmem, size = 0x9000, scoped, tag = 'internal scratch']
  %s0 = inlined_call_operand.vmem [shape: f32[10,10,16,9], index: 0, kind: input, shape index: {}]
  %s1 = inlined_call_operand.vmem [shape: f32[16,784], index: 1, kind: input, shape index: {}]
  %s2 = inlined_call_operand.vmem [shape: f32[16,10], index: 2, kind: input, shape index: {}]
  %s3 = inlined_call_operand.vmem [shape: f32[16,11], index: 3, kind: input, shape index: {}]
  %s4 = inlined_call_operand.vmem [shape: f32[2], index: 4, kind: input, shape index: {}]
  %s5 = inlined_call_operand.vmem [shape: bf16[9,64], index: 5, kind: input, shape index: {}]
  %s6 = inlined_call_operand.vmem [shape: bf16[3,3,64,32], index: 6, kind: input, shape index: {}]
  %s7 = inlined_call_operand.vmem [shape: f32[128,64], index: 7, kind: input, shape index: {}]
  %s8 = inlined_call_operand.vmem [shape: f32[64,10], index: 8, kind: input, shape index: {}]
  %s9 = inlined_call_operand.vmem [shape: f32[5,64], index: 9, kind: input, shape index: {}]
  %s10 = inlined_call_operand.vmem [shape: f32[22,128], index: 10, kind: input, shape index: {}]
  %s11 = inlined_call_operand.vmem [shape: bf16[2,2,32,128], index: 11, kind: input, shape index: {}]
  %s12 = inlined_call_operand.vmem [shape: bf16[2,2,32,128], index: 12, kind: input, shape index: {}]
  %s13 = inlined_call_operand.vmem [shape: bf16[2,2,32,144], index: 13, kind: input, shape index: {}]
  %s14 = inlined_call_operand.vmem [shape: f32[2,144], index: 14, kind: input, shape index: {}]
  %s15 = inlined_call_operand.vmem [shape: bf16[240,56], index: 15, kind: input, shape index: {}]
  %s16 = inlined_call_operand.vmem [shape: f32[16,784], index: 16, kind: output, shape index: {0}]
  %s17 = inlined_call_operand.vmem [shape: f32[16,1], index: 17, kind: output, shape index: {1}]
  %18 = xla_tuple %s16, %s17
  %s19 = sld [smem:[#allocation0]]
  $region86: #{mnist_generator_forward.1} parent=0
    _
  %s21 = ssub.s32 1, %s19
  %s22 = scalar_select 0, %s21, %s19
  $region1: #{mnist_generator_forward.1} parent=0
    #allocation2 [shape = 'u8[512]{0}', space=smem, size = 0x200, scoped, tag = 'input window, operand 4, single buffered']
    #allocation3 [shape = 's32[1]{0}', space=sflag, size = 0x4, scoped, tag = 'scoped memory for mnist_generator_forward.1']
    %23 = vsyncpa [#allocation3], 0
    // Predicated region
    $region2: #{mnist_generator_forward.1} parent=1 // pred_check
      _
    $region3: #{mnist_generator_forward.1} parent=1 // pred_check_branch
      %25 = sbr.rel (0) target = $region5
    $region4: #{mnist_generator_forward.1} parent=1 // pred_region
      _
    $region5: #{mnist_generator_forward.1} parent=1 // pred_fallthru
      _
    // Predicated region
    $region6: #{mnist_generator_forward.1} parent=1 // pred_check
      _
    $region7: #{mnist_generator_forward.1} parent=1 // pred_check_branch
      %27 = sbr.rel (0) target = $region9
    $region8: #{mnist_generator_forward.1} parent=1 // pred_region
      _
    $region9: #{mnist_generator_forward.1} parent=1 // pred_fallthru
      _
    // Predicated region
    $region10: #{mnist_generator_forward.1} parent=1 // pred_check
      _
    $region11: #{mnist_generator_forward.1} parent=1 // pred_check_branch
      %29 = sbr.rel (0) target = $region13
    $region12: #{mnist_generator_forward.1} parent=1 // pred_region
      _
    $region13: #{mnist_generator_forward.1} parent=1 // pred_fallthru
      _
    // Predicated region
    $region14: #{mnist_generator_forward.1} parent=1 // pred_check
      _
    $region15: #{mnist_generator_forward.1} parent=1 // pred_check_branch
      %31 = sbr.rel (0) target = $region17
    $region16: #{mnist_generator_forward.1} parent=1 // pred_region
      _
    $region17: #{mnist_generator_forward.1} parent=1 // pred_fallthru
      _
    // Predicated region
    $region18: #{mnist_generator_forward.1} parent=1 // pred_check
      _
    $region19: #{mnist_generator_forward.1} parent=1 // pred_check_branch
      %33 = sbr.rel (0) target = $region21
    $region20: #{mnist_generator_forward.1} parent=1 // pred_region
      %35 = vsyncadd [#allocation3], 0
      %s37 = sshll.u32 %s4, 4
      %s38 = int_to_ptr.vmem [resolvable:$true] %s37
      %40 = dma.vmem_to_smem %s38, 16, [#allocation2], [#allocation3]
    $region21: #{mnist_generator_forward.1} parent=1 // pred_fallthru
      _
    // Predicated region
    $region22: #{mnist_generator_forward.1} parent=1 // pred_check
      _
    $region23: #{mnist_generator_forward.1} parent=1 // pred_check_branch
      %42 = sbr.rel (0) target = $region25
    $region24: #{mnist_generator_forward.1} parent=1 // pred_region
      _
    $region25: #{mnist_generator_forward.1} parent=1 // pred_fallthru
      _
    // Predicated region
    $region26: #{mnist_generator_forward.1} parent=1 // pred_check
      _
    $region27: #{mnist_generator_forward.1} parent=1 // pred_check_branch
      %44 = sbr.rel (0) target = $region29
    $region28: #{mnist_generator_forward.1} parent=1 // pred_region
      _
    $region29: #{mnist_generator_forward.1} parent=1 // pred_fallthru
      _
    // Predicated region
    $region30: #{mnist_generator_forward.1} parent=1 // pred_check
      _
    $region31: #{mnist_generator_forward.1} parent=1 // pred_check_branch
      %46 = sbr.rel (0) target = $region33
    $region32: #{mnist_generator_forward.1} parent=1 // pred_region
      _
    $region33: #{mnist_generator_forward.1} parent=1 // pred_fallthru
      _
    // Predicated region
    $region34: #{mnist_generator_forward.1} parent=1 // pred_check
      _
    $region35: #{mnist_generator_forward.1} parent=1 // pred_check_branch
      %48 = sbr.rel (0) target = $region37
    $region36: #{mnist_generator_forward.1} parent=1 // pred_region
      _
    $region37: #{mnist_generator_forward.1} parent=1 // pred_fallthru
      _
    // Predicated region
    $region38: #{mnist_generator_forward.1} parent=1 // pred_check
      _
    $region39: #{mnist_generator_forward.1} parent=1 // pred_check_branch
      %50 = sbr.rel (0) target = $region41
    $region40: #{mnist_generator_forward.1} parent=1 // pred_region
      _
    $region41: #{mnist_generator_forward.1} parent=1 // pred_fallthru
      _
    // Predicated region
    $region42: #{mnist_generator_forward.1} parent=1 // pred_check
      _
    $region43: #{mnist_generator_forward.1} parent=1 // pred_check_branch
      %52 = sbr.rel (0) target = $region45
    $region44: #{mnist_generator_forward.1} parent=1 // pred_region
      _
    $region45: #{mnist_generator_forward.1} parent=1 // pred_fallthru
      _
    // Predicated region
    $region46: #{mnist_generator_forward.1} parent=1 // pred_check
      _
    $region47: #{mnist_generator_forward.1} parent=1 // pred_check_branch
      %54 = sbr.rel (0) target = $region49
    $region48: #{mnist_generator_forward.1} parent=1 // pred_region
      _
    $region49: #{mnist_generator_forward.1} parent=1 // pred_fallthru
      _
    // Predicated region
    $region50: #{mnist_generator_forward.1} parent=1 // pred_check
      _
    $region51: #{mnist_generator_forward.1} parent=1 // pred_check_branch
      %56 = sbr.rel (0) target = $region53
    $region52: #{mnist_generator_forward.1} parent=1 // pred_region
      _
    $region53: #{mnist_generator_forward.1} parent=1 // pred_fallthru
      _
    // Predicated region
    $region54: #{mnist_generator_forward.1} parent=1 // pred_check
      _
    $region55: #{mnist_generator_forward.1} parent=1 // pred_check_branch
      %58 = sbr.rel (0) target = $region57
    $region56: #{mnist_generator_forward.1} parent=1 // pred_region
      _
    $region57: #{mnist_generator_forward.1} parent=1 // pred_fallthru
      _
    // Predicated region
    $region58: #{mnist_generator_forward.1} parent=1 // pred_check
      _
    $region59: #{mnist_generator_forward.1} parent=1 // pred_check_branch
      %60 = sbr.rel (0) target = $region61
    $region60: #{mnist_generator_forward.1} parent=1 // pred_region
      _
    $region61: #{mnist_generator_forward.1} parent=1 // pred_fallthru
      _
    // Predicated region
    $region62: #{mnist_generator_forward.1} parent=1 // pred_check
      _
    $region63: #{mnist_generator_forward.1} parent=1 // pred_check_branch
      %62 = sbr.rel (0) target = $region65
    $region64: #{mnist_generator_forward.1} parent=1 // pred_region
      _
    $region65: #{mnist_generator_forward.1} parent=1 // pred_fallthru
      _
    // Predicated region
    $region66: #{mnist_generator_forward.1} parent=1 // pred_check
      _
    $region67: #{mnist_generator_forward.1} parent=1 // pred_check_branch
      %64 = sbr.rel (0) target = $region69
    $region68: #{mnist_generator_forward.1} parent=1 // pred_region
      %66 = dma.done [#allocation3], 16
    $region69: #{mnist_generator_forward.1} parent=1 // pred_fallthru
      _
    %67 = sfence
    %s69 = sld [smem:[#allocation2]]
    %s70 = sld [smem:[#allocation2 + $0x1]]
    %v71 = vld [vmem:[%s9] sm:$0x1f]
    %v72 = vld [vmem:[%s0] sm:$0xff]
    %v73 = vld [vmem:[%s0 + $0x8] sm:$0xff]
    %v74 = vld [vmem:[%s0 + $0x10] sm:$0xff]
    %v75 = vld [vmem:[%s0 + $0x18] sm:$0xff]
    %v76 = vld [vmem:[%s0 + $0x20] sm:$0xff]
    %v77 = vld [vmem:[%s0 + $0x28] sm:$0xff]
    %v78 = vld [vmem:[%s0 + $0x30] sm:$0xff]
    %v79 = vld [vmem:[%s0 + $0x38] sm:$0xff]
    %v80 = vld [vmem:[%s0 + $0x40] sm:$0xff]
    %v81 = vld [vmem:[%s0 + $0x48] sm:$0xff]
    %v82 = vld [vmem:[%s0 + $0x50] sm:$0xff]
    %v83 = vld [vmem:[%s0 + $0x58] sm:$0xff]
    %v84 = vld [vmem:[%s0 + $0x60] sm:$0xff]
    %v85 = vld [vmem:[%s0 + $0x68] sm:$0xff]
    %v86 = vld [vmem:[%s0 + $0x70] sm:$0xff]
    %v87 = vld [vmem:[%s0 + $0x78] sm:$0xff]
    %v88 = vld [vmem:[%s0 + $0x80] sm:$0xff]
    %v89 = vld [vmem:[%s0 + $0x88] sm:$0xff]
    %v90 = vld [vmem:[%s0 + $0x90] sm:$0xff]
    %v91 = vld [vmem:[%s0 + $0x98] sm:$0xff]
    %v92 = vld [vmem:[%s0 + $0xa0] sm:$0xff]
    %v93 = vld [vmem:[%s0 + $0xa8] sm:$0xff]
    %v94 = vld [vmem:[%s0 + $0xb0] sm:$0xff]
    %v95 = vld [vmem:[%s0 + $0xb8] sm:$0xff]
    %v96 = vld [vmem:[%s0 + $0xc0] sm:$0xff]
    %v97 = vld [vmem:[%s0 + $0xc8] sm:$0xff]
    %v98 = vld [vmem:[%s0 + $0xd0] sm:$0xff]
    %v99 = vld [vmem:[%s0 + $0xd8] sm:$0xff]
    %v100 = vld [vmem:[%s0 + $0xe0] sm:$0xff]
    %v101 = vld [vmem:[%s0 + $0xe8] sm:$0xff]
    %v102 = vld [vmem:[%s0 + $0xf0] sm:$0xff]
    %v103 = vld [vmem:[%s0 + $0xf8] sm:$0xff]
    %v104 = vld [vmem:[%s0 + $0x100] sm:$0xff]
    %v105 = vld [vmem:[%s0 + $0x108] sm:$0xff]
    %v106 = vld [vmem:[%s0 + $0x110] sm:$0xff]
    %v107 = vld [vmem:[%s0 + $0x118] sm:$0xff]
    %v108 = vld [vmem:[%s0 + $0x120] sm:$0xff]
    %v109 = vld [vmem:[%s0 + $0x128] sm:$0xff]
    %v110 = vld [vmem:[%s0 + $0x130] sm:$0xff]
    %v111 = vld [vmem:[%s0 + $0x138] sm:$0xff]
    %v112 = vld [vmem:[%s0 + $0x140] sm:$0xff]
    %v113 = vld [vmem:[%s0 + $0x148] sm:$0xff]
    %v114 = vld [vmem:[%s0 + $0x150] sm:$0xff]
    %v115 = vld [vmem:[%s0 + $0x158] sm:$0xff]
    %v116 = vld [vmem:[%s0 + $0x160] sm:$0xff]
    %v117 = vld [vmem:[%s0 + $0x168] sm:$0xff]
    %v118 = vld [vmem:[%s0 + $0x170] sm:$0xff]
    %v119 = vld [vmem:[%s0 + $0x178] sm:$0xff]
    %v120 = vld [vmem:[%s0 + $0x180] sm:$0xff]
    %v121 = vld [vmem:[%s0 + $0x188] sm:$0xff]
    %v122 = vld [vmem:[%s0 + $0x190] sm:$0xff]
    %v123 = vld [vmem:[%s0 + $0x198] sm:$0xff]
    %v124 = vld [vmem:[%s0 + $0x1a0] sm:$0xff]
    %v125 = vld [vmem:[%s0 + $0x1a8] sm:$0xff]
    %v126 = vld [vmem:[%s0 + $0x1b0] sm:$0xff]
    %v127 = vld [vmem:[%s0 + $0x1b8] sm:$0xff]
    %v128 = vld [vmem:[%s0 + $0x1c0] sm:$0xff]
    %v129 = vld [vmem:[%s0 + $0x1c8] sm:$0xff]
    %v130 = vld [vmem:[%s0 + $0x1d0] sm:$0xff]
    %v131 = vld [vmem:[%s0 + $0x1d8] sm:$0xff]
    %v132 = vld [vmem:[%s0 + $0x1e0] sm:$0xff]
    %v133 = vld [vmem:[%s0 + $0x1e8] sm:$0xff]
    %v134 = vld [vmem:[%s0 + $0x1f0] sm:$0xff]
    %v135 = vld [vmem:[%s0 + $0x1f8] sm:$0xff]
    %v136 = vld [vmem:[%s0 + $0x200] sm:$0xff]
    %v137 = vld [vmem:[%s0 + $0x208] sm:$0xff]
    %v138 = vld [vmem:[%s0 + $0x210] sm:$0xff]
    %v139 = vld [vmem:[%s0 + $0x218] sm:$0xff]
    %v140 = vld [vmem:[%s0 + $0x220] sm:$0xff]
    %v141 = vld [vmem:[%s0 + $0x228] sm:$0xff]
    %v142 = vld [vmem:[%s0 + $0x230] sm:$0xff]
    %v143 = vld [vmem:[%s0 + $0x238] sm:$0xff]
    %v144 = vld [vmem:[%s0 + $0x240] sm:$0xff]
    %v145 = vld [vmem:[%s0 + $0x248] sm:$0xff]
    %v146 = vld [vmem:[%s0 + $0x250] sm:$0xff]
    %v147 = vld [vmem:[%s0 + $0x258] sm:$0xff]
    %v148 = vld [vmem:[%s0 + $0x260] sm:$0xff]
    %v149 = vld [vmem:[%s0 + $0x268] sm:$0xff]
    %v150 = vld [vmem:[%s0 + $0x270] sm:$0xff]
    %v151 = vld [vmem:[%s0 + $0x278] sm:$0xff]
    %v152 = vld [vmem:[%s0 + $0x280] sm:$0xff]
    %v153 = vld [vmem:[%s0 + $0x288] sm:$0xff]
    %v154 = vld [vmem:[%s0 + $0x290] sm:$0xff]
    %v155 = vld [vmem:[%s0 + $0x298] sm:$0xff]
    %v156 = vld [vmem:[%s0 + $0x2a0] sm:$0xff]
    %v157 = vld [vmem:[%s0 + $0x2a8] sm:$0xff]
    %v158 = vld [vmem:[%s0 + $0x2b0] sm:$0xff]
    %v159 = vld [vmem:[%s0 + $0x2b8] sm:$0xff]
    %v160 = vld [vmem:[%s0 + $0x2c0] sm:$0xff]
    %v161 = vld [vmem:[%s0 + $0x2c8] sm:$0xff]
    %v162 = vld [vmem:[%s0 + $0x2d0] sm:$0xff]
    %v163 = vld [vmem:[%s0 + $0x2d8] sm:$0xff]
    %v164 = vld [vmem:[%s0 + $0x2e0] sm:$0xff]
    %v165 = vld [vmem:[%s0 + $0x2e8] sm:$0xff]
    %v166 = vld [vmem:[%s0 + $0x2f0] sm:$0xff]
    %v167 = vld [vmem:[%s0 + $0x2f8] sm:$0xff]
    %v168 = vld [vmem:[%s0 + $0x300] sm:$0xff]
    %v169 = vld [vmem:[%s0 + $0x308] sm:$0xff]
    %v170 = vld [vmem:[%s0 + $0x310] sm:$0xff]
    %v171 = vld [vmem:[%s0 + $0x318] sm:$0xff]
    %v172 = vld [vmem:[%s0 + $0x320] sm:$0xff]
    %v173 = vld [vmem:[%s0 + $0x328] sm:$0xff]
    %v174 = vld [vmem:[%s0 + $0x330] sm:$0xff]
    %v175 = vld [vmem:[%s0 + $0x338] sm:$0xff]
    %v176 = vld [vmem:[%s0 + $0x340] sm:$0xff]
    %v177 = vld [vmem:[%s0 + $0x348] sm:$0xff]
    %v178 = vld [vmem:[%s0 + $0x350] sm:$0xff]
    %v179 = vld [vmem:[%s0 + $0x358] sm:$0xff]
    %v180 = vld [vmem:[%s0 + $0x360] sm:$0xff]
    %v181 = vld [vmem:[%s0 + $0x368] sm:$0xff]
    %v182 = vld [vmem:[%s0 + $0x370] sm:$0xff]
    %v183 = vld [vmem:[%s0 + $0x378] sm:$0xff]
    %v184 = vld [vmem:[%s0 + $0x380] sm:$0xff]
    %v185 = vld [vmem:[%s0 + $0x388] sm:$0xff]
    %v186 = vld [vmem:[%s0 + $0x390] sm:$0xff]
    %v187 = vld [vmem:[%s0 + $0x398] sm:$0xff]
    %v188 = vld [vmem:[%s0 + $0x3a0] sm:$0xff]
    %v189 = vld [vmem:[%s0 + $0x3a8] sm:$0xff]
    %v190 = vld [vmem:[%s0 + $0x3b0] sm:$0xff]
    %v191 = vld [vmem:[%s0 + $0x3b8] sm:$0xff]
    %v192 = vld [vmem:[%s0 + $0x3c0] sm:$0xff]
    %v193 = vld [vmem:[%s0 + $0x3c8] sm:$0xff]
    %v194 = vld [vmem:[%s0 + $0x3d0] sm:$0xff]
    %v195 = vld [vmem:[%s0 + $0x3d8] sm:$0xff]
    %v196 = vld [vmem:[%s0 + $0x3e0] sm:$0xff]
    %v197 = vld [vmem:[%s0 + $0x3e8] sm:$0xff]
    %v198 = vld [vmem:[%s0 + $0x3f0] sm:$0xff]
    %v199 = vld [vmem:[%s0 + $0x3f8] sm:$0xff]
    %v200 = vld [vmem:[%s0 + $0x400] sm:$0xff]
    %v201 = vld [vmem:[%s0 + $0x408] sm:$0xff]
    %v202 = vld [vmem:[%s0 + $0x410] sm:$0xff]
    %v203 = vld [vmem:[%s0 + $0x418] sm:$0xff]
    %v204 = vld [vmem:[%s0 + $0x420] sm:$0xff]
    %v205 = vld [vmem:[%s0 + $0x428] sm:$0xff]
    %v206 = vld [vmem:[%s0 + $0x430] sm:$0xff]
    %v207 = vld [vmem:[%s0 + $0x438] sm:$0xff]
    %v208 = vld [vmem:[%s0 + $0x440] sm:$0xff]
    %v209 = vld [vmem:[%s0 + $0x448] sm:$0xff]
    %v210 = vld [vmem:[%s0 + $0x450] sm:$0xff]
    %v211 = vld [vmem:[%s0 + $0x458] sm:$0xff]
    %v212 = vld [vmem:[%s0 + $0x460] sm:$0xff]
    %v213 = vld [vmem:[%s0 + $0x468] sm:$0xff]
    %v214 = vld [vmem:[%s0 + $0x470] sm:$0xff]
    %v215 = vld [vmem:[%s0 + $0x478] sm:$0xff]
    %v216 = vld [vmem:[%s0 + $0x480] sm:$0xff]
    %v217 = vld [vmem:[%s0 + $0x488] sm:$0xff]
    %v218 = vld [vmem:[%s0 + $0x490] sm:$0xff]
    %v219 = vld [vmem:[%s0 + $0x498] sm:$0xff]
    %v220 = vld [vmem:[%s0 + $0x4a0] sm:$0xff]
    %v221 = vld [vmem:[%s0 + $0x4a8] sm:$0xff]
    %v222 = vld [vmem:[%s0 + $0x4b0] sm:$0xff]
    %v223 = vld [vmem:[%s0 + $0x4b8] sm:$0xff]
    %v224 = vld [vmem:[%s0 + $0x4c0] sm:$0xff]
    %v225 = vld [vmem:[%s0 + $0x4c8] sm:$0xff]
    %v226 = vld [vmem:[%s0 + $0x4d0] sm:$0xff]
    %v227 = vld [vmem:[%s0 + $0x4d8] sm:$0xff]
    %v228 = vld [vmem:[%s0 + $0x4e0] sm:$0xff]
    %v229 = vld [vmem:[%s0 + $0x4e8] sm:$0xff]
    %v230 = vld [vmem:[%s0 + $0x4f0] sm:$0xff]
    %v231 = vld [vmem:[%s0 + $0x4f8] sm:$0xff]
    %v232 = vld [vmem:[%s0 + $0x500] sm:$0xff]
    %v233 = vld [vmem:[%s0 + $0x508] sm:$0xff]
    %v234 = vld [vmem:[%s0 + $0x510] sm:$0xff]
    %v235 = vld [vmem:[%s0 + $0x518] sm:$0xff]
    %v236 = vld [vmem:[%s0 + $0x520] sm:$0xff]
    %v237 = vld [vmem:[%s0 + $0x528] sm:$0xff]
    %v238 = vld [vmem:[%s0 + $0x530] sm:$0xff]
    %v239 = vld [vmem:[%s0 + $0x538] sm:$0xff]
    %v240 = vld [vmem:[%s0 + $0x540] sm:$0xff]
    %v241 = vld [vmem:[%s0 + $0x548] sm:$0xff]
    %v242 = vld [vmem:[%s0 + $0x550] sm:$0xff]
    %v243 = vld [vmem:[%s0 + $0x558] sm:$0xff]
    %v244 = vld [vmem:[%s0 + $0x560] sm:$0xff]
    %v245 = vld [vmem:[%s0 + $0x568] sm:$0xff]
    %v246 = vld [vmem:[%s0 + $0x570] sm:$0xff]
    %v247 = vld [vmem:[%s0 + $0x578] sm:$0xff]
    %v248 = vld [vmem:[%s0 + $0x580] sm:$0xff]
    %v249 = vld [vmem:[%s0 + $0x588] sm:$0xff]
    %v250 = vld [vmem:[%s0 + $0x590] sm:$0xff]
    %v251 = vld [vmem:[%s0 + $0x598] sm:$0xff]
    %v252 = vld [vmem:[%s0 + $0x5a0] sm:$0xff]
    %v253 = vld [vmem:[%s0 + $0x5a8] sm:$0xff]
    %v254 = vld [vmem:[%s0 + $0x5b0] sm:$0xff]
    %v255 = vld [vmem:[%s0 + $0x5b8] sm:$0xff]
    %v256 = vld [vmem:[%s0 + $0x5c0] sm:$0xff]
    %v257 = vld [vmem:[%s0 + $0x5c8] sm:$0xff]
    %v258 = vld [vmem:[%s0 + $0x5d0] sm:$0xff]
    %v259 = vld [vmem:[%s0 + $0x5d8] sm:$0xff]
    %v260 = vld [vmem:[%s0 + $0x5e0] sm:$0xff]
    %v261 = vld [vmem:[%s0 + $0x5e8] sm:$0xff]
    %v262 = vld [vmem:[%s0 + $0x5f0] sm:$0xff]
    %v263 = vld [vmem:[%s0 + $0x5f8] sm:$0xff]
    %v264 = vld [vmem:[%s0 + $0x600] sm:$0xff]
    %v265 = vld [vmem:[%s0 + $0x608] sm:$0xff]
    %v266 = vld [vmem:[%s0 + $0x610] sm:$0xff]
    %v267 = vld [vmem:[%s0 + $0x618] sm:$0xff]
    %v268 = vld [vmem:[%s0 + $0x620] sm:$0xff]
    %v269 = vld [vmem:[%s0 + $0x628] sm:$0xff]
    %v270 = vld [vmem:[%s0 + $0x630] sm:$0xff]
    %v271 = vld [vmem:[%s0 + $0x638] sm:$0xff]
    %v272 = vpack.c.bf16 %v72, %v72
    %v273 = vpack.c.bf16 %v73, %v73
    %v274 = vpack.c.bf16 %v74, %v74
    %v275 = vpack.c.bf16 %v75, %v75
    %v276 = vpack.c.bf16 %v76, %v76
    %v277 = vpack.c.bf16 %v77, %v77
    %v278 = vpack.c.bf16 %v78, %v78
    %v279 = vpack.c.bf16 %v79, %v79
    %v280 = vpack.c.bf16 %v80, %v80
    %v281 = vpack.c.bf16 %v81, %v81
    %v282 = vpack.c.bf16 %v82, %v82
    %v283 = vpack.c.bf16 %v83, %v83
    %v284 = vpack.c.bf16 %v84, %v84
    %v285 = vpack.c.bf16 %v85, %v85
    %v286 = vpack.c.bf16 %v86, %v86
    %v287 = vpack.c.bf16 %v87, %v87
    %v288 = vpack.c.bf16 %v88, %v88
    %v289 = vpack.c.bf16 %v89, %v89
    %v290 = vpack.c.bf16 %v90, %v90
    %v291 = vpack.c.bf16 %v91, %v91
    %v292 = vpack.c.bf16 %v92, %v92
    %v293 = vpack.c.bf16 %v93, %v93
    %v294 = vpack.c.bf16 %v94, %v94
    %v295 = vpack.c.bf16 %v95, %v95
    %v296 = vpack.c.bf16 %v96, %v96
    %v297 = vpack.c.bf16 %v97, %v97
    %v298 = vpack.c.bf16 %v98, %v98
    %v299 = vpack.c.bf16 %v99, %v99
    %v300 = vpack.c.bf16 %v100, %v100
    %v301 = vpack.c.bf16 %v101, %v101
    %v302 = vpack.c.bf16 %v102, %v102
    %v303 = vpack.c.bf16 %v103, %v103
    %v304 = vpack.c.bf16 %v104, %v104
    %v305 = vpack.c.bf16 %v105, %v105
    %v306 = vpack.c.bf16 %v106, %v106
    %v307 = vpack.c.bf16 %v107, %v107
    %v308 = vpack.c.bf16 %v108, %v108
    %v309 = vpack.c.bf16 %v109, %v109
    %v310 = vpack.c.bf16 %v110, %v110
    %v311 = vpack.c.bf16 %v111, %v111
    %v312 = vpack.c.bf16 %v112, %v112
    %v313 = vpack.c.bf16 %v113, %v113
    %v314 = vpack.c.bf16 %v114, %v114
    %v315 = vpack.c.bf16 %v115, %v115
    %v316 = vpack.c.bf16 %v116, %v116
    %v317 = vpack.c.bf16 %v117, %v117
    %v318 = vpack.c.bf16 %v118, %v118
    %v319 = vpack.c.bf16 %v119, %v119
    %v320 = vpack.c.bf16 %v120, %v120
    %v321 = vpack.c.bf16 %v121, %v121
    %v322 = vpack.c.bf16 %v122, %v122
    %v323 = vpack.c.bf16 %v123, %v123
    %v324 = vpack.c.bf16 %v124, %v124
    %v325 = vpack.c.bf16 %v125, %v125
    %v326 = vpack.c.bf16 %v126, %v126
    %v327 = vpack.c.bf16 %v127, %v127
    %v328 = vpack.c.bf16 %v128, %v128
    %v329 = vpack.c.bf16 %v129, %v129
    %v330 = vpack.c.bf16 %v130, %v130
    %v331 = vpack.c.bf16 %v131, %v131
    %v332 = vpack.c.bf16 %v132, %v132
    %v333 = vpack.c.bf16 %v133, %v133
    %v334 = vpack.c.bf16 %v134, %v134
    %v335 = vpack.c.bf16 %v135, %v135
    %v336 = vpack.c.bf16 %v136, %v136
    %v337 = vpack.c.bf16 %v137, %v137
    %v338 = vpack.c.bf16 %v138, %v138
    %v339 = vpack.c.bf16 %v139, %v139
    %v340 = vpack.c.bf16 %v140, %v140
    %v341 = vpack.c.bf16 %v141, %v141
    %v342 = vpack.c.bf16 %v142, %v142
    %v343 = vpack.c.bf16 %v143, %v143
    %v344 = vpack.c.bf16 %v144, %v144
    %v345 = vpack.c.bf16 %v145, %v145
    %v346 = vpack.c.bf16 %v146, %v146
    %v347 = vpack.c.bf16 %v147, %v147
    %v348 = vpack.c.bf16 %v148, %v148
    %v349 = vpack.c.bf16 %v149, %v149
    %v350 = vpack.c.bf16 %v150, %v150
    %v351 = vpack.c.bf16 %v151, %v151
    %v352 = vpack.c.bf16 %v152, %v152
    %v353 = vpack.c.bf16 %v153, %v153
    %v354 = vpack.c.bf16 %v154, %v154
    %v355 = vpack.c.bf16 %v155, %v155
    %v356 = vpack.c.bf16 %v156, %v156
    %v357 = vpack.c.bf16 %v157, %v157
    %v358 = vpack.c.bf16 %v158, %v158
    %v359 = vpack.c.bf16 %v159, %v159
    %v360 = vpack.c.bf16 %v160, %v160
    %v361 = vpack.c.bf16 %v161, %v161
    %v362 = vpack.c.bf16 %v162, %v162
    %v363 = vpack.c.bf16 %v163, %v163
    %v364 = vpack.c.bf16 %v164, %v164
    %v365 = vpack.c.bf16 %v165, %v165
    %v366 = vpack.c.bf16 %v166, %v166
    %v367 = vpack.c.bf16 %v167, %v167
    %v368 = vpack.c.bf16 %v168, %v168
    %v369 = vpack.c.bf16 %v169, %v169
    %v370 = vpack.c.bf16 %v170, %v170
    %v371 = vpack.c.bf16 %v171, %v171
    %v372 = vpack.c.bf16 %v172, %v172
    %v373 = vpack.c.bf16 %v173, %v173
    %v374 = vpack.c.bf16 %v174, %v174
    %v375 = vpack.c.bf16 %v175, %v175
    %v376 = vpack.c.bf16 %v176, %v176
    %v377 = vpack.c.bf16 %v177, %v177
    %v378 = vpack.c.bf16 %v178, %v178
    %v379 = vpack.c.bf16 %v179, %v179
    %v380 = vpack.c.bf16 %v180, %v180
    %v381 = vpack.c.bf16 %v181, %v181
    %v382 = vpack.c.bf16 %v182, %v182
    %v383 = vpack.c.bf16 %v183, %v183
    %v384 = vpack.c.bf16 %v184, %v184
    %v385 = vpack.c.bf16 %v185, %v185
    %v386 = vpack.c.bf16 %v186, %v186
    %v387 = vpack.c.bf16 %v187, %v187
    %v388 = vpack.c.bf16 %v188, %v188
    %v389 = vpack.c.bf16 %v189, %v189
    %v390 = vpack.c.bf16 %v190, %v190
    %v391 = vpack.c.bf16 %v191, %v191
    %v392 = vpack.c.bf16 %v192, %v192
    %v393 = vpack.c.bf16 %v193, %v193
    %v394 = vpack.c.bf16 %v194, %v194
    %v395 = vpack.c.bf16 %v195, %v195
    %v396 = vpack.c.bf16 %v196, %v196
    %v397 = vpack.c.bf16 %v197, %v197
    %v398 = vpack.c.bf16 %v198, %v198
    %v399 = vpack.c.bf16 %v199, %v199
    %v400 = vpack.c.bf16 %v200, %v200
    %v401 = vpack.c.bf16 %v201, %v201
    %v402 = vpack.c.bf16 %v202, %v202
    %v403 = vpack.c.bf16 %v203, %v203
    %v404 = vpack.c.bf16 %v204, %v204
    %v405 = vpack.c.bf16 %v205, %v205
    %v406 = vpack.c.bf16 %v206, %v206
    %v407 = vpack.c.bf16 %v207, %v207
    %v408 = vpack.c.bf16 %v208, %v208
    %v409 = vpack.c.bf16 %v209, %v209
    %v410 = vpack.c.bf16 %v210, %v210
    %v411 = vpack.c.bf16 %v211, %v211
    %v412 = vpack.c.bf16 %v212, %v212
    %v413 = vpack.c.bf16 %v213, %v213
    %v414 = vpack.c.bf16 %v214, %v214
    %v415 = vpack.c.bf16 %v215, %v215
    %v416 = vpack.c.bf16 %v216, %v216
    %v417 = vpack.c.bf16 %v217, %v217
    %v418 = vpack.c.bf16 %v218, %v218
    %v419 = vpack.c.bf16 %v219, %v219
    %v420 = vpack.c.bf16 %v220, %v220
    %v421 = vpack.c.bf16 %v221, %v221
    %v422 = vpack.c.bf16 %v222, %v222
    %v423 = vpack.c.bf16 %v223, %v223
    %v424 = vpack.c.bf16 %v224, %v224
    %v425 = vpack.c.bf16 %v225, %v225
    %v426 = vpack.c.bf16 %v226, %v226
    %v427 = vpack.c.bf16 %v227, %v227
    %v428 = vpack.c.bf16 %v228, %v228
    %v429 = vpack.c.bf16 %v229, %v229
    %v430 = vpack.c.bf16 %v230, %v230
    %v431 = vpack.c.bf16 %v231, %v231
    %v432 = vpack.c.bf16 %v232, %v232
    %v433 = vpack.c.bf16 %v233, %v233
    %v434 = vpack.c.bf16 %v234, %v234
    %v435 = vpack.c.bf16 %v235, %v235
    %v436 = vpack.c.bf16 %v236, %v236
    %v437 = vpack.c.bf16 %v237, %v237
    %v438 = vpack.c.bf16 %v238, %v238
    %v439 = vpack.c.bf16 %v239, %v239
    %v440 = vpack.c.bf16 %v240, %v240
    %v441 = vpack.c.bf16 %v241, %v241
    %v442 = vpack.c.bf16 %v242, %v242
    %v443 = vpack.c.bf16 %v243, %v243
    %v444 = vpack.c.bf16 %v244, %v244
    %v445 = vpack.c.bf16 %v245, %v245
    %v446 = vpack.c.bf16 %v246, %v246
    %v447 = vpack.c.bf16 %v247, %v247
    %v448 = vpack.c.bf16 %v248, %v248
    %v449 = vpack.c.bf16 %v249, %v249
    %v450 = vpack.c.bf16 %v250, %v250
    %v451 = vpack.c.bf16 %v251, %v251
    %v452 = vpack.c.bf16 %v252, %v252
    %v453 = vpack.c.bf16 %v253, %v253
    %v454 = vpack.c.bf16 %v254, %v254
    %v455 = vpack.c.bf16 %v255, %v255
    %v456 = vpack.c.bf16 %v256, %v256
    %v457 = vpack.c.bf16 %v257, %v257
    %v458 = vpack.c.bf16 %v258, %v258
    %v459 = vpack.c.bf16 %v259, %v259
    %v460 = vpack.c.bf16 %v260, %v260
    %v461 = vpack.c.bf16 %v261, %v261
    %v462 = vpack.c.bf16 %v262, %v262
    %v463 = vpack.c.bf16 %v263, %v263
    %v464 = vpack.c.bf16 %v264, %v264
    %v465 = vpack.c.bf16 %v265, %v265
    %v466 = vpack.c.bf16 %v266, %v266
    %v467 = vpack.c.bf16 %v267, %v267
    %v468 = vpack.c.bf16 %v268, %v268
    %v469 = vpack.c.bf16 %v269, %v269
    %v470 = vpack.c.bf16 %v270, %v270
    %v471 = vpack.c.bf16 %v271, %v271
    %v472 = vld [vmem:[%s5] sm:$0xf]
    %v473 = vld [vmem:[%s5 + $0x4] sm:$0x1]
    %v474 = vperm.slane %v71, 0
    %v675 = vunpack.c.l.b16 %v272
    %v676 = vunpack.c.l.b16 %v273
    %v677 = vunpack.c.l.b16 %v274
    %v678 = vunpack.c.l.b16 %v275
    %v679 = vunpack.c.l.b16 %v276
    %v680 = vunpack.c.l.b16 %v277
    %v681 = vunpack.c.l.b16 %v278
    %v682 = vunpack.c.l.b16 %v279
    %v683 = vunpack.c.l.b16 %v280
    %v684 = vunpack.c.l.b16 %v281
    %v685 = vunpack.c.l.b16 %v282
    %v686 = vunpack.c.l.b16 %v283
    %v687 = vunpack.c.l.b16 %v284
    %v688 = vunpack.c.l.b16 %v285
    %v689 = vunpack.c.l.b16 %v286
    %v690 = vunpack.c.l.b16 %v287
    %v691 = vunpack.c.l.b16 %v288
    %v692 = vunpack.c.l.b16 %v289
    %v693 = vunpack.c.l.b16 %v290
    %v694 = vunpack.c.l.b16 %v291
    %v695 = vunpack.c.l.b16 %v292
    %v696 = vunpack.c.l.b16 %v293
    %v697 = vunpack.c.l.b16 %v294
    %v698 = vunpack.c.l.b16 %v295
    %v699 = vunpack.c.l.b16 %v296
    %v700 = vunpack.c.l.b16 %v297
    %v701 = vunpack.c.l.b16 %v298
    %v702 = vunpack.c.l.b16 %v299
    %v703 = vunpack.c.l.b16 %v300
    %v704 = vunpack.c.l.b16 %v301
    %v705 = vunpack.c.l.b16 %v302
    %v706 = vunpack.c.l.b16 %v303
    %v707 = vunpack.c.l.b16 %v304
    %v708 = vunpack.c.l.b16 %v305
    %v709 = vunpack.c.l.b16 %v306
    %v710 = vunpack.c.l.b16 %v307
    %v711 = vunpack.c.l.b16 %v308
    %v712 = vunpack.c.l.b16 %v309
    %v713 = vunpack.c.l.b16 %v310
    %v714 = vunpack.c.l.b16 %v311
    %v715 = vunpack.c.l.b16 %v312
    %v716 = vunpack.c.l.b16 %v313
    %v717 = vunpack.c.l.b16 %v314
    %v718 = vunpack.c.l.b16 %v315
    %v719 = vunpack.c.l.b16 %v316
    %v720 = vunpack.c.l.b16 %v317
    %v721 = vunpack.c.l.b16 %v318
    %v722 = vunpack.c.l.b16 %v319
    %v723 = vunpack.c.l.b16 %v320
    %v724 = vunpack.c.l.b16 %v321
    %v725 = vunpack.c.l.b16 %v322
    %v726 = vunpack.c.l.b16 %v323
    %v727 = vunpack.c.l.b16 %v324
    %v728 = vunpack.c.l.b16 %v325
    %v729 = vunpack.c.l.b16 %v326
    %v730 = vunpack.c.l.b16 %v327
    %v731 = vunpack.c.l.b16 %v328
    %v732 = vunpack.c.l.b16 %v329
    %v733 = vunpack.c.l.b16 %v330
    %v734 = vunpack.c.l.b16 %v331
    %v735 = vunpack.c.l.b16 %v332
    %v736 = vunpack.c.l.b16 %v333
    %v737 = vunpack.c.l.b16 %v334
    %v738 = vunpack.c.l.b16 %v335
    %v739 = vunpack.c.l.b16 %v336
    %v740 = vunpack.c.l.b16 %v337
    %v741 = vunpack.c.l.b16 %v338
    %v742 = vunpack.c.l.b16 %v339
    %v743 = vunpack.c.l.b16 %v340
    %v744 = vunpack.c.l.b16 %v341
    %v745 = vunpack.c.l.b16 %v342
    %v746 = vunpack.c.l.b16 %v343
    %v747 = vunpack.c.l.b16 %v344
    %v748 = vunpack.c.l.b16 %v345
    %v749 = vunpack.c.l.b16 %v346
    %v750 = vunpack.c.l.b16 %v347
    %v751 = vunpack.c.l.b16 %v348
    %v752 = vunpack.c.l.b16 %v349
    %v753 = vunpack.c.l.b16 %v350
    %v754 = vunpack.c.l.b16 %v351
    %v755 = vunpack.c.l.b16 %v352
    %v756 = vunpack.c.l.b16 %v353
    %v757 = vunpack.c.l.b16 %v354
    %v758 = vunpack.c.l.b16 %v355
    %v759 = vunpack.c.l.b16 %v356
    %v760 = vunpack.c.l.b16 %v357
    %v761 = vunpack.c.l.b16 %v358
    %v762 = vunpack.c.l.b16 %v359
    %v763 = vunpack.c.l.b16 %v360
    %v764 = vunpack.c.l.b16 %v361
    %v765 = vunpack.c.l.b16 %v362
    %v766 = vunpack.c.l.b16 %v363
    %v767 = vunpack.c.l.b16 %v364
    %v768 = vunpack.c.l.b16 %v365
    %v769 = vunpack.c.l.b16 %v366
    %v770 = vunpack.c.l.b16 %v367
    %v771 = vunpack.c.l.b16 %v368
    %v772 = vunpack.c.l.b16 %v369
    %v773 = vunpack.c.l.b16 %v370
    %v774 = vunpack.c.l.b16 %v371
    %v775 = vunpack.c.l.b16 %v372
    %v776 = vunpack.c.l.b16 %v373
    %v777 = vunpack.c.l.b16 %v374
    %v778 = vunpack.c.l.b16 %v375
    %v779 = vunpack.c.l.b16 %v376
    %v780 = vunpack.c.l.b16 %v377
    %v781 = vunpack.c.l.b16 %v378
    %v782 = vunpack.c.l.b16 %v379
    %v783 = vunpack.c.l.b16 %v380
    %v784 = vunpack.c.l.b16 %v381
    %v785 = vunpack.c.l.b16 %v382
    %v786 = vunpack.c.l.b16 %v383
    %v787 = vunpack.c.l.b16 %v384
    %v788 = vunpack.c.l.b16 %v385
    %v789 = vunpack.c.l.b16 %v386
    %v790 = vunpack.c.l.b16 %v387
    %v791 = vunpack.c.l.b16 %v388
    %v792 = vunpack.c.l.b16 %v389
    %v793 = vunpack.c.l.b16 %v390
    %v794 = vunpack.c.l.b16 %v391
    %v795 = vunpack.c.l.b16 %v392
    %v796 = vunpack.c.l.b16 %v393
    %v797 = vunpack.c.l.b16 %v394
    %v798 = vunpack.c.l.b16 %v395
    %v799 = vunpack.c.l.b16 %v396
    %v800 = vunpack.c.l.b16 %v397
    %v801 = vunpack.c.l.b16 %v398
    %v802 = vunpack.c.l.b16 %v399
    %v803 = vunpack.c.l.b16 %v400
    %v804 = vunpack.c.l.b16 %v401
    %v805 = vunpack.c.l.b16 %v402
    %v806 = vunpack.c.l.b16 %v403
    %v807 = vunpack.c.l.b16 %v404
    %v808 = vunpack.c.l.b16 %v405
    %v809 = vunpack.c.l.b16 %v406
    %v810 = vunpack.c.l.b16 %v407
    %v811 = vunpack.c.l.b16 %v408
    %v812 = vunpack.c.l.b16 %v409
    %v813 = vunpack.c.l.b16 %v410
    %v814 = vunpack.c.l.b16 %v411
    %v815 = vunpack.c.l.b16 %v412
    %v816 = vunpack.c.l.b16 %v413
    %v817 = vunpack.c.l.b16 %v414
    %v818 = vunpack.c.l.b16 %v415
    %v819 = vunpack.c.l.b16 %v416
    %v820 = vunpack.c.l.b16 %v417
    %v821 = vunpack.c.l.b16 %v418
    %v822 = vunpack.c.l.b16 %v419
    %v823 = vunpack.c.l.b16 %v420
    %v824 = vunpack.c.l.b16 %v421
    %v825 = vunpack.c.l.b16 %v422
    %v826 = vunpack.c.l.b16 %v423
    %v827 = vunpack.c.l.b16 %v424
    %v828 = vunpack.c.l.b16 %v425
    %v829 = vunpack.c.l.b16 %v426
    %v830 = vunpack.c.l.b16 %v427
    %v831 = vunpack.c.l.b16 %v428
    %v832 = vunpack.c.l.b16 %v429
    %v833 = vunpack.c.l.b16 %v430
    %v834 = vunpack.c.l.b16 %v431
    %v835 = vunpack.c.l.b16 %v432
    %v836 = vunpack.c.l.b16 %v433
    %v837 = vunpack.c.l.b16 %v434
    %v838 = vunpack.c.l.b16 %v435
    %v839 = vunpack.c.l.b16 %v436
    %v840 = vunpack.c.l.b16 %v437
    %v841 = vunpack.c.l.b16 %v438
    %v842 = vunpack.c.l.b16 %v439
    %v843 = vunpack.c.l.b16 %v440
    %v844 = vunpack.c.l.b16 %v441
    %v845 = vunpack.c.l.b16 %v442
    %v846 = vunpack.c.l.b16 %v443
    %v847 = vunpack.c.l.b16 %v444
    %v848 = vunpack.c.l.b16 %v445
    %v849 = vunpack.c.l.b16 %v446
    %v850 = vunpack.c.l.b16 %v447
    %v851 = vunpack.c.l.b16 %v448
    %v852 = vunpack.c.l.b16 %v449
    %v853 = vunpack.c.l.b16 %v450
    %v854 = vunpack.c.l.b16 %v451
    %v855 = vunpack.c.l.b16 %v452
    %v856 = vunpack.c.l.b16 %v453
    %v857 = vunpack.c.l.b16 %v454
    %v858 = vunpack.c.l.b16 %v455
    %v859 = vunpack.c.l.b16 %v456
    %v860 = vunpack.c.l.b16 %v457
    %v861 = vunpack.c.l.b16 %v458
    %v862 = vunpack.c.l.b16 %v459
    %v863 = vunpack.c.l.b16 %v460
    %v864 = vunpack.c.l.b16 %v461
    %v865 = vunpack.c.l.b16 %v462
    %v866 = vunpack.c.l.b16 %v463
    %v867 = vunpack.c.l.b16 %v464
    %v868 = vunpack.c.l.b16 %v465
    %v869 = vunpack.c.l.b16 %v466
    %v870 = vunpack.c.l.b16 %v467
    %v871 = vunpack.c.l.b16 %v468
    %v872 = vunpack.c.l.b16 %v469
    %v873 = vunpack.c.l.b16 %v470
    %v874 = vunpack.c.l.b16 %v471
    %v875 = vpack.c.b16 %v676, %v675
    %v876 = vpack.c.b16 %v678, %v677
    %v877 = vpack.c.b16 %v680, %v679
    %v878 = vpack.c.b16 %v682, %v681
    %v879 = vpack.c.b16 %v684, %v683
    %v880 = vpack.c.b16 %v686, %v685
    %v881 = vpack.c.b16 %v688, %v687
    %v882 = vpack.c.b16 %v690, %v689
    %v883 = vpack.c.b16 %v692, %v691
    %v884 = vpack.c.b16 %v694, %v693
    %v885 = vpack.c.b16 %v696, %v695
    %v886 = vpack.c.b16 %v698, %v697
    %v887 = vpack.c.b16 %v700, %v699
    %v888 = vpack.c.b16 %v702, %v701
    %v889 = vpack.c.b16 %v704, %v703
    %v890 = vpack.c.b16 %v706, %v705
    %v891 = vpack.c.b16 %v708, %v707
    %v892 = vpack.c.b16 %v710, %v709
    %v893 = vpack.c.b16 %v712, %v711
    %v894 = vpack.c.b16 %v714, %v713
    %v895 = vpack.c.b16 %v716, %v715
    %v896 = vpack.c.b16 %v718, %v717
    %v897 = vpack.c.b16 %v720, %v719
    %v898 = vpack.c.b16 %v722, %v721
    %v899 = vpack.c.b16 %v724, %v723
    %v900 = vpack.c.b16 %v726, %v725
    %v901 = vpack.c.b16 %v728, %v727
    %v902 = vpack.c.b16 %v730, %v729
    %v903 = vpack.c.b16 %v732, %v731
    %v904 = vpack.c.b16 %v734, %v733
    %v905 = vpack.c.b16 %v736, %v735
    %v906 = vpack.c.b16 %v738, %v737
    %v907 = vpack.c.b16 %v740, %v739
    %v908 = vpack.c.b16 %v742, %v741
    %v909 = vpack.c.b16 %v744, %v743
    %v910 = vpack.c.b16 %v746, %v745
    %v911 = vpack.c.b16 %v748, %v747
    %v912 = vpack.c.b16 %v750, %v749
    %v913 = vpack.c.b16 %v752, %v751
    %v914 = vpack.c.b16 %v754, %v753
    %v915 = vpack.c.b16 %v756, %v755
    %v916 = vpack.c.b16 %v758, %v757
    %v917 = vpack.c.b16 %v760, %v759
    %v918 = vpack.c.b16 %v762, %v761
    %v919 = vpack.c.b16 %v764, %v763
    %v920 = vpack.c.b16 %v766, %v765
    %v921 = vpack.c.b16 %v768, %v767
    %v922 = vpack.c.b16 %v770, %v769
    %v923 = vpack.c.b16 %v772, %v771
    %v924 = vpack.c.b16 %v774, %v773
    %v925 = vpack.c.b16 %v776, %v775
    %v926 = vpack.c.b16 %v778, %v777
    %v927 = vpack.c.b16 %v780, %v779
    %v928 = vpack.c.b16 %v782, %v781
    %v929 = vpack.c.b16 %v784, %v783
    %v930 = vpack.c.b16 %v786, %v785
    %v931 = vpack.c.b16 %v788, %v787
    %v932 = vpack.c.b16 %v790, %v789
    %v933 = vpack.c.b16 %v792, %v791
    %v934 = vpack.c.b16 %v794, %v793
    %v935 = vpack.c.b16 %v796, %v795
    %v936 = vpack.c.b16 %v798, %v797
    %v937 = vpack.c.b16 %v800, %v799
    %v938 = vpack.c.b16 %v802, %v801
    %v939 = vpack.c.b16 %v804, %v803
    %v940 = vpack.c.b16 %v806, %v805
    %v941 = vpack.c.b16 %v808, %v807
    %v942 = vpack.c.b16 %v810, %v809
    %v943 = vpack.c.b16 %v812, %v811
    %v944 = vpack.c.b16 %v814, %v813
    %v945 = vpack.c.b16 %v816, %v815
    %v946 = vpack.c.b16 %v818, %v817
    %v947 = vpack.c.b16 %v820, %v819
    %v948 = vpack.c.b16 %v822, %v821
    %v949 = vpack.c.b16 %v824, %v823
    %v950 = vpack.c.b16 %v826, %v825
    %v951 = vpack.c.b16 %v828, %v827
    %v952 = vpack.c.b16 %v830, %v829
    %v953 = vpack.c.b16 %v832, %v831
    %v954 = vpack.c.b16 %v834, %v833
    %v955 = vpack.c.b16 %v836, %v835
    %v956 = vpack.c.b16 %v838, %v837
    %v957 = vpack.c.b16 %v840, %v839
    %v958 = vpack.c.b16 %v842, %v841
    %v959 = vpack.c.b16 %v844, %v843
    %v960 = vpack.c.b16 %v846, %v845
    %v961 = vpack.c.b16 %v848, %v847
    %v962 = vpack.c.b16 %v850, %v849
    %v963 = vpack.c.b16 %v852, %v851
    %v964 = vpack.c.b16 %v854, %v853
    %v965 = vpack.c.b16 %v856, %v855
    %v966 = vpack.c.b16 %v858, %v857
    %v967 = vpack.c.b16 %v860, %v859
    %v968 = vpack.c.b16 %v862, %v861
    %v969 = vpack.c.b16 %v864, %v863
    %v970 = vpack.c.b16 %v866, %v865
    %v971 = vpack.c.b16 %v868, %v867
    %v972 = vpack.c.b16 %v870, %v869
    %v973 = vpack.c.b16 %v872, %v871
    %v974 = vpack.c.b16 %v874, %v873
    %v977 = vunpack.c.l.b16 %v472
    %v978 = vunpack.c.l.b16 %v473
    %v979 = vpack.c.b16 %v978, %v977
    %vm980 = vcmask 72704
    %v982 = vsel %vm980, %v875, 0
    %v985 = vsel %vm980, %v876, 0
    %v988 = vsel %vm980, %v877, 0
    %v991 = vsel %vm980, %v878, 0
    %v994 = vsel %vm980, %v879, 0
    %v997 = vsel %vm980, %v880, 0
    %v1000 = vsel %vm980, %v881, 0
    %v1003 = vsel %vm980, %v882, 0
    %v1006 = vsel %vm980, %v883, 0
    %v1009 = vsel %vm980, %v884, 0
    %v1012 = vsel %vm980, %v885, 0
    %v1015 = vsel %vm980, %v886, 0
    %v1018 = vsel %vm980, %v887, 0
    %v1021 = vsel %vm980, %v888, 0
    %v1024 = vsel %vm980, %v889, 0
    %v1027 = vsel %vm980, %v890, 0
    %v1030 = vsel %vm980, %v891, 0
    %v1033 = vsel %vm980, %v892, 0
    %v1036 = vsel %vm980, %v893, 0
    %v1039 = vsel %vm980, %v894, 0
    %v1042 = vsel %vm980, %v895, 0
    %v1045 = vsel %vm980, %v896, 0
    %v1048 = vsel %vm980, %v897, 0
    %v1051 = vsel %vm980, %v898, 0
    %v1054 = vsel %vm980, %v899, 0
    %v1057 = vsel %vm980, %v900, 0
    %v1060 = vsel %vm980, %v901, 0
    %v1063 = vsel %vm980, %v902, 0
    %v1066 = vsel %vm980, %v903, 0
    %v1069 = vsel %vm980, %v904, 0
    %v1072 = vsel %vm980, %v905, 0
    %v1075 = vsel %vm980, %v906, 0
    %v1078 = vsel %vm980, %v907, 0
    %v1081 = vsel %vm980, %v908, 0
    %v1084 = vsel %vm980, %v909, 0
    %v1087 = vsel %vm980, %v910, 0
    %v1090 = vsel %vm980, %v911, 0
    %v1093 = vsel %vm980, %v912, 0
    %v1096 = vsel %vm980, %v913, 0
    %v1099 = vsel %vm980, %v914, 0
    %v1102 = vsel %vm980, %v915, 0
    %v1105 = vsel %vm980, %v916, 0
    %v1108 = vsel %vm980, %v917, 0
    %v1111 = vsel %vm980, %v918, 0
    %v1114 = vsel %vm980, %v919, 0
    %v1117 = vsel %vm980, %v920, 0
    %v1120 = vsel %vm980, %v921, 0
    %v1123 = vsel %vm980, %v922, 0
    %v1126 = vsel %vm980, %v923, 0
    %v1129 = vsel %vm980, %v924, 0
    %v1132 = vsel %vm980, %v925, 0
    %v1135 = vsel %vm980, %v926, 0
    %v1138 = vsel %vm980, %v927, 0
    %v1141 = vsel %vm980, %v928, 0
    %v1144 = vsel %vm980, %v929, 0
    %v1147 = vsel %vm980, %v930, 0
    %v1150 = vsel %vm980, %v931, 0
    %v1153 = vsel %vm980, %v932, 0
    %v1156 = vsel %vm980, %v933, 0
    %v1159 = vsel %vm980, %v934, 0
    %v1162 = vsel %vm980, %v935, 0
    %v1165 = vsel %vm980, %v936, 0
    %v1168 = vsel %vm980, %v937, 0
    %v1171 = vsel %vm980, %v938, 0
    %v1174 = vsel %vm980, %v939, 0
    %v1177 = vsel %vm980, %v940, 0
    %v1180 = vsel %vm980, %v941, 0
    %v1183 = vsel %vm980, %v942, 0
    %v1186 = vsel %vm980, %v943, 0
    %v1189 = vsel %vm980, %v944, 0
    %v1192 = vsel %vm980, %v945, 0
    %v1195 = vsel %vm980, %v946, 0
    %v1198 = vsel %vm980, %v947, 0
    %v1201 = vsel %vm980, %v948, 0
    %v1204 = vsel %vm980, %v949, 0
    %v1207 = vsel %vm980, %v950, 0
    %v1210 = vsel %vm980, %v951, 0
    %v1213 = vsel %vm980, %v952, 0
    %v1216 = vsel %vm980, %v953, 0
    %v1219 = vsel %vm980, %v954, 0
    %v1222 = vsel %vm980, %v955, 0
    %v1225 = vsel %vm980, %v956, 0
    %v1228 = vsel %vm980, %v957, 0
    %v1231 = vsel %vm980, %v958, 0
    %v1234 = vsel %vm980, %v959, 0
    %v1237 = vsel %vm980, %v960, 0
    %v1240 = vsel %vm980, %v961, 0
    %v1243 = vsel %vm980, %v962, 0
    %v1246 = vsel %vm980, %v963, 0
    %v1249 = vsel %vm980, %v964, 0
    %v1252 = vsel %vm980, %v965, 0
    %v1255 = vsel %vm980, %v966, 0
    %v1258 = vsel %vm980, %v967, 0
    %v1261 = vsel %vm980, %v968, 0
    %v1264 = vsel %vm980, %v969, 0
    %v1267 = vsel %vm980, %v970, 0
    %v1270 = vsel %vm980, %v971, 0
    %v1273 = vsel %vm980, %v972, 0
    %v1276 = vsel %vm980, %v973, 0
    %v1279 = vsel %vm980, %v974, 0
    %vm1281 = vcmask 1043456
    %vm1282 = vcmask 1044480
    %v1283 = vsel %vm1281, 4294967295, 65535
    %v1284 = vsel %vm1282, %v1283, 0
    %v1286 = vand.u32 %v979, %v1284
    %1288 = vmatpush.bf16.msra.mxu0 0
    %1289 = vmatpush.bf16.msra.mxu0 0
    %1290 = vmatpush.bf16.msra.mxu0 0
    %1291 = vmatpush.bf16.msra.mxu0 0
    %1292 = vmatpush.bf16.msra.mxu0 0
    %1293 = vmatpush.bf16.msra.mxu0 0
    %1294 = vmatpush.bf16.msra.mxu0 0
    %1295 = vmatpush.bf16.msra.mxu0 %v1286
    %1296 = vmatmul.bf16.gmra.mxu0 %v982
    %v1297 = vpop.f32.mrf.mxu0
    %v1298 = vadd.f32 %v474, %v1297
    %v1299 = vpop.f32.mrf.mxu0
    %v1300 = vadd.f32 %v474, %v1299
    %1301 = vmatmul.bf16.gmra.mxu0 %v985
    %v1302 = vpop.f32.mrf.mxu0
    %v1303 = vadd.f32 %v474, %v1302
    %v1304 = vpop.f32.mrf.mxu0
    %v1305 = vadd.f32 %v474, %v1304
    %1306 = vmatmul.bf16.gmra.mxu0 %v988
    %v1307 = vpop.f32.mrf.mxu0
    %v1308 = vadd.f32 %v474, %v1307
    %v1309 = vpop.f32.mrf.mxu0
    %v1310 = vadd.f32 %v474, %v1309
    %1311 = vmatmul.bf16.gmra.mxu0 %v991
    %v1312 = vpop.f32.mrf.mxu0
    %v1313 = vadd.f32 %v474, %v1312
    %v1314 = vpop.f32.mrf.mxu0
    %v1315 = vadd.f32 %v474, %v1314
    %1316 = vmatmul.bf16.gmra.mxu0 %v994
    %v1317 = vpop.f32.mrf.mxu0
    %v1318 = vadd.f32 %v474, %v1317
    %v1319 = vpop.f32.mrf.mxu0
    %v1320 = vadd.f32 %v474, %v1319
    %1321 = vmatmul.bf16.gmra.mxu0 %v997
    %v1322 = vpop.f32.mrf.mxu0
    %v1323 = vadd.f32 %v474, %v1322
    %v1324 = vpop.f32.mrf.mxu0
    %v1325 = vadd.f32 %v474, %v1324
    %1326 = vmatmul.bf16.gmra.mxu0 %v1000
    %v1327 = vpop.f32.mrf.mxu0
    %v1328 = vadd.f32 %v474, %v1327
    %v1329 = vpop.f32.mrf.mxu0
    %v1330 = vadd.f32 %v474, %v1329
    %1331 = vmatmul.bf16.gmra.mxu0 %v1003
    %v1332 = vpop.f32.mrf.mxu0
    %v1333 = vadd.f32 %v474, %v1332
    %v1334 = vpop.f32.mrf.mxu0
    %v1335 = vadd.f32 %v474, %v1334
    %1336 = vmatmul.bf16.gmra.mxu0 %v1006
    %v1337 = vpop.f32.mrf.mxu0
    %v1338 = vadd.f32 %v474, %v1337
    %v1339 = vpop.f32.mrf.mxu0
    %v1340 = vadd.f32 %v474, %v1339
    %1341 = vmatmul.bf16.gmra.mxu0 %v1009
    %v1342 = vpop.f32.mrf.mxu0
    %v1343 = vadd.f32 %v474, %v1342
    %v1344 = vpop.f32.mrf.mxu0
    %v1345 = vadd.f32 %v474, %v1344
    %1346 = vmatmul.bf16.gmra.mxu0 %v1012
    %v1347 = vpop.f32.mrf.mxu0
    %v1348 = vadd.f32 %v474, %v1347
    %v1349 = vpop.f32.mrf.mxu0
    %v1350 = vadd.f32 %v474, %v1349
    %1351 = vmatmul.bf16.gmra.mxu0 %v1015
    %v1352 = vpop.f32.mrf.mxu0
    %v1353 = vadd.f32 %v474, %v1352
    %v1354 = vpop.f32.mrf.mxu0
    %v1355 = vadd.f32 %v474, %v1354
    %1356 = vmatmul.bf16.gmra.mxu0 %v1018
    %v1357 = vpop.f32.mrf.mxu0
    %v1358 = vadd.f32 %v474, %v1357
    %v1359 = vpop.f32.mrf.mxu0
    %v1360 = vadd.f32 %v474, %v1359
    %1361 = vmatmul.bf16.gmra.mxu0 %v1021
    %v1362 = vpop.f32.mrf.mxu0
    %v1363 = vadd.f32 %v474, %v1362
    %v1364 = vpop.f32.mrf.mxu0
    %v1365 = vadd.f32 %v474, %v1364
    %1366 = vmatmul.bf16.gmra.mxu0 %v1024
    %v1367 = vpop.f32.mrf.mxu0
    %v1368 = vadd.f32 %v474, %v1367
    %v1369 = vpop.f32.mrf.mxu0
    %v1370 = vadd.f32 %v474, %v1369
    %1371 = vmatmul.bf16.gmra.mxu0 %v1027
    %v1372 = vpop.f32.mrf.mxu0
    %v1373 = vadd.f32 %v474, %v1372
    %v1374 = vpop.f32.mrf.mxu0
    %v1375 = vadd.f32 %v474, %v1374
    %1376 = vmatmul.bf16.gmra.mxu0 %v1030
    %v1377 = vpop.f32.mrf.mxu0
    %v1378 = vadd.f32 %v474, %v1377
    %v1379 = vpop.f32.mrf.mxu0
    %v1380 = vadd.f32 %v474, %v1379
    %1381 = vmatmul.bf16.gmra.mxu0 %v1033
    %v1382 = vpop.f32.mrf.mxu0
    %v1383 = vadd.f32 %v474, %v1382
    %v1384 = vpop.f32.mrf.mxu0
    %v1385 = vadd.f32 %v474, %v1384
    %1386 = vmatmul.bf16.gmra.mxu0 %v1036
    %v1387 = vpop.f32.mrf.mxu0
    %v1388 = vadd.f32 %v474, %v1387
    %v1389 = vpop.f32.mrf.mxu0
    %v1390 = vadd.f32 %v474, %v1389
    %1391 = vmatmul.bf16.gmra.mxu0 %v1039
    %v1392 = vpop.f32.mrf.mxu0
    %v1393 = vadd.f32 %v474, %v1392
    %v1394 = vpop.f32.mrf.mxu0
    %v1395 = vadd.f32 %v474, %v1394
    %1396 = vmatmul.bf16.gmra.mxu0 %v1042
    %v1397 = vpop.f32.mrf.mxu0
    %v1398 = vadd.f32 %v474, %v1397
    %v1399 = vpop.f32.mrf.mxu0
    %v1400 = vadd.f32 %v474, %v1399
    %1401 = vmatmul.bf16.gmra.mxu0 %v1045
    %v1402 = vpop.f32.mrf.mxu0
    %v1403 = vadd.f32 %v474, %v1402
    %v1404 = vpop.f32.mrf.mxu0
    %v1405 = vadd.f32 %v474, %v1404
    %1406 = vmatmul.bf16.gmra.mxu0 %v1048
    %v1407 = vpop.f32.mrf.mxu0
    %v1408 = vadd.f32 %v474, %v1407
    %v1409 = vpop.f32.mrf.mxu0
    %v1410 = vadd.f32 %v474, %v1409
    %1411 = vmatmul.bf16.gmra.mxu0 %v1051
    %v1412 = vpop.f32.mrf.mxu0
    %v1413 = vadd.f32 %v474, %v1412
    %v1414 = vpop.f32.mrf.mxu0
    %v1415 = vadd.f32 %v474, %v1414
    %1416 = vmatmul.bf16.gmra.mxu0 %v1054
    %v1417 = vpop.f32.mrf.mxu0
    %v1418 = vadd.f32 %v474, %v1417
    %v1419 = vpop.f32.mrf.mxu0
    %v1420 = vadd.f32 %v474, %v1419
    %1421 = vmatmul.bf16.gmra.mxu0 %v1057
    %v1422 = vpop.f32.mrf.mxu0
    %v1423 = vadd.f32 %v474, %v1422
    %v1424 = vpop.f32.mrf.mxu0
    %v1425 = vadd.f32 %v474, %v1424
    %1426 = vmatmul.bf16.gmra.mxu0 %v1060
    %v1427 = vpop.f32.mrf.mxu0
    %v1428 = vadd.f32 %v474, %v1427
    %v1429 = vpop.f32.mrf.mxu0
    %v1430 = vadd.f32 %v474, %v1429
    %1431 = vmatmul.bf16.gmra.mxu0 %v1063
    %v1432 = vpop.f32.mrf.mxu0
    %v1433 = vadd.f32 %v474, %v1432
    %v1434 = vpop.f32.mrf.mxu0
    %v1435 = vadd.f32 %v474, %v1434
    %1436 = vmatmul.bf16.gmra.mxu0 %v1066
    %v1437 = vpop.f32.mrf.mxu0
    %v1438 = vadd.f32 %v474, %v1437
    %v1439 = vpop.f32.mrf.mxu0
    %v1440 = vadd.f32 %v474, %v1439
    %1441 = vmatmul.bf16.gmra.mxu0 %v1069
    %v1442 = vpop.f32.mrf.mxu0
    %v1443 = vadd.f32 %v474, %v1442
    %v1444 = vpop.f32.mrf.mxu0
    %v1445 = vadd.f32 %v474, %v1444
    %1446 = vmatmul.bf16.gmra.mxu0 %v1072
    %v1447 = vpop.f32.mrf.mxu0
    %v1448 = vadd.f32 %v474, %v1447
    %v1449 = vpop.f32.mrf.mxu0
    %v1450 = vadd.f32 %v474, %v1449
    %1451 = vmatmul.bf16.gmra.mxu0 %v1075
    %v1452 = vpop.f32.mrf.mxu0
    %v1453 = vadd.f32 %v474, %v1452
    %v1454 = vpop.f32.mrf.mxu0
    %v1455 = vadd.f32 %v474, %v1454
    %1456 = vmatmul.bf16.gmra.mxu0 %v1078
    %v1457 = vpop.f32.mrf.mxu0
    %v1458 = vadd.f32 %v474, %v1457
    %v1459 = vpop.f32.mrf.mxu0
    %v1460 = vadd.f32 %v474, %v1459
    %1461 = vmatmul.bf16.gmra.mxu0 %v1081
    %v1462 = vpop.f32.mrf.mxu0
    %v1463 = vadd.f32 %v474, %v1462
    %v1464 = vpop.f32.mrf.mxu0
    %v1465 = vadd.f32 %v474, %v1464
    %1466 = vmatmul.bf16.gmra.mxu0 %v1084
    %v1467 = vpop.f32.mrf.mxu0
    %v1468 = vadd.f32 %v474, %v1467
    %v1469 = vpop.f32.mrf.mxu0
    %v1470 = vadd.f32 %v474, %v1469
    %1471 = vmatmul.bf16.gmra.mxu0 %v1087
    %v1472 = vpop.f32.mrf.mxu0
    %v1473 = vadd.f32 %v474, %v1472
    %v1474 = vpop.f32.mrf.mxu0
    %v1475 = vadd.f32 %v474, %v1474
    %1476 = vmatmul.bf16.gmra.mxu0 %v1090
    %v1477 = vpop.f32.mrf.mxu0
    %v1478 = vadd.f32 %v474, %v1477
    %v1479 = vpop.f32.mrf.mxu0
    %v1480 = vadd.f32 %v474, %v1479
    %1481 = vmatmul.bf16.gmra.mxu0 %v1093
    %v1482 = vpop.f32.mrf.mxu0
    %v1483 = vadd.f32 %v474, %v1482
    %v1484 = vpop.f32.mrf.mxu0
    %v1485 = vadd.f32 %v474, %v1484
    %1486 = vmatmul.bf16.gmra.mxu0 %v1096
    %v1487 = vpop.f32.mrf.mxu0
    %v1488 = vadd.f32 %v474, %v1487
    %v1489 = vpop.f32.mrf.mxu0
    %v1490 = vadd.f32 %v474, %v1489
    %1491 = vmatmul.bf16.gmra.mxu0 %v1099
    %v1492 = vpop.f32.mrf.mxu0
    %v1493 = vadd.f32 %v474, %v1492
    %v1494 = vpop.f32.mrf.mxu0
    %v1495 = vadd.f32 %v474, %v1494
    %1496 = vmatmul.bf16.gmra.mxu0 %v1102
    %v1497 = vpop.f32.mrf.mxu0
    %v1498 = vadd.f32 %v474, %v1497
    %v1499 = vpop.f32.mrf.mxu0
    %v1500 = vadd.f32 %v474, %v1499
    %1501 = vmatmul.bf16.gmra.mxu0 %v1105
    %v1502 = vpop.f32.mrf.mxu0
    %v1503 = vadd.f32 %v474, %v1502
    %v1504 = vpop.f32.mrf.mxu0
    %v1505 = vadd.f32 %v474, %v1504
    %1506 = vmatmul.bf16.gmra.mxu0 %v1108
    %v1507 = vpop.f32.mrf.mxu0
    %v1508 = vadd.f32 %v474, %v1507
    %v1509 = vpop.f32.mrf.mxu0
    %v1510 = vadd.f32 %v474, %v1509
    %1511 = vmatmul.bf16.gmra.mxu0 %v1111
    %v1512 = vpop.f32.mrf.mxu0
    %v1513 = vadd.f32 %v474, %v1512
    %v1514 = vpop.f32.mrf.mxu0
    %v1515 = vadd.f32 %v474, %v1514
    %1516 = vmatmul.bf16.gmra.mxu0 %v1114
    %v1517 = vpop.f32.mrf.mxu0
    %v1518 = vadd.f32 %v474, %v1517
    %v1519 = vpop.f32.mrf.mxu0
    %v1520 = vadd.f32 %v474, %v1519
    %1521 = vmatmul.bf16.gmra.mxu0 %v1117
    %v1522 = vpop.f32.mrf.mxu0
    %v1523 = vadd.f32 %v474, %v1522
    %v1524 = vpop.f32.mrf.mxu0
    %v1525 = vadd.f32 %v474, %v1524
    %1526 = vmatmul.bf16.gmra.mxu0 %v1120
    %v1527 = vpop.f32.mrf.mxu0
    %v1528 = vadd.f32 %v474, %v1527
    %v1529 = vpop.f32.mrf.mxu0
    %v1530 = vadd.f32 %v474, %v1529
    %1531 = vmatmul.bf16.gmra.mxu0 %v1123
    %v1532 = vpop.f32.mrf.mxu0
    %v1533 = vadd.f32 %v474, %v1532
    %v1534 = vpop.f32.mrf.mxu0
    %v1535 = vadd.f32 %v474, %v1534
    %1536 = vmatmul.bf16.gmra.mxu0 %v1126
    %v1537 = vpop.f32.mrf.mxu0
    %v1538 = vadd.f32 %v474, %v1537
    %v1539 = vpop.f32.mrf.mxu0
    %v1540 = vadd.f32 %v474, %v1539
    %1541 = vmatmul.bf16.gmra.mxu0 %v1129
    %v1542 = vpop.f32.mrf.mxu0
    %v1543 = vadd.f32 %v474, %v1542
    %v1544 = vpop.f32.mrf.mxu0
    %v1545 = vadd.f32 %v474, %v1544
    %1546 = vmatmul.bf16.gmra.mxu0 %v1132
    %v1547 = vpop.f32.mrf.mxu0
    %v1548 = vadd.f32 %v474, %v1547
    %v1549 = vpop.f32.mrf.mxu0
    %v1550 = vadd.f32 %v474, %v1549
    %1551 = vmatmul.bf16.gmra.mxu0 %v1135
    %v1552 = vpop.f32.mrf.mxu0
    %v1553 = vadd.f32 %v474, %v1552
    %v1554 = vpop.f32.mrf.mxu0
    %v1555 = vadd.f32 %v474, %v1554
    %1556 = vmatmul.bf16.gmra.mxu0 %v1138
    %v1557 = vpop.f32.mrf.mxu0
    %v1558 = vadd.f32 %v474, %v1557
    %v1559 = vpop.f32.mrf.mxu0
    %v1560 = vadd.f32 %v474, %v1559
    %1561 = vmatmul.bf16.gmra.mxu0 %v1141
    %v1562 = vpop.f32.mrf.mxu0
    %v1563 = vadd.f32 %v474, %v1562
    %v1564 = vpop.f32.mrf.mxu0
    %v1565 = vadd.f32 %v474, %v1564
    %1566 = vmatmul.bf16.gmra.mxu0 %v1144
    %v1567 = vpop.f32.mrf.mxu0
    %v1568 = vadd.f32 %v474, %v1567
    %v1569 = vpop.f32.mrf.mxu0
    %v1570 = vadd.f32 %v474, %v1569
    %1571 = vmatmul.bf16.gmra.mxu0 %v1147
    %v1572 = vpop.f32.mrf.mxu0
    %v1573 = vadd.f32 %v474, %v1572
    %v1574 = vpop.f32.mrf.mxu0
    %v1575 = vadd.f32 %v474, %v1574
    %1576 = vmatmul.bf16.gmra.mxu0 %v1150
    %v1577 = vpop.f32.mrf.mxu0
    %v1578 = vadd.f32 %v474, %v1577
    %v1579 = vpop.f32.mrf.mxu0
    %v1580 = vadd.f32 %v474, %v1579
    %1581 = vmatmul.bf16.gmra.mxu0 %v1153
    %v1582 = vpop.f32.mrf.mxu0
    %v1583 = vadd.f32 %v474, %v1582
    %v1584 = vpop.f32.mrf.mxu0
    %v1585 = vadd.f32 %v474, %v1584
    %1586 = vmatmul.bf16.gmra.mxu0 %v1156
    %v1587 = vpop.f32.mrf.mxu0
    %v1588 = vadd.f32 %v474, %v1587
    %v1589 = vpop.f32.mrf.mxu0
    %v1590 = vadd.f32 %v474, %v1589
    %1591 = vmatmul.bf16.gmra.mxu0 %v1159
    %v1592 = vpop.f32.mrf.mxu0
    %v1593 = vadd.f32 %v474, %v1592
    %v1594 = vpop.f32.mrf.mxu0
    %v1595 = vadd.f32 %v474, %v1594
    %1596 = vmatmul.bf16.gmra.mxu0 %v1162
    %v1597 = vpop.f32.mrf.mxu0
    %v1598 = vadd.f32 %v474, %v1597
    %v1599 = vpop.f32.mrf.mxu0
    %v1600 = vadd.f32 %v474, %v1599
    %1601 = vmatmul.bf16.gmra.mxu0 %v1165
    %v1602 = vpop.f32.mrf.mxu0
    %v1603 = vadd.f32 %v474, %v1602
    %v1604 = vpop.f32.mrf.mxu0
    %v1605 = vadd.f32 %v474, %v1604
    %1606 = vmatmul.bf16.gmra.mxu0 %v1168
    %v1607 = vpop.f32.mrf.mxu0
    %v1608 = vadd.f32 %v474, %v1607
    %v1609 = vpop.f32.mrf.mxu0
    %v1610 = vadd.f32 %v474, %v1609
    %1611 = vmatmul.bf16.gmra.mxu0 %v1171
    %v1612 = vpop.f32.mrf.mxu0
    %v1613 = vadd.f32 %v474, %v1612
    %v1614 = vpop.f32.mrf.mxu0
    %v1615 = vadd.f32 %v474, %v1614
    %1616 = vmatmul.bf16.gmra.mxu0 %v1174
    %v1617 = vpop.f32.mrf.mxu0
    %v1618 = vadd.f32 %v474, %v1617
    %v1619 = vpop.f32.mrf.mxu0
    %v1620 = vadd.f32 %v474, %v1619
    %1621 = vmatmul.bf16.gmra.mxu0 %v1177
    %v1622 = vpop.f32.mrf.mxu0
    %v1623 = vadd.f32 %v474, %v1622
    %v1624 = vpop.f32.mrf.mxu0
    %v1625 = vadd.f32 %v474, %v1624
    %1626 = vmatmul.bf16.gmra.mxu0 %v1180
    %v1627 = vpop.f32.mrf.mxu0
    %v1628 = vadd.f32 %v474, %v1627
    %v1629 = vpop.f32.mrf.mxu0
    %v1630 = vadd.f32 %v474, %v1629
    %1631 = vmatmul.bf16.gmra.mxu0 %v1183
    %v1632 = vpop.f32.mrf.mxu0
    %v1633 = vadd.f32 %v474, %v1632
    %v1634 = vpop.f32.mrf.mxu0
    %v1635 = vadd.f32 %v474, %v1634
    %1636 = vmatmul.bf16.gmra.mxu0 %v1186
    %v1637 = vpop.f32.mrf.mxu0
    %v1638 = vadd.f32 %v474, %v1637
    %v1639 = vpop.f32.mrf.mxu0
    %v1640 = vadd.f32 %v474, %v1639
    %1641 = vmatmul.bf16.gmra.mxu0 %v1189
    %v1642 = vpop.f32.mrf.mxu0
    %v1643 = vadd.f32 %v474, %v1642
    %v1644 = vpop.f32.mrf.mxu0
    %v1645 = vadd.f32 %v474, %v1644
    %1646 = vmatmul.bf16.gmra.mxu0 %v1192
    %v1647 = vpop.f32.mrf.mxu0
    %v1648 = vadd.f32 %v474, %v1647
    %v1649 = vpop.f32.mrf.mxu0
    %v1650 = vadd.f32 %v474, %v1649
    %1651 = vmatmul.bf16.gmra.mxu0 %v1195
    %v1652 = vpop.f32.mrf.mxu0
    %v1653 = vadd.f32 %v474, %v1652
    %v1654 = vpop.f32.mrf.mxu0
    %v1655 = vadd.f32 %v474, %v1654
    %1656 = vmatmul.bf16.gmra.mxu0 %v1198
    %v1657 = vpop.f32.mrf.mxu0
    %v1658 = vadd.f32 %v474, %v1657
    %v1659 = vpop.f32.mrf.mxu0
    %v1660 = vadd.f32 %v474, %v1659
    %1661 = vmatmul.bf16.gmra.mxu0 %v1201
    %v1662 = vpop.f32.mrf.mxu0
    %v1663 = vadd.f32 %v474, %v1662
    %v1664 = vpop.f32.mrf.mxu0
    %v1665 = vadd.f32 %v474, %v1664
    %1666 = vmatmul.bf16.gmra.mxu0 %v1204
    %v1667 = vpop.f32.mrf.mxu0
    %v1668 = vadd.f32 %v474, %v1667
    %v1669 = vpop.f32.mrf.mxu0
    %v1670 = vadd.f32 %v474, %v1669
    %1671 = vmatmul.bf16.gmra.mxu0 %v1207
    %v1672 = vpop.f32.mrf.mxu0
    %v1673 = vadd.f32 %v474, %v1672
    %v1674 = vpop.f32.mrf.mxu0
    %v1675 = vadd.f32 %v474, %v1674
    %1676 = vmatmul.bf16.gmra.mxu0 %v1210
    %v1677 = vpop.f32.mrf.mxu0
    %v1678 = vadd.f32 %v474, %v1677
    %v1679 = vpop.f32.mrf.mxu0
    %v1680 = vadd.f32 %v474, %v1679
    %1681 = vmatmul.bf16.gmra.mxu0 %v1213
    %v1682 = vpop.f32.mrf.mxu0
    %v1683 = vadd.f32 %v474, %v1682
    %v1684 = vpop.f32.mrf.mxu0
    %v1685 = vadd.f32 %v474, %v1684
    %1686 = vmatmul.bf16.gmra.mxu0 %v1216
    %v1687 = vpop.f32.mrf.mxu0
    %v1688 = vadd.f32 %v474, %v1687
    %v1689 = vpop.f32.mrf.mxu0
    %v1690 = vadd.f32 %v474, %v1689
    %1691 = vmatmul.bf16.gmra.mxu0 %v1219
    %v1692 = vpop.f32.mrf.mxu0
    %v1693 = vadd.f32 %v474, %v1692
    %v1694 = vpop.f32.mrf.mxu0
    %v1695 = vadd.f32 %v474, %v1694
    %1696 = vmatmul.bf16.gmra.mxu0 %v1222
    %v1697 = vpop.f32.mrf.mxu0
    %v1698 = vadd.f32 %v474, %v1697
    %v1699 = vpop.f32.mrf.mxu0
    %v1700 = vadd.f32 %v474, %v1699
    %1701 = vmatmul.bf16.gmra.mxu0 %v1225
    %v1702 = vpop.f32.mrf.mxu0
    %v1703 = vadd.f32 %v474, %v1702
    %v1704 = vpop.f32.mrf.mxu0
    %v1705 = vadd.f32 %v474, %v1704
    %1706 = vmatmul.bf16.gmra.mxu0 %v1228
    %v1707 = vpop.f32.mrf.mxu0
    %v1708 = vadd.f32 %v474, %v1707
    %v1709 = vpop.f32.mrf.mxu0
    %v1710 = vadd.f32 %v474, %v1709
    %1711 = vmatmul.bf16.gmra.mxu0 %v1231
    %v1712 = vpop.f32.mrf.mxu0
    %v1713 = vadd.f32 %v474, %v1712
    %v1714 = vpop.f32.mrf.mxu0
    %v1715 = vadd.f32 %v474, %v1714
    %1716 = vmatmul.bf16.gmra.mxu0 %v1234
    %v1717 = vpop.f32.mrf.mxu0
    %v1718 = vadd.f32 %v474, %v1717
    %v1719 = vpop.f32.mrf.mxu0
    %v1720 = vadd.f32 %v474, %v1719
    %1721 = vmatmul.bf16.gmra.mxu0 %v1237
    %v1722 = vpop.f32.mrf.mxu0
    %v1723 = vadd.f32 %v474, %v1722
    %v1724 = vpop.f32.mrf.mxu0
    %v1725 = vadd.f32 %v474, %v1724
    %1726 = vmatmul.bf16.gmra.mxu0 %v1240
    %v1727 = vpop.f32.mrf.mxu0
    %v1728 = vadd.f32 %v474, %v1727
    %v1729 = vpop.f32.mrf.mxu0
    %v1730 = vadd.f32 %v474, %v1729
    %1731 = vmatmul.bf16.gmra.mxu0 %v1243
    %v1732 = vpop.f32.mrf.mxu0
    %v1733 = vadd.f32 %v474, %v1732
    %v1734 = vpop.f32.mrf.mxu0
    %v1735 = vadd.f32 %v474, %v1734
    %1736 = vmatmul.bf16.gmra.mxu0 %v1246
    %v1737 = vpop.f32.mrf.mxu0
    %v1738 = vadd.f32 %v474, %v1737
    %v1739 = vpop.f32.mrf.mxu0
    %v1740 = vadd.f32 %v474, %v1739
    %1741 = vmatmul.bf16.gmra.mxu0 %v1249
    %v1742 = vpop.f32.mrf.mxu0
    %v1743 = vadd.f32 %v474, %v1742
    %v1744 = vpop.f32.mrf.mxu0
    %v1745 = vadd.f32 %v474, %v1744
    %1746 = vmatmul.bf16.gmra.mxu0 %v1252
    %v1747 = vpop.f32.mrf.mxu0
    %v1748 = vadd.f32 %v474, %v1747
    %v1749 = vpop.f32.mrf.mxu0
    %v1750 = vadd.f32 %v474, %v1749
    %1751 = vmatmul.bf16.gmra.mxu0 %v1255
    %v1752 = vpop.f32.mrf.mxu0
    %v1753 = vadd.f32 %v474, %v1752
    %v1754 = vpop.f32.mrf.mxu0
    %v1755 = vadd.f32 %v474, %v1754
    %1756 = vmatmul.bf16.gmra.mxu0 %v1258
    %v1757 = vpop.f32.mrf.mxu0
    %v1758 = vadd.f32 %v474, %v1757
    %v1759 = vpop.f32.mrf.mxu0
    %v1760 = vadd.f32 %v474, %v1759
    %1761 = vmatmul.bf16.gmra.mxu0 %v1261
    %v1762 = vpop.f32.mrf.mxu0
    %v1763 = vadd.f32 %v474, %v1762
    %v1764 = vpop.f32.mrf.mxu0
    %v1765 = vadd.f32 %v474, %v1764
    %1766 = vmatmul.bf16.gmra.mxu0 %v1264
    %v1767 = vpop.f32.mrf.mxu0
    %v1768 = vadd.f32 %v474, %v1767
    %v1769 = vpop.f32.mrf.mxu0
    %v1770 = vadd.f32 %v474, %v1769
    %1771 = vmatmul.bf16.gmra.mxu0 %v1267
    %v1772 = vpop.f32.mrf.mxu0
    %v1773 = vadd.f32 %v474, %v1772
    %v1774 = vpop.f32.mrf.mxu0
    %v1775 = vadd.f32 %v474, %v1774
    %1776 = vmatmul.bf16.gmra.mxu0 %v1270
    %v1777 = vpop.f32.mrf.mxu0
    %v1778 = vadd.f32 %v474, %v1777
    %v1779 = vpop.f32.mrf.mxu0
    %v1780 = vadd.f32 %v474, %v1779
    %1781 = vmatmul.bf16.gmra.mxu0 %v1273
    %v1782 = vpop.f32.mrf.mxu0
    %v1783 = vadd.f32 %v474, %v1782
    %v1784 = vpop.f32.mrf.mxu0
    %v1785 = vadd.f32 %v474, %v1784
    %1786 = vmatmul.bf16.gmra.mxu0 %v1276
    %v1787 = vpop.f32.mrf.mxu0
    %v1788 = vadd.f32 %v474, %v1787
    %v1789 = vpop.f32.mrf.mxu0
    %v1790 = vadd.f32 %v474, %v1789
    %1791 = vmatmul.bf16.gmra.mxu0 %v1279
    %v1792 = vpop.f32.mrf.mxu0
    %v1793 = vadd.f32 %v474, %v1792
    %v1794 = vpop.f32.mrf.mxu0
    %v1795 = vadd.f32 %v474, %v1794
    %1796 = vdwg.mxu0
    %v1797 = vmul.f32 %v1298, 0.2
    %v1798 = vmul.f32 %v1300, 0.2
    %v1799 = vmul.f32 %v1303, 0.2
    %v1800 = vmul.f32 %v1305, 0.2
    %v1801 = vmul.f32 %v1308, 0.2
    %v1802 = vmul.f32 %v1310, 0.2
    %v1803 = vmul.f32 %v1313, 0.2
    %v1804 = vmul.f32 %v1315, 0.2
    %v1805 = vmul.f32 %v1318, 0.2
    %v1806 = vmul.f32 %v1320, 0.2
    %v1807 = vmul.f32 %v1323, 0.2
    %v1808 = vmul.f32 %v1325, 0.2
    %v1809 = vmul.f32 %v1328, 0.2
    %v1810 = vmul.f32 %v1330, 0.2
    %v1811 = vmul.f32 %v1333, 0.2
    %v1812 = vmul.f32 %v1335, 0.2
    %v1813 = vmul.f32 %v1338, 0.2
    %v1814 = vmul.f32 %v1340, 0.2
    %v1815 = vmul.f32 %v1343, 0.2
    %v1816 = vmul.f32 %v1345, 0.2
    %v1817 = vmul.f32 %v1348, 0.2
    %v1818 = vmul.f32 %v1350, 0.2
    %v1819 = vmul.f32 %v1353, 0.2
    %v1820 = vmul.f32 %v1355, 0.2
    %v1821 = vmul.f32 %v1358, 0.2
    %v1822 = vmul.f32 %v1360, 0.2
    %v1823 = vmul.f32 %v1363, 0.2
    %v1824 = vmul.f32 %v1365, 0.2
    %v1825 = vmul.f32 %v1368, 0.2
    %v1826 = vmul.f32 %v1370, 0.2
    %v1827 = vmul.f32 %v1373, 0.2
    %v1828 = vmul.f32 %v1375, 0.2
    %v1829 = vmul.f32 %v1378, 0.2
    %v1830 = vmul.f32 %v1380, 0.2
    %v1831 = vmul.f32 %v1383, 0.2
    %v1832 = vmul.f32 %v1385, 0.2
    %v1833 = vmul.f32 %v1388, 0.2
    %v1834 = vmul.f32 %v1390, 0.2
    %v1835 = vmul.f32 %v1393, 0.2
    %v1836 = vmul.f32 %v1395, 0.2
    %v1837 = vmul.f32 %v1398, 0.2
    %v1838 = vmul.f32 %v1400, 0.2
    %v1839 = vmul.f32 %v1403, 0.2
    %v1840 = vmul.f32 %v1405, 0.2
    %v1841 = vmul.f32 %v1408, 0.2
    %v1842 = vmul.f32 %v1410, 0.2
    %v1843 = vmul.f32 %v1413, 0.2
    %v1844 = vmul.f32 %v1415, 0.2
    %v1845 = vmul.f32 %v1418, 0.2
    %v1846 = vmul.f32 %v1420, 0.2
    %v1847 = vmul.f32 %v1423, 0.2
    %v1848 = vmul.f32 %v1425, 0.2
    %v1849 = vmul.f32 %v1428, 0.2
    %v1850 = vmul.f32 %v1430, 0.2
    %v1851 = vmul.f32 %v1433, 0.2
    %v1852 = vmul.f32 %v1435, 0.2
    %v1853 = vmul.f32 %v1438, 0.2
    %v1854 = vmul.f32 %v1440, 0.2
    %v1855 = vmul.f32 %v1443, 0.2
    %v1856 = vmul.f32 %v1445, 0.2
    %v1857 = vmul.f32 %v1448, 0.2
    %v1858 = vmul.f32 %v1450, 0.2
    %v1859 = vmul.f32 %v1453, 0.2
    %v1860 = vmul.f32 %v1455, 0.2
    %v1861 = vmul.f32 %v1458, 0.2
    %v1862 = vmul.f32 %v1460, 0.2
    %v1863 = vmul.f32 %v1463, 0.2
    %v1864 = vmul.f32 %v1465, 0.2
    %v1865 = vmul.f32 %v1468, 0.2
    %v1866 = vmul.f32 %v1470, 0.2
    %v1867 = vmul.f32 %v1473, 0.2
    %v1868 = vmul.f32 %v1475, 0.2
    %v1869 = vmul.f32 %v1478, 0.2
    %v1870 = vmul.f32 %v1480, 0.2
    %v1871 = vmul.f32 %v1483, 0.2
    %v1872 = vmul.f32 %v1485, 0.2
    %v1873 = vmul.f32 %v1488, 0.2
    %v1874 = vmul.f32 %v1490, 0.2
    %v1875 = vmul.f32 %v1493, 0.2
    %v1876 = vmul.f32 %v1495, 0.2
    %v1877 = vmul.f32 %v1498, 0.2
    %v1878 = vmul.f32 %v1500, 0.2
    %v1879 = vmul.f32 %v1503, 0.2
    %v1880 = vmul.f32 %v1505, 0.2
    %v1881 = vmul.f32 %v1508, 0.2
    %v1882 = vmul.f32 %v1510, 0.2
    %v1883 = vmul.f32 %v1513, 0.2
    %v1884 = vmul.f32 %v1515, 0.2
    %v1885 = vmul.f32 %v1518, 0.2
    %v1886 = vmul.f32 %v1520, 0.2
    %v1887 = vmul.f32 %v1523, 0.2
    %v1888 = vmul.f32 %v1525, 0.2
    %v1889 = vmul.f32 %v1528, 0.2
    %v1890 = vmul.f32 %v1530, 0.2
    %v1891 = vmul.f32 %v1533, 0.2
    %v1892 = vmul.f32 %v1535, 0.2
    %v1893 = vmul.f32 %v1538, 0.2
    %v1894 = vmul.f32 %v1540, 0.2
    %v1895 = vmul.f32 %v1543, 0.2
    %v1896 = vmul.f32 %v1545, 0.2
    %v1897 = vmul.f32 %v1548, 0.2
    %v1898 = vmul.f32 %v1550, 0.2
    %v1899 = vmul.f32 %v1553, 0.2
    %v1900 = vmul.f32 %v1555, 0.2
    %v1901 = vmul.f32 %v1558, 0.2
    %v1902 = vmul.f32 %v1560, 0.2
    %v1903 = vmul.f32 %v1563, 0.2
    %v1904 = vmul.f32 %v1565, 0.2
    %v1905 = vmul.f32 %v1568, 0.2
    %v1906 = vmul.f32 %v1570, 0.2
    %v1907 = vmul.f32 %v1573, 0.2
    %v1908 = vmul.f32 %v1575, 0.2
    %v1909 = vmul.f32 %v1578, 0.2
    %v1910 = vmul.f32 %v1580, 0.2
    %v1911 = vmul.f32 %v1583, 0.2
    %v1912 = vmul.f32 %v1585, 0.2
    %v1913 = vmul.f32 %v1588, 0.2
    %v1914 = vmul.f32 %v1590, 0.2
    %v1915 = vmul.f32 %v1593, 0.2
    %v1916 = vmul.f32 %v1595, 0.2
    %v1917 = vmul.f32 %v1598, 0.2
    %v1918 = vmul.f32 %v1600, 0.2
    %v1919 = vmul.f32 %v1603, 0.2
    %v1920 = vmul.f32 %v1605, 0.2
    %v1921 = vmul.f32 %v1608, 0.2
    %v1922 = vmul.f32 %v1610, 0.2
    %v1923 = vmul.f32 %v1613, 0.2
    %v1924 = vmul.f32 %v1615, 0.2
    %v1925 = vmul.f32 %v1618, 0.2
    %v1926 = vmul.f32 %v1620, 0.2
    %v1927 = vmul.f32 %v1623, 0.2
    %v1928 = vmul.f32 %v1625, 0.2
    %v1929 = vmul.f32 %v1628, 0.2
    %v1930 = vmul.f32 %v1630, 0.2
    %v1931 = vmul.f32 %v1633, 0.2
    %v1932 = vmul.f32 %v1635, 0.2
    %v1933 = vmul.f32 %v1638, 0.2
    %v1934 = vmul.f32 %v1640, 0.2
    %v1935 = vmul.f32 %v1643, 0.2
    %v1936 = vmul.f32 %v1645, 0.2
    %v1937 = vmul.f32 %v1648, 0.2
    %v1938 = vmul.f32 %v1650, 0.2
    %v1939 = vmul.f32 %v1653, 0.2
    %v1940 = vmul.f32 %v1655, 0.2
    %v1941 = vmul.f32 %v1658, 0.2
    %v1942 = vmul.f32 %v1660, 0.2
    %v1943 = vmul.f32 %v1663, 0.2
    %v1944 = vmul.f32 %v1665, 0.2
    %v1945 = vmul.f32 %v1668, 0.2
    %v1946 = vmul.f32 %v1670, 0.2
    %v1947 = vmul.f32 %v1673, 0.2
    %v1948 = vmul.f32 %v1675, 0.2
    %v1949 = vmul.f32 %v1678, 0.2
    %v1950 = vmul.f32 %v1680, 0.2
    %v1951 = vmul.f32 %v1683, 0.2
    %v1952 = vmul.f32 %v1685, 0.2
    %v1953 = vmul.f32 %v1688, 0.2
    %v1954 = vmul.f32 %v1690, 0.2
    %v1955 = vmul.f32 %v1693, 0.2
    %v1956 = vmul.f32 %v1695, 0.2
    %v1957 = vmul.f32 %v1698, 0.2
    %v1958 = vmul.f32 %v1700, 0.2
    %v1959 = vmul.f32 %v1703, 0.2
    %v1960 = vmul.f32 %v1705, 0.2
    %v1961 = vmul.f32 %v1708, 0.2
    %v1962 = vmul.f32 %v1710, 0.2
    %v1963 = vmul.f32 %v1713, 0.2
    %v1964 = vmul.f32 %v1715, 0.2
    %v1965 = vmul.f32 %v1718, 0.2
    %v1966 = vmul.f32 %v1720, 0.2
    %v1967 = vmul.f32 %v1723, 0.2
    %v1968 = vmul.f32 %v1725, 0.2
    %v1969 = vmul.f32 %v1728, 0.2
    %v1970 = vmul.f32 %v1730, 0.2
    %v1971 = vmul.f32 %v1733, 0.2
    %v1972 = vmul.f32 %v1735, 0.2
    %v1973 = vmul.f32 %v1738, 0.2
    %v1974 = vmul.f32 %v1740, 0.2
    %v1975 = vmul.f32 %v1743, 0.2
    %v1976 = vmul.f32 %v1745, 0.2
    %v1977 = vmul.f32 %v1748, 0.2
    %v1978 = vmul.f32 %v1750, 0.2
    %v1979 = vmul.f32 %v1753, 0.2
    %v1980 = vmul.f32 %v1755, 0.2
    %v1981 = vmul.f32 %v1758, 0.2
    %v1982 = vmul.f32 %v1760, 0.2
    %v1983 = vmul.f32 %v1763, 0.2
    %v1984 = vmul.f32 %v1765, 0.2
    %v1985 = vmul.f32 %v1768, 0.2
    %v1986 = vmul.f32 %v1770, 0.2
    %v1987 = vmul.f32 %v1773, 0.2
    %v1988 = vmul.f32 %v1775, 0.2
    %v1989 = vmul.f32 %v1778, 0.2
    %v1990 = vmul.f32 %v1780, 0.2
    %v1991 = vmul.f32 %v1783, 0.2
    %v1992 = vmul.f32 %v1785, 0.2
    %v1993 = vmul.f32 %v1788, 0.2
    %v1994 = vmul.f32 %v1790, 0.2
    %v1995 = vmul.f32 %v1793, 0.2
    %v1996 = vmul.f32 %v1795, 0.2
    %v1997 = vmax.f32 %v1298, %v1797
    %v1998 = vmax.f32 %v1300, %v1798
    %v1999 = vmax.f32 %v1303, %v1799
    %v2000 = vmax.f32 %v1305, %v1800
    %v2001 = vmax.f32 %v1308, %v1801
    %v2002 = vmax.f32 %v1310, %v1802
    %v2003 = vmax.f32 %v1313, %v1803
    %v2004 = vmax.f32 %v1315, %v1804
    %v2005 = vmax.f32 %v1318, %v1805
    %v2006 = vmax.f32 %v1320, %v1806
    %v2007 = vmax.f32 %v1323, %v1807
    %v2008 = vmax.f32 %v1325, %v1808
    %v2009 = vmax.f32 %v1328, %v1809
    %v2010 = vmax.f32 %v1330, %v1810
    %v2011 = vmax.f32 %v1333, %v1811
    %v2012 = vmax.f32 %v1335, %v1812
    %v2013 = vmax.f32 %v1338, %v1813
    %v2014 = vmax.f32 %v1340, %v1814
    %v2015 = vmax.f32 %v1343, %v1815
    %v2016 = vmax.f32 %v1345, %v1816
    %v2017 = vmax.f32 %v1348, %v1817
    %v2018 = vmax.f32 %v1350, %v1818
    %v2019 = vmax.f32 %v1353, %v1819
    %v2020 = vmax.f32 %v1355, %v1820
    %v2021 = vmax.f32 %v1358, %v1821
    %v2022 = vmax.f32 %v1360, %v1822
    %v2023 = vmax.f32 %v1363, %v1823
    %v2024 = vmax.f32 %v1365, %v1824
    %v2025 = vmax.f32 %v1368, %v1825
    %v2026 = vmax.f32 %v1370, %v1826
    %v2027 = vmax.f32 %v1373, %v1827
    %v2028 = vmax.f32 %v1375, %v1828
    %v2029 = vmax.f32 %v1378, %v1829
    %v2030 = vmax.f32 %v1380, %v1830
    %v2031 = vmax.f32 %v1383, %v1831
    %v2032 = vmax.f32 %v1385, %v1832
    %v2033 = vmax.f32 %v1388, %v1833
    %v2034 = vmax.f32 %v1390, %v1834
    %v2035 = vmax.f32 %v1393, %v1835
    %v2036 = vmax.f32 %v1395, %v1836
    %v2037 = vmax.f32 %v1398, %v1837
    %v2038 = vmax.f32 %v1400, %v1838
    %v2039 = vmax.f32 %v1403, %v1839
    %v2040 = vmax.f32 %v1405, %v1840
    %v2041 = vmax.f32 %v1408, %v1841
    %v2042 = vmax.f32 %v1410, %v1842
    %v2043 = vmax.f32 %v1413, %v1843
    %v2044 = vmax.f32 %v1415, %v1844
    %v2045 = vmax.f32 %v1418, %v1845
    %v2046 = vmax.f32 %v1420, %v1846
    %v2047 = vmax.f32 %v1423, %v1847
    %v2048 = vmax.f32 %v1425, %v1848
    %v2049 = vmax.f32 %v1428, %v1849
    %v2050 = vmax.f32 %v1430, %v1850
    %v2051 = vmax.f32 %v1433, %v1851
    %v2052 = vmax.f32 %v1435, %v1852
    %v2053 = vmax.f32 %v1438, %v1853
    %v2054 = vmax.f32 %v1440, %v1854
    %v2055 = vmax.f32 %v1443, %v1855
    %v2056 = vmax.f32 %v1445, %v1856
    %v2057 = vmax.f32 %v1448, %v1857
    %v2058 = vmax.f32 %v1450, %v1858
    %v2059 = vmax.f32 %v1453, %v1859
    %v2060 = vmax.f32 %v1455, %v1860
    %v2061 = vmax.f32 %v1458, %v1861
    %v2062 = vmax.f32 %v1460, %v1862
    %v2063 = vmax.f32 %v1463, %v1863
    %v2064 = vmax.f32 %v1465, %v1864
    %v2065 = vmax.f32 %v1468, %v1865
    %v2066 = vmax.f32 %v1470, %v1866
    %v2067 = vmax.f32 %v1473, %v1867
    %v2068 = vmax.f32 %v1475, %v1868
    %v2069 = vmax.f32 %v1478, %v1869
    %v2070 = vmax.f32 %v1480, %v1870
    %v2071 = vmax.f32 %v1483, %v1871
    %v2072 = vmax.f32 %v1485, %v1872
    %v2073 = vmax.f32 %v1488, %v1873
    %v2074 = vmax.f32 %v1490, %v1874
    %v2075 = vmax.f32 %v1493, %v1875
    %v2076 = vmax.f32 %v1495, %v1876
    %v2077 = vmax.f32 %v1498, %v1877
    %v2078 = vmax.f32 %v1500, %v1878
    %v2079 = vmax.f32 %v1503, %v1879
    %v2080 = vmax.f32 %v1505, %v1880
    %v2081 = vmax.f32 %v1508, %v1881
    %v2082 = vmax.f32 %v1510, %v1882
    %v2083 = vmax.f32 %v1513, %v1883
    %v2084 = vmax.f32 %v1515, %v1884
    %v2085 = vmax.f32 %v1518, %v1885
    %v2086 = vmax.f32 %v1520, %v1886
    %v2087 = vmax.f32 %v1523, %v1887
    %v2088 = vmax.f32 %v1525, %v1888
    %v2089 = vmax.f32 %v1528, %v1889
    %v2090 = vmax.f32 %v1530, %v1890
    %v2091 = vmax.f32 %v1533, %v1891
    %v2092 = vmax.f32 %v1535, %v1892
    %v2093 = vmax.f32 %v1538, %v1893
    %v2094 = vmax.f32 %v1540, %v1894
    %v2095 = vmax.f32 %v1543, %v1895
    %v2096 = vmax.f32 %v1545, %v1896
    %v2097 = vmax.f32 %v1548, %v1897
    %v2098 = vmax.f32 %v1550, %v1898
    %v2099 = vmax.f32 %v1553, %v1899
    %v2100 = vmax.f32 %v1555, %v1900
    %v2101 = vmax.f32 %v1558, %v1901
    %v2102 = vmax.f32 %v1560, %v1902
    %v2103 = vmax.f32 %v1563, %v1903
    %v2104 = vmax.f32 %v1565, %v1904
    %v2105 = vmax.f32 %v1568, %v1905
    %v2106 = vmax.f32 %v1570, %v1906
    %v2107 = vmax.f32 %v1573, %v1907
    %v2108 = vmax.f32 %v1575, %v1908
    %v2109 = vmax.f32 %v1578, %v1909
    %v2110 = vmax.f32 %v1580, %v1910
    %v2111 = vmax.f32 %v1583, %v1911
    %v2112 = vmax.f32 %v1585, %v1912
    %v2113 = vmax.f32 %v1588, %v1913
    %v2114 = vmax.f32 %v1590, %v1914
    %v2115 = vmax.f32 %v1593, %v1915
    %v2116 = vmax.f32 %v1595, %v1916
    %v2117 = vmax.f32 %v1598, %v1917
    %v2118 = vmax.f32 %v1600, %v1918
    %v2119 = vmax.f32 %v1603, %v1919
    %v2120 = vmax.f32 %v1605, %v1920
    %v2121 = vmax.f32 %v1608, %v1921
    %v2122 = vmax.f32 %v1610, %v1922
    %v2123 = vmax.f32 %v1613, %v1923
    %v2124 = vmax.f32 %v1615, %v1924
    %v2125 = vmax.f32 %v1618, %v1925
    %v2126 = vmax.f32 %v1620, %v1926
    %v2127 = vmax.f32 %v1623, %v1927
    %v2128 = vmax.f32 %v1625, %v1928
    %v2129 = vmax.f32 %v1628, %v1929
    %v2130 = vmax.f32 %v1630, %v1930
    %v2131 = vmax.f32 %v1633, %v1931
    %v2132 = vmax.f32 %v1635, %v1932
    %v2133 = vmax.f32 %v1638, %v1933
    %v2134 = vmax.f32 %v1640, %v1934
    %v2135 = vmax.f32 %v1643, %v1935
    %v2136 = vmax.f32 %v1645, %v1936
    %v2137 = vmax.f32 %v1648, %v1937
    %v2138 = vmax.f32 %v1650, %v1938
    %v2139 = vmax.f32 %v1653, %v1939
    %v2140 = vmax.f32 %v1655, %v1940
    %v2141 = vmax.f32 %v1658, %v1941
    %v2142 = vmax.f32 %v1660, %v1942
    %v2143 = vmax.f32 %v1663, %v1943
    %v2144 = vmax.f32 %v1665, %v1944
    %v2145 = vmax.f32 %v1668, %v1945
    %v2146 = vmax.f32 %v1670, %v1946
    %v2147 = vmax.f32 %v1673, %v1947
    %v2148 = vmax.f32 %v1675, %v1948
    %v2149 = vmax.f32 %v1678, %v1949
    %v2150 = vmax.f32 %v1680, %v1950
    %v2151 = vmax.f32 %v1683, %v1951
    %v2152 = vmax.f32 %v1685, %v1952
    %v2153 = vmax.f32 %v1688, %v1953
    %v2154 = vmax.f32 %v1690, %v1954
    %v2155 = vmax.f32 %v1693, %v1955
    %v2156 = vmax.f32 %v1695, %v1956
    %v2157 = vmax.f32 %v1698, %v1957
    %v2158 = vmax.f32 %v1700, %v1958
    %v2159 = vmax.f32 %v1703, %v1959
    %v2160 = vmax.f32 %v1705, %v1960
    %v2161 = vmax.f32 %v1708, %v1961
    %v2162 = vmax.f32 %v1710, %v1962
    %v2163 = vmax.f32 %v1713, %v1963
    %v2164 = vmax.f32 %v1715, %v1964
    %v2165 = vmax.f32 %v1718, %v1965
    %v2166 = vmax.f32 %v1720, %v1966
    %v2167 = vmax.f32 %v1723, %v1967
    %v2168 = vmax.f32 %v1725, %v1968
    %v2169 = vmax.f32 %v1728, %v1969
    %v2170 = vmax.f32 %v1730, %v1970
    %v2171 = vmax.f32 %v1733, %v1971
    %v2172 = vmax.f32 %v1735, %v1972
    %v2173 = vmax.f32 %v1738, %v1973
    %v2174 = vmax.f32 %v1740, %v1974
    %v2175 = vmax.f32 %v1743, %v1975
    %v2176 = vmax.f32 %v1745, %v1976
    %v2177 = vmax.f32 %v1748, %v1977
    %v2178 = vmax.f32 %v1750, %v1978
    %v2179 = vmax.f32 %v1753, %v1979
    %v2180 = vmax.f32 %v1755, %v1980
    %v2181 = vmax.f32 %v1758, %v1981
    %v2182 = vmax.f32 %v1760, %v1982
    %v2183 = vmax.f32 %v1763, %v1983
    %v2184 = vmax.f32 %v1765, %v1984
    %v2185 = vmax.f32 %v1768, %v1985
    %v2186 = vmax.f32 %v1770, %v1986
    %v2187 = vmax.f32 %v1773, %v1987
    %v2188 = vmax.f32 %v1775, %v1988
    %v2189 = vmax.f32 %v1778, %v1989
    %v2190 = vmax.f32 %v1780, %v1990
    %v2191 = vmax.f32 %v1783, %v1991
    %v2192 = vmax.f32 %v1785, %v1992
    %v2193 = vmax.f32 %v1788, %v1993
    %v2194 = vmax.f32 %v1790, %v1994
    %v2195 = vmax.f32 %v1793, %v1995
    %v2196 = vmax.f32 %v1795, %v1996
    %v2197 = vmax.f32 %v1997, %v1999
    %v2198 = vmax.f32 %v1998, %v2000
    %v2199 = vmax.f32 %v2001, %v2003
    %v2200 = vmax.f32 %v2002, %v2004
    %v2201 = vmax.f32 %v2005, %v2007
    %v2202 = vmax.f32 %v2006, %v2008
    %v2203 = vmax.f32 %v2009, %v2011
    %v2204 = vmax.f32 %v2010, %v2012
    %v2205 = vmax.f32 %v2013, %v2015
    %v2206 = vmax.f32 %v2014, %v2016
    %v2207 = vmax.f32 %v2037, %v2039
    %v2208 = vmax.f32 %v2038, %v2040
    %v2209 = vmax.f32 %v2041, %v2043
    %v2210 = vmax.f32 %v2042, %v2044
    %v2211 = vmax.f32 %v2045, %v2047
    %v2212 = vmax.f32 %v2046, %v2048
    %v2213 = vmax.f32 %v2049, %v2051
    %v2214 = vmax.f32 %v2050, %v2052
    %v2215 = vmax.f32 %v2053, %v2055
    %v2216 = vmax.f32 %v2054, %v2056
    %v2217 = vmax.f32 %v2077, %v2079
    %v2218 = vmax.f32 %v2078, %v2080
    %v2219 = vmax.f32 %v2081, %v2083
    %v2220 = vmax.f32 %v2082, %v2084
    %v2221 = vmax.f32 %v2085, %v2087
    %v2222 = vmax.f32 %v2086, %v2088
    %v2223 = vmax.f32 %v2089, %v2091
    %v2224 = vmax.f32 %v2090, %v2092
    %v2225 = vmax.f32 %v2093, %v2095
    %v2226 = vmax.f32 %v2094, %v2096
    %v2227 = vmax.f32 %v2117, %v2119
    %v2228 = vmax.f32 %v2118, %v2120
    %v2229 = vmax.f32 %v2121, %v2123
    %v2230 = vmax.f32 %v2122, %v2124
    %v2231 = vmax.f32 %v2125, %v2127
    %v2232 = vmax.f32 %v2126, %v2128
    %v2233 = vmax.f32 %v2129, %v2131
    %v2234 = vmax.f32 %v2130, %v2132
    %v2235 = vmax.f32 %v2133, %v2135
    %v2236 = vmax.f32 %v2134, %v2136
    %v2237 = vmax.f32 %v2157, %v2159
    %v2238 = vmax.f32 %v2158, %v2160
    %v2239 = vmax.f32 %v2161, %v2163
    %v2240 = vmax.f32 %v2162, %v2164
    %v2241 = vmax.f32 %v2165, %v2167
    %v2242 = vmax.f32 %v2166, %v2168
    %v2243 = vmax.f32 %v2169, %v2171
    %v2244 = vmax.f32 %v2170, %v2172
    %v2245 = vmax.f32 %v2173, %v2175
    %v2246 = vmax.f32 %v2174, %v2176
    %v2247 = vmax.f32 %v2197, %v2017
    %v2248 = vmax.f32 %v2198, %v2018
    %v2249 = vmax.f32 %v2199, %v2021
    %v2250 = vmax.f32 %v2200, %v2022
    %v2251 = vmax.f32 %v2201, %v2025
    %v2252 = vmax.f32 %v2202, %v2026
    %v2253 = vmax.f32 %v2203, %v2029
    %v2254 = vmax.f32 %v2204, %v2030
    %v2255 = vmax.f32 %v2205, %v2033
    %v2256 = vmax.f32 %v2206, %v2034
    %v2257 = vmax.f32 %v2207, %v2057
    %v2258 = vmax.f32 %v2208, %v2058
    %v2259 = vmax.f32 %v2209, %v2061
    %v2260 = vmax.f32 %v2210, %v2062
    %v2261 = vmax.f32 %v2211, %v2065
    %v2262 = vmax.f32 %v2212, %v2066
    %v2263 = vmax.f32 %v2213, %v2069
    %v2264 = vmax.f32 %v2214, %v2070
    %v2265 = vmax.f32 %v2215, %v2073
    %v2266 = vmax.f32 %v2216, %v2074
    %v2267 = vmax.f32 %v2217, %v2097
    %v2268 = vmax.f32 %v2218, %v2098
    %v2269 = vmax.f32 %v2219, %v2101
    %v2270 = vmax.f32 %v2220, %v2102
    %v2271 = vmax.f32 %v2221, %v2105
    %v2272 = vmax.f32 %v2222, %v2106
    %v2273 = vmax.f32 %v2223, %v2109
    %v2274 = vmax.f32 %v2224, %v2110
    %v2275 = vmax.f32 %v2225, %v2113
    %v2276 = vmax.f32 %v2226, %v2114
    %v2277 = vmax.f32 %v2227, %v2137
    %v2278 = vmax.f32 %v2228, %v2138
    %v2279 = vmax.f32 %v2229, %v2141
    %v2280 = vmax.f32 %v2230, %v2142
    %v2281 = vmax.f32 %v2231, %v2145
    %v2282 = vmax.f32 %v2232, %v2146
    %v2283 = vmax.f32 %v2233, %v2149
    %v2284 = vmax.f32 %v2234, %v2150
    %v2285 = vmax.f32 %v2235, %v2153
    %v2286 = vmax.f32 %v2236, %v2154
    %v2287 = vmax.f32 %v2237, %v2177
    %v2288 = vmax.f32 %v2238, %v2178
    %v2289 = vmax.f32 %v2239, %v2181
    %v2290 = vmax.f32 %v2240, %v2182
    %v2291 = vmax.f32 %v2241, %v2185
    %v2292 = vmax.f32 %v2242, %v2186
    %v2293 = vmax.f32 %v2243, %v2189
    %v2294 = vmax.f32 %v2244, %v2190
    %v2295 = vmax.f32 %v2245, %v2193
    %v2296 = vmax.f32 %v2246, %v2194
    %v2297 = vmax.f32 %v2247, %v2019
    %v2298 = vmax.f32 %v2248, %v2020
    %v2299 = vmax.f32 %v2249, %v2023
    %v2300 = vmax.f32 %v2250, %v2024
    %v2301 = vmax.f32 %v2251, %v2027
    %v2302 = vmax.f32 %v2252, %v2028
    %v2303 = vmax.f32 %v2253, %v2031
    %v2304 = vmax.f32 %v2254, %v2032
    %v2305 = vmax.f32 %v2255, %v2035
    %v2306 = vmax.f32 %v2256, %v2036
    %v2307 = vmax.f32 %v2257, %v2059
    %v2308 = vmax.f32 %v2258, %v2060
    %v2309 = vmax.f32 %v2259, %v2063
    %v2310 = vmax.f32 %v2260, %v2064
    %v2311 = vmax.f32 %v2261, %v2067
    %v2312 = vmax.f32 %v2262, %v2068
    %v2313 = vmax.f32 %v2263, %v2071
    %v2314 = vmax.f32 %v2264, %v2072
    %v2315 = vmax.f32 %v2265, %v2075
    %v2316 = vmax.f32 %v2266, %v2076
    %v2317 = vmax.f32 %v2267, %v2099
    %v2318 = vmax.f32 %v2268, %v2100
    %v2319 = vmax.f32 %v2269, %v2103
    %v2320 = vmax.f32 %v2270, %v2104
    %v2321 = vmax.f32 %v2271, %v2107
    %v2322 = vmax.f32 %v2272, %v2108
    %v2323 = vmax.f32 %v2273, %v2111
    %v2324 = vmax.f32 %v2274, %v2112
    %v2325 = vmax.f32 %v2275, %v2115
    %v2326 = vmax.f32 %v2276, %v2116
    %v2327 = vmax.f32 %v2277, %v2139
    %v2328 = vmax.f32 %v2278, %v2140
    %v2329 = vmax.f32 %v2279, %v2143
    %v2330 = vmax.f32 %v2280, %v2144
    %v2331 = vmax.f32 %v2281, %v2147
    %v2332 = vmax.f32 %v2282, %v2148
    %v2333 = vmax.f32 %v2283, %v2151
    %v2334 = vmax.f32 %v2284, %v2152
    %v2335 = vmax.f32 %v2285, %v2155
    %v2336 = vmax.f32 %v2286, %v2156
    %v2337 = vmax.f32 %v2287, %v2179
    %v2338 = vmax.f32 %v2288, %v2180
    %v2339 = vmax.f32 %v2289, %v2183
    %v2340 = vmax.f32 %v2290, %v2184
    %v2341 = vmax.f32 %v2291, %v2187
    %v2342 = vmax.f32 %v2292, %v2188
    %v2343 = vmax.f32 %v2293, %v2191
    %v2344 = vmax.f32 %v2294, %v2192
    %v2345 = vmax.f32 %v2295, %v2195
    %v2346 = vmax.f32 %v2296, %v2196
    %v2347 = vld [vmem:[%s6] sm:$0xf]
    %v2348 = vld [vmem:[%s6 + $0x4] sm:$0xf]
    %v2349 = vld [vmem:[%s6 + $0x8] sm:$0xf]
    %v2350 = vld [vmem:[%s6 + $0xc] sm:$0xf]
    %v2351 = vld [vmem:[%s6 + $0x10] sm:$0xf]
    %v2352 = vld [vmem:[%s6 + $0x14] sm:$0xf]
    %v2353 = vld [vmem:[%s6 + $0x18] sm:$0xf]
    %v2354 = vld [vmem:[%s6 + $0x1c] sm:$0xf]
    %v2355 = vld [vmem:[%s6 + $0x20] sm:$0xf]
    %v2356 = vld [vmem:[%s6 + $0x24] sm:$0xf]
    %v2357 = vld [vmem:[%s6 + $0x28] sm:$0xf]
    %v2358 = vld [vmem:[%s6 + $0x2c] sm:$0xf]
    %v2359 = vld [vmem:[%s6 + $0x30] sm:$0xf]
    %v2360 = vld [vmem:[%s6 + $0x34] sm:$0xf]
    %v2361 = vld [vmem:[%s6 + $0x38] sm:$0xf]
    %v2362 = vld [vmem:[%s6 + $0x3c] sm:$0xf]
    %v2363 = vld [vmem:[%s6 + $0x40] sm:$0xf]
    %v2364 = vld [vmem:[%s6 + $0x44] sm:$0xf]
    %v2365 = vld [vmem:[%s6 + $0x48] sm:$0xf]
    %v2366 = vld [vmem:[%s6 + $0x4c] sm:$0xf]
    %v2367 = vld [vmem:[%s6 + $0x50] sm:$0xf]
    %v2368 = vld [vmem:[%s6 + $0x54] sm:$0xf]
    %v2369 = vld [vmem:[%s6 + $0x58] sm:$0xf]
    %v2370 = vld [vmem:[%s6 + $0x5c] sm:$0xf]
    %v2371 = vld [vmem:[%s6 + $0x60] sm:$0xf]
    %v2372 = vld [vmem:[%s6 + $0x64] sm:$0xf]
    %v2373 = vld [vmem:[%s6 + $0x68] sm:$0xf]
    %v2374 = vld [vmem:[%s6 + $0x6c] sm:$0xf]
    %v2375 = vld [vmem:[%s6 + $0x70] sm:$0xf]
    %v2376 = vld [vmem:[%s6 + $0x74] sm:$0xf]
    %v2377 = vld [vmem:[%s6 + $0x78] sm:$0xf]
    %v2378 = vld [vmem:[%s6 + $0x7c] sm:$0xf]
    %v2379 = vld [vmem:[%s6 + $0x80] sm:$0xf]
    %v2380 = vld [vmem:[%s6 + $0x84] sm:$0xf]
    %v2381 = vld [vmem:[%s6 + $0x88] sm:$0xf]
    %v2382 = vld [vmem:[%s6 + $0x8c] sm:$0xf]
    %v2383 = vld [vmem:[%s6 + $0x90] sm:$0xf]
    %v2384 = vld [vmem:[%s6 + $0x94] sm:$0xf]
    %v2385 = vld [vmem:[%s6 + $0x98] sm:$0xf]
    %v2386 = vld [vmem:[%s6 + $0x9c] sm:$0xf]
    %v2387 = vld [vmem:[%s6 + $0xa0] sm:$0xf]
    %v2388 = vld [vmem:[%s6 + $0xa4] sm:$0xf]
    %v2389 = vld [vmem:[%s6 + $0xa8] sm:$0xf]
    %v2390 = vld [vmem:[%s6 + $0xac] sm:$0xf]
    %v2391 = vld [vmem:[%s6 + $0xb0] sm:$0xf]
    %v2392 = vld [vmem:[%s6 + $0xb4] sm:$0xf]
    %v2393 = vld [vmem:[%s6 + $0xb8] sm:$0xf]
    %v2394 = vld [vmem:[%s6 + $0xbc] sm:$0xf]
    %v2395 = vld [vmem:[%s6 + $0xc0] sm:$0xf]
    %v2396 = vld [vmem:[%s6 + $0xc4] sm:$0xf]
    %v2397 = vld [vmem:[%s6 + $0xc8] sm:$0xf]
    %v2398 = vld [vmem:[%s6 + $0xcc] sm:$0xf]
    %v2399 = vld [vmem:[%s6 + $0xd0] sm:$0xf]
    %v2400 = vld [vmem:[%s6 + $0xd4] sm:$0xf]
    %v2401 = vld [vmem:[%s6 + $0xd8] sm:$0xf]
    %v2402 = vld [vmem:[%s6 + $0xdc] sm:$0xf]
    %v2403 = vld [vmem:[%s6 + $0xe0] sm:$0xf]
    %v2404 = vld [vmem:[%s6 + $0xe4] sm:$0xf]
    %v2405 = vld [vmem:[%s6 + $0xe8] sm:$0xf]
    %v2406 = vld [vmem:[%s6 + $0xec] sm:$0xf]
    %v2407 = vld [vmem:[%s6 + $0xf0] sm:$0xf]
    %v2408 = vld [vmem:[%s6 + $0xf4] sm:$0xf]
    %v2409 = vld [vmem:[%s6 + $0xf8] sm:$0xf]
    %v2410 = vld [vmem:[%s6 + $0xfc] sm:$0xf]
    %v2411 = vld [vmem:[%s6 + $0x100] sm:$0xf]
    %v2412 = vld [vmem:[%s6 + $0x104] sm:$0xf]
    %v2413 = vld [vmem:[%s6 + $0x108] sm:$0xf]
    %v2414 = vld [vmem:[%s6 + $0x10c] sm:$0xf]
    %v2415 = vld [vmem:[%s6 + $0x110] sm:$0xf]
    %v2416 = vld [vmem:[%s6 + $0x114] sm:$0xf]
    %v2417 = vld [vmem:[%s6 + $0x118] sm:$0xf]
    %v2418 = vld [vmem:[%s6 + $0x11c] sm:$0xf]
    %v2419 = vpack.c.bf16 0.0, 0.0
    %v2420 = vpack.c.bf16 %v2297, %v2297
    %v2421 = vpack.c.bf16 %v2298, %v2298
    %v2422 = vpack.c.bf16 %v2299, %v2299
    %v2423 = vpack.c.bf16 %v2300, %v2300
    %v2424 = vpack.c.bf16 %v2301, %v2301
    %v2425 = vpack.c.bf16 %v2302, %v2302
    %v2426 = vpack.c.bf16 %v2303, %v2303
    %v2427 = vpack.c.bf16 %v2304, %v2304
    %v2428 = vpack.c.bf16 %v2305, %v2305
    %v2429 = vpack.c.bf16 %v2306, %v2306
    %v2430 = vpack.c.bf16 %v2307, %v2307
    %v2431 = vpack.c.bf16 %v2308, %v2308
    %v2432 = vpack.c.bf16 %v2309, %v2309
    %v2433 = vpack.c.bf16 %v2310, %v2310
    %v2434 = vpack.c.bf16 %v2311, %v2311
    %v2435 = vpack.c.bf16 %v2312, %v2312
    %v2436 = vpack.c.bf16 %v2313, %v2313
    %v2437 = vpack.c.bf16 %v2314, %v2314
    %v2438 = vpack.c.bf16 %v2315, %v2315
    %v2439 = vpack.c.bf16 %v2316, %v2316
    %v2440 = vpack.c.bf16 %v2317, %v2317
    %v2441 = vpack.c.bf16 %v2318, %v2318
    %v2442 = vpack.c.bf16 %v2319, %v2319
    %v2443 = vpack.c.bf16 %v2320, %v2320
    %v2444 = vpack.c.bf16 %v2321, %v2321
    %v2445 = vpack.c.bf16 %v2322, %v2322
    %v2446 = vpack.c.bf16 %v2323, %v2323
    %v2447 = vpack.c.bf16 %v2324, %v2324
    %v2448 = vpack.c.bf16 %v2325, %v2325
    %v2449 = vpack.c.bf16 %v2326, %v2326
    %v2450 = vpack.c.bf16 %v2327, %v2327
    %v2451 = vpack.c.bf16 %v2328, %v2328
    %v2452 = vpack.c.bf16 %v2329, %v2329
    %v2453 = vpack.c.bf16 %v2330, %v2330
    %v2454 = vpack.c.bf16 %v2331, %v2331
    %v2455 = vpack.c.bf16 %v2332, %v2332
    %v2456 = vpack.c.bf16 %v2333, %v2333
    %v2457 = vpack.c.bf16 %v2334, %v2334
    %v2458 = vpack.c.bf16 %v2335, %v2335
    %v2459 = vpack.c.bf16 %v2336, %v2336
    %v2460 = vpack.c.bf16 %v2337, %v2337
    %v2461 = vpack.c.bf16 %v2338, %v2338
    %v2462 = vpack.c.bf16 %v2339, %v2339
    %v2463 = vpack.c.bf16 %v2340, %v2340
    %v2464 = vpack.c.bf16 %v2341, %v2341
    %v2465 = vpack.c.bf16 %v2342, %v2342
    %v2466 = vpack.c.bf16 %v2343, %v2343
    %v2467 = vpack.c.bf16 %v2344, %v2344
    %v2468 = vpack.c.bf16 %v2345, %v2345
    %v2469 = vpack.c.bf16 %v2346, %v2346
    %v2483 = vunpack.c.l.b16 %v2419
    %v2484 = vunpack.c.l.b16 %v2430
    %v2485 = vunpack.c.l.b16 %v2431
    %v2486 = vunpack.c.l.b16 %v2434
    %v2487 = vunpack.c.l.b16 %v2435
    %v2488 = vunpack.c.l.b16 %v2438
    %v2489 = vunpack.c.l.b16 %v2439
    %v2490 = vunpack.c.l.b16 %v2450
    %v2491 = vunpack.c.l.b16 %v2451
    %v2492 = vunpack.c.l.b16 %v2454
    %v2493 = vunpack.c.l.b16 %v2455
    %v2494 = vunpack.c.l.b16 %v2458
    %v2495 = vunpack.c.l.b16 %v2459
    %v2496 = vpack.c.b16 %v2483, %v2483
    %v2497 = vpack.c.b16 %v2485, %v2484
    %v2498 = vpack.c.b16 %v2487, %v2486
    %v2499 = vpack.c.b16 %v2489, %v2488
    %v2500 = vpack.c.b16 %v2491, %v2490
    %v2501 = vpack.c.b16 %v2493, %v2492
    %v2502 = vpack.c.b16 %v2495, %v2494
    %v2511 = vunpack.c.l.b16 %v2355
    %v2512 = vunpack.c.l.b16 %v2356
    %v2513 = vunpack.c.l.b16 %v2357
    %v2514 = vunpack.c.l.b16 %v2358
    %v2515 = vunpack.c.l.b16 %v2359
    %v2516 = vunpack.c.l.b16 %v2360
    %v2517 = vunpack.c.l.b16 %v2361
    %v2518 = vunpack.c.l.b16 %v2362
    %v2519 = vpack.c.b16 %v2512, %v2511
    %v2520 = vpack.c.b16 %v2514, %v2513
    %v2521 = vpack.c.b16 %v2516, %v2515
    %v2522 = vpack.c.b16 %v2518, %v2517
    %vm2527 = vcmask 523264
    %v2529 = vsel %vm2527, %v2496, 0
    %v2532 = vsel %vm2527, %v2497, 0
    %v2535 = vsel %vm2527, %v2498, 0
    %v2538 = vsel %vm2527, %v2499, 0
    %v2541 = vsel %vm2527, %v2500, 0
    %v2544 = vsel %vm2527, %v2501, 0
    %v2547 = vsel %vm2527, %v2502, 0
    %2549 = vmatpush.bf16.msra.mxu0 0
    %2550 = vmatpush.bf16.msra.mxu0 0
    %2551 = vmatpush.bf16.msra.mxu0 0
    %2552 = vmatpush.bf16.msra.mxu0 0
    %2553 = vmatpush.bf16.msra.mxu0 %v2522
    %2554 = vmatpush.bf16.msra.mxu0 %v2521
    %2555 = vmatpush.bf16.msra.mxu0 %v2520
    %2556 = vmatpush.bf16.msra.mxu0 %v2519
    %2557 = vmatmul.bf16.gmra.mxu0 %v2529
    %v2558 = vpop.f32.mrf.mxu0
    %v2559 = vadd.f32 0.0, %v2558
    %v2560 = vpop.f32.mrf.mxu0
    %v2561 = vadd.f32 0.0, %v2560
    %2562 = vmatmul.bf16.gmra.mxu0 %v2529
    %v2563 = vpop.f32.mrf.mxu0
    %v2564 = vadd.f32 0.0, %v2563
    %v2565 = vpop.f32.mrf.mxu0
    %v2566 = vadd.f32 0.0, %v2565
    %2567 = vmatmul.bf16.gmra.mxu0 %v2529
    %v2568 = vpop.f32.mrf.mxu0
    %v2569 = vadd.f32 0.0, %v2568
    %v2570 = vpop.f32.mrf.mxu0
    %v2571 = vadd.f32 0.0, %v2570
    %2572 = vmatmul.bf16.gmra.mxu0 %v2532
    %v2573 = vpop.f32.mrf.mxu0
    %v2574 = vadd.f32 0.0, %v2573
    %v2575 = vpop.f32.mrf.mxu0
    %v2576 = vadd.f32 0.0, %v2575
    %2577 = vmatmul.bf16.gmra.mxu0 %v2535
    %v2578 = vpop.f32.mrf.mxu0
    %v2579 = vadd.f32 0.0, %v2578
    %v2580 = vpop.f32.mrf.mxu0
    %v2581 = vadd.f32 0.0, %v2580
    %2582 = vmatmul.bf16.gmra.mxu0 %v2538
    %v2583 = vpop.f32.mrf.mxu0
    %v2584 = vadd.f32 0.0, %v2583
    %v2585 = vpop.f32.mrf.mxu0
    %v2586 = vadd.f32 0.0, %v2585
    %2587 = vmatmul.bf16.gmra.mxu0 %v2541
    %v2588 = vpop.f32.mrf.mxu0
    %v2589 = vadd.f32 0.0, %v2588
    %v2590 = vpop.f32.mrf.mxu0
    %v2591 = vadd.f32 0.0, %v2590
    %2592 = vmatmul.bf16.gmra.mxu0 %v2544
    %v2593 = vpop.f32.mrf.mxu0
    %v2594 = vadd.f32 0.0, %v2593
    %v2595 = vpop.f32.mrf.mxu0
    %v2596 = vadd.f32 0.0, %v2595
    %2597 = vmatmul.bf16.gmra.mxu0 %v2547
    %v2598 = vpop.f32.mrf.mxu0
    %v2599 = vadd.f32 0.0, %v2598
    %v2600 = vpop.f32.mrf.mxu0
    %v2601 = vadd.f32 0.0, %v2600
    %2602 = vdwg.mxu0
    %v2611 = vunpack.c.l.b16 %v2432
    %v2612 = vunpack.c.l.b16 %v2433
    %v2613 = vunpack.c.l.b16 %v2436
    %v2614 = vunpack.c.l.b16 %v2437
    %v2615 = vunpack.c.l.b16 %v2452
    %v2616 = vunpack.c.l.b16 %v2453
    %v2617 = vunpack.c.l.b16 %v2456
    %v2618 = vunpack.c.l.b16 %v2457
    %v2619 = vpack.c.b16 %v2612, %v2611
    %v2620 = vpack.c.b16 %v2614, %v2613
    %v2621 = vpack.c.b16 %v2616, %v2615
    %v2622 = vpack.c.b16 %v2618, %v2617
    %v2631 = vunpack.c.l.b16 %v2347
    %v2632 = vunpack.c.l.b16 %v2348
    %v2633 = vunpack.c.l.b16 %v2349
    %v2634 = vunpack.c.l.b16 %v2350
    %v2635 = vunpack.c.l.b16 %v2351
    %v2636 = vunpack.c.l.b16 %v2352
    %v2637 = vunpack.c.l.b16 %v2353
    %v2638 = vunpack.c.l.b16 %v2354
    %v2639 = vpack.c.b16 %v2632, %v2631
    %v2640 = vpack.c.b16 %v2634, %v2633
    %v2641 = vpack.c.b16 %v2636, %v2635
    %v2642 = vpack.c.b16 %v2638, %v2637
    %v2648 = vsel %vm2527, %v2619, 0
    %v2651 = vsel %vm2527, %v2620, 0
    %v2654 = vsel %vm2527, %v2621, 0
    %v2657 = vsel %vm2527, %v2622, 0
    %2659 = vmatpush.bf16.msra.mxu0 0
    %2660 = vmatpush.bf16.msra.mxu0 0
    %2661 = vmatpush.bf16.msra.mxu0 0
    %2662 = vmatpush.bf16.msra.mxu0 0
    %2663 = vmatpush.bf16.msra.mxu0 %v2642
    %2664 = vmatpush.bf16.msra.mxu0 %v2641
    %2665 = vmatpush.bf16.msra.mxu0 %v2640
    %2666 = vmatpush.bf16.msra.mxu0 %v2639
    %2667 = vmatmul.bf16.gmra.mxu0 %v2529
    %v2668 = vpop.f32.mrf.mxu0
    %v2669 = vadd.f32 %v2559, %v2668
    %v2670 = vpop.f32.mrf.mxu0
    %v2671 = vadd.f32 %v2561, %v2670
    %2672 = vmatmul.bf16.gmra.mxu0 %v2529
    %v2673 = vpop.f32.mrf.mxu0
    %v2674 = vadd.f32 %v2564, %v2673
    %v2675 = vpop.f32.mrf.mxu0
    %v2676 = vadd.f32 %v2566, %v2675
    %2677 = vmatmul.bf16.gmra.mxu0 %v2529
    %v2678 = vpop.f32.mrf.mxu0
    %v2679 = vadd.f32 %v2569, %v2678
    %v2680 = vpop.f32.mrf.mxu0
    %v2681 = vadd.f32 %v2571, %v2680
    %2682 = vmatmul.bf16.gmra.mxu0 %v2529
    %v2683 = vpop.f32.mrf.mxu0
    %v2684 = vadd.f32 %v2574, %v2683
    %v2685 = vpop.f32.mrf.mxu0
    %v2686 = vadd.f32 %v2576, %v2685
    %2687 = vmatmul.bf16.gmra.mxu0 %v2648
    %v2688 = vpop.f32.mrf.mxu0
    %v2689 = vadd.f32 %v2579, %v2688
    %v2690 = vpop.f32.mrf.mxu0
    %v2691 = vadd.f32 %v2581, %v2690
    %2692 = vmatmul.bf16.gmra.mxu0 %v2651
    %v2693 = vpop.f32.mrf.mxu0
    %v2694 = vadd.f32 %v2584, %v2693
    %v2695 = vpop.f32.mrf.mxu0
    %v2696 = vadd.f32 %v2586, %v2695
    %2697 = vmatmul.bf16.gmra.mxu0 %v2529
    %v2698 = vpop.f32.mrf.mxu0
    %v2699 = vadd.f32 %v2589, %v2698
    %v2700 = vpop.f32.mrf.mxu0
    %v2701 = vadd.f32 %v2591, %v2700
    %2702 = vmatmul.bf16.gmra.mxu0 %v2654
    %v2703 = vpop.f32.mrf.mxu0
    %v2704 = vadd.f32 %v2594, %v2703
    %v2705 = vpop.f32.mrf.mxu0
    %v2706 = vadd.f32 %v2596, %v2705
    %2707 = vmatmul.bf16.gmra.mxu0 %v2657
    %v2708 = vpop.f32.mrf.mxu0
    %v2709 = vadd.f32 %v2599, %v2708
    %v2710 = vpop.f32.mrf.mxu0
    %v2711 = vadd.f32 %v2601, %v2710
    %2712 = vdwg.mxu0
    %v2721 = vunpack.c.l.b16 %v2363
    %v2722 = vunpack.c.l.b16 %v2364
    %v2723 = vunpack.c.l.b16 %v2365
    %v2724 = vunpack.c.l.b16 %v2366
    %v2725 = vunpack.c.l.b16 %v2367
    %v2726 = vunpack.c.l.b16 %v2368
    %v2727 = vunpack.c.l.b16 %v2369
    %v2728 = vunpack.c.l.b16 %v2370
    %v2729 = vpack.c.b16 %v2722, %v2721
    %v2730 = vpack.c.b16 %v2724, %v2723
    %v2731 = vpack.c.b16 %v2726, %v2725
    %v2732 = vpack.c.b16 %v2728, %v2727
    %2737 = vmatpush.bf16.msra.mxu0 0
    %2738 = vmatpush.bf16.msra.mxu0 0
    %2739 = vmatpush.bf16.msra.mxu0 0
    %2740 = vmatpush.bf16.msra.mxu0 0
    %2741 = vmatpush.bf16.msra.mxu0 %v2732
    %2742 = vmatpush.bf16.msra.mxu0 %v2731
    %2743 = vmatpush.bf16.msra.mxu0 %v2730
    %2744 = vmatpush.bf16.msra.mxu0 %v2729
    %2745 = vmatmul.bf16.gmra.mxu0 %v2529
    %v2746 = vpop.f32.mrf.mxu0
    %v2747 = vadd.f32 0.0, %v2746
    %v2748 = vpop.f32.mrf.mxu0
    %v2749 = vadd.f32 0.0, %v2748
    %2750 = vmatmul.bf16.gmra.mxu0 %v2529
    %v2751 = vpop.f32.mrf.mxu0
    %v2752 = vadd.f32 0.0, %v2751
    %v2753 = vpop.f32.mrf.mxu0
    %v2754 = vadd.f32 0.0, %v2753
    %2755 = vmatmul.bf16.gmra.mxu0 %v2529
    %v2756 = vpop.f32.mrf.mxu0
    %v2757 = vadd.f32 0.0, %v2756
    %v2758 = vpop.f32.mrf.mxu0
    %v2759 = vadd.f32 0.0, %v2758
    %2760 = vmatmul.bf16.gmra.mxu0 %v2648
    %v2761 = vpop.f32.mrf.mxu0
    %v2762 = vadd.f32 0.0, %v2761
    %v2763 = vpop.f32.mrf.mxu0
    %v2764 = vadd.f32 0.0, %v2763
    %2765 = vmatmul.bf16.gmra.mxu0 %v2651
    %v2766 = vpop.f32.mrf.mxu0
    %v2767 = vadd.f32 0.0, %v2766
    %v2768 = vpop.f32.mrf.mxu0
    %v2769 = vadd.f32 0.0, %v2768
    %2770 = vmatmul.bf16.gmra.mxu0 %v2529
    %v2771 = vpop.f32.mrf.mxu0
    %v2772 = vadd.f32 0.0, %v2771
    %v2773 = vpop.f32.mrf.mxu0
    %v2774 = vadd.f32 0.0, %v2773
    %2775 = vmatmul.bf16.gmra.mxu0 %v2654
    %v2776 = vpop.f32.mrf.mxu0
    %v2777 = vadd.f32 0.0, %v2776
    %v2778 = vpop.f32.mrf.mxu0
    %v2779 = vadd.f32 0.0, %v2778
    %2780 = vmatmul.bf16.gmra.mxu0 %v2657
    %v2781 = vpop.f32.mrf.mxu0
    %v2782 = vadd.f32 0.0, %v2781
    %v2783 = vpop.f32.mrf.mxu0
    %v2784 = vadd.f32 0.0, %v2783
    %2785 = vmatmul.bf16.gmra.mxu0 %v2529
    %v2786 = vpop.f32.mrf.mxu0
    %v2787 = vadd.f32 0.0, %v2786
    %v2788 = vpop.f32.mrf.mxu0
    %v2789 = vadd.f32 0.0, %v2788
    %2790 = vdwg.mxu0
    %v2791 = vadd.f32 %v2669, %v2747
    %v2792 = vadd.f32 %v2671, %v2749
    %v2793 = vadd.f32 %v2674, %v2752
    %v2794 = vadd.f32 %v2676, %v2754
    %v2795 = vadd.f32 %v2679, %v2757
    %v2796 = vadd.f32 %v2681, %v2759
    %v2797 = vadd.f32 %v2684, %v2762
    %v2798 = vadd.f32 %v2686, %v2764
    %v2799 = vadd.f32 %v2689, %v2767
    %v2800 = vadd.f32 %v2691, %v2769
    %v2801 = vadd.f32 %v2694, %v2772
    %v2802 = vadd.f32 %v2696, %v2774
    %v2803 = vadd.f32 %v2699, %v2777
    %v2804 = vadd.f32 %v2701, %v2779
    %v2805 = vadd.f32 %v2704, %v2782
    %v2806 = vadd.f32 %v2706, %v2784
    %v2807 = vadd.f32 %v2709, %v2787
    %v2808 = vadd.f32 %v2711, %v2789
    %v2821 = vunpack.c.l.b16 %v2422
    %v2822 = vunpack.c.l.b16 %v2423
    %v2823 = vunpack.c.l.b16 %v2426
    %v2824 = vunpack.c.l.b16 %v2427
    %v2825 = vunpack.c.l.b16 %v2442
    %v2826 = vunpack.c.l.b16 %v2443
    %v2827 = vunpack.c.l.b16 %v2446
    %v2828 = vunpack.c.l.b16 %v2447
    %v2829 = vunpack.c.l.b16 %v2462
    %v2830 = vunpack.c.l.b16 %v2463
    %v2831 = vunpack.c.l.b16 %v2466
    %v2832 = vunpack.c.l.b16 %v2467
    %v2833 = vpack.c.b16 %v2822, %v2821
    %v2834 = vpack.c.b16 %v2824, %v2823
    %v2835 = vpack.c.b16 %v2826, %v2825
    %v2836 = vpack.c.b16 %v2828, %v2827
    %v2837 = vpack.c.b16 %v2830, %v2829
    %v2838 = vpack.c.b16 %v2832, %v2831
    %v2847 = vunpack.c.l.b16 %v2371
    %v2848 = vunpack.c.l.b16 %v2372
    %v2849 = vunpack.c.l.b16 %v2373
    %v2850 = vunpack.c.l.b16 %v2374
    %v2851 = vunpack.c.l.b16 %v2375
    %v2852 = vunpack.c.l.b16 %v2376
    %v2853 = vunpack.c.l.b16 %v2377
    %v2854 = vunpack.c.l.b16 %v2378
    %v2855 = vpack.c.b16 %v2848, %v2847
    %v2856 = vpack.c.b16 %v2850, %v2849
    %v2857 = vpack.c.b16 %v2852, %v2851
    %v2858 = vpack.c.b16 %v2854, %v2853
    %v2864 = vsel %vm2527, %v2833, 0
    %v2867 = vsel %vm2527, %v2834, 0
    %v2870 = vsel %vm2527, %v2835, 0
    %v2873 = vsel %vm2527, %v2836, 0
    %v2876 = vsel %vm2527, %v2837, 0
    %v2879 = vsel %vm2527, %v2838, 0
    %2881 = vmatpush.bf16.msra.mxu0 0
    %2882 = vmatpush.bf16.msra.mxu0 0
    %2883 = vmatpush.bf16.msra.mxu0 0
    %2884 = vmatpush.bf16.msra.mxu0 0
    %2885 = vmatpush.bf16.msra.mxu0 %v2858
    %2886 = vmatpush.bf16.msra.mxu0 %v2857
    %2887 = vmatpush.bf16.msra.mxu0 %v2856
    %2888 = vmatpush.bf16.msra.mxu0 %v2855
    %2889 = vmatmul.bf16.gmra.mxu0 %v2529
    %v2890 = vpop.f32.mrf.mxu0
    %v2891 = vadd.f32 0.0, %v2890
    %v2892 = vpop.f32.mrf.mxu0
    %v2893 = vadd.f32 0.0, %v2892
    %2894 = vmatmul.bf16.gmra.mxu0 %v2864
    %v2895 = vpop.f32.mrf.mxu0
    %v2896 = vadd.f32 0.0, %v2895
    %v2897 = vpop.f32.mrf.mxu0
    %v2898 = vadd.f32 0.0, %v2897
    %2899 = vmatmul.bf16.gmra.mxu0 %v2867
    %v2900 = vpop.f32.mrf.mxu0
    %v2901 = vadd.f32 0.0, %v2900
    %v2902 = vpop.f32.mrf.mxu0
    %v2903 = vadd.f32 0.0, %v2902
    %2904 = vmatmul.bf16.gmra.mxu0 %v2529
    %v2905 = vpop.f32.mrf.mxu0
    %v2906 = vadd.f32 0.0, %v2905
    %v2907 = vpop.f32.mrf.mxu0
    %v2908 = vadd.f32 0.0, %v2907
    %2909 = vmatmul.bf16.gmra.mxu0 %v2870
    %v2910 = vpop.f32.mrf.mxu0
    %v2911 = vadd.f32 0.0, %v2910
    %v2912 = vpop.f32.mrf.mxu0
    %v2913 = vadd.f32 0.0, %v2912
    %2914 = vmatmul.bf16.gmra.mxu0 %v2873
    %v2915 = vpop.f32.mrf.mxu0
    %v2916 = vadd.f32 0.0, %v2915
    %v2917 = vpop.f32.mrf.mxu0
    %v2918 = vadd.f32 0.0, %v2917
    %2919 = vmatmul.bf16.gmra.mxu0 %v2529
    %v2920 = vpop.f32.mrf.mxu0
    %v2921 = vadd.f32 0.0, %v2920
    %v2922 = vpop.f32.mrf.mxu0
    %v2923 = vadd.f32 0.0, %v2922
    %2924 = vmatmul.bf16.gmra.mxu0 %v2876
    %v2925 = vpop.f32.mrf.mxu0
    %v2926 = vadd.f32 0.0, %v2925
    %v2927 = vpop.f32.mrf.mxu0
    %v2928 = vadd.f32 0.0, %v2927
    %2929 = vmatmul.bf16.gmra.mxu0 %v2879
    %v2930 = vpop.f32.mrf.mxu0
    %v2931 = vadd.f32 0.0, %v2930
    %v2932 = vpop.f32.mrf.mxu0
    %v2933 = vadd.f32 0.0, %v2932
    %2934 = vdwg.mxu0
    %v2935 = vadd.f32 %v2791, %v2891
    %v2936 = vadd.f32 %v2792, %v2893
    %v2937 = vadd.f32 %v2793, %v2896
    %v2938 = vadd.f32 %v2794, %v2898
    %v2939 = vadd.f32 %v2795, %v2901
    %v2940 = vadd.f32 %v2796, %v2903
    %v2941 = vadd.f32 %v2797, %v2906
    %v2942 = vadd.f32 %v2798, %v2908
    %v2943 = vadd.f32 %v2799, %v2911
    %v2944 = vadd.f32 %v2800, %v2913
    %v2945 = vadd.f32 %v2801, %v2916
    %v2946 = vadd.f32 %v2802, %v2918
    %v2947 = vadd.f32 %v2803, %v2921
    %v2948 = vadd.f32 %v2804, %v2923
    %v2949 = vadd.f32 %v2805, %v2926
    %v2950 = vadd.f32 %v2806, %v2928
    %v2951 = vadd.f32 %v2807, %v2931
    %v2952 = vadd.f32 %v2808, %v2933
    %v2971 = vunpack.c.l.b16 %v2420
    %v2972 = vunpack.c.l.b16 %v2421
    %v2973 = vunpack.c.l.b16 %v2424
    %v2974 = vunpack.c.l.b16 %v2425
    %v2975 = vunpack.c.l.b16 %v2428
    %v2976 = vunpack.c.l.b16 %v2429
    %v2977 = vunpack.c.l.b16 %v2440
    %v2978 = vunpack.c.l.b16 %v2441
    %v2979 = vunpack.c.l.b16 %v2444
    %v2980 = vunpack.c.l.b16 %v2445
    %v2981 = vunpack.c.l.b16 %v2448
    %v2982 = vunpack.c.l.b16 %v2449
    %v2983 = vunpack.c.l.b16 %v2460
    %v2984 = vunpack.c.l.b16 %v2461
    %v2985 = vunpack.c.l.b16 %v2464
    %v2986 = vunpack.c.l.b16 %v2465
    %v2987 = vunpack.c.l.b16 %v2468
    %v2988 = vunpack.c.l.b16 %v2469
    %v2989 = vpack.c.b16 %v2972, %v2971
    %v2990 = vpack.c.b16 %v2974, %v2973
    %v2991 = vpack.c.b16 %v2976, %v2975
    %v2992 = vpack.c.b16 %v2978, %v2977
    %v2993 = vpack.c.b16 %v2980, %v2979
    %v2994 = vpack.c.b16 %v2982, %v2981
    %v2995 = vpack.c.b16 %v2984, %v2983
    %v2996 = vpack.c.b16 %v2986, %v2985
    %v2997 = vpack.c.b16 %v2988, %v2987
    %v3006 = vunpack.c.l.b16 %v2379
    %v3007 = vunpack.c.l.b16 %v2380
    %v3008 = vunpack.c.l.b16 %v2381
    %v3009 = vunpack.c.l.b16 %v2382
    %v3010 = vunpack.c.l.b16 %v2383
    %v3011 = vunpack.c.l.b16 %v2384
    %v3012 = vunpack.c.l.b16 %v2385
    %v3013 = vunpack.c.l.b16 %v2386
    %v3014 = vpack.c.b16 %v3007, %v3006
    %v3015 = vpack.c.b16 %v3009, %v3008
    %v3016 = vpack.c.b16 %v3011, %v3010
    %v3017 = vpack.c.b16 %v3013, %v3012
    %v3023 = vsel %vm2527, %v2989, 0
    %v3026 = vsel %vm2527, %v2990, 0
    %v3029 = vsel %vm2527, %v2991, 0
    %v3032 = vsel %vm2527, %v2992, 0
    %v3035 = vsel %vm2527, %v2993, 0
    %v3038 = vsel %vm2527, %v2994, 0
    %v3041 = vsel %vm2527, %v2995, 0
    %v3044 = vsel %vm2527, %v2996, 0
    %v3047 = vsel %vm2527, %v2997, 0
    %3049 = vmatpush.bf16.msra.mxu0 0
    %3050 = vmatpush.bf16.msra.mxu0 0
    %3051 = vmatpush.bf16.msra.mxu0 0
    %3052 = vmatpush.bf16.msra.mxu0 0
    %3053 = vmatpush.bf16.msra.mxu0 %v3017
    %3054 = vmatpush.bf16.msra.mxu0 %v3016
    %3055 = vmatpush.bf16.msra.mxu0 %v3015
    %3056 = vmatpush.bf16.msra.mxu0 %v3014
    %3057 = vmatmul.bf16.gmra.mxu0 %v3023
    %v3058 = vpop.f32.mrf.mxu0
    %v3059 = vadd.f32 0.0, %v3058
    %v3060 = vpop.f32.mrf.mxu0
    %v3061 = vadd.f32 0.0, %v3060
    %3062 = vmatmul.bf16.gmra.mxu0 %v3026
    %v3063 = vpop.f32.mrf.mxu0
    %v3064 = vadd.f32 0.0, %v3063
    %v3065 = vpop.f32.mrf.mxu0
    %v3066 = vadd.f32 0.0, %v3065
    %3067 = vmatmul.bf16.gmra.mxu0 %v3029
    %v3068 = vpop.f32.mrf.mxu0
    %v3069 = vadd.f32 0.0, %v3068
    %v3070 = vpop.f32.mrf.mxu0
    %v3071 = vadd.f32 0.0, %v3070
    %3072 = vmatmul.bf16.gmra.mxu0 %v3032
    %v3073 = vpop.f32.mrf.mxu0
    %v3074 = vadd.f32 0.0, %v3073
    %v3075 = vpop.f32.mrf.mxu0
    %v3076 = vadd.f32 0.0, %v3075
    %3077 = vmatmul.bf16.gmra.mxu0 %v3035
    %v3078 = vpop.f32.mrf.mxu0
    %v3079 = vadd.f32 0.0, %v3078
    %v3080 = vpop.f32.mrf.mxu0
    %v3081 = vadd.f32 0.0, %v3080
    %3082 = vmatmul.bf16.gmra.mxu0 %v3038
    %v3083 = vpop.f32.mrf.mxu0
    %v3084 = vadd.f32 0.0, %v3083
    %v3085 = vpop.f32.mrf.mxu0
    %v3086 = vadd.f32 0.0, %v3085
    %3087 = vmatmul.bf16.gmra.mxu0 %v3041
    %v3088 = vpop.f32.mrf.mxu0
    %v3089 = vadd.f32 0.0, %v3088
    %v3090 = vpop.f32.mrf.mxu0
    %v3091 = vadd.f32 0.0, %v3090
    %3092 = vmatmul.bf16.gmra.mxu0 %v3044
    %v3093 = vpop.f32.mrf.mxu0
    %v3094 = vadd.f32 0.0, %v3093
    %v3095 = vpop.f32.mrf.mxu0
    %v3096 = vadd.f32 0.0, %v3095
    %3097 = vmatmul.bf16.gmra.mxu0 %v3047
    %v3098 = vpop.f32.mrf.mxu0
    %v3099 = vadd.f32 0.0, %v3098
    %v3100 = vpop.f32.mrf.mxu0
    %v3101 = vadd.f32 0.0, %v3100
    %3102 = vdwg.mxu0
    %v3103 = vadd.f32 %v2935, %v3059
    %v3104 = vadd.f32 %v2936, %v3061
    %v3105 = vadd.f32 %v2937, %v3064
    %v3106 = vadd.f32 %v2938, %v3066
    %v3107 = vadd.f32 %v2939, %v3069
    %v3108 = vadd.f32 %v2940, %v3071
    %v3109 = vadd.f32 %v2941, %v3074
    %v3110 = vadd.f32 %v2942, %v3076
    %v3111 = vadd.f32 %v2943, %v3079
    %v3112 = vadd.f32 %v2944, %v3081
    %v3113 = vadd.f32 %v2945, %v3084
    %v3114 = vadd.f32 %v2946, %v3086
    %v3115 = vadd.f32 %v2947, %v3089
    %v3116 = vadd.f32 %v2948, %v3091
    %v3117 = vadd.f32 %v2949, %v3094
    %v3118 = vadd.f32 %v2950, %v3096
    %v3119 = vadd.f32 %v2951, %v3099
    %v3120 = vadd.f32 %v2952, %v3101
    %v3129 = vunpack.c.l.b16 %v2387
    %v3130 = vunpack.c.l.b16 %v2388
    %v3131 = vunpack.c.l.b16 %v2389
    %v3132 = vunpack.c.l.b16 %v2390
    %v3133 = vunpack.c.l.b16 %v2391
    %v3134 = vunpack.c.l.b16 %v2392
    %v3135 = vunpack.c.l.b16 %v2393
    %v3136 = vunpack.c.l.b16 %v2394
    %v3137 = vpack.c.b16 %v3130, %v3129
    %v3138 = vpack.c.b16 %v3132, %v3131
    %v3139 = vpack.c.b16 %v3134, %v3133
    %v3140 = vpack.c.b16 %v3136, %v3135
    %3145 = vmatpush.bf16.msra.mxu0 0
    %3146 = vmatpush.bf16.msra.mxu0 0
    %3147 = vmatpush.bf16.msra.mxu0 0
    %3148 = vmatpush.bf16.msra.mxu0 0
    %3149 = vmatpush.bf16.msra.mxu0 %v3140
    %3150 = vmatpush.bf16.msra.mxu0 %v3139
    %3151 = vmatpush.bf16.msra.mxu0 %v3138
    %3152 = vmatpush.bf16.msra.mxu0 %v3137
    %3153 = vmatmul.bf16.gmra.mxu0 %v2864
    %v3154 = vpop.f32.mrf.mxu0
    %v3155 = vadd.f32 0.0, %v3154
    %v3156 = vpop.f32.mrf.mxu0
    %v3157 = vadd.f32 0.0, %v3156
    %3158 = vmatmul.bf16.gmra.mxu0 %v2867
    %v3159 = vpop.f32.mrf.mxu0
    %v3160 = vadd.f32 0.0, %v3159
    %v3161 = vpop.f32.mrf.mxu0
    %v3162 = vadd.f32 0.0, %v3161
    %3163 = vmatmul.bf16.gmra.mxu0 %v2529
    %v3164 = vpop.f32.mrf.mxu0
    %v3165 = vadd.f32 0.0, %v3164
    %v3166 = vpop.f32.mrf.mxu0
    %v3167 = vadd.f32 0.0, %v3166
    %3168 = vmatmul.bf16.gmra.mxu0 %v2870
    %v3169 = vpop.f32.mrf.mxu0
    %v3170 = vadd.f32 0.0, %v3169
    %v3171 = vpop.f32.mrf.mxu0
    %v3172 = vadd.f32 0.0, %v3171
    %3173 = vmatmul.bf16.gmra.mxu0 %v2873
    %v3174 = vpop.f32.mrf.mxu0
    %v3175 = vadd.f32 0.0, %v3174
    %v3176 = vpop.f32.mrf.mxu0
    %v3177 = vadd.f32 0.0, %v3176
    %3178 = vmatmul.bf16.gmra.mxu0 %v2529
    %v3179 = vpop.f32.mrf.mxu0
    %v3180 = vadd.f32 0.0, %v3179
    %v3181 = vpop.f32.mrf.mxu0
    %v3182 = vadd.f32 0.0, %v3181
    %3183 = vmatmul.bf16.gmra.mxu0 %v2876
    %v3184 = vpop.f32.mrf.mxu0
    %v3185 = vadd.f32 0.0, %v3184
    %v3186 = vpop.f32.mrf.mxu0
    %v3187 = vadd.f32 0.0, %v3186
    %3188 = vmatmul.bf16.gmra.mxu0 %v2879
    %v3189 = vpop.f32.mrf.mxu0
    %v3190 = vadd.f32 0.0, %v3189
    %v3191 = vpop.f32.mrf.mxu0
    %v3192 = vadd.f32 0.0, %v3191
    %3193 = vmatmul.bf16.gmra.mxu0 %v2529
    %v3194 = vpop.f32.mrf.mxu0
    %v3195 = vadd.f32 0.0, %v3194
    %v3196 = vpop.f32.mrf.mxu0
    %v3197 = vadd.f32 0.0, %v3196
    %3198 = vdwg.mxu0
    %v3199 = vadd.f32 %v3103, %v3155
    %v3200 = vadd.f32 %v3104, %v3157
    %v3201 = vadd.f32 %v3105, %v3160
    %v3202 = vadd.f32 %v3106, %v3162
    %v3203 = vadd.f32 %v3107, %v3165
    %v3204 = vadd.f32 %v3108, %v3167
    %v3205 = vadd.f32 %v3109, %v3170
    %v3206 = vadd.f32 %v3110, %v3172
    %v3207 = vadd.f32 %v3111, %v3175
    %v3208 = vadd.f32 %v3112, %v3177
    %v3209 = vadd.f32 %v3113, %v3180
    %v3210 = vadd.f32 %v3114, %v3182
    %v3211 = vadd.f32 %v3115, %v3185
    %v3212 = vadd.f32 %v3116, %v3187
    %v3213 = vadd.f32 %v3117, %v3190
    %v3214 = vadd.f32 %v3118, %v3192
    %v3215 = vadd.f32 %v3119, %v3195
    %v3216 = vadd.f32 %v3120, %v3197
    %v3225 = vunpack.c.l.b16 %v2395
    %v3226 = vunpack.c.l.b16 %v2396
    %v3227 = vunpack.c.l.b16 %v2397
    %v3228 = vunpack.c.l.b16 %v2398
    %v3229 = vunpack.c.l.b16 %v2399
    %v3230 = vunpack.c.l.b16 %v2400
    %v3231 = vunpack.c.l.b16 %v2401
    %v3232 = vunpack.c.l.b16 %v2402
    %v3233 = vpack.c.b16 %v3226, %v3225
    %v3234 = vpack.c.b16 %v3228, %v3227
    %v3235 = vpack.c.b16 %v3230, %v3229
    %v3236 = vpack.c.b16 %v3232, %v3231
    %3241 = vmatpush.bf16.msra.mxu0 0
    %3242 = vmatpush.bf16.msra.mxu0 0
    %3243 = vmatpush.bf16.msra.mxu0 0
    %3244 = vmatpush.bf16.msra.mxu0 0
    %3245 = vmatpush.bf16.msra.mxu0 %v3236
    %3246 = vmatpush.bf16.msra.mxu0 %v3235
    %3247 = vmatpush.bf16.msra.mxu0 %v3234
    %3248 = vmatpush.bf16.msra.mxu0 %v3233
    %3249 = vmatmul.bf16.gmra.mxu0 %v2529
    %v3250 = vpop.f32.mrf.mxu0
    %v3251 = vadd.f32 0.0, %v3250
    %v3252 = vpop.f32.mrf.mxu0
    %v3253 = vadd.f32 0.0, %v3252
    %3254 = vmatmul.bf16.gmra.mxu0 %v2648
    %v3255 = vpop.f32.mrf.mxu0
    %v3256 = vadd.f32 0.0, %v3255
    %v3257 = vpop.f32.mrf.mxu0
    %v3258 = vadd.f32 0.0, %v3257
    %3259 = vmatmul.bf16.gmra.mxu0 %v2651
    %v3260 = vpop.f32.mrf.mxu0
    %v3261 = vadd.f32 0.0, %v3260
    %v3262 = vpop.f32.mrf.mxu0
    %v3263 = vadd.f32 0.0, %v3262
    %3264 = vmatmul.bf16.gmra.mxu0 %v2529
    %v3265 = vpop.f32.mrf.mxu0
    %v3266 = vadd.f32 0.0, %v3265
    %v3267 = vpop.f32.mrf.mxu0
    %v3268 = vadd.f32 0.0, %v3267
    %3269 = vmatmul.bf16.gmra.mxu0 %v2654
    %v3270 = vpop.f32.mrf.mxu0
    %v3271 = vadd.f32 0.0, %v3270
    %v3272 = vpop.f32.mrf.mxu0
    %v3273 = vadd.f32 0.0, %v3272
    %3274 = vmatmul.bf16.gmra.mxu0 %v2657
    %v3275 = vpop.f32.mrf.mxu0
    %v3276 = vadd.f32 0.0, %v3275
    %v3277 = vpop.f32.mrf.mxu0
    %v3278 = vadd.f32 0.0, %v3277
    %3279 = vmatmul.bf16.gmra.mxu0 %v2529
    %v3280 = vpop.f32.mrf.mxu0
    %v3281 = vadd.f32 0.0, %v3280
    %v3282 = vpop.f32.mrf.mxu0
    %v3283 = vadd.f32 0.0, %v3282
    %3284 = vmatmul.bf16.gmra.mxu0 %v2529
    %v3285 = vpop.f32.mrf.mxu0
    %v3286 = vadd.f32 0.0, %v3285
    %v3287 = vpop.f32.mrf.mxu0
    %v3288 = vadd.f32 0.0, %v3287
    %3289 = vmatmul.bf16.gmra.mxu0 %v2529
    %v3290 = vpop.f32.mrf.mxu0
    %v3291 = vadd.f32 0.0, %v3290
    %v3292 = vpop.f32.mrf.mxu0
    %v3293 = vadd.f32 0.0, %v3292
    %3294 = vdwg.mxu0
    %v3295 = vadd.f32 %v3199, %v3251
    %v3296 = vadd.f32 %v3200, %v3253
    %v3297 = vadd.f32 %v3201, %v3256
    %v3298 = vadd.f32 %v3202, %v3258
    %v3299 = vadd.f32 %v3203, %v3261
    %v3300 = vadd.f32 %v3204, %v3263
    %v3301 = vadd.f32 %v3205, %v3266
    %v3302 = vadd.f32 %v3206, %v3268
    %v3303 = vadd.f32 %v3207, %v3271
    %v3304 = vadd.f32 %v3208, %v3273
    %v3305 = vadd.f32 %v3209, %v3276
    %v3306 = vadd.f32 %v3210, %v3278
    %v3307 = vadd.f32 %v3211, %v3281
    %v3308 = vadd.f32 %v3212, %v3283
    %v3309 = vadd.f32 %v3213, %v3286
    %v3310 = vadd.f32 %v3214, %v3288
    %v3311 = vadd.f32 %v3215, %v3291
    %v3312 = vadd.f32 %v3216, %v3293
    %v3321 = vunpack.c.l.b16 %v2403
    %v3322 = vunpack.c.l.b16 %v2404
    %v3323 = vunpack.c.l.b16 %v2405
    %v3324 = vunpack.c.l.b16 %v2406
    %v3325 = vunpack.c.l.b16 %v2407
    %v3326 = vunpack.c.l.b16 %v2408
    %v3327 = vunpack.c.l.b16 %v2409
    %v3328 = vunpack.c.l.b16 %v2410
    %v3329 = vpack.c.b16 %v3322, %v3321
    %v3330 = vpack.c.b16 %v3324, %v3323
    %v3331 = vpack.c.b16 %v3326, %v3325
    %v3332 = vpack.c.b16 %v3328, %v3327
    %3337 = vmatpush.bf16.msra.mxu0 0
    %3338 = vmatpush.bf16.msra.mxu0 0
    %3339 = vmatpush.bf16.msra.mxu0 0
    %3340 = vmatpush.bf16.msra.mxu0 0
    %3341 = vmatpush.bf16.msra.mxu0 %v3332
    %3342 = vmatpush.bf16.msra.mxu0 %v3331
    %3343 = vmatpush.bf16.msra.mxu0 %v3330
    %3344 = vmatpush.bf16.msra.mxu0 %v3329
    %3345 = vmatmul.bf16.gmra.mxu0 %v2532
    %v3346 = vpop.f32.mrf.mxu0
    %v3347 = vadd.f32 0.0, %v3346
    %v3348 = vpop.f32.mrf.mxu0
    %v3349 = vadd.f32 0.0, %v3348
    %3350 = vmatmul.bf16.gmra.mxu0 %v2535
    %v3351 = vpop.f32.mrf.mxu0
    %v3352 = vadd.f32 0.0, %v3351
    %v3353 = vpop.f32.mrf.mxu0
    %v3354 = vadd.f32 0.0, %v3353
    %3355 = vmatmul.bf16.gmra.mxu0 %v2538
    %v3356 = vpop.f32.mrf.mxu0
    %v3357 = vadd.f32 0.0, %v3356
    %v3358 = vpop.f32.mrf.mxu0
    %v3359 = vadd.f32 0.0, %v3358
    %3360 = vmatmul.bf16.gmra.mxu0 %v2541
    %v3361 = vpop.f32.mrf.mxu0
    %v3362 = vadd.f32 0.0, %v3361
    %v3363 = vpop.f32.mrf.mxu0
    %v3364 = vadd.f32 0.0, %v3363
    %3365 = vmatmul.bf16.gmra.mxu0 %v2544
    %v3366 = vpop.f32.mrf.mxu0
    %v3367 = vadd.f32 0.0, %v3366
    %v3368 = vpop.f32.mrf.mxu0
    %v3369 = vadd.f32 0.0, %v3368
    %3370 = vmatmul.bf16.gmra.mxu0 %v2547
    %v3371 = vpop.f32.mrf.mxu0
    %v3372 = vadd.f32 0.0, %v3371
    %v3373 = vpop.f32.mrf.mxu0
    %v3374 = vadd.f32 0.0, %v3373
    %3375 = vmatmul.bf16.gmra.mxu0 %v2529
    %v3376 = vpop.f32.mrf.mxu0
    %v3377 = vadd.f32 0.0, %v3376
    %v3378 = vpop.f32.mrf.mxu0
    %v3379 = vadd.f32 0.0, %v3378
    %3380 = vmatmul.bf16.gmra.mxu0 %v2529
    %v3381 = vpop.f32.mrf.mxu0
    %v3382 = vadd.f32 0.0, %v3381
    %v3383 = vpop.f32.mrf.mxu0
    %v3384 = vadd.f32 0.0, %v3383
    %3385 = vmatmul.bf16.gmra.mxu0 %v2529
    %v3386 = vpop.f32.mrf.mxu0
    %v3387 = vadd.f32 0.0, %v3386
    %v3388 = vpop.f32.mrf.mxu0
    %v3389 = vadd.f32 0.0, %v3388
    %3390 = vdwg.mxu0
    %v3391 = vadd.f32 %v3295, %v3347
    %v3392 = vadd.f32 %v3296, %v3349
    %v3393 = vadd.f32 %v3297, %v3352
    %v3394 = vadd.f32 %v3298, %v3354
    %v3395 = vadd.f32 %v3299, %v3357
    %v3396 = vadd.f32 %v3300, %v3359
    %v3397 = vadd.f32 %v3301, %v3362
    %v3398 = vadd.f32 %v3302, %v3364
    %v3399 = vadd.f32 %v3303, %v3367
    %v3400 = vadd.f32 %v3304, %v3369
    %v3401 = vadd.f32 %v3305, %v3372
    %v3402 = vadd.f32 %v3306, %v3374
    %v3403 = vadd.f32 %v3307, %v3377
    %v3404 = vadd.f32 %v3308, %v3379
    %v3405 = vadd.f32 %v3309, %v3382
    %v3406 = vadd.f32 %v3310, %v3384
    %v3407 = vadd.f32 %v3311, %v3387
    %v3408 = vadd.f32 %v3312, %v3389
    %v3417 = vunpack.c.l.b16 %v2411
    %v3418 = vunpack.c.l.b16 %v2412
    %v3419 = vunpack.c.l.b16 %v2413
    %v3420 = vunpack.c.l.b16 %v2414
    %v3421 = vunpack.c.l.b16 %v2415
    %v3422 = vunpack.c.l.b16 %v2416
    %v3423 = vunpack.c.l.b16 %v2417
    %v3424 = vunpack.c.l.b16 %v2418
    %v3425 = vpack.c.b16 %v3418, %v3417
    %v3426 = vpack.c.b16 %v3420, %v3419
    %v3427 = vpack.c.b16 %v3422, %v3421
    %v3428 = vpack.c.b16 %v3424, %v3423
    %3433 = vmatpush.bf16.msra.mxu0 0
    %3434 = vmatpush.bf16.msra.mxu0 0
    %3435 = vmatpush.bf16.msra.mxu0 0
    %3436 = vmatpush.bf16.msra.mxu0 0
    %3437 = vmatpush.bf16.msra.mxu0 %v3428
    %3438 = vmatpush.bf16.msra.mxu0 %v3427
    %3439 = vmatpush.bf16.msra.mxu0 %v3426
    %3440 = vmatpush.bf16.msra.mxu0 %v3425
    %3441 = vmatmul.bf16.gmra.mxu0 %v2648
    %v3442 = vpop.f32.mrf.mxu0
    %v3443 = vadd.f32 0.0, %v3442
    %v3444 = vpop.f32.mrf.mxu0
    %v3445 = vadd.f32 0.0, %v3444
    %3446 = vmatmul.bf16.gmra.mxu0 %v2651
    %v3447 = vpop.f32.mrf.mxu0
    %v3448 = vadd.f32 0.0, %v3447
    %v3449 = vpop.f32.mrf.mxu0
    %v3450 = vadd.f32 0.0, %v3449
    %3451 = vmatmul.bf16.gmra.mxu0 %v2529
    %v3452 = vpop.f32.mrf.mxu0
    %v3453 = vadd.f32 0.0, %v3452
    %v3454 = vpop.f32.mrf.mxu0
    %v3455 = vadd.f32 0.0, %v3454
    %3456 = vmatmul.bf16.gmra.mxu0 %v2654
    %v3457 = vpop.f32.mrf.mxu0
    %v3458 = vadd.f32 0.0, %v3457
    %v3459 = vpop.f32.mrf.mxu0
    %v3460 = vadd.f32 0.0, %v3459
    %3461 = vmatmul.bf16.gmra.mxu0 %v2657
    %v3462 = vpop.f32.mrf.mxu0
    %v3463 = vadd.f32 0.0, %v3462
    %v3464 = vpop.f32.mrf.mxu0
    %v3465 = vadd.f32 0.0, %v3464
    %3466 = vmatmul.bf16.gmra.mxu0 %v2529
    %v3467 = vpop.f32.mrf.mxu0
    %v3468 = vadd.f32 0.0, %v3467
    %v3469 = vpop.f32.mrf.mxu0
    %v3470 = vadd.f32 0.0, %v3469
    %3471 = vmatmul.bf16.gmra.mxu0 %v2529
    %v3472 = vpop.f32.mrf.mxu0
    %v3473 = vadd.f32 0.0, %v3472
    %v3474 = vpop.f32.mrf.mxu0
    %v3475 = vadd.f32 0.0, %v3474
    %3476 = vmatmul.bf16.gmra.mxu0 %v2529
    %v3477 = vpop.f32.mrf.mxu0
    %v3478 = vadd.f32 0.0, %v3477
    %v3479 = vpop.f32.mrf.mxu0
    %v3480 = vadd.f32 0.0, %v3479
    %3481 = vmatmul.bf16.gmra.mxu0 %v2529
    %v3482 = vpop.f32.mrf.mxu0
    %v3483 = vadd.f32 0.0, %v3482
    %v3484 = vpop.f32.mrf.mxu0
    %v3485 = vadd.f32 0.0, %v3484
    %3486 = vdwg.mxu0
    %v3487 = vadd.f32 %v3391, %v3443
    %v3488 = vadd.f32 %v3392, %v3445
    %v3489 = vadd.f32 %v3393, %v3448
    %v3490 = vadd.f32 %v3394, %v3450
    %v3491 = vadd.f32 %v3395, %v3453
    %v3492 = vadd.f32 %v3396, %v3455
    %v3493 = vadd.f32 %v3397, %v3458
    %v3494 = vadd.f32 %v3398, %v3460
    %v3495 = vadd.f32 %v3399, %v3463
    %v3496 = vadd.f32 %v3400, %v3465
    %v3497 = vadd.f32 %v3401, %v3468
    %v3498 = vadd.f32 %v3402, %v3470
    %v3499 = vadd.f32 %v3403, %v3473
    %v3500 = vadd.f32 %v3404, %v3475
    %v3501 = vadd.f32 %v3405, %v3478
    %v3502 = vadd.f32 %v3406, %v3480
    %v3503 = vadd.f32 %v3407, %v3483
    %v3504 = vadd.f32 %v3408, %v3485
    %v3505 = vperm.slane %v71, 1
    %v3506 = vadd.f32 %v3487, %v3505
    %v3507 = vadd.f32 %v3488, %v3505
    %v3508 = vadd.f32 %v3489, %v3505
    %v3509 = vadd.f32 %v3490, %v3505
    %v3510 = vadd.f32 %v3491, %v3505
    %v3511 = vadd.f32 %v3492, %v3505
    %v3512 = vadd.f32 %v3493, %v3505
    %v3513 = vadd.f32 %v3494, %v3505
    %v3514 = vadd.f32 %v3495, %v3505
    %v3515 = vadd.f32 %v3496, %v3505
    %v3516 = vadd.f32 %v3497, %v3505
    %v3517 = vadd.f32 %v3498, %v3505
    %v3518 = vadd.f32 %v3499, %v3505
    %v3519 = vadd.f32 %v3500, %v3505
    %v3520 = vadd.f32 %v3501, %v3505
    %v3521 = vadd.f32 %v3502, %v3505
    %v3522 = vadd.f32 %v3503, %v3505
    %v3523 = vadd.f32 %v3504, %v3505
    %v3524 = vmul.f32 %v3506, 0.2
    %v3525 = vmul.f32 %v3507, 0.2
    %v3526 = vmul.f32 %v3508, 0.2
    %v3527 = vmul.f32 %v3509, 0.2
    %v3528 = vmul.f32 %v3510, 0.2
    %v3529 = vmul.f32 %v3511, 0.2
    %v3530 = vmul.f32 %v3512, 0.2
    %v3531 = vmul.f32 %v3513, 0.2
    %v3532 = vmul.f32 %v3514, 0.2
    %v3533 = vmul.f32 %v3515, 0.2
    %v3534 = vmul.f32 %v3516, 0.2
    %v3535 = vmul.f32 %v3517, 0.2
    %v3536 = vmul.f32 %v3518, 0.2
    %v3537 = vmul.f32 %v3519, 0.2
    %v3538 = vmul.f32 %v3520, 0.2
    %v3539 = vmul.f32 %v3521, 0.2
    %v3540 = vmul.f32 %v3522, 0.2
    %v3541 = vmul.f32 %v3523, 0.2
    %v3542 = vmax.f32 %v3506, %v3524
    %v3543 = vmax.f32 %v3507, %v3525
    %v3544 = vmax.f32 %v3508, %v3526
    %v3545 = vmax.f32 %v3509, %v3527
    %v3546 = vmax.f32 %v3510, %v3528
    %v3547 = vmax.f32 %v3511, %v3529
    %v3548 = vmax.f32 %v3512, %v3530
    %v3549 = vmax.f32 %v3513, %v3531
    %v3550 = vmax.f32 %v3514, %v3532
    %v3551 = vmax.f32 %v3515, %v3533
    %v3552 = vmax.f32 %v3516, %v3534
    %v3553 = vmax.f32 %v3517, %v3535
    %v3554 = vmax.f32 %v3518, %v3536
    %v3555 = vmax.f32 %v3519, %v3537
    %v3556 = vmax.f32 %v3520, %v3538
    %v3557 = vmax.f32 %v3521, %v3539
    %v3558 = vmax.f32 %v3522, %v3540
    %v3559 = vmax.f32 %v3523, %v3541
    %v3560 = vmax.f32 %v3542, %v3544
    %v3561 = vmax.f32 %v3543, %v3545
    %v3562 = vmax.f32 %v3544, %v3546
    %v3563 = vmax.f32 %v3545, %v3547
    %v3564 = vmax.f32 %v3548, %v3550
    %v3565 = vmax.f32 %v3549, %v3551
    %v3566 = vmax.f32 %v3550, %v3552
    %v3567 = vmax.f32 %v3551, %v3553
    %v3568 = vmax.f32 %v3560, %v3548
    %v3569 = vmax.f32 %v3561, %v3549
    %v3570 = vmax.f32 %v3562, %v3550
    %v3571 = vmax.f32 %v3563, %v3551
    %v3572 = vmax.f32 %v3564, %v3554
    %v3573 = vmax.f32 %v3565, %v3555
    %v3574 = vmax.f32 %v3566, %v3556
    %v3575 = vmax.f32 %v3567, %v3557
    %v3576 = vmax.f32 %v3568, %v3550
    %v3577 = vmax.f32 %v3569, %v3551
    %v3578 = vmax.f32 %v3570, %v3552
    %v3579 = vmax.f32 %v3571, %v3553
    %v3580 = vmax.f32 %v3572, %v3556
    %v3581 = vmax.f32 %v3573, %v3557
    %v3582 = vmax.f32 %v3574, %v3558
    %v3583 = vmax.f32 %v3575, %v3559
    %3586 = vrot.lane.b32.xlu0 %v3578, 32
    %v3587 = vpop.permute.xlu0 %3586
    %3588 = vrot.lane.b32.xlu0 %v3579, 32
    %v3589 = vpop.permute.xlu0 %3588
    %3594 = vrot.lane.b32.xlu0 %v3580, 64
    %v3595 = vpop.permute.xlu0 %3594
    %3596 = vrot.lane.b32.xlu0 %v3581, 64
    %v3597 = vpop.permute.xlu0 %3596
    %3602 = vrot.lane.b32.xlu0 %v3582, 96
    %v3603 = vpop.permute.xlu0 %3602
    %3604 = vrot.lane.b32.xlu0 %v3583, 96
    %v3605 = vpop.permute.xlu0 %3604
    %vm3608 = vcmask 261120
    %v3609 = vsel %vm3608, %v3576, %v3587
    %v3610 = vsel %vm3608, %v3577, %v3589
    %v3611 = vsel %vm2527, %v3609, %v3595
    %v3612 = vsel %vm2527, %v3610, %v3597
    %vm3613 = vcmask 785408
    %v3614 = vsel %vm3613, %v3611, %v3603
    %v3615 = vsel %vm3613, %v3612, %v3605
    %v3616 = vld [vmem:[%s7] sm:$0xff]
    %v3617 = vld [vmem:[%s7 + $0x8] sm:$0xff]
    %v3618 = vld [vmem:[%s7 + $0x10] sm:$0xff]
    %v3619 = vld [vmem:[%s7 + $0x18] sm:$0xff]
    %v3620 = vld [vmem:[%s7 + $0x20] sm:$0xff]
    %v3621 = vld [vmem:[%s7 + $0x28] sm:$0xff]
    %v3622 = vld [vmem:[%s7 + $0x30] sm:$0xff]
    %v3623 = vld [vmem:[%s7 + $0x38] sm:$0xff]
    %v3624 = vld [vmem:[%s7 + $0x40] sm:$0xff]
    %v3625 = vld [vmem:[%s7 + $0x48] sm:$0xff]
    %v3626 = vld [vmem:[%s7 + $0x50] sm:$0xff]
    %v3627 = vld [vmem:[%s7 + $0x58] sm:$0xff]
    %v3628 = vld [vmem:[%s7 + $0x60] sm:$0xff]
    %v3629 = vld [vmem:[%s7 + $0x68] sm:$0xff]
    %v3630 = vld [vmem:[%s7 + $0x70] sm:$0xff]
    %v3631 = vld [vmem:[%s7 + $0x78] sm:$0xff]
    %v3632 = vstv %s69
    %v3633 = vmul.f32 %v3632, %v71
    %v3634 = vperm.slane %v3633, 3
    %3635 = vmatpush.msra.mxu0 %v3631
    %3636 = vmatpush.msra.mxu0 %v3630
    %3637 = vmatpush.msra.mxu0 %v3629
    %3638 = vmatpush.msra.mxu0 %v3628
    %3639 = vmatpush.msra.mxu0 %v3627
    %3640 = vmatpush.msra.mxu0 %v3626
    %3641 = vmatpush.msra.mxu0 %v3625
    %3642 = vmatpush.msra.mxu0 %v3624
    %3643 = vmatpush.msra.mxu0 %v3623
    %3644 = vmatpush.msra.mxu0 %v3622
    %3645 = vmatpush.msra.mxu0 %v3621
    %3646 = vmatpush.msra.mxu0 %v3620
    %3647 = vmatpush.msra.mxu0 %v3619
    %3648 = vmatpush.msra.mxu0 %v3618
    %3649 = vmatpush.msra.mxu0 %v3617
    %3650 = vmatpush.msra.mxu0 %v3616
    %3651 = vmatmul.f32.gmra.mxu0 %v3614
    %v3652 = vpop.f32.mrf.mxu0
    %v3653 = vadd.f32 %v3634, %v3652
    %3654 = vmatmul.f32.gmra.mxu0 %v3615
    %v3655 = vpop.f32.mrf.mxu0
    %v3656 = vadd.f32 %v3634, %v3655
    %3657 = vdwg.mxu0
    %v3658 = vperm.slane %v71, 2
    %v3659 = vadd.f32 %v3653, %v3658
    %v3660 = vadd.f32 %v3656, %v3658
    %v3661 = vmul.f32 %v3659, 0.2
    %v3662 = vmul.f32 %v3660, 0.2
    %v3663 = vmax.f32 %v3659, %v3661
    %v3664 = vmax.f32 %v3660, %v3662
    %v3665 = vld [vmem:[%s8] sm:$0xff]
    %v3666 = vld [vmem:[%s8 + $0x8] sm:$0xff]
    %v3667 = vld [vmem:[%s8 + $0x10] sm:$0xff]
    %v3668 = vld [vmem:[%s8 + $0x18] sm:$0xff]
    %v3669 = vld [vmem:[%s8 + $0x20] sm:$0xff]
    %v3670 = vld [vmem:[%s8 + $0x28] sm:$0xff]
    %v3671 = vld [vmem:[%s8 + $0x30] sm:$0xff]
    %v3672 = vld [vmem:[%s8 + $0x38] sm:$0xff]
    %v3673 = vperm.slane %v71, 4
    %v3675 = vsel %vm2527, %v3663, 0
    %v3678 = vsel %vm2527, %v3664, 0
    %3680 = vmatpush.msra.mxu0 0.0
    %3681 = vmatpush.msra.mxu0 0.0
    %3682 = vmatpush.msra.mxu0 0.0
    %3683 = vmatpush.msra.mxu0 0.0
    %3684 = vmatpush.msra.mxu0 0.0
    %3685 = vmatpush.msra.mxu0 0.0
    %3686 = vmatpush.msra.mxu0 0.0
    %3687 = vmatpush.msra.mxu0 0.0
    %3688 = vmatpush.msra.mxu0 %v3672
    %3689 = vmatpush.msra.mxu0 %v3671
    %3690 = vmatpush.msra.mxu0 %v3670
    %3691 = vmatpush.msra.mxu0 %v3669
    %3692 = vmatpush.msra.mxu0 %v3668
    %3693 = vmatpush.msra.mxu0 %v3667
    %3694 = vmatpush.msra.mxu0 %v3666
    %3695 = vmatpush.msra.mxu0 %v3665
    %3696 = vmatmul.f32.gmra.mxu0 %v3675
    %v3697 = vpop.f32.mrf.mxu0
    %v3698 = vadd.f32 %v3673, %v3697
    %3699 = vmatmul.f32.gmra.mxu0 %v3678
    %v3700 = vpop.f32.mrf.mxu0
    %v3701 = vadd.f32 %v3673, %v3700
    %3702 = vdwg.mxu0
    %vm3703 = vcmask 80896
    %v3704 = vsel %vm3703, %v3698, -inf
    %3705 = vmax.xlane.f32.xlu0 %v3704
    %v3706 = vpop.xlane.xlu0 %3705
    %v3707 = vsel %vm3703, %v3701, -inf
    %3708 = vmax.xlane.f32.xlu0 %v3707
    %v3709 = vpop.xlane.xlu0 %3708
    %v3710 = vsub.f32 %v3698, %v3706
    %v3711 = vsub.f32 %v3701, %v3709
    %v3712 = vmul.f32 %v3710, 1.442695
    %v3713 = vpow.pop %v3712
    %v3714 = vmul.f32 %v3711, 1.442695
    %v3715 = vpow.pop %v3714
    %v3716 = vsel %vm3703, %v3713, 0.0
    %3717 = vadd.xlane.f32.xlu0 %v3716
    %v3718 = vpop.xlane.xlu0 %3717
    %v3719 = vsel %vm3703, %v3715, 0.0
    %3720 = vadd.xlane.f32.xlu0 %v3719
    %v3721 = vpop.xlane.xlu0 %3720
    %v3722 = vrcp.pop %v3718
    %v3723 = vmul.f32 %v3718, %v3722
    %v3724 = vsub.f32 1.0, %v3723
    %v3725 = vmul.f32 %v3722, %v3724
    %v3726 = vadd.f32 %v3722, %v3725
    %vm3727 = vweird.f32 %v3718
    %vm3728 = vweird.f32 %v3722
    %vm3729 = vmor %vm3727, %vm3728
    %v3730 = vsel %vm3729, %v3722, %v3726
    %v3731 = vand.u32 2147483647, %v3718
    %vm3732 = vcmp.eq.f32.partialorder %v3731, 8.507059e+37
    %v3733 = vand.u32 %v3718, 2147483648
    %v3734 = vor.u32 1.1754944e-38, %v3733
    %v3735 = vsel %vm3732, %v3734, %v3730
    %v3736 = vmul.f32 %v3713, %v3735
    %v3737 = vrcp.pop %v3721
    %v3738 = vmul.f32 %v3721, %v3737
    %v3739 = vsub.f32 1.0, %v3738
    %v3740 = vmul.f32 %v3737, %v3739
    %v3741 = vadd.f32 %v3737, %v3740
    %vm3742 = vweird.f32 %v3721
    %vm3743 = vweird.f32 %v3737
    %vm3744 = vmor %vm3742, %vm3743
    %v3745 = vsel %vm3744, %v3737, %v3741
    %v3746 = vand.u32 2147483647, %v3721
    %vm3747 = vcmp.eq.f32.partialorder %v3746, 8.507059e+37
    %v3748 = vand.u32 %v3721, 2147483648
    %v3749 = vor.u32 1.1754944e-38, %v3748
    %v3750 = vsel %vm3747, %v3749, %v3745
    %v3751 = vmul.f32 %v3715, %v3750
    %v3752 = vlog2.pop %v3718
    %v3753 = vmul.f32 %v3752, 0.6931472
    %v3754 = vlog2.pop %v3721
    %v3755 = vmul.f32 %v3754, 0.6931472
    %v3756 = vsub.f32 %v3710, %v3753
    %v3757 = vsub.f32 %v3711, %v3755
    %v3758 = vmul.f32 %v3736, %v3756
    %v3759 = vmul.f32 %v3751, %v3757
    %v3760 = vsel %vm3703, %v3758, 0.0
    %3761 = vadd.xlane.f32.xlu0 %v3760
    %v3762 = vpop.xlane.xlu0 %3761
    %v3763 = vsel %vm3703, %v3759, 0.0
    %3764 = vadd.xlane.f32.xlu0 %v3763
    %v3765 = vpop.xlane.xlu0 %3764
    %vm3766 = vcmask 7168
    %3767 = vst.msk [vmem:[%s17] sm:$0xff] %vm3766, %v3762
    %3768 = vst.msk [vmem:[%s17 + $0x8] sm:$0xff] %vm3766, %v3765
    %v3769 = vld [vmem:[%s2] sm:$0xff]
    %v3770 = vld [vmem:[%s2 + $0x8] sm:$0xff]
    %v3771 = vadd.f32 %v3698, %v3769
    %v3772 = vadd.f32 %v3701, %v3770
    %v3773 = vsel %vm3703, %v3771, -inf
    %3774 = vmax.xlane.f32.xlu0 %v3773
    %v3775 = vpop.xlane.xlu0 %3774
    %v3776 = vsel %vm3703, %v3772, -inf
    %3777 = vmax.xlane.f32.xlu0 %v3776
    %v3778 = vpop.xlane.xlu0 %3777
    %vm3779 = vcmp.ge.f32.partialorder %v3771, %v3775
    %vm3780 = vcmp.ge.f32.partialorder %v3772, %v3778
    %v3781 = vsel %vm3779, 1, 0
    %v3782 = vsel %vm3780, 1, 0
    %v3783 = vcvt.s32.f32 %v3781
    %v3784 = vcvt.s32.f32 %v3782
    %v3785 = vld [vmem:[%s10] sm:$0xff]
    %v3786 = vld [vmem:[%s10 + $0x8] sm:$0xff]
    %v3787 = vld [vmem:[%s10 + $0x10] sm:$0x3f]
    %v3788 = vld [vmem:[%s3] sm:$0xff]
    %v3789 = vld [vmem:[%s3 + $0x8] sm:$0xff]
    %vm3792 = vcmask 1045504
    %v3793 = vrot.slane %v3786, 2
    %v3794 = vrot.slane %v3787, 2
    %v3795 = vsel %vm3792, %v3793, %v3794
    %vm3797 = vcmask 89088
    %v3799 = vsel %vm3797, %v3788, 0
    %v3802 = vsel %vm3797, %v3789, 0
    %vm3804 = vcmask 1042432
    %v3805 = vsel %vm3804, %v3794, 0
    %3807 = vmatpush.msra.mxu0 0.0
    %3808 = vmatpush.msra.mxu0 0.0
    %3809 = vmatpush.msra.mxu0 0.0
    %3810 = vmatpush.msra.mxu0 0.0
    %3811 = vmatpush.msra.mxu0 0.0
    %3812 = vmatpush.msra.mxu0 0.0
    %3813 = vmatpush.msra.mxu0 0.0
    %3814 = vmatpush.msra.mxu0 0.0
    %3815 = vmatpush.msra.mxu0 0.0
    %3816 = vmatpush.msra.mxu0 0.0
    %3817 = vmatpush.msra.mxu0 0.0
    %3818 = vmatpush.msra.mxu0 0.0
    %3819 = vmatpush.msra.mxu0 0.0
    %3820 = vmatpush.msra.mxu0 0.0
    %3821 = vmatpush.msra.mxu0 %v3805
    %3822 = vmatpush.msra.mxu0 %v3795
    %3823 = vmatmul.f32.gmra.mxu0 %v3799
    %v3824 = vpop.f32.mrf.mxu0
    %v3825 = vadd.f32 0.0, %v3824
    %3826 = vmatmul.f32.gmra.mxu0 %v3802
    %v3827 = vpop.f32.mrf.mxu0
    %v3828 = vadd.f32 0.0, %v3827
    %3829 = vdwg.mxu0
    %v3831 = vsel %vm3703, %v3783, 0
    %v3834 = vsel %vm3703, %v3784, 0
    %vm3836 = vcmask 1041408
    %v3837 = vsel %vm3836, %v3786, 0
    %3839 = vmatpush.msra.mxu0 0.0
    %3840 = vmatpush.msra.mxu0 0.0
    %3841 = vmatpush.msra.mxu0 0.0
    %3842 = vmatpush.msra.mxu0 0.0
    %3843 = vmatpush.msra.mxu0 0.0
    %3844 = vmatpush.msra.mxu0 0.0
    %3845 = vmatpush.msra.mxu0 0.0
    %3846 = vmatpush.msra.mxu0 0.0
    %3847 = vmatpush.msra.mxu0 0.0
    %3848 = vmatpush.msra.mxu0 0.0
    %3849 = vmatpush.msra.mxu0 0.0
    %3850 = vmatpush.msra.mxu0 0.0
    %3851 = vmatpush.msra.mxu0 0.0
    %3852 = vmatpush.msra.mxu0 0.0
    %3853 = vmatpush.msra.mxu0 %v3837
    %3854 = vmatpush.msra.mxu0 %v3785
    %3855 = vmatmul.f32.gmra.mxu0 %v3831
    %v3856 = vpop.f32.mrf.mxu0
    %v3857 = vadd.f32 %v3825, %v3856
    %3858 = vmatmul.f32.gmra.mxu0 %v3834
    %v3859 = vpop.f32.mrf.mxu0
    %v3860 = vadd.f32 %v3828, %v3859
    %3861 = vdwg.mxu0
    %v3862 = vperm.slane %v3787, 5
    %v3863 = vadd.f32 %v3857, %v3862
    %v3864 = vadd.f32 %v3860, %v3862
    %v3865 = vmax.f32 %v3863, 0.0
    %v3866 = vmax.f32 %v3864, 0.0
    %v3867 = vlaneseq
    %v3868 = vand.u32 %v3867, 127
    %vm3869 = vcmp.eq.s32.totalorder %v3868, 0
    %v3870 = vsel %vm3869, 1, 0
    %v3871 = vcvt.s32.f32 %v3870
    %v3872 = vmul.f32 %v3632, %v3871
    %v3873 = vadd.f32 %v3865, %v3872
    %v3874 = vadd.f32 %v3866, %v3872
    %3877 = vrot.lane.b32.xlu0 %v3873, 96
    %v3878 = vpop.permute.xlu0 %3877
    %3879 = vrot.lane.b32.xlu0 %v3874, 96
    %v3880 = vpop.permute.xlu0 %3879
    %3883 = vrot.lane.b32.xlu0 %v3873, 64
    %v3884 = vpop.permute.xlu0 %3883
    %3885 = vrot.lane.b32.xlu0 %v3874, 64
    %v3886 = vpop.permute.xlu0 %3885
    %3887 = vrot.lane.b32.xlu0 %v3878, 64
    %v3888 = vpop.permute.xlu0 %3887
    %3889 = vrot.lane.b32.xlu0 %v3880, 64
    %v3890 = vpop.permute.xlu0 %3889
    %v3895 = vld [vmem:[%s14] sm:$0xf]
    %v3896 = vld [vmem:[%s11] sm:$0xf]
    %v3897 = vld [vmem:[%s11 + $0x4] sm:$0xf]
    %v3898 = vld [vmem:[%s11 + $0x8] sm:$0xf]
    %v3899 = vld [vmem:[%s11 + $0xc] sm:$0xf]
    %v3900 = vld [vmem:[%s11 + $0x10] sm:$0xf]
    %v3901 = vld [vmem:[%s11 + $0x14] sm:$0xf]
    %v3902 = vld [vmem:[%s11 + $0x18] sm:$0xf]
    %v3903 = vld [vmem:[%s11 + $0x1c] sm:$0xf]
    %v3904 = vld [vmem:[%s11 + $0x20] sm:$0xf]
    %v3905 = vld [vmem:[%s11 + $0x24] sm:$0xf]
    %v3906 = vld [vmem:[%s11 + $0x28] sm:$0xf]
    %v3907 = vld [vmem:[%s11 + $0x2c] sm:$0xf]
    %v3908 = vld [vmem:[%s11 + $0x30] sm:$0xf]
    %v3909 = vld [vmem:[%s11 + $0x34] sm:$0xf]
    %v3910 = vld [vmem:[%s11 + $0x38] sm:$0xf]
    %v3911 = vld [vmem:[%s11 + $0x3c] sm:$0xf]
    %v3912 = vld [vmem:[%s12] sm:$0xf]
    %v3913 = vld [vmem:[%s12 + $0x4] sm:$0xf]
    %v3914 = vld [vmem:[%s12 + $0x8] sm:$0xf]
    %v3915 = vld [vmem:[%s12 + $0xc] sm:$0xf]
    %v3916 = vld [vmem:[%s12 + $0x10] sm:$0xf]
    %v3917 = vld [vmem:[%s12 + $0x14] sm:$0xf]
    %v3918 = vld [vmem:[%s12 + $0x18] sm:$0xf]
    %v3919 = vld [vmem:[%s12 + $0x1c] sm:$0xf]
    %v3920 = vld [vmem:[%s12 + $0x20] sm:$0xf]
    %v3921 = vld [vmem:[%s12 + $0x24] sm:$0xf]
    %v3922 = vld [vmem:[%s12 + $0x28] sm:$0xf]
    %v3923 = vld [vmem:[%s12 + $0x2c] sm:$0xf]
    %v3924 = vld [vmem:[%s12 + $0x30] sm:$0xf]
    %v3925 = vld [vmem:[%s12 + $0x34] sm:$0xf]
    %v3926 = vld [vmem:[%s12 + $0x38] sm:$0xf]
    %v3927 = vld [vmem:[%s12 + $0x3c] sm:$0xf]
    %v3928 = vpack.c.bf16 %v3576, %v3576
    %v3929 = vpack.c.bf16 %v3577, %v3577
    %v3930 = vpack.c.bf16 %v3578, %v3578
    %v3931 = vpack.c.bf16 %v3579, %v3579
    %v3932 = vpack.c.bf16 %v3580, %v3580
    %v3933 = vpack.c.bf16 %v3581, %v3581
    %v3934 = vpack.c.bf16 %v3582, %v3582
    %v3935 = vpack.c.bf16 %v3583, %v3583
    %v3936 = vpack.c.bf16 %v3873, %v3873
    %v3937 = vpack.c.bf16 %v3874, %v3874
    %v3938 = vpack.c.bf16 %v3878, %v3878
    %v3939 = vpack.c.bf16 %v3880, %v3880
    %v3940 = vpack.c.bf16 %v3884, %v3884
    %v3941 = vpack.c.bf16 %v3886, %v3886
    %v3942 = vpack.c.bf16 %v3888, %v3888
    %v3943 = vpack.c.bf16 %v3890, %v3890
    %v3952 = vunpack.c.l.b16 %v3936
    %v3953 = vunpack.c.l.b16 %v3937
    %v3954 = vunpack.c.l.b16 %v3938
    %v3955 = vunpack.c.l.b16 %v3939
    %v3956 = vunpack.c.l.b16 %v3940
    %v3957 = vunpack.c.l.b16 %v3941
    %v3958 = vunpack.c.l.b16 %v3942
    %v3959 = vunpack.c.l.b16 %v3943
    %v3960 = vpack.c.b16 %v3953, %v3952
    %v3961 = vpack.c.b16 %v3955, %v3954
    %v3962 = vpack.c.b16 %v3957, %v3956
    %v3963 = vpack.c.b16 %v3959, %v3958
    %v3968 = vunpack.c.l.b16 %v3912
    %v3969 = vunpack.c.l.b16 %v3913
    %v3970 = vunpack.c.l.b16 %v3914
    %v3971 = vunpack.c.l.b16 %v3915
    %v3972 = vpack.c.b16 %v3969, %v3968
    %v3973 = vpack.c.b16 %v3971, %v3970
    %v3977 = vsel %vm3608, %v3960, 0
    %v3980 = vsel %vm3608, %v3961, 0
    %v3982 = vsel %vm3608, %v2496, 0
    %v3985 = vsel %vm3608, %v3962, 0
    %v3988 = vsel %vm3608, %v3963, 0
    %3990 = vmatpush.bf16.msra.mxu0 0
    %3991 = vmatpush.bf16.msra.mxu0 0
    %3992 = vmatpush.bf16.msra.mxu0 0
    %3993 = vmatpush.bf16.msra.mxu0 0
    %3994 = vmatpush.bf16.msra.mxu0 0
    %3995 = vmatpush.bf16.msra.mxu0 0
    %3996 = vmatpush.bf16.msra.mxu0 %v3973
    %3997 = vmatpush.bf16.msra.mxu0 %v3972
    %3998 = vmatmul.bf16.gmra.mxu0 %v3977
    %v3999 = vpop.f32.mrf.mxu0
    %v4000 = vadd.f32 0.0, %v3999
    %v4001 = vpop.f32.mrf.mxu0
    %v4002 = vadd.f32 0.0, %v4001
    %4003 = vmatmul.bf16.gmra.mxu0 %v3980
    %v4004 = vpop.f32.mrf.mxu0
    %v4005 = vadd.f32 0.0, %v4004
    %v4006 = vpop.f32.mrf.mxu0
    %v4007 = vadd.f32 0.0, %v4006
    %4008 = vmatmul.bf16.gmra.mxu0 %v3982
    %v4009 = vpop.f32.mrf.mxu0
    %v4010 = vadd.f32 0.0, %v4009
    %v4011 = vpop.f32.mrf.mxu0
    %v4012 = vadd.f32 0.0, %v4011
    %4013 = vmatmul.bf16.gmra.mxu0 %v3985
    %v4014 = vpop.f32.mrf.mxu0
    %v4015 = vadd.f32 0.0, %v4014
    %v4016 = vpop.f32.mrf.mxu0
    %v4017 = vadd.f32 0.0, %v4016
    %4018 = vmatmul.bf16.gmra.mxu0 %v3988
    %v4019 = vpop.f32.mrf.mxu0
    %v4020 = vadd.f32 0.0, %v4019
    %v4021 = vpop.f32.mrf.mxu0
    %v4022 = vadd.f32 0.0, %v4021
    %4023 = vmatmul.bf16.gmra.mxu0 %v3982
    %v4024 = vpop.f32.mrf.mxu0
    %v4025 = vadd.f32 0.0, %v4024
    %v4026 = vpop.f32.mrf.mxu0
    %v4027 = vadd.f32 0.0, %v4026
    %4028 = vmatmul.bf16.gmra.mxu0 %v3982
    %v4029 = vpop.f32.mrf.mxu0
    %v4030 = vadd.f32 0.0, %v4029
    %v4031 = vpop.f32.mrf.mxu0
    %v4032 = vadd.f32 0.0, %v4031
    %4033 = vmatmul.bf16.gmra.mxu0 %v3982
    %v4034 = vpop.f32.mrf.mxu0
    %v4035 = vadd.f32 0.0, %v4034
    %v4036 = vpop.f32.mrf.mxu0
    %v4037 = vadd.f32 0.0, %v4036
    %4038 = vmatmul.bf16.gmra.mxu0 %v3982
    %v4039 = vpop.f32.mrf.mxu0
    %v4040 = vadd.f32 0.0, %v4039
    %v4041 = vpop.f32.mrf.mxu0
    %v4042 = vadd.f32 0.0, %v4041
    %4043 = vdwg.mxu0
    %v4052 = vunpack.c.l.b16 %v3928
    %v4053 = vunpack.c.l.b16 %v3929
    %v4054 = vunpack.c.l.b16 %v3930
    %v4055 = vunpack.c.l.b16 %v3931
    %v4056 = vunpack.c.l.b16 %v3932
    %v4057 = vunpack.c.l.b16 %v3933
    %v4058 = vunpack.c.l.b16 %v3934
    %v4059 = vunpack.c.l.b16 %v3935
    %v4060 = vpack.c.b16 %v4053, %v4052
    %v4061 = vpack.c.b16 %v4055, %v4054
    %v4062 = vpack.c.b16 %v4057, %v4056
    %v4063 = vpack.c.b16 %v4059, %v4058
    %v4068 = vunpack.c.l.b16 %v3896
    %v4069 = vunpack.c.l.b16 %v3897
    %v4070 = vunpack.c.l.b16 %v3898
    %v4071 = vunpack.c.l.b16 %v3899
    %v4072 = vpack.c.b16 %v4069, %v4068
    %v4073 = vpack.c.b16 %v4071, %v4070
    %v4077 = vsel %vm3608, %v4060, 0
    %v4080 = vsel %vm3608, %v4061, 0
    %v4083 = vsel %vm3608, %v4062, 0
    %v4086 = vsel %vm3608, %v4063, 0
    %4088 = vmatpush.bf16.msra.mxu0 0
    %4089 = vmatpush.bf16.msra.mxu0 0
    %4090 = vmatpush.bf16.msra.mxu0 0
    %4091 = vmatpush.bf16.msra.mxu0 0
    %4092 = vmatpush.bf16.msra.mxu0 0
    %4093 = vmatpush.bf16.msra.mxu0 0
    %4094 = vmatpush.bf16.msra.mxu0 %v4073
    %4095 = vmatpush.bf16.msra.mxu0 %v4072
    %4096 = vmatmul.bf16.gmra.mxu0 %v4077
    %v4097 = vpop.f32.mrf.mxu0
    %v4098 = vadd.f32 %v4000, %v4097
    %v4099 = vpop.f32.mrf.mxu0
    %v4100 = vadd.f32 %v4002, %v4099
    %4101 = vmatmul.bf16.gmra.mxu0 %v4080
    %v4102 = vpop.f32.mrf.mxu0
    %v4103 = vadd.f32 %v4005, %v4102
    %v4104 = vpop.f32.mrf.mxu0
    %v4105 = vadd.f32 %v4007, %v4104
    %4106 = vmatmul.bf16.gmra.mxu0 %v3982
    %v4107 = vpop.f32.mrf.mxu0
    %v4108 = vadd.f32 %v4010, %v4107
    %v4109 = vpop.f32.mrf.mxu0
    %v4110 = vadd.f32 %v4012, %v4109
    %4111 = vmatmul.bf16.gmra.mxu0 %v4083
    %v4112 = vpop.f32.mrf.mxu0
    %v4113 = vadd.f32 %v4015, %v4112
    %v4114 = vpop.f32.mrf.mxu0
    %v4115 = vadd.f32 %v4017, %v4114
    %4116 = vmatmul.bf16.gmra.mxu0 %v4086
    %v4117 = vpop.f32.mrf.mxu0
    %v4118 = vadd.f32 %v4020, %v4117
    %v4119 = vpop.f32.mrf.mxu0
    %v4120 = vadd.f32 %v4022, %v4119
    %4121 = vmatmul.bf16.gmra.mxu0 %v3982
    %v4122 = vpop.f32.mrf.mxu0
    %v4123 = vadd.f32 %v4025, %v4122
    %v4124 = vpop.f32.mrf.mxu0
    %v4125 = vadd.f32 %v4027, %v4124
    %4126 = vmatmul.bf16.gmra.mxu0 %v3982
    %v4127 = vpop.f32.mrf.mxu0
    %v4128 = vadd.f32 %v4030, %v4127
    %v4129 = vpop.f32.mrf.mxu0
    %v4130 = vadd.f32 %v4032, %v4129
    %4131 = vmatmul.bf16.gmra.mxu0 %v3982
    %v4132 = vpop.f32.mrf.mxu0
    %v4133 = vadd.f32 %v4035, %v4132
    %v4134 = vpop.f32.mrf.mxu0
    %v4135 = vadd.f32 %v4037, %v4134
    %4136 = vmatmul.bf16.gmra.mxu0 %v3982
    %v4137 = vpop.f32.mrf.mxu0
    %v4138 = vadd.f32 %v4040, %v4137
    %v4139 = vpop.f32.mrf.mxu0
    %v4140 = vadd.f32 %v4042, %v4139
    %4141 = vdwg.mxu0
    %v4146 = vunpack.c.l.b16 %v3900
    %v4147 = vunpack.c.l.b16 %v3901
    %v4148 = vunpack.c.l.b16 %v3902
    %v4149 = vunpack.c.l.b16 %v3903
    %v4150 = vpack.c.b16 %v4147, %v4146
    %v4151 = vpack.c.b16 %v4149, %v4148
    %4154 = vmatpush.bf16.msra.mxu0 0
    %4155 = vmatpush.bf16.msra.mxu0 0
    %4156 = vmatpush.bf16.msra.mxu0 0
    %4157 = vmatpush.bf16.msra.mxu0 0
    %4158 = vmatpush.bf16.msra.mxu0 0
    %4159 = vmatpush.bf16.msra.mxu0 0
    %4160 = vmatpush.bf16.msra.mxu0 %v4151
    %4161 = vmatpush.bf16.msra.mxu0 %v4150
    %4162 = vmatmul.bf16.gmra.mxu0 %v3982
    %v4163 = vpop.f32.mrf.mxu0
    %v4164 = vadd.f32 0.0, %v4163
    %v4165 = vpop.f32.mrf.mxu0
    %v4166 = vadd.f32 0.0, %v4165
    %4167 = vmatmul.bf16.gmra.mxu0 %v4077
    %v4168 = vpop.f32.mrf.mxu0
    %v4169 = vadd.f32 0.0, %v4168
    %v4170 = vpop.f32.mrf.mxu0
    %v4171 = vadd.f32 0.0, %v4170
    %4172 = vmatmul.bf16.gmra.mxu0 %v4080
    %v4173 = vpop.f32.mrf.mxu0
    %v4174 = vadd.f32 0.0, %v4173
    %v4175 = vpop.f32.mrf.mxu0
    %v4176 = vadd.f32 0.0, %v4175
    %4177 = vmatmul.bf16.gmra.mxu0 %v3982
    %v4178 = vpop.f32.mrf.mxu0
    %v4179 = vadd.f32 0.0, %v4178
    %v4180 = vpop.f32.mrf.mxu0
    %v4181 = vadd.f32 0.0, %v4180
    %4182 = vmatmul.bf16.gmra.mxu0 %v4083
    %v4183 = vpop.f32.mrf.mxu0
    %v4184 = vadd.f32 0.0, %v4183
    %v4185 = vpop.f32.mrf.mxu0
    %v4186 = vadd.f32 0.0, %v4185
    %4187 = vmatmul.bf16.gmra.mxu0 %v4086
    %v4188 = vpop.f32.mrf.mxu0
    %v4189 = vadd.f32 0.0, %v4188
    %v4190 = vpop.f32.mrf.mxu0
    %v4191 = vadd.f32 0.0, %v4190
    %4192 = vmatmul.bf16.gmra.mxu0 %v3982
    %v4193 = vpop.f32.mrf.mxu0
    %v4194 = vadd.f32 0.0, %v4193
    %v4195 = vpop.f32.mrf.mxu0
    %v4196 = vadd.f32 0.0, %v4195
    %4197 = vmatmul.bf16.gmra.mxu0 %v3982
    %v4198 = vpop.f32.mrf.mxu0
    %v4199 = vadd.f32 0.0, %v4198
    %v4200 = vpop.f32.mrf.mxu0
    %v4201 = vadd.f32 0.0, %v4200
    %4202 = vmatmul.bf16.gmra.mxu0 %v3982
    %v4203 = vpop.f32.mrf.mxu0
    %v4204 = vadd.f32 0.0, %v4203
    %v4205 = vpop.f32.mrf.mxu0
    %v4206 = vadd.f32 0.0, %v4205
    %4207 = vdwg.mxu0
    %v4208 = vadd.f32 %v4098, %v4164
    %v4209 = vadd.f32 %v4100, %v4166
    %v4210 = vadd.f32 %v4103, %v4169
    %v4211 = vadd.f32 %v4105, %v4171
    %v4212 = vadd.f32 %v4108, %v4174
    %v4213 = vadd.f32 %v4110, %v4176
    %v4214 = vadd.f32 %v4113, %v4179
    %v4215 = vadd.f32 %v4115, %v4181
    %v4216 = vadd.f32 %v4118, %v4184
    %v4217 = vadd.f32 %v4120, %v4186
    %v4218 = vadd.f32 %v4123, %v4189
    %v4219 = vadd.f32 %v4125, %v4191
    %v4220 = vadd.f32 %v4128, %v4194
    %v4221 = vadd.f32 %v4130, %v4196
    %v4222 = vadd.f32 %v4133, %v4199
    %v4223 = vadd.f32 %v4135, %v4201
    %v4224 = vadd.f32 %v4138, %v4204
    %v4225 = vadd.f32 %v4140, %v4206
    %v4230 = vunpack.c.l.b16 %v3916
    %v4231 = vunpack.c.l.b16 %v3917
    %v4232 = vunpack.c.l.b16 %v3918
    %v4233 = vunpack.c.l.b16 %v3919
    %v4234 = vpack.c.b16 %v4231, %v4230
    %v4235 = vpack.c.b16 %v4233, %v4232
    %4238 = vmatpush.bf16.msra.mxu0 0
    %4239 = vmatpush.bf16.msra.mxu0 0
    %4240 = vmatpush.bf16.msra.mxu0 0
    %4241 = vmatpush.bf16.msra.mxu0 0
    %4242 = vmatpush.bf16.msra.mxu0 0
    %4243 = vmatpush.bf16.msra.mxu0 0
    %4244 = vmatpush.bf16.msra.mxu0 %v4235
    %4245 = vmatpush.bf16.msra.mxu0 %v4234
    %4246 = vmatmul.bf16.gmra.mxu0 %v3982
    %v4247 = vpop.f32.mrf.mxu0
    %v4248 = vadd.f32 0.0, %v4247
    %v4249 = vpop.f32.mrf.mxu0
    %v4250 = vadd.f32 0.0, %v4249
    %4251 = vmatmul.bf16.gmra.mxu0 %v3977
    %v4252 = vpop.f32.mrf.mxu0
    %v4253 = vadd.f32 0.0, %v4252
    %v4254 = vpop.f32.mrf.mxu0
    %v4255 = vadd.f32 0.0, %v4254
    %4256 = vmatmul.bf16.gmra.mxu0 %v3980
    %v4257 = vpop.f32.mrf.mxu0
    %v4258 = vadd.f32 0.0, %v4257
    %v4259 = vpop.f32.mrf.mxu0
    %v4260 = vadd.f32 0.0, %v4259
    %4261 = vmatmul.bf16.gmra.mxu0 %v3982
    %v4262 = vpop.f32.mrf.mxu0
    %v4263 = vadd.f32 0.0, %v4262
    %v4264 = vpop.f32.mrf.mxu0
    %v4265 = vadd.f32 0.0, %v4264
    %4266 = vmatmul.bf16.gmra.mxu0 %v3985
    %v4267 = vpop.f32.mrf.mxu0
    %v4268 = vadd.f32 0.0, %v4267
    %v4269 = vpop.f32.mrf.mxu0
    %v4270 = vadd.f32 0.0, %v4269
    %4271 = vmatmul.bf16.gmra.mxu0 %v3988
    %v4272 = vpop.f32.mrf.mxu0
    %v4273 = vadd.f32 0.0, %v4272
    %v4274 = vpop.f32.mrf.mxu0
    %v4275 = vadd.f32 0.0, %v4274
    %4276 = vmatmul.bf16.gmra.mxu0 %v3982
    %v4277 = vpop.f32.mrf.mxu0
    %v4278 = vadd.f32 0.0, %v4277
    %v4279 = vpop.f32.mrf.mxu0
    %v4280 = vadd.f32 0.0, %v4279
    %4281 = vmatmul.bf16.gmra.mxu0 %v3982
    %v4282 = vpop.f32.mrf.mxu0
    %v4283 = vadd.f32 0.0, %v4282
    %v4284 = vpop.f32.mrf.mxu0
    %v4285 = vadd.f32 0.0, %v4284
    %4286 = vmatmul.bf16.gmra.mxu0 %v3982
    %v4287 = vpop.f32.mrf.mxu0
    %v4288 = vadd.f32 0.0, %v4287
    %v4289 = vpop.f32.mrf.mxu0
    %v4290 = vadd.f32 0.0, %v4289
    %4291 = vdwg.mxu0
    %v4292 = vadd.f32 %v4208, %v4248
    %v4293 = vadd.f32 %v4209, %v4250
    %v4294 = vadd.f32 %v4210, %v4253
    %v4295 = vadd.f32 %v4211, %v4255
    %v4296 = vadd.f32 %v4212, %v4258
    %v4297 = vadd.f32 %v4213, %v4260
    %v4298 = vadd.f32 %v4214, %v4263
    %v4299 = vadd.f32 %v4215, %v4265
    %v4300 = vadd.f32 %v4216, %v4268
    %v4301 = vadd.f32 %v4217, %v4270
    %v4302 = vadd.f32 %v4218, %v4273
    %v4303 = vadd.f32 %v4219, %v4275
    %v4304 = vadd.f32 %v4220, %v4278
    %v4305 = vadd.f32 %v4221, %v4280
    %v4306 = vadd.f32 %v4222, %v4283
    %v4307 = vadd.f32 %v4223, %v4285
    %v4308 = vadd.f32 %v4224, %v4288
    %v4309 = vadd.f32 %v4225, %v4290
    %v4314 = vunpack.c.l.b16 %v3904
    %v4315 = vunpack.c.l.b16 %v3905
    %v4316 = vunpack.c.l.b16 %v3906
    %v4317 = vunpack.c.l.b16 %v3907
    %v4318 = vpack.c.b16 %v4315, %v4314
    %v4319 = vpack.c.b16 %v4317, %v4316
    %4322 = vmatpush.bf16.msra.mxu0 0
    %4323 = vmatpush.bf16.msra.mxu0 0
    %4324 = vmatpush.bf16.msra.mxu0 0
    %4325 = vmatpush.bf16.msra.mxu0 0
    %4326 = vmatpush.bf16.msra.mxu0 0
    %4327 = vmatpush.bf16.msra.mxu0 0
    %4328 = vmatpush.bf16.msra.mxu0 %v4319
    %4329 = vmatpush.bf16.msra.mxu0 %v4318
    %4330 = vmatmul.bf16.gmra.mxu0 %v3982
    %v4331 = vpop.f32.mrf.mxu0
    %v4332 = vadd.f32 0.0, %v4331
    %v4333 = vpop.f32.mrf.mxu0
    %v4334 = vadd.f32 0.0, %v4333
    %4335 = vmatmul.bf16.gmra.mxu0 %v3982
    %v4336 = vpop.f32.mrf.mxu0
    %v4337 = vadd.f32 0.0, %v4336
    %v4338 = vpop.f32.mrf.mxu0
    %v4339 = vadd.f32 0.0, %v4338
    %4340 = vmatmul.bf16.gmra.mxu0 %v3982
    %v4341 = vpop.f32.mrf.mxu0
    %v4342 = vadd.f32 0.0, %v4341
    %v4343 = vpop.f32.mrf.mxu0
    %v4344 = vadd.f32 0.0, %v4343
    %4345 = vmatmul.bf16.gmra.mxu0 %v4077
    %v4346 = vpop.f32.mrf.mxu0
    %v4347 = vadd.f32 0.0, %v4346
    %v4348 = vpop.f32.mrf.mxu0
    %v4349 = vadd.f32 0.0, %v4348
    %4350 = vmatmul.bf16.gmra.mxu0 %v4080
    %v4351 = vpop.f32.mrf.mxu0
    %v4352 = vadd.f32 0.0, %v4351
    %v4353 = vpop.f32.mrf.mxu0
    %v4354 = vadd.f32 0.0, %v4353
    %4355 = vmatmul.bf16.gmra.mxu0 %v3982
    %v4356 = vpop.f32.mrf.mxu0
    %v4357 = vadd.f32 0.0, %v4356
    %v4358 = vpop.f32.mrf.mxu0
    %v4359 = vadd.f32 0.0, %v4358
    %4360 = vmatmul.bf16.gmra.mxu0 %v4083
    %v4361 = vpop.f32.mrf.mxu0
    %v4362 = vadd.f32 0.0, %v4361
    %v4363 = vpop.f32.mrf.mxu0
    %v4364 = vadd.f32 0.0, %v4363
    %4365 = vmatmul.bf16.gmra.mxu0 %v4086
    %v4366 = vpop.f32.mrf.mxu0
    %v4367 = vadd.f32 0.0, %v4366
    %v4368 = vpop.f32.mrf.mxu0
    %v4369 = vadd.f32 0.0, %v4368
    %4370 = vmatmul.bf16.gmra.mxu0 %v3982
    %v4371 = vpop.f32.mrf.mxu0
    %v4372 = vadd.f32 0.0, %v4371
    %v4373 = vpop.f32.mrf.mxu0
    %v4374 = vadd.f32 0.0, %v4373
    %4375 = vdwg.mxu0
    %v4376 = vadd.f32 %v4292, %v4332
    %v4377 = vadd.f32 %v4293, %v4334
    %v4378 = vadd.f32 %v4294, %v4337
    %v4379 = vadd.f32 %v4295, %v4339
    %v4380 = vadd.f32 %v4296, %v4342
    %v4381 = vadd.f32 %v4297, %v4344
    %v4382 = vadd.f32 %v4298, %v4347
    %v4383 = vadd.f32 %v4299, %v4349
    %v4384 = vadd.f32 %v4300, %v4352
    %v4385 = vadd.f32 %v4301, %v4354
    %v4386 = vadd.f32 %v4302, %v4357
    %v4387 = vadd.f32 %v4303, %v4359
    %v4388 = vadd.f32 %v4304, %v4362
    %v4389 = vadd.f32 %v4305, %v4364
    %v4390 = vadd.f32 %v4306, %v4367
    %v4391 = vadd.f32 %v4307, %v4369
    %v4392 = vadd.f32 %v4308, %v4372
    %v4393 = vadd.f32 %v4309, %v4374
    %v4398 = vunpack.c.l.b16 %v3920
    %v4399 = vunpack.c.l.b16 %v3921
    %v4400 = vunpack.c.l.b16 %v3922
    %v4401 = vunpack.c.l.b16 %v3923
    %v4402 = vpack.c.b16 %v4399, %v4398
    %v4403 = vpack.c.b16 %v4401, %v4400
    %4406 = vmatpush.bf16.msra.mxu0 0
    %4407 = vmatpush.bf16.msra.mxu0 0
    %4408 = vmatpush.bf16.msra.mxu0 0
    %4409 = vmatpush.bf16.msra.mxu0 0
    %4410 = vmatpush.bf16.msra.mxu0 0
    %4411 = vmatpush.bf16.msra.mxu0 0
    %4412 = vmatpush.bf16.msra.mxu0 %v4403
    %4413 = vmatpush.bf16.msra.mxu0 %v4402
    %4414 = vmatmul.bf16.gmra.mxu0 %v3982
    %v4415 = vpop.f32.mrf.mxu0
    %v4416 = vadd.f32 0.0, %v4415
    %v4417 = vpop.f32.mrf.mxu0
    %v4418 = vadd.f32 0.0, %v4417
    %4419 = vmatmul.bf16.gmra.mxu0 %v3982
    %v4420 = vpop.f32.mrf.mxu0
    %v4421 = vadd.f32 0.0, %v4420
    %v4422 = vpop.f32.mrf.mxu0
    %v4423 = vadd.f32 0.0, %v4422
    %4424 = vmatmul.bf16.gmra.mxu0 %v3982
    %v4425 = vpop.f32.mrf.mxu0
    %v4426 = vadd.f32 0.0, %v4425
    %v4427 = vpop.f32.mrf.mxu0
    %v4428 = vadd.f32 0.0, %v4427
    %4429 = vmatmul.bf16.gmra.mxu0 %v3977
    %v4430 = vpop.f32.mrf.mxu0
    %v4431 = vadd.f32 0.0, %v4430
    %v4432 = vpop.f32.mrf.mxu0
    %v4433 = vadd.f32 0.0, %v4432
    %4434 = vmatmul.bf16.gmra.mxu0 %v3980
    %v4435 = vpop.f32.mrf.mxu0
    %v4436 = vadd.f32 0.0, %v4435
    %v4437 = vpop.f32.mrf.mxu0
    %v4438 = vadd.f32 0.0, %v4437
    %4439 = vmatmul.bf16.gmra.mxu0 %v3982
    %v4440 = vpop.f32.mrf.mxu0
    %v4441 = vadd.f32 0.0, %v4440
    %v4442 = vpop.f32.mrf.mxu0
    %v4443 = vadd.f32 0.0, %v4442
    %4444 = vmatmul.bf16.gmra.mxu0 %v3985
    %v4445 = vpop.f32.mrf.mxu0
    %v4446 = vadd.f32 0.0, %v4445
    %v4447 = vpop.f32.mrf.mxu0
    %v4448 = vadd.f32 0.0, %v4447
    %4449 = vmatmul.bf16.gmra.mxu0 %v3988
    %v4450 = vpop.f32.mrf.mxu0
    %v4451 = vadd.f32 0.0, %v4450
    %v4452 = vpop.f32.mrf.mxu0
    %v4453 = vadd.f32 0.0, %v4452
    %4454 = vmatmul.bf16.gmra.mxu0 %v3982
    %v4455 = vpop.f32.mrf.mxu0
    %v4456 = vadd.f32 0.0, %v4455
    %v4457 = vpop.f32.mrf.mxu0
    %v4458 = vadd.f32 0.0, %v4457
    %4459 = vdwg.mxu0
    %v4460 = vadd.f32 %v4376, %v4416
    %v4461 = vadd.f32 %v4377, %v4418
    %v4462 = vadd.f32 %v4378, %v4421
    %v4463 = vadd.f32 %v4379, %v4423
    %v4464 = vadd.f32 %v4380, %v4426
    %v4465 = vadd.f32 %v4381, %v4428
    %v4466 = vadd.f32 %v4382, %v4431
    %v4467 = vadd.f32 %v4383, %v4433
    %v4468 = vadd.f32 %v4384, %v4436
    %v4469 = vadd.f32 %v4385, %v4438
    %v4470 = vadd.f32 %v4386, %v4441
    %v4471 = vadd.f32 %v4387, %v4443
    %v4472 = vadd.f32 %v4388, %v4446
    %v4473 = vadd.f32 %v4389, %v4448
    %v4474 = vadd.f32 %v4390, %v4451
    %v4475 = vadd.f32 %v4391, %v4453
    %v4476 = vadd.f32 %v4392, %v4456
    %v4477 = vadd.f32 %v4393, %v4458
    %v4482 = vunpack.c.l.b16 %v3908
    %v4483 = vunpack.c.l.b16 %v3909
    %v4484 = vunpack.c.l.b16 %v3910
    %v4485 = vunpack.c.l.b16 %v3911
    %v4486 = vpack.c.b16 %v4483, %v4482
    %v4487 = vpack.c.b16 %v4485, %v4484
    %4490 = vmatpush.bf16.msra.mxu0 0
    %4491 = vmatpush.bf16.msra.mxu0 0
    %4492 = vmatpush.bf16.msra.mxu0 0
    %4493 = vmatpush.bf16.msra.mxu0 0
    %4494 = vmatpush.bf16.msra.mxu0 0
    %4495 = vmatpush.bf16.msra.mxu0 0
    %4496 = vmatpush.bf16.msra.mxu0 %v4487
    %4497 = vmatpush.bf16.msra.mxu0 %v4486
    %4498 = vmatmul.bf16.gmra.mxu0 %v3982
    %v4499 = vpop.f32.mrf.mxu0
    %v4500 = vadd.f32 0.0, %v4499
    %v4501 = vpop.f32.mrf.mxu0
    %v4502 = vadd.f32 0.0, %v4501
    %4503 = vmatmul.bf16.gmra.mxu0 %v3982
    %v4504 = vpop.f32.mrf.mxu0
    %v4505 = vadd.f32 0.0, %v4504
    %v4506 = vpop.f32.mrf.mxu0
    %v4507 = vadd.f32 0.0, %v4506
    %4508 = vmatmul.bf16.gmra.mxu0 %v3982
    %v4509 = vpop.f32.mrf.mxu0
    %v4510 = vadd.f32 0.0, %v4509
    %v4511 = vpop.f32.mrf.mxu0
    %v4512 = vadd.f32 0.0, %v4511
    %4513 = vmatmul.bf16.gmra.mxu0 %v3982
    %v4514 = vpop.f32.mrf.mxu0
    %v4515 = vadd.f32 0.0, %v4514
    %v4516 = vpop.f32.mrf.mxu0
    %v4517 = vadd.f32 0.0, %v4516
    %4518 = vmatmul.bf16.gmra.mxu0 %v4077
    %v4519 = vpop.f32.mrf.mxu0
    %v4520 = vadd.f32 0.0, %v4519
    %v4521 = vpop.f32.mrf.mxu0
    %v4522 = vadd.f32 0.0, %v4521
    %4523 = vmatmul.bf16.gmra.mxu0 %v4080
    %v4524 = vpop.f32.mrf.mxu0
    %v4525 = vadd.f32 0.0, %v4524
    %v4526 = vpop.f32.mrf.mxu0
    %v4527 = vadd.f32 0.0, %v4526
    %4528 = vmatmul.bf16.gmra.mxu0 %v3982
    %v4529 = vpop.f32.mrf.mxu0
    %v4530 = vadd.f32 0.0, %v4529
    %v4531 = vpop.f32.mrf.mxu0
    %v4532 = vadd.f32 0.0, %v4531
    %4533 = vmatmul.bf16.gmra.mxu0 %v4083
    %v4534 = vpop.f32.mrf.mxu0
    %v4535 = vadd.f32 0.0, %v4534
    %v4536 = vpop.f32.mrf.mxu0
    %v4537 = vadd.f32 0.0, %v4536
    %4538 = vmatmul.bf16.gmra.mxu0 %v4086
    %v4539 = vpop.f32.mrf.mxu0
    %v4540 = vadd.f32 0.0, %v4539
    %v4541 = vpop.f32.mrf.mxu0
    %v4542 = vadd.f32 0.0, %v4541
    %4543 = vdwg.mxu0
    %v4544 = vadd.f32 %v4460, %v4500
    %v4545 = vadd.f32 %v4461, %v4502
    %v4546 = vadd.f32 %v4462, %v4505
    %v4547 = vadd.f32 %v4463, %v4507
    %v4548 = vadd.f32 %v4464, %v4510
    %v4549 = vadd.f32 %v4465, %v4512
    %v4550 = vadd.f32 %v4466, %v4515
    %v4551 = vadd.f32 %v4467, %v4517
    %v4552 = vadd.f32 %v4468, %v4520
    %v4553 = vadd.f32 %v4469, %v4522
    %v4554 = vadd.f32 %v4470, %v4525
    %v4555 = vadd.f32 %v4471, %v4527
    %v4556 = vadd.f32 %v4472, %v4530
    %v4557 = vadd.f32 %v4473, %v4532
    %v4558 = vadd.f32 %v4474, %v4535
    %v4559 = vadd.f32 %v4475, %v4537
    %v4560 = vadd.f32 %v4476, %v4540
    %v4561 = vadd.f32 %v4477, %v4542
    %v4566 = vunpack.c.l.b16 %v3924
    %v4567 = vunpack.c.l.b16 %v3925
    %v4568 = vunpack.c.l.b16 %v3926
    %v4569 = vunpack.c.l.b16 %v3927
    %v4570 = vpack.c.b16 %v4567, %v4566
    %v4571 = vpack.c.b16 %v4569, %v4568
    %4574 = vmatpush.bf16.msra.mxu0 0
    %4575 = vmatpush.bf16.msra.mxu0 0
    %4576 = vmatpush.bf16.msra.mxu0 0
    %4577 = vmatpush.bf16.msra.mxu0 0
    %4578 = vmatpush.bf16.msra.mxu0 0
    %4579 = vmatpush.bf16.msra.mxu0 0
    %4580 = vmatpush.bf16.msra.mxu0 %v4571
    %4581 = vmatpush.bf16.msra.mxu0 %v4570
    %4582 = vmatmul.bf16.gmra.mxu0 %v3982
    %v4583 = vpop.f32.mrf.mxu0
    %v4584 = vadd.f32 0.0, %v4583
    %v4585 = vpop.f32.mrf.mxu0
    %v4586 = vadd.f32 0.0, %v4585
    %4587 = vmatmul.bf16.gmra.mxu0 %v3982
    %v4588 = vpop.f32.mrf.mxu0
    %v4589 = vadd.f32 0.0, %v4588
    %v4590 = vpop.f32.mrf.mxu0
    %v4591 = vadd.f32 0.0, %v4590
    %4592 = vmatmul.bf16.gmra.mxu0 %v3982
    %v4593 = vpop.f32.mrf.mxu0
    %v4594 = vadd.f32 0.0, %v4593
    %v4595 = vpop.f32.mrf.mxu0
    %v4596 = vadd.f32 0.0, %v4595
    %4597 = vmatmul.bf16.gmra.mxu0 %v3982
    %v4598 = vpop.f32.mrf.mxu0
    %v4599 = vadd.f32 0.0, %v4598
    %v4600 = vpop.f32.mrf.mxu0
    %v4601 = vadd.f32 0.0, %v4600
    %4602 = vmatmul.bf16.gmra.mxu0 %v3977
    %v4603 = vpop.f32.mrf.mxu0
    %v4604 = vadd.f32 0.0, %v4603
    %v4605 = vpop.f32.mrf.mxu0
    %v4606 = vadd.f32 0.0, %v4605
    %4607 = vmatmul.bf16.gmra.mxu0 %v3980
    %v4608 = vpop.f32.mrf.mxu0
    %v4609 = vadd.f32 0.0, %v4608
    %v4610 = vpop.f32.mrf.mxu0
    %v4611 = vadd.f32 0.0, %v4610
    %4612 = vmatmul.bf16.gmra.mxu0 %v3982
    %v4613 = vpop.f32.mrf.mxu0
    %v4614 = vadd.f32 0.0, %v4613
    %v4615 = vpop.f32.mrf.mxu0
    %v4616 = vadd.f32 0.0, %v4615
    %4617 = vmatmul.bf16.gmra.mxu0 %v3985
    %v4618 = vpop.f32.mrf.mxu0
    %v4619 = vadd.f32 0.0, %v4618
    %v4620 = vpop.f32.mrf.mxu0
    %v4621 = vadd.f32 0.0, %v4620
    %4622 = vmatmul.bf16.gmra.mxu0 %v3988
    %v4623 = vpop.f32.mrf.mxu0
    %v4624 = vadd.f32 0.0, %v4623
    %v4625 = vpop.f32.mrf.mxu0
    %v4626 = vadd.f32 0.0, %v4625
    %4627 = vdwg.mxu0
    %v4628 = vadd.f32 %v4544, %v4584
    %v4629 = vadd.f32 %v4545, %v4586
    %v4630 = vadd.f32 %v4546, %v4589
    %v4631 = vadd.f32 %v4547, %v4591
    %v4632 = vadd.f32 %v4548, %v4594
    %v4633 = vadd.f32 %v4549, %v4596
    %v4634 = vadd.f32 %v4550, %v4599
    %v4635 = vadd.f32 %v4551, %v4601
    %v4636 = vadd.f32 %v4552, %v4604
    %v4637 = vadd.f32 %v4553, %v4606
    %v4638 = vadd.f32 %v4554, %v4609
    %v4639 = vadd.f32 %v4555, %v4611
    %v4640 = vadd.f32 %v4556, %v4614
    %v4641 = vadd.f32 %v4557, %v4616
    %v4642 = vadd.f32 %v4558, %v4619
    %v4643 = vadd.f32 %v4559, %v4621
    %v4644 = vadd.f32 %v4560, %v4624
    %v4645 = vadd.f32 %v4561, %v4626
    %v4646 = vperm.slane %v3895, 0
    %v4647 = vadd.f32 %v4628, %v4646
    %v4648 = vadd.f32 %v4629, %v4646
    %v4649 = vadd.f32 %v4630, %v4646
    %v4650 = vadd.f32 %v4631, %v4646
    %v4651 = vadd.f32 %v4632, %v4646
    %v4652 = vadd.f32 %v4633, %v4646
    %v4653 = vadd.f32 %v4634, %v4646
    %v4654 = vadd.f32 %v4635, %v4646
    %v4655 = vadd.f32 %v4636, %v4646
    %v4656 = vadd.f32 %v4637, %v4646
    %v4657 = vadd.f32 %v4638, %v4646
    %v4658 = vadd.f32 %v4639, %v4646
    %v4659 = vadd.f32 %v4640, %v4646
    %v4660 = vadd.f32 %v4641, %v4646
    %v4661 = vadd.f32 %v4642, %v4646
    %v4662 = vadd.f32 %v4643, %v4646
    %v4663 = vadd.f32 %v4644, %v4646
    %v4664 = vadd.f32 %v4645, %v4646
    %v4665 = vmul.f32 %v4647, 0.2
    %v4666 = vmul.f32 %v4648, 0.2
    %v4667 = vmul.f32 %v4649, 0.2
    %v4668 = vmul.f32 %v4650, 0.2
    %v4669 = vmul.f32 %v4651, 0.2
    %v4670 = vmul.f32 %v4652, 0.2
    %v4671 = vmul.f32 %v4653, 0.2
    %v4672 = vmul.f32 %v4654, 0.2
    %v4673 = vmul.f32 %v4655, 0.2
    %v4674 = vmul.f32 %v4656, 0.2
    %v4675 = vmul.f32 %v4657, 0.2
    %v4676 = vmul.f32 %v4658, 0.2
    %v4677 = vmul.f32 %v4659, 0.2
    %v4678 = vmul.f32 %v4660, 0.2
    %v4679 = vmul.f32 %v4661, 0.2
    %v4680 = vmul.f32 %v4662, 0.2
    %v4681 = vmul.f32 %v4663, 0.2
    %v4682 = vmul.f32 %v4664, 0.2
    %v4683 = vmax.f32 %v4647, %v4665
    %v4684 = vmax.f32 %v4648, %v4666
    %v4685 = vmax.f32 %v4649, %v4667
    %v4686 = vmax.f32 %v4650, %v4668
    %v4687 = vmax.f32 %v4651, %v4669
    %v4688 = vmax.f32 %v4652, %v4670
    %v4689 = vmax.f32 %v4653, %v4671
    %v4690 = vmax.f32 %v4654, %v4672
    %v4691 = vmax.f32 %v4655, %v4673
    %v4692 = vmax.f32 %v4656, %v4674
    %v4693 = vmax.f32 %v4657, %v4675
    %v4694 = vmax.f32 %v4658, %v4676
    %v4695 = vmax.f32 %v4659, %v4677
    %v4696 = vmax.f32 %v4660, %v4678
    %v4697 = vmax.f32 %v4661, %v4679
    %v4698 = vmax.f32 %v4662, %v4680
    %v4699 = vmax.f32 %v4663, %v4681
    %v4700 = vmax.f32 %v4664, %v4682
    %4713 = vrot.lane.b32.xlu0 %v4683, 64
    %v4714 = vpop.permute.xlu0 %4713
    %4715 = vrot.lane.b32.xlu0 %v4684, 64
    %v4716 = vpop.permute.xlu0 %4715
    %4717 = vrot.lane.b32.xlu0 %v4685, 64
    %v4718 = vpop.permute.xlu0 %4717
    %4719 = vrot.lane.b32.xlu0 %v4686, 64
    %v4720 = vpop.permute.xlu0 %4719
    %4721 = vrot.lane.b32.xlu0 %v4687, 64
    %v4722 = vpop.permute.xlu0 %4721
    %4723 = vrot.lane.b32.xlu0 %v4688, 64
    %v4724 = vpop.permute.xlu0 %4723
    %4725 = vrot.lane.b32.xlu0 %v4689, 64
    %v4726 = vpop.permute.xlu0 %4725
    %4727 = vrot.lane.b32.xlu0 %v4690, 64
    %v4728 = vpop.permute.xlu0 %4727
    %4729 = vrot.lane.b32.xlu0 %v4691, 64
    %v4730 = vpop.permute.xlu0 %4729
    %4731 = vrot.lane.b32.xlu0 %v4692, 64
    %v4732 = vpop.permute.xlu0 %4731
    %4733 = vrot.lane.b32.xlu0 %v4693, 64
    %v4734 = vpop.permute.xlu0 %4733
    %4735 = vrot.lane.b32.xlu0 %v4694, 64
    %v4736 = vpop.permute.xlu0 %4735
    %4753 = vrot.lane.b32.xlu0 %v4683, 96
    %v4754 = vpop.permute.xlu0 %4753
    %4755 = vrot.lane.b32.xlu0 %v4684, 96
    %v4756 = vpop.permute.xlu0 %4755
    %4757 = vrot.lane.b32.xlu0 %v4685, 96
    %v4758 = vpop.permute.xlu0 %4757
    %4759 = vrot.lane.b32.xlu0 %v4686, 96
    %v4760 = vpop.permute.xlu0 %4759
    %4761 = vrot.lane.b32.xlu0 %v4714, 96
    %v4762 = vpop.permute.xlu0 %4761
    %4763 = vrot.lane.b32.xlu0 %v4716, 96
    %v4764 = vpop.permute.xlu0 %4763
    %4765 = vrot.lane.b32.xlu0 %v4718, 96
    %v4766 = vpop.permute.xlu0 %4765
    %4767 = vrot.lane.b32.xlu0 %v4720, 96
    %v4768 = vpop.permute.xlu0 %4767
    %4769 = vrot.lane.b32.xlu0 %v4689, 96
    %v4770 = vpop.permute.xlu0 %4769
    %4771 = vrot.lane.b32.xlu0 %v4690, 96
    %v4772 = vpop.permute.xlu0 %4771
    %4773 = vrot.lane.b32.xlu0 %v4691, 96
    %v4774 = vpop.permute.xlu0 %4773
    %4775 = vrot.lane.b32.xlu0 %v4692, 96
    %v4776 = vpop.permute.xlu0 %4775
    %4777 = vrot.lane.b32.xlu0 %v4726, 96
    %v4778 = vpop.permute.xlu0 %4777
    %4779 = vrot.lane.b32.xlu0 %v4728, 96
    %v4780 = vpop.permute.xlu0 %4779
    %4781 = vrot.lane.b32.xlu0 %v4730, 96
    %v4782 = vpop.permute.xlu0 %4781
    %4783 = vrot.lane.b32.xlu0 %v4732, 96
    %v4784 = vpop.permute.xlu0 %4783
    %4785 = vrot.lane.b32.xlu0 %v4695, 96
    %v4786 = vpop.permute.xlu0 %4785
    %4787 = vrot.lane.b32.xlu0 %v4696, 96
    %v4788 = vpop.permute.xlu0 %4787
    %4789 = vrot.lane.b32.xlu0 %v4697, 96
    %v4790 = vpop.permute.xlu0 %4789
    %4791 = vrot.lane.b32.xlu0 %v4698, 96
    %v4792 = vpop.permute.xlu0 %4791
    %v4813 = vld [vmem:[%s13] sm:$0xff]
    %v4814 = vld [vmem:[%s13 + $0x8] sm:$0xff]
    %v4815 = vld [vmem:[%s13 + $0x10] sm:$0xff]
    %v4816 = vld [vmem:[%s13 + $0x18] sm:$0xff]
    %v4817 = vld [vmem:[%s13 + $0x20] sm:$0xff]
    %v4818 = vld [vmem:[%s13 + $0x28] sm:$0xff]
    %v4819 = vld [vmem:[%s13 + $0x30] sm:$0xff]
    %v4820 = vld [vmem:[%s13 + $0x38] sm:$0xff]
    %v4821 = vld [vmem:[%s13 + $0x40] sm:$0xff]
    %v4822 = vld [vmem:[%s13 + $0x48] sm:$0xff]
    %v4823 = vld [vmem:[%s13 + $0x50] sm:$0xff]
    %v4824 = vld [vmem:[%s13 + $0x58] sm:$0xff]
    %v4825 = vld [vmem:[%s13 + $0x60] sm:$0xff]
    %v4826 = vld [vmem:[%s13 + $0x68] sm:$0xff]
    %v4827 = vld [vmem:[%s13 + $0x70] sm:$0xff]
    %v4828 = vld [vmem:[%s13 + $0x78] sm:$0xff]
    %v4829 = vpack.c.bf16 %v4683, %v4683
    %v4830 = vpack.c.bf16 %v4684, %v4684
    %v4831 = vpack.c.bf16 %v4754, %v4754
    %v4832 = vpack.c.bf16 %v4756, %v4756
    %v4833 = vpack.c.bf16 %v4685, %v4685
    %v4834 = vpack.c.bf16 %v4686, %v4686
    %v4835 = vpack.c.bf16 %v4758, %v4758
    %v4836 = vpack.c.bf16 %v4760, %v4760
    %v4837 = vpack.c.bf16 %v4687, %v4687
    %v4838 = vpack.c.bf16 %v4688, %v4688
    %v4839 = vpack.c.bf16 %v4714, %v4714
    %v4840 = vpack.c.bf16 %v4716, %v4716
    %v4841 = vpack.c.bf16 %v4762, %v4762
    %v4842 = vpack.c.bf16 %v4764, %v4764
    %v4843 = vpack.c.bf16 %v4718, %v4718
    %v4844 = vpack.c.bf16 %v4720, %v4720
    %v4845 = vpack.c.bf16 %v4766, %v4766
    %v4846 = vpack.c.bf16 %v4768, %v4768
    %v4847 = vpack.c.bf16 %v4722, %v4722
    %v4848 = vpack.c.bf16 %v4724, %v4724
    %v4849 = vpack.c.bf16 %v4689, %v4689
    %v4850 = vpack.c.bf16 %v4690, %v4690
    %v4851 = vpack.c.bf16 %v4770, %v4770
    %v4852 = vpack.c.bf16 %v4772, %v4772
    %v4853 = vpack.c.bf16 %v4691, %v4691
    %v4854 = vpack.c.bf16 %v4692, %v4692
    %v4855 = vpack.c.bf16 %v4774, %v4774
    %v4856 = vpack.c.bf16 %v4776, %v4776
    %v4857 = vpack.c.bf16 %v4693, %v4693
    %v4858 = vpack.c.bf16 %v4694, %v4694
    %v4859 = vpack.c.bf16 %v4726, %v4726
    %v4860 = vpack.c.bf16 %v4728, %v4728
    %v4861 = vpack.c.bf16 %v4778, %v4778
    %v4862 = vpack.c.bf16 %v4780, %v4780
    %v4863 = vpack.c.bf16 %v4730, %v4730
    %v4864 = vpack.c.bf16 %v4732, %v4732
    %v4865 = vpack.c.bf16 %v4782, %v4782
    %v4866 = vpack.c.bf16 %v4784, %v4784
    %v4867 = vpack.c.bf16 %v4734, %v4734
    %v4868 = vpack.c.bf16 %v4736, %v4736
    %v4869 = vpack.c.bf16 %v4695, %v4695
    %v4870 = vpack.c.bf16 %v4696, %v4696
    %v4871 = vpack.c.bf16 %v4786, %v4786
    %v4872 = vpack.c.bf16 %v4788, %v4788
    %v4873 = vpack.c.bf16 %v4697, %v4697
    %v4874 = vpack.c.bf16 %v4698, %v4698
    %v4875 = vpack.c.bf16 %v4790, %v4790
    %v4876 = vpack.c.bf16 %v4792, %v4792
    %v4877 = vpack.c.bf16 %v4699, %v4699
    %v4878 = vpack.c.bf16 %v4700, %v4700
    %v4929 = vunpack.c.l.b16 %v4829
    %v4930 = vunpack.c.l.b16 %v4830
    %v4931 = vunpack.c.l.b16 %v4831
    %v4932 = vunpack.c.l.b16 %v4832
    %v4933 = vunpack.c.l.b16 %v4833
    %v4934 = vunpack.c.l.b16 %v4834
    %v4935 = vunpack.c.l.b16 %v4835
    %v4936 = vunpack.c.l.b16 %v4836
    %v4937 = vunpack.c.l.b16 %v4837
    %v4938 = vunpack.c.l.b16 %v4838
    %v4939 = vunpack.c.l.b16 %v4839
    %v4940 = vunpack.c.l.b16 %v4840
    %v4941 = vunpack.c.l.b16 %v4841
    %v4942 = vunpack.c.l.b16 %v4842
    %v4943 = vunpack.c.l.b16 %v4843
    %v4944 = vunpack.c.l.b16 %v4844
    %v4945 = vunpack.c.l.b16 %v4845
    %v4946 = vunpack.c.l.b16 %v4846
    %v4947 = vunpack.c.l.b16 %v4847
    %v4948 = vunpack.c.l.b16 %v4848
    %v4949 = vunpack.c.l.b16 %v4849
    %v4950 = vunpack.c.l.b16 %v4850
    %v4951 = vunpack.c.l.b16 %v4851
    %v4952 = vunpack.c.l.b16 %v4852
    %v4953 = vunpack.c.l.b16 %v4853
    %v4954 = vunpack.c.l.b16 %v4854
    %v4955 = vunpack.c.l.b16 %v4855
    %v4956 = vunpack.c.l.b16 %v4856
    %v4957 = vunpack.c.l.b16 %v4857
    %v4958 = vunpack.c.l.b16 %v4858
    %v4959 = vunpack.c.l.b16 %v4859
    %v4960 = vunpack.c.l.b16 %v4860
    %v4961 = vunpack.c.l.b16 %v4861
    %v4962 = vunpack.c.l.b16 %v4862
    %v4963 = vunpack.c.l.b16 %v4863
    %v4964 = vunpack.c.l.b16 %v4864
    %v4965 = vunpack.c.l.b16 %v4865
    %v4966 = vunpack.c.l.b16 %v4866
    %v4967 = vunpack.c.l.b16 %v4867
    %v4968 = vunpack.c.l.b16 %v4868
    %v4969 = vunpack.c.l.b16 %v4869
    %v4970 = vunpack.c.l.b16 %v4870
    %v4971 = vunpack.c.l.b16 %v4871
    %v4972 = vunpack.c.l.b16 %v4872
    %v4973 = vunpack.c.l.b16 %v4873
    %v4974 = vunpack.c.l.b16 %v4874
    %v4975 = vunpack.c.l.b16 %v4875
    %v4976 = vunpack.c.l.b16 %v4876
    %v4977 = vunpack.c.l.b16 %v4877
    %v4978 = vunpack.c.l.b16 %v4878
    %v4979 = vpack.c.b16 %v4930, %v4929
    %v4980 = vpack.c.b16 %v4932, %v4931
    %v4981 = vpack.c.b16 %v4934, %v4933
    %v4982 = vpack.c.b16 %v4936, %v4935
    %v4983 = vpack.c.b16 %v4938, %v4937
    %v4984 = vpack.c.b16 %v4940, %v4939
    %v4985 = vpack.c.b16 %v4942, %v4941
    %v4986 = vpack.c.b16 %v4944, %v4943
    %v4987 = vpack.c.b16 %v4946, %v4945
    %v4988 = vpack.c.b16 %v4948, %v4947
    %v4989 = vpack.c.b16 %v4950, %v4949
    %v4990 = vpack.c.b16 %v4952, %v4951
    %v4991 = vpack.c.b16 %v4954, %v4953
    %v4992 = vpack.c.b16 %v4956, %v4955
    %v4993 = vpack.c.b16 %v4958, %v4957
    %v4994 = vpack.c.b16 %v4960, %v4959
    %v4995 = vpack.c.b16 %v4962, %v4961
    %v4996 = vpack.c.b16 %v4964, %v4963
    %v4997 = vpack.c.b16 %v4966, %v4965
    %v4998 = vpack.c.b16 %v4968, %v4967
    %v4999 = vpack.c.b16 %v4970, %v4969
    %v5000 = vpack.c.b16 %v4972, %v4971
    %v5001 = vpack.c.b16 %v4974, %v4973
    %v5002 = vpack.c.b16 %v4976, %v4975
    %v5003 = vpack.c.b16 %v4978, %v4977
    %v5008 = vunpack.c.l.b16 %v4817
    %v5009 = vunpack.c.h.b16 %v4817
    %v5010 = vunpack.c.l.b16 %v4818
    %v5011 = vunpack.c.h.b16 %v4818
    %v5012 = vunpack.c.l.b16 %v4819
    %v5013 = vunpack.c.h.b16 %v4819
    %v5014 = vunpack.c.l.b16 %v4820
    %v5015 = vunpack.c.h.b16 %v4820
    %v5016 = vpack.c.b16 %v5010, %v5008
    %v5017 = vpack.c.b16 %v5011, %v5009
    %v5018 = vpack.c.b16 %v5014, %v5012
    %v5019 = vpack.c.b16 %v5015, %v5013
    %v5025 = vsel %vm3608, %v4979, 0
    %v5028 = vsel %vm3608, %v4980, 0
    %v5031 = vsel %vm3608, %v4981, 0
    %v5034 = vsel %vm3608, %v4982, 0
    %v5037 = vsel %vm3608, %v4983, 0
    %v5040 = vsel %vm3608, %v4984, 0
    %v5043 = vsel %vm3608, %v4985, 0
    %v5046 = vsel %vm3608, %v4986, 0
    %v5049 = vsel %vm3608, %v4987, 0
    %v5052 = vsel %vm3608, %v4988, 0
    %v5055 = vsel %vm3608, %v4989, 0
    %v5058 = vsel %vm3608, %v4990, 0
    %v5061 = vsel %vm3608, %v4991, 0
    %v5064 = vsel %vm3608, %v4992, 0
    %v5067 = vsel %vm3608, %v4993, 0
    %v5070 = vsel %vm3608, %v4994, 0
    %v5073 = vsel %vm3608, %v4995, 0
    %v5076 = vsel %vm3608, %v4996, 0
    %v5079 = vsel %vm3608, %v4997, 0
    %v5082 = vsel %vm3608, %v4998, 0
    %v5085 = vsel %vm3608, %v4999, 0
    %v5088 = vsel %vm3608, %v5000, 0
    %v5091 = vsel %vm3608, %v5001, 0
    %v5094 = vsel %vm3608, %v5002, 0
    %v5097 = vsel %vm3608, %v5003, 0
    %5099 = vmatpush.bf16.msra.mxu0 0
    %5100 = vmatpush.bf16.msra.mxu0 0
    %5101 = vmatpush.bf16.msra.mxu0 0
    %5102 = vmatpush.bf16.msra.mxu0 0
    %5103 = vmatpush.bf16.msra.mxu0 0
    %5104 = vmatpush.bf16.msra.mxu0 0
    %5105 = vmatpush.bf16.msra.mxu0 %v5018
    %5106 = vmatpush.bf16.msra.mxu0 %v5016
    %5107 = vmatmul.bf16.gmra.mxu0 %v3982
    %v5108 = vpop.f32.mrf.mxu0
    %v5109 = vadd.f32 0.0, %v5108
    %v5110 = vpop.f32.mrf.mxu0
    %v5111 = vadd.f32 0.0, %v5110
    %5112 = vmatmul.bf16.gmra.mxu0 %v5025
    %v5113 = vpop.f32.mrf.mxu0
    %v5114 = vadd.f32 0.0, %v5113
    %v5115 = vpop.f32.mrf.mxu0
    %v5116 = vadd.f32 0.0, %v5115
    %5117 = vmatmul.bf16.gmra.mxu0 %v5028
    %v5118 = vpop.f32.mrf.mxu0
    %v5119 = vadd.f32 0.0, %v5118
    %v5120 = vpop.f32.mrf.mxu0
    %v5121 = vadd.f32 0.0, %v5120
    %5122 = vmatmul.bf16.gmra.mxu0 %v5031
    %v5123 = vpop.f32.mrf.mxu0
    %v5124 = vadd.f32 0.0, %v5123
    %v5125 = vpop.f32.mrf.mxu0
    %v5126 = vadd.f32 0.0, %v5125
    %5127 = vmatmul.bf16.gmra.mxu0 %v5034
    %v5128 = vpop.f32.mrf.mxu0
    %v5129 = vadd.f32 0.0, %v5128
    %v5130 = vpop.f32.mrf.mxu0
    %v5131 = vadd.f32 0.0, %v5130
    %5132 = vmatmul.bf16.gmra.mxu0 %v5037
    %v5133 = vpop.f32.mrf.mxu0
    %v5134 = vadd.f32 0.0, %v5133
    %v5135 = vpop.f32.mrf.mxu0
    %v5136 = vadd.f32 0.0, %v5135
    %5137 = vmatmul.bf16.gmra.mxu0 %v3982
    %v5138 = vpop.f32.mrf.mxu0
    %v5139 = vadd.f32 0.0, %v5138
    %v5140 = vpop.f32.mrf.mxu0
    %v5141 = vadd.f32 0.0, %v5140
    %5142 = vmatmul.bf16.gmra.mxu0 %v5040
    %v5143 = vpop.f32.mrf.mxu0
    %v5144 = vadd.f32 0.0, %v5143
    %v5145 = vpop.f32.mrf.mxu0
    %v5146 = vadd.f32 0.0, %v5145
    %5147 = vmatmul.bf16.gmra.mxu0 %v5043
    %v5148 = vpop.f32.mrf.mxu0
    %v5149 = vadd.f32 0.0, %v5148
    %v5150 = vpop.f32.mrf.mxu0
    %v5151 = vadd.f32 0.0, %v5150
    %5152 = vmatmul.bf16.gmra.mxu0 %v5046
    %v5153 = vpop.f32.mrf.mxu0
    %v5154 = vadd.f32 0.0, %v5153
    %v5155 = vpop.f32.mrf.mxu0
    %v5156 = vadd.f32 0.0, %v5155
    %5157 = vmatmul.bf16.gmra.mxu0 %v5049
    %v5158 = vpop.f32.mrf.mxu0
    %v5159 = vadd.f32 0.0, %v5158
    %v5160 = vpop.f32.mrf.mxu0
    %v5161 = vadd.f32 0.0, %v5160
    %5162 = vmatmul.bf16.gmra.mxu0 %v5052
    %v5163 = vpop.f32.mrf.mxu0
    %v5164 = vadd.f32 0.0, %v5163
    %v5165 = vpop.f32.mrf.mxu0
    %v5166 = vadd.f32 0.0, %v5165
    %5167 = vmatmul.bf16.gmra.mxu0 %v3982
    %v5168 = vpop.f32.mrf.mxu0
    %v5169 = vadd.f32 0.0, %v5168
    %v5170 = vpop.f32.mrf.mxu0
    %v5171 = vadd.f32 0.0, %v5170
    %5172 = vmatmul.bf16.gmra.mxu0 %v5055
    %v5173 = vpop.f32.mrf.mxu0
    %v5174 = vadd.f32 0.0, %v5173
    %v5175 = vpop.f32.mrf.mxu0
    %v5176 = vadd.f32 0.0, %v5175
    %5177 = vmatmul.bf16.gmra.mxu0 %v5058
    %v5178 = vpop.f32.mrf.mxu0
    %v5179 = vadd.f32 0.0, %v5178
    %v5180 = vpop.f32.mrf.mxu0
    %v5181 = vadd.f32 0.0, %v5180
    %5182 = vmatmul.bf16.gmra.mxu0 %v5061
    %v5183 = vpop.f32.mrf.mxu0
    %v5184 = vadd.f32 0.0, %v5183
    %v5185 = vpop.f32.mrf.mxu0
    %v5186 = vadd.f32 0.0, %v5185
    %5187 = vmatmul.bf16.gmra.mxu0 %v5064
    %v5188 = vpop.f32.mrf.mxu0
    %v5189 = vadd.f32 0.0, %v5188
    %v5190 = vpop.f32.mrf.mxu0
    %v5191 = vadd.f32 0.0, %v5190
    %5192 = vmatmul.bf16.gmra.mxu0 %v5067
    %v5193 = vpop.f32.mrf.mxu0
    %v5194 = vadd.f32 0.0, %v5193
    %v5195 = vpop.f32.mrf.mxu0
    %v5196 = vadd.f32 0.0, %v5195
    %5197 = vmatmul.bf16.gmra.mxu0 %v3982
    %v5198 = vpop.f32.mrf.mxu0
    %v5199 = vadd.f32 0.0, %v5198
    %v5200 = vpop.f32.mrf.mxu0
    %v5201 = vadd.f32 0.0, %v5200
    %5202 = vmatmul.bf16.gmra.mxu0 %v5070
    %v5203 = vpop.f32.mrf.mxu0
    %v5204 = vadd.f32 0.0, %v5203
    %v5205 = vpop.f32.mrf.mxu0
    %v5206 = vadd.f32 0.0, %v5205
    %5207 = vmatmul.bf16.gmra.mxu0 %v5073
    %v5208 = vpop.f32.mrf.mxu0
    %v5209 = vadd.f32 0.0, %v5208
    %v5210 = vpop.f32.mrf.mxu0
    %v5211 = vadd.f32 0.0, %v5210
    %5212 = vmatmul.bf16.gmra.mxu0 %v5076
    %v5213 = vpop.f32.mrf.mxu0
    %v5214 = vadd.f32 0.0, %v5213
    %v5215 = vpop.f32.mrf.mxu0
    %v5216 = vadd.f32 0.0, %v5215
    %5217 = vmatmul.bf16.gmra.mxu0 %v5079
    %v5218 = vpop.f32.mrf.mxu0
    %v5219 = vadd.f32 0.0, %v5218
    %v5220 = vpop.f32.mrf.mxu0
    %v5221 = vadd.f32 0.0, %v5220
    %5222 = vmatmul.bf16.gmra.mxu0 %v5082
    %v5223 = vpop.f32.mrf.mxu0
    %v5224 = vadd.f32 0.0, %v5223
    %v5225 = vpop.f32.mrf.mxu0
    %v5226 = vadd.f32 0.0, %v5225
    %5227 = vmatmul.bf16.gmra.mxu0 %v3982
    %v5228 = vpop.f32.mrf.mxu0
    %v5229 = vadd.f32 0.0, %v5228
    %v5230 = vpop.f32.mrf.mxu0
    %v5231 = vadd.f32 0.0, %v5230
    %5232 = vmatmul.bf16.gmra.mxu0 %v5085
    %v5233 = vpop.f32.mrf.mxu0
    %v5234 = vadd.f32 0.0, %v5233
    %v5235 = vpop.f32.mrf.mxu0
    %v5236 = vadd.f32 0.0, %v5235
    %5237 = vmatmul.bf16.gmra.mxu0 %v5088
    %v5238 = vpop.f32.mrf.mxu0
    %v5239 = vadd.f32 0.0, %v5238
    %v5240 = vpop.f32.mrf.mxu0
    %v5241 = vadd.f32 0.0, %v5240
    %5242 = vmatmul.bf16.gmra.mxu0 %v5091
    %v5243 = vpop.f32.mrf.mxu0
    %v5244 = vadd.f32 0.0, %v5243
    %v5245 = vpop.f32.mrf.mxu0
    %v5246 = vadd.f32 0.0, %v5245
    %5247 = vmatmul.bf16.gmra.mxu0 %v5094
    %v5248 = vpop.f32.mrf.mxu0
    %v5249 = vadd.f32 0.0, %v5248
    %v5250 = vpop.f32.mrf.mxu0
    %v5251 = vadd.f32 0.0, %v5250
    %5252 = vmatmul.bf16.gmra.mxu0 %v5097
    %v5253 = vpop.f32.mrf.mxu0
    %v5254 = vadd.f32 0.0, %v5253
    %v5255 = vpop.f32.mrf.mxu0
    %v5256 = vadd.f32 0.0, %v5255
    %5257 = vmatmul.bf16.gmra.mxu0 %v3982
    %v5258 = vpop.f32.mrf.mxu0
    %v5259 = vadd.f32 0.0, %v5258
    %v5260 = vpop.f32.mrf.mxu0
    %v5261 = vadd.f32 0.0, %v5260
    %5262 = vmatmul.bf16.gmra.mxu0 %v3982
    %v5263 = vpop.f32.mrf.mxu0
    %v5264 = vadd.f32 0.0, %v5263
    %v5265 = vpop.f32.mrf.mxu0
    %v5266 = vadd.f32 0.0, %v5265
    %5267 = vmatmul.bf16.gmra.mxu0 %v3982
    %v5268 = vpop.f32.mrf.mxu0
    %v5269 = vadd.f32 0.0, %v5268
    %v5270 = vpop.f32.mrf.mxu0
    %v5271 = vadd.f32 0.0, %v5270
    %5272 = vmatmul.bf16.gmra.mxu0 %v3982
    %v5273 = vpop.f32.mrf.mxu0
    %v5274 = vadd.f32 0.0, %v5273
    %v5275 = vpop.f32.mrf.mxu0
    %v5276 = vadd.f32 0.0, %v5275
    %5277 = vmatmul.bf16.gmra.mxu0 %v3982
    %v5278 = vpop.f32.mrf.mxu0
    %v5279 = vadd.f32 0.0, %v5278
    %v5280 = vpop.f32.mrf.mxu0
    %v5281 = vadd.f32 0.0, %v5280
    %5282 = vmatmul.bf16.gmra.mxu0 %v3982
    %v5283 = vpop.f32.mrf.mxu0
    %v5284 = vadd.f32 0.0, %v5283
    %v5285 = vpop.f32.mrf.mxu0
    %v5286 = vadd.f32 0.0, %v5285
    %5287 = vdwg.mxu0
    %5288 = vmatpush.bf16.msra.mxu0 0
    %5289 = vmatpush.bf16.msra.mxu0 0
    %5290 = vmatpush.bf16.msra.mxu0 0
    %5291 = vmatpush.bf16.msra.mxu0 0
    %5292 = vmatpush.bf16.msra.mxu0 0
    %5293 = vmatpush.bf16.msra.mxu0 0
    %5294 = vmatpush.bf16.msra.mxu0 %v5019
    %5295 = vmatpush.bf16.msra.mxu0 %v5017
    %5296 = vmatmul.bf16.gmra.mxu0 %v3982
    %v5297 = vpop.f32.mrf.mxu0
    %v5298 = vadd.f32 0.0, %v5297
    %v5299 = vpop.f32.mrf.mxu0
    %v5300 = vadd.f32 0.0, %v5299
    %5301 = vmatmul.bf16.gmra.mxu0 %v5025
    %v5302 = vpop.f32.mrf.mxu0
    %v5303 = vadd.f32 0.0, %v5302
    %v5304 = vpop.f32.mrf.mxu0
    %v5305 = vadd.f32 0.0, %v5304
    %5306 = vmatmul.bf16.gmra.mxu0 %v5028
    %v5307 = vpop.f32.mrf.mxu0
    %v5308 = vadd.f32 0.0, %v5307
    %v5309 = vpop.f32.mrf.mxu0
    %v5310 = vadd.f32 0.0, %v5309
    %5311 = vmatmul.bf16.gmra.mxu0 %v5031
    %v5312 = vpop.f32.mrf.mxu0
    %v5313 = vadd.f32 0.0, %v5312
    %v5314 = vpop.f32.mrf.mxu0
    %v5315 = vadd.f32 0.0, %v5314
    %5316 = vmatmul.bf16.gmra.mxu0 %v5034
    %v5317 = vpop.f32.mrf.mxu0
    %v5318 = vadd.f32 0.0, %v5317
    %v5319 = vpop.f32.mrf.mxu0
    %v5320 = vadd.f32 0.0, %v5319
    %5321 = vmatmul.bf16.gmra.mxu0 %v5037
    %v5322 = vpop.f32.mrf.mxu0
    %v5323 = vpop.f32.mrf.mxu0
    %5324 = vmatmul.bf16.gmra.mxu0 %v3982
    %v5325 = vpop.f32.mrf.mxu0
    %v5326 = vadd.f32 0.0, %v5325
    %v5327 = vpop.f32.mrf.mxu0
    %v5328 = vadd.f32 0.0, %v5327
    %5329 = vmatmul.bf16.gmra.mxu0 %v5040
    %v5330 = vpop.f32.mrf.mxu0
    %v5331 = vadd.f32 0.0, %v5330
    %v5332 = vpop.f32.mrf.mxu0
    %v5333 = vadd.f32 0.0, %v5332
    %5334 = vmatmul.bf16.gmra.mxu0 %v5043
    %v5335 = vpop.f32.mrf.mxu0
    %v5336 = vadd.f32 0.0, %v5335
    %v5337 = vpop.f32.mrf.mxu0
    %v5338 = vadd.f32 0.0, %v5337
    %5339 = vmatmul.bf16.gmra.mxu0 %v5046
    %v5340 = vpop.f32.mrf.mxu0
    %v5341 = vadd.f32 0.0, %v5340
    %v5342 = vpop.f32.mrf.mxu0
    %v5343 = vadd.f32 0.0, %v5342
    %5344 = vmatmul.bf16.gmra.mxu0 %v5049
    %v5345 = vpop.f32.mrf.mxu0
    %v5346 = vadd.f32 0.0, %v5345
    %v5347 = vpop.f32.mrf.mxu0
    %v5348 = vadd.f32 0.0, %v5347
    %5349 = vmatmul.bf16.gmra.mxu0 %v5052
    %v5350 = vpop.f32.mrf.mxu0
    %v5351 = vpop.f32.mrf.mxu0
    %5352 = vmatmul.bf16.gmra.mxu0 %v3982
    %v5353 = vpop.f32.mrf.mxu0
    %v5354 = vadd.f32 0.0, %v5353
    %v5355 = vpop.f32.mrf.mxu0
    %v5356 = vadd.f32 0.0, %v5355
    %5357 = vmatmul.bf16.gmra.mxu0 %v5055
    %v5358 = vpop.f32.mrf.mxu0
    %v5359 = vadd.f32 0.0, %v5358
    %v5360 = vpop.f32.mrf.mxu0
    %v5361 = vadd.f32 0.0, %v5360
    %5362 = vmatmul.bf16.gmra.mxu0 %v5058
    %v5363 = vpop.f32.mrf.mxu0
    %v5364 = vadd.f32 0.0, %v5363
    %v5365 = vpop.f32.mrf.mxu0
    %v5366 = vadd.f32 0.0, %v5365
    %5367 = vmatmul.bf16.gmra.mxu0 %v5061
    %v5368 = vpop.f32.mrf.mxu0
    %v5369 = vadd.f32 0.0, %v5368
    %v5370 = vpop.f32.mrf.mxu0
    %v5371 = vadd.f32 0.0, %v5370
    %5372 = vmatmul.bf16.gmra.mxu0 %v5064
    %v5373 = vpop.f32.mrf.mxu0
    %v5374 = vadd.f32 0.0, %v5373
    %v5375 = vpop.f32.mrf.mxu0
    %v5376 = vadd.f32 0.0, %v5375
    %5377 = vmatmul.bf16.gmra.mxu0 %v5067
    %v5378 = vpop.f32.mrf.mxu0
    %v5379 = vpop.f32.mrf.mxu0
    %5380 = vmatmul.bf16.gmra.mxu0 %v3982
    %v5381 = vpop.f32.mrf.mxu0
    %v5382 = vadd.f32 0.0, %v5381
    %v5383 = vpop.f32.mrf.mxu0
    %v5384 = vadd.f32 0.0, %v5383
    %5385 = vmatmul.bf16.gmra.mxu0 %v5070
    %v5386 = vpop.f32.mrf.mxu0
    %v5387 = vadd.f32 0.0, %v5386
    %v5388 = vpop.f32.mrf.mxu0
    %v5389 = vadd.f32 0.0, %v5388
    %5390 = vmatmul.bf16.gmra.mxu0 %v5073
    %v5391 = vpop.f32.mrf.mxu0
    %v5392 = vadd.f32 0.0, %v5391
    %v5393 = vpop.f32.mrf.mxu0
    %v5394 = vadd.f32 0.0, %v5393
    %5395 = vmatmul.bf16.gmra.mxu0 %v5076
    %v5396 = vpop.f32.mrf.mxu0
    %v5397 = vadd.f32 0.0, %v5396
    %v5398 = vpop.f32.mrf.mxu0
    %v5399 = vadd.f32 0.0, %v5398
    %5400 = vmatmul.bf16.gmra.mxu0 %v5079
    %v5401 = vpop.f32.mrf.mxu0
    %v5402 = vadd.f32 0.0, %v5401
    %v5403 = vpop.f32.mrf.mxu0
    %v5404 = vadd.f32 0.0, %v5403
    %5405 = vmatmul.bf16.gmra.mxu0 %v5082
    %v5406 = vpop.f32.mrf.mxu0
    %v5407 = vpop.f32.mrf.mxu0
    %5408 = vmatmul.bf16.gmra.mxu0 %v3982
    %v5409 = vpop.f32.mrf.mxu0
    %v5410 = vadd.f32 0.0, %v5409
    %v5411 = vpop.f32.mrf.mxu0
    %v5412 = vadd.f32 0.0, %v5411
    %5413 = vmatmul.bf16.gmra.mxu0 %v5085
    %v5414 = vpop.f32.mrf.mxu0
    %v5415 = vadd.f32 0.0, %v5414
    %v5416 = vpop.f32.mrf.mxu0
    %v5417 = vadd.f32 0.0, %v5416
    %5418 = vmatmul.bf16.gmra.mxu0 %v5088
    %v5419 = vpop.f32.mrf.mxu0
    %v5420 = vadd.f32 0.0, %v5419
    %v5421 = vpop.f32.mrf.mxu0
    %v5422 = vadd.f32 0.0, %v5421
    %5423 = vmatmul.bf16.gmra.mxu0 %v5091
    %v5424 = vpop.f32.mrf.mxu0
    %v5425 = vadd.f32 0.0, %v5424
    %v5426 = vpop.f32.mrf.mxu0
    %v5427 = vadd.f32 0.0, %v5426
    %5428 = vmatmul.bf16.gmra.mxu0 %v5094
    %v5429 = vpop.f32.mrf.mxu0
    %v5430 = vadd.f32 0.0, %v5429
    %v5431 = vpop.f32.mrf.mxu0
    %v5432 = vadd.f32 0.0, %v5431
    %5433 = vmatmul.bf16.gmra.mxu0 %v5097
    %v5434 = vpop.f32.mrf.mxu0
    %v5435 = vpop.f32.mrf.mxu0
    %5436 = vmatmul.bf16.gmra.mxu0 %v3982
    %v5437 = vpop.f32.mrf.mxu0
    %v5438 = vpop.f32.mrf.mxu0
    %5439 = vmatmul.bf16.gmra.mxu0 %v3982
    %v5440 = vpop.f32.mrf.mxu0
    %v5441 = vpop.f32.mrf.mxu0
    %5442 = vmatmul.bf16.gmra.mxu0 %v3982
    %v5443 = vpop.f32.mrf.mxu0
    %v5444 = vpop.f32.mrf.mxu0
    %5445 = vmatmul.bf16.gmra.mxu0 %v3982
    %v5446 = vpop.f32.mrf.mxu0
    %v5447 = vpop.f32.mrf.mxu0
    %5448 = vmatmul.bf16.gmra.mxu0 %v3982
    %v5449 = vpop.f32.mrf.mxu0
    %v5450 = vpop.f32.mrf.mxu0
    %5451 = vmatmul.bf16.gmra.mxu0 %v3982
    %v5452 = vpop.f32.mrf.mxu0
    %v5453 = vpop.f32.mrf.mxu0
    %5454 = vdwg.mxu0
    %v5459 = vunpack.c.l.b16 %v4813
    %v5460 = vunpack.c.h.b16 %v4813
    %v5461 = vunpack.c.l.b16 %v4814
    %v5462 = vunpack.c.h.b16 %v4814
    %v5463 = vunpack.c.l.b16 %v4815
    %v5464 = vunpack.c.h.b16 %v4815
    %v5465 = vunpack.c.l.b16 %v4816
    %v5466 = vunpack.c.h.b16 %v4816
    %v5467 = vpack.c.b16 %v5461, %v5459
    %v5468 = vpack.c.b16 %v5462, %v5460
    %v5469 = vpack.c.b16 %v5465, %v5463
    %v5470 = vpack.c.b16 %v5466, %v5464
    %5475 = vmatpush.bf16.msra.mxu0 0
    %5476 = vmatpush.bf16.msra.mxu0 0
    %5477 = vmatpush.bf16.msra.mxu0 0
    %5478 = vmatpush.bf16.msra.mxu0 0
    %5479 = vmatpush.bf16.msra.mxu0 0
    %5480 = vmatpush.bf16.msra.mxu0 0
    %5481 = vmatpush.bf16.msra.mxu0 %v5469
    %5482 = vmatpush.bf16.msra.mxu0 %v5467
    %5483 = vmatmul.bf16.gmra.mxu0 %v5025
    %v5484 = vpop.f32.mrf.mxu0
    %v5485 = vadd.f32 %v5109, %v5484
    %v5486 = vpop.f32.mrf.mxu0
    %v5487 = vadd.f32 %v5111, %v5486
    %5488 = vmatmul.bf16.gmra.mxu0 %v5028
    %v5489 = vpop.f32.mrf.mxu0
    %v5490 = vadd.f32 %v5114, %v5489
    %v5491 = vpop.f32.mrf.mxu0
    %v5492 = vadd.f32 %v5116, %v5491
    %5493 = vmatmul.bf16.gmra.mxu0 %v5031
    %v5494 = vpop.f32.mrf.mxu0
    %v5495 = vadd.f32 %v5119, %v5494
    %v5496 = vpop.f32.mrf.mxu0
    %v5497 = vadd.f32 %v5121, %v5496
    %5498 = vmatmul.bf16.gmra.mxu0 %v5034
    %v5499 = vpop.f32.mrf.mxu0
    %v5500 = vadd.f32 %v5124, %v5499
    %v5501 = vpop.f32.mrf.mxu0
    %v5502 = vadd.f32 %v5126, %v5501
    %5503 = vmatmul.bf16.gmra.mxu0 %v5037
    %v5504 = vpop.f32.mrf.mxu0
    %v5505 = vadd.f32 %v5129, %v5504
    %v5506 = vpop.f32.mrf.mxu0
    %v5507 = vadd.f32 %v5131, %v5506
    %5508 = vmatmul.bf16.gmra.mxu0 %v3982
    %v5509 = vpop.f32.mrf.mxu0
    %v5510 = vadd.f32 %v5134, %v5509
    %v5511 = vpop.f32.mrf.mxu0
    %v5512 = vadd.f32 %v5136, %v5511
    %5513 = vmatmul.bf16.gmra.mxu0 %v5040
    %v5514 = vpop.f32.mrf.mxu0
    %v5515 = vadd.f32 %v5139, %v5514
    %v5516 = vpop.f32.mrf.mxu0
    %v5517 = vadd.f32 %v5141, %v5516
    %5518 = vmatmul.bf16.gmra.mxu0 %v5043
    %v5519 = vpop.f32.mrf.mxu0
    %v5520 = vadd.f32 %v5144, %v5519
    %v5521 = vpop.f32.mrf.mxu0
    %v5522 = vadd.f32 %v5146, %v5521
    %5523 = vmatmul.bf16.gmra.mxu0 %v5046
    %v5524 = vpop.f32.mrf.mxu0
    %v5525 = vadd.f32 %v5149, %v5524
    %v5526 = vpop.f32.mrf.mxu0
    %v5527 = vadd.f32 %v5151, %v5526
    %5528 = vmatmul.bf16.gmra.mxu0 %v5049
    %v5529 = vpop.f32.mrf.mxu0
    %v5530 = vadd.f32 %v5154, %v5529
    %v5531 = vpop.f32.mrf.mxu0
    %v5532 = vadd.f32 %v5156, %v5531
    %5533 = vmatmul.bf16.gmra.mxu0 %v5052
    %v5534 = vpop.f32.mrf.mxu0
    %v5535 = vadd.f32 %v5159, %v5534
    %v5536 = vpop.f32.mrf.mxu0
    %v5537 = vadd.f32 %v5161, %v5536
    %5538 = vmatmul.bf16.gmra.mxu0 %v3982
    %v5539 = vpop.f32.mrf.mxu0
    %v5540 = vadd.f32 %v5164, %v5539
    %v5541 = vpop.f32.mrf.mxu0
    %v5542 = vadd.f32 %v5166, %v5541
    %5543 = vmatmul.bf16.gmra.mxu0 %v5055
    %v5544 = vpop.f32.mrf.mxu0
    %v5545 = vadd.f32 %v5169, %v5544
    %v5546 = vpop.f32.mrf.mxu0
    %v5547 = vadd.f32 %v5171, %v5546
    %5548 = vmatmul.bf16.gmra.mxu0 %v5058
    %v5549 = vpop.f32.mrf.mxu0
    %v5550 = vadd.f32 %v5174, %v5549
    %v5551 = vpop.f32.mrf.mxu0
    %v5552 = vadd.f32 %v5176, %v5551
    %5553 = vmatmul.bf16.gmra.mxu0 %v5061
    %v5554 = vpop.f32.mrf.mxu0
    %v5555 = vadd.f32 %v5179, %v5554
    %v5556 = vpop.f32.mrf.mxu0
    %v5557 = vadd.f32 %v5181, %v5556
    %5558 = vmatmul.bf16.gmra.mxu0 %v5064
    %v5559 = vpop.f32.mrf.mxu0
    %v5560 = vadd.f32 %v5184, %v5559
    %v5561 = vpop.f32.mrf.mxu0
    %v5562 = vadd.f32 %v5186, %v5561
    %5563 = vmatmul.bf16.gmra.mxu0 %v5067
    %v5564 = vpop.f32.mrf.mxu0
    %v5565 = vadd.f32 %v5189, %v5564
    %v5566 = vpop.f32.mrf.mxu0
    %v5567 = vadd.f32 %v5191, %v5566
    %5568 = vmatmul.bf16.gmra.mxu0 %v3982
    %v5569 = vpop.f32.mrf.mxu0
    %v5570 = vadd.f32 %v5194, %v5569
    %v5571 = vpop.f32.mrf.mxu0
    %v5572 = vadd.f32 %v5196, %v5571
    %5573 = vmatmul.bf16.gmra.mxu0 %v5070
    %v5574 = vpop.f32.mrf.mxu0
    %v5575 = vadd.f32 %v5199, %v5574
    %v5576 = vpop.f32.mrf.mxu0
    %v5577 = vadd.f32 %v5201, %v5576
    %5578 = vmatmul.bf16.gmra.mxu0 %v5073
    %v5579 = vpop.f32.mrf.mxu0
    %v5580 = vadd.f32 %v5204, %v5579
    %v5581 = vpop.f32.mrf.mxu0
    %v5582 = vadd.f32 %v5206, %v5581
    %5583 = vmatmul.bf16.gmra.mxu0 %v5076
    %v5584 = vpop.f32.mrf.mxu0
    %v5585 = vadd.f32 %v5209, %v5584
    %v5586 = vpop.f32.mrf.mxu0
    %v5587 = vadd.f32 %v5211, %v5586
    %5588 = vmatmul.bf16.gmra.mxu0 %v5079
    %v5589 = vpop.f32.mrf.mxu0
    %v5590 = vadd.f32 %v5214, %v5589
    %v5591 = vpop.f32.mrf.mxu0
    %v5592 = vadd.f32 %v5216, %v5591
    %5593 = vmatmul.bf16.gmra.mxu0 %v5082
    %v5594 = vpop.f32.mrf.mxu0
    %v5595 = vadd.f32 %v5219, %v5594
    %v5596 = vpop.f32.mrf.mxu0
    %v5597 = vadd.f32 %v5221, %v5596
    %5598 = vmatmul.bf16.gmra.mxu0 %v3982
    %v5599 = vpop.f32.mrf.mxu0
    %v5600 = vadd.f32 %v5224, %v5599
    %v5601 = vpop.f32.mrf.mxu0
    %v5602 = vadd.f32 %v5226, %v5601
    %5603 = vmatmul.bf16.gmra.mxu0 %v5085
    %v5604 = vpop.f32.mrf.mxu0
    %v5605 = vadd.f32 %v5229, %v5604
    %v5606 = vpop.f32.mrf.mxu0
    %v5607 = vadd.f32 %v5231, %v5606
    %5608 = vmatmul.bf16.gmra.mxu0 %v5088
    %v5609 = vpop.f32.mrf.mxu0
    %v5610 = vadd.f32 %v5234, %v5609
    %v5611 = vpop.f32.mrf.mxu0
    %v5612 = vadd.f32 %v5236, %v5611
    %5613 = vmatmul.bf16.gmra.mxu0 %v5091
    %v5614 = vpop.f32.mrf.mxu0
    %v5615 = vadd.f32 %v5239, %v5614
    %v5616 = vpop.f32.mrf.mxu0
    %v5617 = vadd.f32 %v5241, %v5616
    %5618 = vmatmul.bf16.gmra.mxu0 %v5094
    %v5619 = vpop.f32.mrf.mxu0
    %v5620 = vadd.f32 %v5244, %v5619
    %v5621 = vpop.f32.mrf.mxu0
    %v5622 = vadd.f32 %v5246, %v5621
    %5623 = vmatmul.bf16.gmra.mxu0 %v5097
    %v5624 = vpop.f32.mrf.mxu0
    %v5625 = vadd.f32 %v5249, %v5624
    %v5626 = vpop.f32.mrf.mxu0
    %v5627 = vadd.f32 %v5251, %v5626
    %5628 = vmatmul.bf16.gmra.mxu0 %v3982
    %v5629 = vpop.f32.mrf.mxu0
    %v5630 = vadd.f32 %v5254, %v5629
    %v5631 = vpop.f32.mrf.mxu0
    %v5632 = vadd.f32 %v5256, %v5631
    %5633 = vmatmul.bf16.gmra.mxu0 %v3982
    %v5634 = vpop.f32.mrf.mxu0
    %v5635 = vadd.f32 %v5259, %v5634
    %v5636 = vpop.f32.mrf.mxu0
    %v5637 = vadd.f32 %v5261, %v5636
    %5638 = vmatmul.bf16.gmra.mxu0 %v3982
    %v5639 = vpop.f32.mrf.mxu0
    %v5640 = vadd.f32 %v5264, %v5639
    %v5641 = vpop.f32.mrf.mxu0
    %v5642 = vadd.f32 %v5266, %v5641
    %5643 = vmatmul.bf16.gmra.mxu0 %v3982
    %v5644 = vpop.f32.mrf.mxu0
    %v5645 = vadd.f32 %v5269, %v5644
    %v5646 = vpop.f32.mrf.mxu0
    %v5647 = vadd.f32 %v5271, %v5646
    %5648 = vmatmul.bf16.gmra.mxu0 %v3982
    %v5649 = vpop.f32.mrf.mxu0
    %v5650 = vadd.f32 %v5274, %v5649
    %v5651 = vpop.f32.mrf.mxu0
    %v5652 = vadd.f32 %v5276, %v5651
    %5653 = vmatmul.bf16.gmra.mxu0 %v3982
    %v5654 = vpop.f32.mrf.mxu0
    %v5655 = vadd.f32 %v5279, %v5654
    %v5656 = vpop.f32.mrf.mxu0
    %v5657 = vadd.f32 %v5281, %v5656
    %5658 = vmatmul.bf16.gmra.mxu0 %v3982
    %v5659 = vpop.f32.mrf.mxu0
    %v5660 = vadd.f32 %v5284, %v5659
    %v5661 = vpop.f32.mrf.mxu0
    %v5662 = vadd.f32 %v5286, %v5661
    %5663 = vdwg.mxu0
    %5664 = vmatpush.bf16.msra.mxu0 0
    %5665 = vmatpush.bf16.msra.mxu0 0
    %5666 = vmatpush.bf16.msra.mxu0 0
    %5667 = vmatpush.bf16.msra.mxu0 0
    %5668 = vmatpush.bf16.msra.mxu0 0
    %5669 = vmatpush.bf16.msra.mxu0 0
    %5670 = vmatpush.bf16.msra.mxu0 %v5470
    %5671 = vmatpush.bf16.msra.mxu0 %v5468
    %5672 = vmatmul.bf16.gmra.mxu0 %v5025
    %v5673 = vpop.f32.mrf.mxu0
    %v5674 = vadd.f32 %v5298, %v5673
    %v5675 = vpop.f32.mrf.mxu0
    %v5676 = vadd.f32 %v5300, %v5675
    %5677 = vmatmul.bf16.gmra.mxu0 %v5028
    %v5678 = vpop.f32.mrf.mxu0
    %v5679 = vadd.f32 %v5303, %v5678
    %v5680 = vpop.f32.mrf.mxu0
    %v5681 = vadd.f32 %v5305, %v5680
    %5682 = vmatmul.bf16.gmra.mxu0 %v5031
    %v5683 = vpop.f32.mrf.mxu0
    %v5684 = vadd.f32 %v5308, %v5683
    %v5685 = vpop.f32.mrf.mxu0
    %v5686 = vadd.f32 %v5310, %v5685
    %5687 = vmatmul.bf16.gmra.mxu0 %v5034
    %v5688 = vpop.f32.mrf.mxu0
    %v5689 = vadd.f32 %v5313, %v5688
    %v5690 = vpop.f32.mrf.mxu0
    %v5691 = vadd.f32 %v5315, %v5690
    %5692 = vmatmul.bf16.gmra.mxu0 %v5037
    %v5693 = vpop.f32.mrf.mxu0
    %v5694 = vadd.f32 %v5318, %v5693
    %v5695 = vpop.f32.mrf.mxu0
    %v5696 = vadd.f32 %v5320, %v5695
    %5697 = vmatmul.bf16.gmra.mxu0 %v3982
    %v5698 = vpop.f32.mrf.mxu0
    %v5699 = vpop.f32.mrf.mxu0
    %5700 = vmatmul.bf16.gmra.mxu0 %v5040
    %v5701 = vpop.f32.mrf.mxu0
    %v5702 = vadd.f32 %v5326, %v5701
    %v5703 = vpop.f32.mrf.mxu0
    %v5704 = vadd.f32 %v5328, %v5703
    %5705 = vmatmul.bf16.gmra.mxu0 %v5043
    %v5706 = vpop.f32.mrf.mxu0
    %v5707 = vadd.f32 %v5331, %v5706
    %v5708 = vpop.f32.mrf.mxu0
    %v5709 = vadd.f32 %v5333, %v5708
    %5710 = vmatmul.bf16.gmra.mxu0 %v5046
    %v5711 = vpop.f32.mrf.mxu0
    %v5712 = vadd.f32 %v5336, %v5711
    %v5713 = vpop.f32.mrf.mxu0
    %v5714 = vadd.f32 %v5338, %v5713
    %5715 = vmatmul.bf16.gmra.mxu0 %v5049
    %v5716 = vpop.f32.mrf.mxu0
    %v5717 = vadd.f32 %v5341, %v5716
    %v5718 = vpop.f32.mrf.mxu0
    %v5719 = vadd.f32 %v5343, %v5718
    %5720 = vmatmul.bf16.gmra.mxu0 %v5052
    %v5721 = vpop.f32.mrf.mxu0
    %v5722 = vadd.f32 %v5346, %v5721
    %v5723 = vpop.f32.mrf.mxu0
    %v5724 = vadd.f32 %v5348, %v5723
    %5725 = vmatmul.bf16.gmra.mxu0 %v3982
    %v5726 = vpop.f32.mrf.mxu0
    %v5727 = vpop.f32.mrf.mxu0
    %5728 = vmatmul.bf16.gmra.mxu0 %v5055
    %v5729 = vpop.f32.mrf.mxu0
    %v5730 = vadd.f32 %v5354, %v5729
    %v5731 = vpop.f32.mrf.mxu0
    %v5732 = vadd.f32 %v5356, %v5731
    %5733 = vmatmul.bf16.gmra.mxu0 %v5058
    %v5734 = vpop.f32.mrf.mxu0
    %v5735 = vadd.f32 %v5359, %v5734
    %v5736 = vpop.f32.mrf.mxu0
    %v5737 = vadd.f32 %v5361, %v5736
    %5738 = vmatmul.bf16.gmra.mxu0 %v5061
    %v5739 = vpop.f32.mrf.mxu0
    %v5740 = vadd.f32 %v5364, %v5739
    %v5741 = vpop.f32.mrf.mxu0
    %v5742 = vadd.f32 %v5366, %v5741
    %5743 = vmatmul.bf16.gmra.mxu0 %v5064
    %v5744 = vpop.f32.mrf.mxu0
    %v5745 = vadd.f32 %v5369, %v5744
    %v5746 = vpop.f32.mrf.mxu0
    %v5747 = vadd.f32 %v5371, %v5746
    %5748 = vmatmul.bf16.gmra.mxu0 %v5067
    %v5749 = vpop.f32.mrf.mxu0
    %v5750 = vadd.f32 %v5374, %v5749
    %v5751 = vpop.f32.mrf.mxu0
    %v5752 = vadd.f32 %v5376, %v5751
    %5753 = vmatmul.bf16.gmra.mxu0 %v3982
    %v5754 = vpop.f32.mrf.mxu0
    %v5755 = vpop.f32.mrf.mxu0
    %5756 = vmatmul.bf16.gmra.mxu0 %v5070
    %v5757 = vpop.f32.mrf.mxu0
    %v5758 = vadd.f32 %v5382, %v5757
    %v5759 = vpop.f32.mrf.mxu0
    %v5760 = vadd.f32 %v5384, %v5759
    %5761 = vmatmul.bf16.gmra.mxu0 %v5073
    %v5762 = vpop.f32.mrf.mxu0
    %v5763 = vadd.f32 %v5387, %v5762
    %v5764 = vpop.f32.mrf.mxu0
    %v5765 = vadd.f32 %v5389, %v5764
    %5766 = vmatmul.bf16.gmra.mxu0 %v5076
    %v5767 = vpop.f32.mrf.mxu0
    %v5768 = vadd.f32 %v5392, %v5767
    %v5769 = vpop.f32.mrf.mxu0
    %v5770 = vadd.f32 %v5394, %v5769
    %5771 = vmatmul.bf16.gmra.mxu0 %v5079
    %v5772 = vpop.f32.mrf.mxu0
    %v5773 = vadd.f32 %v5397, %v5772
    %v5774 = vpop.f32.mrf.mxu0
    %v5775 = vadd.f32 %v5399, %v5774
    %5776 = vmatmul.bf16.gmra.mxu0 %v5082
    %v5777 = vpop.f32.mrf.mxu0
    %v5778 = vadd.f32 %v5402, %v5777
    %v5779 = vpop.f32.mrf.mxu0
    %v5780 = vadd.f32 %v5404, %v5779
    %5781 = vmatmul.bf16.gmra.mxu0 %v3982
    %v5782 = vpop.f32.mrf.mxu0
    %v5783 = vpop.f32.mrf.mxu0
    %5784 = vmatmul.bf16.gmra.mxu0 %v5085
    %v5785 = vpop.f32.mrf.mxu0
    %v5786 = vadd.f32 %v5410, %v5785
    %v5787 = vpop.f32.mrf.mxu0
    %v5788 = vadd.f32 %v5412, %v5787
    %5789 = vmatmul.bf16.gmra.mxu0 %v5088
    %v5790 = vpop.f32.mrf.mxu0
    %v5791 = vadd.f32 %v5415, %v5790
    %v5792 = vpop.f32.mrf.mxu0
    %v5793 = vadd.f32 %v5417, %v5792
    %5794 = vmatmul.bf16.gmra.mxu0 %v5091
    %v5795 = vpop.f32.mrf.mxu0
    %v5796 = vadd.f32 %v5420, %v5795
    %v5797 = vpop.f32.mrf.mxu0
    %v5798 = vadd.f32 %v5422, %v5797
    %5799 = vmatmul.bf16.gmra.mxu0 %v5094
    %v5800 = vpop.f32.mrf.mxu0
    %v5801 = vadd.f32 %v5425, %v5800
    %v5802 = vpop.f32.mrf.mxu0
    %v5803 = vadd.f32 %v5427, %v5802
    %5804 = vmatmul.bf16.gmra.mxu0 %v5097
    %v5805 = vpop.f32.mrf.mxu0
    %v5806 = vadd.f32 %v5430, %v5805
    %v5807 = vpop.f32.mrf.mxu0
    %v5808 = vadd.f32 %v5432, %v5807
    %5809 = vmatmul.bf16.gmra.mxu0 %v3982
    %v5810 = vpop.f32.mrf.mxu0
    %v5811 = vpop.f32.mrf.mxu0
    %5812 = vmatmul.bf16.gmra.mxu0 %v3982
    %v5813 = vpop.f32.mrf.mxu0
    %v5814 = vpop.f32.mrf.mxu0
    %5815 = vmatmul.bf16.gmra.mxu0 %v3982
    %v5816 = vpop.f32.mrf.mxu0
    %v5817 = vpop.f32.mrf.mxu0
    %5818 = vmatmul.bf16.gmra.mxu0 %v3982
    %v5819 = vpop.f32.mrf.mxu0
    %v5820 = vpop.f32.mrf.mxu0
    %5821 = vmatmul.bf16.gmra.mxu0 %v3982
    %v5822 = vpop.f32.mrf.mxu0
    %v5823 = vpop.f32.mrf.mxu0
    %5824 = vmatmul.bf16.gmra.mxu0 %v3982
    %v5825 = vpop.f32.mrf.mxu0
    %v5826 = vpop.f32.mrf.mxu0
    %5827 = vmatmul.bf16.gmra.mxu0 %v3982
    %v5828 = vpop.f32.mrf.mxu0
    %v5829 = vpop.f32.mrf.mxu0
    %5830 = vdwg.mxu0
    %v5835 = vunpack.c.l.b16 %v4821
    %v5836 = vunpack.c.h.b16 %v4821
    %v5837 = vunpack.c.l.b16 %v4822
    %v5838 = vunpack.c.h.b16 %v4822
    %v5839 = vunpack.c.l.b16 %v4823
    %v5840 = vunpack.c.h.b16 %v4823
    %v5841 = vunpack.c.l.b16 %v4824
    %v5842 = vunpack.c.h.b16 %v4824
    %v5843 = vpack.c.b16 %v5837, %v5835
    %v5844 = vpack.c.b16 %v5838, %v5836
    %v5845 = vpack.c.b16 %v5841, %v5839
    %v5846 = vpack.c.b16 %v5842, %v5840
    %5851 = vmatpush.bf16.msra.mxu0 0
    %5852 = vmatpush.bf16.msra.mxu0 0
    %5853 = vmatpush.bf16.msra.mxu0 0
    %5854 = vmatpush.bf16.msra.mxu0 0
    %5855 = vmatpush.bf16.msra.mxu0 0
    %5856 = vmatpush.bf16.msra.mxu0 0
    %5857 = vmatpush.bf16.msra.mxu0 %v5845
    %5858 = vmatpush.bf16.msra.mxu0 %v5843
    %5859 = vmatmul.bf16.gmra.mxu0 %v3982
    %v5860 = vpop.f32.mrf.mxu0
    %v5861 = vadd.f32 0.0, %v5860
    %v5862 = vpop.f32.mrf.mxu0
    %v5863 = vadd.f32 0.0, %v5862
    %5864 = vmatmul.bf16.gmra.mxu0 %v3982
    %v5865 = vpop.f32.mrf.mxu0
    %v5866 = vadd.f32 0.0, %v5865
    %v5867 = vpop.f32.mrf.mxu0
    %v5868 = vadd.f32 0.0, %v5867
    %5869 = vmatmul.bf16.gmra.mxu0 %v3982
    %v5870 = vpop.f32.mrf.mxu0
    %v5871 = vadd.f32 0.0, %v5870
    %v5872 = vpop.f32.mrf.mxu0
    %v5873 = vadd.f32 0.0, %v5872
    %5874 = vmatmul.bf16.gmra.mxu0 %v3982
    %v5875 = vpop.f32.mrf.mxu0
    %v5876 = vadd.f32 0.0, %v5875
    %v5877 = vpop.f32.mrf.mxu0
    %v5878 = vadd.f32 0.0, %v5877
    %5879 = vmatmul.bf16.gmra.mxu0 %v3982
    %v5880 = vpop.f32.mrf.mxu0
    %v5881 = vadd.f32 0.0, %v5880
    %v5882 = vpop.f32.mrf.mxu0
    %v5883 = vadd.f32 0.0, %v5882
    %5884 = vmatmul.bf16.gmra.mxu0 %v3982
    %v5885 = vpop.f32.mrf.mxu0
    %v5886 = vadd.f32 0.0, %v5885
    %v5887 = vpop.f32.mrf.mxu0
    %v5888 = vadd.f32 0.0, %v5887
    %5889 = vmatmul.bf16.gmra.mxu0 %v5025
    %v5890 = vpop.f32.mrf.mxu0
    %v5891 = vadd.f32 0.0, %v5890
    %v5892 = vpop.f32.mrf.mxu0
    %v5893 = vadd.f32 0.0, %v5892
    %5894 = vmatmul.bf16.gmra.mxu0 %v5028
    %v5895 = vpop.f32.mrf.mxu0
    %v5896 = vadd.f32 0.0, %v5895
    %v5897 = vpop.f32.mrf.mxu0
    %v5898 = vadd.f32 0.0, %v5897
    %5899 = vmatmul.bf16.gmra.mxu0 %v5031
    %v5900 = vpop.f32.mrf.mxu0
    %v5901 = vadd.f32 0.0, %v5900
    %v5902 = vpop.f32.mrf.mxu0
    %v5903 = vadd.f32 0.0, %v5902
    %5904 = vmatmul.bf16.gmra.mxu0 %v5034
    %v5905 = vpop.f32.mrf.mxu0
    %v5906 = vadd.f32 0.0, %v5905
    %v5907 = vpop.f32.mrf.mxu0
    %v5908 = vadd.f32 0.0, %v5907
    %5909 = vmatmul.bf16.gmra.mxu0 %v5037
    %v5910 = vpop.f32.mrf.mxu0
    %v5911 = vadd.f32 0.0, %v5910
    %v5912 = vpop.f32.mrf.mxu0
    %v5913 = vadd.f32 0.0, %v5912
    %5914 = vmatmul.bf16.gmra.mxu0 %v3982
    %v5915 = vpop.f32.mrf.mxu0
    %v5916 = vadd.f32 0.0, %v5915
    %v5917 = vpop.f32.mrf.mxu0
    %v5918 = vadd.f32 0.0, %v5917
    %5919 = vmatmul.bf16.gmra.mxu0 %v5040
    %v5920 = vpop.f32.mrf.mxu0
    %v5921 = vadd.f32 0.0, %v5920
    %v5922 = vpop.f32.mrf.mxu0
    %v5923 = vadd.f32 0.0, %v5922
    %5924 = vmatmul.bf16.gmra.mxu0 %v5043
    %v5925 = vpop.f32.mrf.mxu0
    %v5926 = vadd.f32 0.0, %v5925
    %v5927 = vpop.f32.mrf.mxu0
    %v5928 = vadd.f32 0.0, %v5927
    %5929 = vmatmul.bf16.gmra.mxu0 %v5046
    %v5930 = vpop.f32.mrf.mxu0
    %v5931 = vadd.f32 0.0, %v5930
    %v5932 = vpop.f32.mrf.mxu0
    %v5933 = vadd.f32 0.0, %v5932
    %5934 = vmatmul.bf16.gmra.mxu0 %v5049
    %v5935 = vpop.f32.mrf.mxu0
    %v5936 = vadd.f32 0.0, %v5935
    %v5937 = vpop.f32.mrf.mxu0
    %v5938 = vadd.f32 0.0, %v5937
    %5939 = vmatmul.bf16.gmra.mxu0 %v5052
    %v5940 = vpop.f32.mrf.mxu0
    %v5941 = vadd.f32 0.0, %v5940
    %v5942 = vpop.f32.mrf.mxu0
    %v5943 = vadd.f32 0.0, %v5942
    %5944 = vmatmul.bf16.gmra.mxu0 %v3982
    %v5945 = vpop.f32.mrf.mxu0
    %v5946 = vadd.f32 0.0, %v5945
    %v5947 = vpop.f32.mrf.mxu0
    %v5948 = vadd.f32 0.0, %v5947
    %5949 = vmatmul.bf16.gmra.mxu0 %v5055
    %v5950 = vpop.f32.mrf.mxu0
    %v5951 = vadd.f32 0.0, %v5950
    %v5952 = vpop.f32.mrf.mxu0
    %v5953 = vadd.f32 0.0, %v5952
    %5954 = vmatmul.bf16.gmra.mxu0 %v5058
    %v5955 = vpop.f32.mrf.mxu0
    %v5956 = vadd.f32 0.0, %v5955
    %v5957 = vpop.f32.mrf.mxu0
    %v5958 = vadd.f32 0.0, %v5957
    %5959 = vmatmul.bf16.gmra.mxu0 %v5061
    %v5960 = vpop.f32.mrf.mxu0
    %v5961 = vadd.f32 0.0, %v5960
    %v5962 = vpop.f32.mrf.mxu0
    %v5963 = vadd.f32 0.0, %v5962
    %5964 = vmatmul.bf16.gmra.mxu0 %v5064
    %v5965 = vpop.f32.mrf.mxu0
    %v5966 = vadd.f32 0.0, %v5965
    %v5967 = vpop.f32.mrf.mxu0
    %v5968 = vadd.f32 0.0, %v5967
    %5969 = vmatmul.bf16.gmra.mxu0 %v5067
    %v5970 = vpop.f32.mrf.mxu0
    %v5971 = vadd.f32 0.0, %v5970
    %v5972 = vpop.f32.mrf.mxu0
    %v5973 = vadd.f32 0.0, %v5972
    %5974 = vmatmul.bf16.gmra.mxu0 %v3982
    %v5975 = vpop.f32.mrf.mxu0
    %v5976 = vadd.f32 0.0, %v5975
    %v5977 = vpop.f32.mrf.mxu0
    %v5978 = vadd.f32 0.0, %v5977
    %5979 = vmatmul.bf16.gmra.mxu0 %v5070
    %v5980 = vpop.f32.mrf.mxu0
    %v5981 = vadd.f32 0.0, %v5980
    %v5982 = vpop.f32.mrf.mxu0
    %v5983 = vadd.f32 0.0, %v5982
    %5984 = vmatmul.bf16.gmra.mxu0 %v5073
    %v5985 = vpop.f32.mrf.mxu0
    %v5986 = vadd.f32 0.0, %v5985
    %v5987 = vpop.f32.mrf.mxu0
    %v5988 = vadd.f32 0.0, %v5987
    %5989 = vmatmul.bf16.gmra.mxu0 %v5076
    %v5990 = vpop.f32.mrf.mxu0
    %v5991 = vadd.f32 0.0, %v5990
    %v5992 = vpop.f32.mrf.mxu0
    %v5993 = vadd.f32 0.0, %v5992
    %5994 = vmatmul.bf16.gmra.mxu0 %v5079
    %v5995 = vpop.f32.mrf.mxu0
    %v5996 = vadd.f32 0.0, %v5995
    %v5997 = vpop.f32.mrf.mxu0
    %v5998 = vadd.f32 0.0, %v5997
    %5999 = vmatmul.bf16.gmra.mxu0 %v5082
    %v6000 = vpop.f32.mrf.mxu0
    %v6001 = vadd.f32 0.0, %v6000
    %v6002 = vpop.f32.mrf.mxu0
    %v6003 = vadd.f32 0.0, %v6002
    %6004 = vmatmul.bf16.gmra.mxu0 %v3982
    %v6005 = vpop.f32.mrf.mxu0
    %v6006 = vadd.f32 0.0, %v6005
    %v6007 = vpop.f32.mrf.mxu0
    %v6008 = vadd.f32 0.0, %v6007
    %6009 = vmatmul.bf16.gmra.mxu0 %v5085
    %v6010 = vpop.f32.mrf.mxu0
    %v6011 = vadd.f32 0.0, %v6010
    %v6012 = vpop.f32.mrf.mxu0
    %v6013 = vadd.f32 0.0, %v6012
    %6014 = vmatmul.bf16.gmra.mxu0 %v5088
    %v6015 = vpop.f32.mrf.mxu0
    %v6016 = vadd.f32 0.0, %v6015
    %v6017 = vpop.f32.mrf.mxu0
    %v6018 = vadd.f32 0.0, %v6017
    %6019 = vmatmul.bf16.gmra.mxu0 %v5091
    %v6020 = vpop.f32.mrf.mxu0
    %v6021 = vadd.f32 0.0, %v6020
    %v6022 = vpop.f32.mrf.mxu0
    %v6023 = vadd.f32 0.0, %v6022
    %6024 = vmatmul.bf16.gmra.mxu0 %v5094
    %v6025 = vpop.f32.mrf.mxu0
    %v6026 = vadd.f32 0.0, %v6025
    %v6027 = vpop.f32.mrf.mxu0
    %v6028 = vadd.f32 0.0, %v6027
    %6029 = vmatmul.bf16.gmra.mxu0 %v5097
    %v6030 = vpop.f32.mrf.mxu0
    %v6031 = vadd.f32 0.0, %v6030
    %v6032 = vpop.f32.mrf.mxu0
    %v6033 = vadd.f32 0.0, %v6032
    %6034 = vmatmul.bf16.gmra.mxu0 %v3982
    %v6035 = vpop.f32.mrf.mxu0
    %v6036 = vadd.f32 0.0, %v6035
    %v6037 = vpop.f32.mrf.mxu0
    %v6038 = vadd.f32 0.0, %v6037
    %6039 = vdwg.mxu0
    %6040 = vmatpush.bf16.msra.mxu0 0
    %6041 = vmatpush.bf16.msra.mxu0 0
    %6042 = vmatpush.bf16.msra.mxu0 0
    %6043 = vmatpush.bf16.msra.mxu0 0
    %6044 = vmatpush.bf16.msra.mxu0 0
    %6045 = vmatpush.bf16.msra.mxu0 0
    %6046 = vmatpush.bf16.msra.mxu0 %v5846
    %6047 = vmatpush.bf16.msra.mxu0 %v5844
    %6048 = vmatmul.bf16.gmra.mxu0 %v3982
    %v6049 = vpop.f32.mrf.mxu0
    %v6050 = vadd.f32 0.0, %v6049
    %v6051 = vpop.f32.mrf.mxu0
    %v6052 = vadd.f32 0.0, %v6051
    %6053 = vmatmul.bf16.gmra.mxu0 %v3982
    %v6054 = vpop.f32.mrf.mxu0
    %v6055 = vadd.f32 0.0, %v6054
    %v6056 = vpop.f32.mrf.mxu0
    %v6057 = vadd.f32 0.0, %v6056
    %6058 = vmatmul.bf16.gmra.mxu0 %v3982
    %v6059 = vpop.f32.mrf.mxu0
    %v6060 = vadd.f32 0.0, %v6059
    %v6061 = vpop.f32.mrf.mxu0
    %v6062 = vadd.f32 0.0, %v6061
    %6063 = vmatmul.bf16.gmra.mxu0 %v3982
    %v6064 = vpop.f32.mrf.mxu0
    %v6065 = vadd.f32 0.0, %v6064
    %v6066 = vpop.f32.mrf.mxu0
    %v6067 = vadd.f32 0.0, %v6066
    %6068 = vmatmul.bf16.gmra.mxu0 %v3982
    %v6069 = vpop.f32.mrf.mxu0
    %v6070 = vadd.f32 0.0, %v6069
    %v6071 = vpop.f32.mrf.mxu0
    %v6072 = vadd.f32 0.0, %v6071
    %6073 = vmatmul.bf16.gmra.mxu0 %v3982
    %v6074 = vpop.f32.mrf.mxu0
    %v6075 = vpop.f32.mrf.mxu0
    %6076 = vmatmul.bf16.gmra.mxu0 %v5025
    %v6077 = vpop.f32.mrf.mxu0
    %v6078 = vadd.f32 0.0, %v6077
    %v6079 = vpop.f32.mrf.mxu0
    %v6080 = vadd.f32 0.0, %v6079
    %6081 = vmatmul.bf16.gmra.mxu0 %v5028
    %v6082 = vpop.f32.mrf.mxu0
    %v6083 = vadd.f32 0.0, %v6082
    %v6084 = vpop.f32.mrf.mxu0
    %v6085 = vadd.f32 0.0, %v6084
    %6086 = vmatmul.bf16.gmra.mxu0 %v5031
    %v6087 = vpop.f32.mrf.mxu0
    %v6088 = vadd.f32 0.0, %v6087
    %v6089 = vpop.f32.mrf.mxu0
    %v6090 = vadd.f32 0.0, %v6089
    %6091 = vmatmul.bf16.gmra.mxu0 %v5034
    %v6092 = vpop.f32.mrf.mxu0
    %v6093 = vadd.f32 0.0, %v6092
    %v6094 = vpop.f32.mrf.mxu0
    %v6095 = vadd.f32 0.0, %v6094
    %6096 = vmatmul.bf16.gmra.mxu0 %v5037
    %v6097 = vpop.f32.mrf.mxu0
    %v6098 = vadd.f32 0.0, %v6097
    %v6099 = vpop.f32.mrf.mxu0
    %v6100 = vadd.f32 0.0, %v6099
    %6101 = vmatmul.bf16.gmra.mxu0 %v3982
    %v6102 = vpop.f32.mrf.mxu0
    %v6103 = vpop.f32.mrf.mxu0
    %6104 = vmatmul.bf16.gmra.mxu0 %v5040
    %v6105 = vpop.f32.mrf.mxu0
    %v6106 = vadd.f32 0.0, %v6105
    %v6107 = vpop.f32.mrf.mxu0
    %v6108 = vadd.f32 0.0, %v6107
    %6109 = vmatmul.bf16.gmra.mxu0 %v5043
    %v6110 = vpop.f32.mrf.mxu0
    %v6111 = vadd.f32 0.0, %v6110
    %v6112 = vpop.f32.mrf.mxu0
    %v6113 = vadd.f32 0.0, %v6112
    %6114 = vmatmul.bf16.gmra.mxu0 %v5046
    %v6115 = vpop.f32.mrf.mxu0
    %v6116 = vadd.f32 0.0, %v6115
    %v6117 = vpop.f32.mrf.mxu0
    %v6118 = vadd.f32 0.0, %v6117
    %6119 = vmatmul.bf16.gmra.mxu0 %v5049
    %v6120 = vpop.f32.mrf.mxu0
    %v6121 = vadd.f32 0.0, %v6120
    %v6122 = vpop.f32.mrf.mxu0
    %v6123 = vadd.f32 0.0, %v6122
    %6124 = vmatmul.bf16.gmra.mxu0 %v5052
    %v6125 = vpop.f32.mrf.mxu0
    %v6126 = vadd.f32 0.0, %v6125
    %v6127 = vpop.f32.mrf.mxu0
    %v6128 = vadd.f32 0.0, %v6127
    %6129 = vmatmul.bf16.gmra.mxu0 %v3982
    %v6130 = vpop.f32.mrf.mxu0
    %v6131 = vpop.f32.mrf.mxu0
    %6132 = vmatmul.bf16.gmra.mxu0 %v5055
    %v6133 = vpop.f32.mrf.mxu0
    %v6134 = vadd.f32 0.0, %v6133
    %v6135 = vpop.f32.mrf.mxu0
    %v6136 = vadd.f32 0.0, %v6135
    %6137 = vmatmul.bf16.gmra.mxu0 %v5058
    %v6138 = vpop.f32.mrf.mxu0
    %v6139 = vadd.f32 0.0, %v6138
    %v6140 = vpop.f32.mrf.mxu0
    %v6141 = vadd.f32 0.0, %v6140
    %6142 = vmatmul.bf16.gmra.mxu0 %v5061
    %v6143 = vpop.f32.mrf.mxu0
    %v6144 = vadd.f32 0.0, %v6143
    %v6145 = vpop.f32.mrf.mxu0
    %v6146 = vadd.f32 0.0, %v6145
    %6147 = vmatmul.bf16.gmra.mxu0 %v5064
    %v6148 = vpop.f32.mrf.mxu0
    %v6149 = vadd.f32 0.0, %v6148
    %v6150 = vpop.f32.mrf.mxu0
    %v6151 = vadd.f32 0.0, %v6150
    %6152 = vmatmul.bf16.gmra.mxu0 %v5067
    %v6153 = vpop.f32.mrf.mxu0
    %v6154 = vadd.f32 0.0, %v6153
    %v6155 = vpop.f32.mrf.mxu0
    %v6156 = vadd.f32 0.0, %v6155
    %6157 = vmatmul.bf16.gmra.mxu0 %v3982
    %v6158 = vpop.f32.mrf.mxu0
    %v6159 = vpop.f32.mrf.mxu0
    %6160 = vmatmul.bf16.gmra.mxu0 %v5070
    %v6161 = vpop.f32.mrf.mxu0
    %v6162 = vadd.f32 0.0, %v6161
    %v6163 = vpop.f32.mrf.mxu0
    %v6164 = vadd.f32 0.0, %v6163
    %6165 = vmatmul.bf16.gmra.mxu0 %v5073
    %v6166 = vpop.f32.mrf.mxu0
    %v6167 = vadd.f32 0.0, %v6166
    %v6168 = vpop.f32.mrf.mxu0
    %v6169 = vadd.f32 0.0, %v6168
    %6170 = vmatmul.bf16.gmra.mxu0 %v5076
    %v6171 = vpop.f32.mrf.mxu0
    %v6172 = vadd.f32 0.0, %v6171
    %v6173 = vpop.f32.mrf.mxu0
    %v6174 = vadd.f32 0.0, %v6173
    %6175 = vmatmul.bf16.gmra.mxu0 %v5079
    %v6176 = vpop.f32.mrf.mxu0
    %v6177 = vadd.f32 0.0, %v6176
    %v6178 = vpop.f32.mrf.mxu0
    %v6179 = vadd.f32 0.0, %v6178
    %6180 = vmatmul.bf16.gmra.mxu0 %v5082
    %v6181 = vpop.f32.mrf.mxu0
    %v6182 = vadd.f32 0.0, %v6181
    %v6183 = vpop.f32.mrf.mxu0
    %v6184 = vadd.f32 0.0, %v6183
    %6185 = vmatmul.bf16.gmra.mxu0 %v3982
    %v6186 = vpop.f32.mrf.mxu0
    %v6187 = vpop.f32.mrf.mxu0
    %6188 = vmatmul.bf16.gmra.mxu0 %v5085
    %v6189 = vpop.f32.mrf.mxu0
    %v6190 = vpop.f32.mrf.mxu0
    %6191 = vmatmul.bf16.gmra.mxu0 %v5088
    %v6192 = vpop.f32.mrf.mxu0
    %v6193 = vpop.f32.mrf.mxu0
    %6194 = vmatmul.bf16.gmra.mxu0 %v5091
    %v6195 = vpop.f32.mrf.mxu0
    %v6196 = vpop.f32.mrf.mxu0
    %6197 = vmatmul.bf16.gmra.mxu0 %v5094
    %v6198 = vpop.f32.mrf.mxu0
    %v6199 = vpop.f32.mrf.mxu0
    %6200 = vmatmul.bf16.gmra.mxu0 %v5097
    %v6201 = vpop.f32.mrf.mxu0
    %v6202 = vpop.f32.mrf.mxu0
    %6203 = vmatmul.bf16.gmra.mxu0 %v3982
    %v6204 = vpop.f32.mrf.mxu0
    %v6205 = vpop.f32.mrf.mxu0
    %6206 = vdwg.mxu0
    %v6207 = vadd.f32 %v5485, %v5861
    %v6208 = vadd.f32 %v5674, %v6050
    %v6209 = vadd.f32 %v5487, %v5863
    %v6210 = vadd.f32 %v5676, %v6052
    %v6211 = vadd.f32 %v5490, %v5866
    %v6212 = vadd.f32 %v5679, %v6055
    %v6213 = vadd.f32 %v5492, %v5868
    %v6214 = vadd.f32 %v5681, %v6057
    %v6215 = vadd.f32 %v5495, %v5871
    %v6216 = vadd.f32 %v5684, %v6060
    %v6217 = vadd.f32 %v5497, %v5873
    %v6218 = vadd.f32 %v5686, %v6062
    %v6219 = vadd.f32 %v5500, %v5876
    %v6220 = vadd.f32 %v5689, %v6065
    %v6221 = vadd.f32 %v5502, %v5878
    %v6222 = vadd.f32 %v5691, %v6067
    %v6223 = vadd.f32 %v5505, %v5881
    %v6224 = vadd.f32 %v5694, %v6070
    %v6225 = vadd.f32 %v5507, %v5883
    %v6226 = vadd.f32 %v5696, %v6072
    %v6227 = vadd.f32 %v5510, %v5886
    %v6228 = vadd.f32 %v5512, %v5888
    %v6229 = vadd.f32 %v5515, %v5891
    %v6230 = vadd.f32 %v5702, %v6078
    %v6231 = vadd.f32 %v5517, %v5893
    %v6232 = vadd.f32 %v5704, %v6080
    %v6233 = vadd.f32 %v5520, %v5896
    %v6234 = vadd.f32 %v5707, %v6083
    %v6235 = vadd.f32 %v5522, %v5898
    %v6236 = vadd.f32 %v5709, %v6085
    %v6237 = vadd.f32 %v5525, %v5901
    %v6238 = vadd.f32 %v5712, %v6088
    %v6239 = vadd.f32 %v5527, %v5903
    %v6240 = vadd.f32 %v5714, %v6090
    %v6241 = vadd.f32 %v5530, %v5906
    %v6242 = vadd.f32 %v5717, %v6093
    %v6243 = vadd.f32 %v5532, %v5908
    %v6244 = vadd.f32 %v5719, %v6095
    %v6245 = vadd.f32 %v5535, %v5911
    %v6246 = vadd.f32 %v5722, %v6098
    %v6247 = vadd.f32 %v5537, %v5913
    %v6248 = vadd.f32 %v5724, %v6100
    %v6249 = vadd.f32 %v5540, %v5916
    %v6250 = vadd.f32 %v5542, %v5918
    %v6251 = vadd.f32 %v5545, %v5921
    %v6252 = vadd.f32 %v5730, %v6106
    %v6253 = vadd.f32 %v5547, %v5923
    %v6254 = vadd.f32 %v5732, %v6108
    %v6255 = vadd.f32 %v5550, %v5926
    %v6256 = vadd.f32 %v5735, %v6111
    %v6257 = vadd.f32 %v5552, %v5928
    %v6258 = vadd.f32 %v5737, %v6113
    %v6259 = vadd.f32 %v5555, %v5931
    %v6260 = vadd.f32 %v5740, %v6116
    %v6261 = vadd.f32 %v5557, %v5933
    %v6262 = vadd.f32 %v5742, %v6118
    %v6263 = vadd.f32 %v5560, %v5936
    %v6264 = vadd.f32 %v5745, %v6121
    %v6265 = vadd.f32 %v5562, %v5938
    %v6266 = vadd.f32 %v5747, %v6123
    %v6267 = vadd.f32 %v5565, %v5941
    %v6268 = vadd.f32 %v5750, %v6126
    %v6269 = vadd.f32 %v5567, %v5943
    %v6270 = vadd.f32 %v5752, %v6128
    %v6271 = vadd.f32 %v5570, %v5946
    %v6272 = vadd.f32 %v5572, %v5948
    %v6273 = vadd.f32 %v5575, %v5951
    %v6274 = vadd.f32 %v5758, %v6134
    %v6275 = vadd.f32 %v5577, %v5953
    %v6276 = vadd.f32 %v5760, %v6136
    %v6277 = vadd.f32 %v5580, %v5956
    %v6278 = vadd.f32 %v5763, %v6139
    %v6279 = vadd.f32 %v5582, %v5958
    %v6280 = vadd.f32 %v5765, %v6141
    %v6281 = vadd.f32 %v5585, %v5961
    %v6282 = vadd.f32 %v5768, %v6144
    %v6283 = vadd.f32 %v5587, %v5963
    %v6284 = vadd.f32 %v5770, %v6146
    %v6285 = vadd.f32 %v5590, %v5966
    %v6286 = vadd.f32 %v5773, %v6149
    %v6287 = vadd.f32 %v5592, %v5968
    %v6288 = vadd.f32 %v5775, %v6151
    %v6289 = vadd.f32 %v5595, %v5971
    %v6290 = vadd.f32 %v5778, %v6154
    %v6291 = vadd.f32 %v5597, %v5973
    %v6292 = vadd.f32 %v5780, %v6156
    %v6293 = vadd.f32 %v5600, %v5976
    %v6294 = vadd.f32 %v5602, %v5978
    %v6295 = vadd.f32 %v5605, %v5981
    %v6296 = vadd.f32 %v5786, %v6162
    %v6297 = vadd.f32 %v5607, %v5983
    %v6298 = vadd.f32 %v5788, %v6164
    %v6299 = vadd.f32 %v5610, %v5986
    %v6300 = vadd.f32 %v5791, %v6167
    %v6301 = vadd.f32 %v5612, %v5988
    %v6302 = vadd.f32 %v5793, %v6169
    %v6303 = vadd.f32 %v5615, %v5991
    %v6304 = vadd.f32 %v5796, %v6172
    %v6305 = vadd.f32 %v5617, %v5993
    %v6306 = vadd.f32 %v5798, %v6174
    %v6307 = vadd.f32 %v5620, %v5996
    %v6308 = vadd.f32 %v5801, %v6177
    %v6309 = vadd.f32 %v5622, %v5998
    %v6310 = vadd.f32 %v5803, %v6179
    %v6311 = vadd.f32 %v5625, %v6001
    %v6312 = vadd.f32 %v5806, %v6182
    %v6313 = vadd.f32 %v5627, %v6003
    %v6314 = vadd.f32 %v5808, %v6184
    %v6315 = vadd.f32 %v5630, %v6006
    %v6316 = vadd.f32 %v5632, %v6008
    %v6317 = vadd.f32 %v5635, %v6011
    %v6318 = vadd.f32 %v5637, %v6013
    %v6319 = vadd.f32 %v5640, %v6016
    %v6320 = vadd.f32 %v5642, %v6018
    %v6321 = vadd.f32 %v5645, %v6021
    %v6322 = vadd.f32 %v5647, %v6023
    %v6323 = vadd.f32 %v5650, %v6026
    %v6324 = vadd.f32 %v5652, %v6028
    %v6325 = vadd.f32 %v5655, %v6031
    %v6326 = vadd.f32 %v5657, %v6033
    %v6327 = vadd.f32 %v5660, %v6036
    %v6328 = vadd.f32 %v5662, %v6038
    %v6333 = vunpack.c.l.b16 %v4825
    %v6334 = vunpack.c.h.b16 %v4825
    %v6335 = vunpack.c.l.b16 %v4826
    %v6336 = vunpack.c.h.b16 %v4826
    %v6337 = vunpack.c.l.b16 %v4827
    %v6338 = vunpack.c.h.b16 %v4827
    %v6339 = vunpack.c.l.b16 %v4828
    %v6340 = vunpack.c.h.b16 %v4828
    %v6341 = vpack.c.b16 %v6335, %v6333
    %v6342 = vpack.c.b16 %v6336, %v6334
    %v6343 = vpack.c.b16 %v6339, %v6337
    %v6344 = vpack.c.b16 %v6340, %v6338
    %6349 = vmatpush.bf16.msra.mxu0 0
    %6350 = vmatpush.bf16.msra.mxu0 0
    %6351 = vmatpush.bf16.msra.mxu0 0
    %6352 = vmatpush.bf16.msra.mxu0 0
    %6353 = vmatpush.bf16.msra.mxu0 0
    %6354 = vmatpush.bf16.msra.mxu0 0
    %6355 = vmatpush.bf16.msra.mxu0 %v6343
    %6356 = vmatpush.bf16.msra.mxu0 %v6341
    %6357 = vmatmul.bf16.gmra.mxu0 %v3982
    %v6358 = vpop.f32.mrf.mxu0
    %v6359 = vadd.f32 0.0, %v6358
    %v6360 = vpop.f32.mrf.mxu0
    %v6361 = vadd.f32 0.0, %v6360
    %6362 = vmatmul.bf16.gmra.mxu0 %v3982
    %v6363 = vpop.f32.mrf.mxu0
    %v6364 = vadd.f32 0.0, %v6363
    %v6365 = vpop.f32.mrf.mxu0
    %v6366 = vadd.f32 0.0, %v6365
    %6367 = vmatmul.bf16.gmra.mxu0 %v3982
    %v6368 = vpop.f32.mrf.mxu0
    %v6369 = vadd.f32 0.0, %v6368
    %v6370 = vpop.f32.mrf.mxu0
    %v6371 = vadd.f32 0.0, %v6370
    %6372 = vmatmul.bf16.gmra.mxu0 %v3982
    %v6373 = vpop.f32.mrf.mxu0
    %v6374 = vadd.f32 0.0, %v6373
    %v6375 = vpop.f32.mrf.mxu0
    %v6376 = vadd.f32 0.0, %v6375
    %6377 = vmatmul.bf16.gmra.mxu0 %v3982
    %v6378 = vpop.f32.mrf.mxu0
    %v6379 = vadd.f32 0.0, %v6378
    %v6380 = vpop.f32.mrf.mxu0
    %v6381 = vadd.f32 0.0, %v6380
    %6382 = vmatmul.bf16.gmra.mxu0 %v3982
    %v6383 = vpop.f32.mrf.mxu0
    %v6384 = vadd.f32 0.0, %v6383
    %v6385 = vpop.f32.mrf.mxu0
    %v6386 = vadd.f32 0.0, %v6385
    %6387 = vmatmul.bf16.gmra.mxu0 %v3982
    %v6388 = vpop.f32.mrf.mxu0
    %v6389 = vadd.f32 0.0, %v6388
    %v6390 = vpop.f32.mrf.mxu0
    %v6391 = vadd.f32 0.0, %v6390
    %6392 = vmatmul.bf16.gmra.mxu0 %v5025
    %v6393 = vpop.f32.mrf.mxu0
    %v6394 = vadd.f32 0.0, %v6393
    %v6395 = vpop.f32.mrf.mxu0
    %v6396 = vadd.f32 0.0, %v6395
    %6397 = vmatmul.bf16.gmra.mxu0 %v5028
    %v6398 = vpop.f32.mrf.mxu0
    %v6399 = vadd.f32 0.0, %v6398
    %v6400 = vpop.f32.mrf.mxu0
    %v6401 = vadd.f32 0.0, %v6400
    %6402 = vmatmul.bf16.gmra.mxu0 %v5031
    %v6403 = vpop.f32.mrf.mxu0
    %v6404 = vadd.f32 0.0, %v6403
    %v6405 = vpop.f32.mrf.mxu0
    %v6406 = vadd.f32 0.0, %v6405
    %6407 = vmatmul.bf16.gmra.mxu0 %v5034
    %v6408 = vpop.f32.mrf.mxu0
    %v6409 = vadd.f32 0.0, %v6408
    %v6410 = vpop.f32.mrf.mxu0
    %v6411 = vadd.f32 0.0, %v6410
    %6412 = vmatmul.bf16.gmra.mxu0 %v5037
    %v6413 = vpop.f32.mrf.mxu0
    %v6414 = vadd.f32 0.0, %v6413
    %v6415 = vpop.f32.mrf.mxu0
    %v6416 = vadd.f32 0.0, %v6415
    %6417 = vmatmul.bf16.gmra.mxu0 %v3982
    %v6418 = vpop.f32.mrf.mxu0
    %v6419 = vadd.f32 0.0, %v6418
    %v6420 = vpop.f32.mrf.mxu0
    %v6421 = vadd.f32 0.0, %v6420
    %6422 = vmatmul.bf16.gmra.mxu0 %v5040
    %v6423 = vpop.f32.mrf.mxu0
    %v6424 = vadd.f32 0.0, %v6423
    %v6425 = vpop.f32.mrf.mxu0
    %v6426 = vadd.f32 0.0, %v6425
    %6427 = vmatmul.bf16.gmra.mxu0 %v5043
    %v6428 = vpop.f32.mrf.mxu0
    %v6429 = vadd.f32 0.0, %v6428
    %v6430 = vpop.f32.mrf.mxu0
    %v6431 = vadd.f32 0.0, %v6430
    %6432 = vmatmul.bf16.gmra.mxu0 %v5046
    %v6433 = vpop.f32.mrf.mxu0
    %v6434 = vadd.f32 0.0, %v6433
    %v6435 = vpop.f32.mrf.mxu0
    %v6436 = vadd.f32 0.0, %v6435
    %6437 = vmatmul.bf16.gmra.mxu0 %v5049
    %v6438 = vpop.f32.mrf.mxu0
    %v6439 = vadd.f32 0.0, %v6438
    %v6440 = vpop.f32.mrf.mxu0
    %v6441 = vadd.f32 0.0, %v6440
    %6442 = vmatmul.bf16.gmra.mxu0 %v5052
    %v6443 = vpop.f32.mrf.mxu0
    %v6444 = vadd.f32 0.0, %v6443
    %v6445 = vpop.f32.mrf.mxu0
    %v6446 = vadd.f32 0.0, %v6445
    %6447 = vmatmul.bf16.gmra.mxu0 %v3982
    %v6448 = vpop.f32.mrf.mxu0
    %v6449 = vadd.f32 0.0, %v6448
    %v6450 = vpop.f32.mrf.mxu0
    %v6451 = vadd.f32 0.0, %v6450
    %6452 = vmatmul.bf16.gmra.mxu0 %v5055
    %v6453 = vpop.f32.mrf.mxu0
    %v6454 = vadd.f32 0.0, %v6453
    %v6455 = vpop.f32.mrf.mxu0
    %v6456 = vadd.f32 0.0, %v6455
    %6457 = vmatmul.bf16.gmra.mxu0 %v5058
    %v6458 = vpop.f32.mrf.mxu0
    %v6459 = vadd.f32 0.0, %v6458
    %v6460 = vpop.f32.mrf.mxu0
    %v6461 = vadd.f32 0.0, %v6460
    %6462 = vmatmul.bf16.gmra.mxu0 %v5061
    %v6463 = vpop.f32.mrf.mxu0
    %v6464 = vadd.f32 0.0, %v6463
    %v6465 = vpop.f32.mrf.mxu0
    %v6466 = vadd.f32 0.0, %v6465
    %6467 = vmatmul.bf16.gmra.mxu0 %v5064
    %v6468 = vpop.f32.mrf.mxu0
    %v6469 = vadd.f32 0.0, %v6468
    %v6470 = vpop.f32.mrf.mxu0
    %v6471 = vadd.f32 0.0, %v6470
    %6472 = vmatmul.bf16.gmra.mxu0 %v5067
    %v6473 = vpop.f32.mrf.mxu0
    %v6474 = vadd.f32 0.0, %v6473
    %v6475 = vpop.f32.mrf.mxu0
    %v6476 = vadd.f32 0.0, %v6475
    %6477 = vmatmul.bf16.gmra.mxu0 %v3982
    %v6478 = vpop.f32.mrf.mxu0
    %v6479 = vadd.f32 0.0, %v6478
    %v6480 = vpop.f32.mrf.mxu0
    %v6481 = vadd.f32 0.0, %v6480
    %6482 = vmatmul.bf16.gmra.mxu0 %v5070
    %v6483 = vpop.f32.mrf.mxu0
    %v6484 = vadd.f32 0.0, %v6483
    %v6485 = vpop.f32.mrf.mxu0
    %v6486 = vadd.f32 0.0, %v6485
    %6487 = vmatmul.bf16.gmra.mxu0 %v5073
    %v6488 = vpop.f32.mrf.mxu0
    %v6489 = vadd.f32 0.0, %v6488
    %v6490 = vpop.f32.mrf.mxu0
    %v6491 = vadd.f32 0.0, %v6490
    %6492 = vmatmul.bf16.gmra.mxu0 %v5076
    %v6493 = vpop.f32.mrf.mxu0
    %v6494 = vadd.f32 0.0, %v6493
    %v6495 = vpop.f32.mrf.mxu0
    %v6496 = vadd.f32 0.0, %v6495
    %6497 = vmatmul.bf16.gmra.mxu0 %v5079
    %v6498 = vpop.f32.mrf.mxu0
    %v6499 = vadd.f32 0.0, %v6498
    %v6500 = vpop.f32.mrf.mxu0
    %v6501 = vadd.f32 0.0, %v6500
    %6502 = vmatmul.bf16.gmra.mxu0 %v5082
    %v6503 = vpop.f32.mrf.mxu0
    %v6504 = vadd.f32 0.0, %v6503
    %v6505 = vpop.f32.mrf.mxu0
    %v6506 = vadd.f32 0.0, %v6505
    %6507 = vmatmul.bf16.gmra.mxu0 %v3982
    %v6508 = vpop.f32.mrf.mxu0
    %v6509 = vadd.f32 0.0, %v6508
    %v6510 = vpop.f32.mrf.mxu0
    %v6511 = vadd.f32 0.0, %v6510
    %6512 = vmatmul.bf16.gmra.mxu0 %v5085
    %v6513 = vpop.f32.mrf.mxu0
    %v6514 = vadd.f32 0.0, %v6513
    %v6515 = vpop.f32.mrf.mxu0
    %v6516 = vadd.f32 0.0, %v6515
    %6517 = vmatmul.bf16.gmra.mxu0 %v5088
    %v6518 = vpop.f32.mrf.mxu0
    %v6519 = vadd.f32 0.0, %v6518
    %v6520 = vpop.f32.mrf.mxu0
    %v6521 = vadd.f32 0.0, %v6520
    %6522 = vmatmul.bf16.gmra.mxu0 %v5091
    %v6523 = vpop.f32.mrf.mxu0
    %v6524 = vadd.f32 0.0, %v6523
    %v6525 = vpop.f32.mrf.mxu0
    %v6526 = vadd.f32 0.0, %v6525
    %6527 = vmatmul.bf16.gmra.mxu0 %v5094
    %v6528 = vpop.f32.mrf.mxu0
    %v6529 = vadd.f32 0.0, %v6528
    %v6530 = vpop.f32.mrf.mxu0
    %v6531 = vadd.f32 0.0, %v6530
    %6532 = vmatmul.bf16.gmra.mxu0 %v5097
    %v6533 = vpop.f32.mrf.mxu0
    %v6534 = vadd.f32 0.0, %v6533
    %v6535 = vpop.f32.mrf.mxu0
    %v6536 = vadd.f32 0.0, %v6535
    %6537 = vdwg.mxu0
    %6538 = vmatpush.bf16.msra.mxu0 0
    %6539 = vmatpush.bf16.msra.mxu0 0
    %6540 = vmatpush.bf16.msra.mxu0 0
    %6541 = vmatpush.bf16.msra.mxu0 0
    %6542 = vmatpush.bf16.msra.mxu0 0
    %6543 = vmatpush.bf16.msra.mxu0 0
    %6544 = vmatpush.bf16.msra.mxu0 %v6344
    %6545 = vmatpush.bf16.msra.mxu0 %v6342
    %6546 = vmatmul.bf16.gmra.mxu0 %v3982
    %v6547 = vpop.f32.mrf.mxu0
    %v6548 = vadd.f32 0.0, %v6547
    %v6549 = vpop.f32.mrf.mxu0
    %v6550 = vadd.f32 0.0, %v6549
    %6551 = vmatmul.bf16.gmra.mxu0 %v3982
    %v6552 = vpop.f32.mrf.mxu0
    %v6553 = vadd.f32 0.0, %v6552
    %v6554 = vpop.f32.mrf.mxu0
    %v6555 = vadd.f32 0.0, %v6554
    %6556 = vmatmul.bf16.gmra.mxu0 %v3982
    %v6557 = vpop.f32.mrf.mxu0
    %v6558 = vadd.f32 0.0, %v6557
    %v6559 = vpop.f32.mrf.mxu0
    %v6560 = vadd.f32 0.0, %v6559
    %6561 = vmatmul.bf16.gmra.mxu0 %v3982
    %v6562 = vpop.f32.mrf.mxu0
    %v6563 = vadd.f32 0.0, %v6562
    %v6564 = vpop.f32.mrf.mxu0
    %v6565 = vadd.f32 0.0, %v6564
    %6566 = vmatmul.bf16.gmra.mxu0 %v3982
    %v6567 = vpop.f32.mrf.mxu0
    %v6568 = vadd.f32 0.0, %v6567
    %v6569 = vpop.f32.mrf.mxu0
    %v6570 = vadd.f32 0.0, %v6569
    %6571 = vmatmul.bf16.gmra.mxu0 %v3982
    %v6572 = vpop.f32.mrf.mxu0
    %v6573 = vpop.f32.mrf.mxu0
    %6574 = vmatmul.bf16.gmra.mxu0 %v3982
    %v6575 = vpop.f32.mrf.mxu0
    %v6576 = vadd.f32 0.0, %v6575
    %v6577 = vpop.f32.mrf.mxu0
    %v6578 = vadd.f32 0.0, %v6577
    %6579 = vmatmul.bf16.gmra.mxu0 %v5025
    %v6580 = vpop.f32.mrf.mxu0
    %v6581 = vadd.f32 0.0, %v6580
    %v6582 = vpop.f32.mrf.mxu0
    %v6583 = vadd.f32 0.0, %v6582
    %6584 = vmatmul.bf16.gmra.mxu0 %v5028
    %v6585 = vpop.f32.mrf.mxu0
    %v6586 = vadd.f32 0.0, %v6585
    %v6587 = vpop.f32.mrf.mxu0
    %v6588 = vadd.f32 0.0, %v6587
    %6589 = vmatmul.bf16.gmra.mxu0 %v5031
    %v6590 = vpop.f32.mrf.mxu0
    %v6591 = vadd.f32 0.0, %v6590
    %v6592 = vpop.f32.mrf.mxu0
    %v6593 = vadd.f32 0.0, %v6592
    %6594 = vmatmul.bf16.gmra.mxu0 %v5034
    %v6595 = vpop.f32.mrf.mxu0
    %v6596 = vadd.f32 0.0, %v6595
    %v6597 = vpop.f32.mrf.mxu0
    %v6598 = vadd.f32 0.0, %v6597
    %6599 = vmatmul.bf16.gmra.mxu0 %v5037
    %v6600 = vpop.f32.mrf.mxu0
    %v6601 = vpop.f32.mrf.mxu0
    %6602 = vmatmul.bf16.gmra.mxu0 %v3982
    %v6603 = vpop.f32.mrf.mxu0
    %v6604 = vadd.f32 0.0, %v6603
    %v6605 = vpop.f32.mrf.mxu0
    %v6606 = vadd.f32 0.0, %v6605
    %6607 = vmatmul.bf16.gmra.mxu0 %v5040
    %v6608 = vpop.f32.mrf.mxu0
    %v6609 = vadd.f32 0.0, %v6608
    %v6610 = vpop.f32.mrf.mxu0
    %v6611 = vadd.f32 0.0, %v6610
    %6612 = vmatmul.bf16.gmra.mxu0 %v5043
    %v6613 = vpop.f32.mrf.mxu0
    %v6614 = vadd.f32 0.0, %v6613
    %v6615 = vpop.f32.mrf.mxu0
    %v6616 = vadd.f32 0.0, %v6615
    %6617 = vmatmul.bf16.gmra.mxu0 %v5046
    %v6618 = vpop.f32.mrf.mxu0
    %v6619 = vadd.f32 0.0, %v6618
    %v6620 = vpop.f32.mrf.mxu0
    %v6621 = vadd.f32 0.0, %v6620
    %6622 = vmatmul.bf16.gmra.mxu0 %v5049
    %v6623 = vpop.f32.mrf.mxu0
    %v6624 = vadd.f32 0.0, %v6623
    %v6625 = vpop.f32.mrf.mxu0
    %v6626 = vadd.f32 0.0, %v6625
    %6627 = vmatmul.bf16.gmra.mxu0 %v5052
    %v6628 = vpop.f32.mrf.mxu0
    %v6629 = vpop.f32.mrf.mxu0
    %6630 = vmatmul.bf16.gmra.mxu0 %v3982
    %v6631 = vpop.f32.mrf.mxu0
    %v6632 = vadd.f32 0.0, %v6631
    %v6633 = vpop.f32.mrf.mxu0
    %v6634 = vadd.f32 0.0, %v6633
    %6635 = vmatmul.bf16.gmra.mxu0 %v5055
    %v6636 = vpop.f32.mrf.mxu0
    %v6637 = vadd.f32 0.0, %v6636
    %v6638 = vpop.f32.mrf.mxu0
    %v6639 = vadd.f32 0.0, %v6638
    %6640 = vmatmul.bf16.gmra.mxu0 %v5058
    %v6641 = vpop.f32.mrf.mxu0
    %v6642 = vadd.f32 0.0, %v6641
    %v6643 = vpop.f32.mrf.mxu0
    %v6644 = vadd.f32 0.0, %v6643
    %6645 = vmatmul.bf16.gmra.mxu0 %v5061
    %v6646 = vpop.f32.mrf.mxu0
    %v6647 = vadd.f32 0.0, %v6646
    %v6648 = vpop.f32.mrf.mxu0
    %v6649 = vadd.f32 0.0, %v6648
    %6650 = vmatmul.bf16.gmra.mxu0 %v5064
    %v6651 = vpop.f32.mrf.mxu0
    %v6652 = vadd.f32 0.0, %v6651
    %v6653 = vpop.f32.mrf.mxu0
    %v6654 = vadd.f32 0.0, %v6653
    %6655 = vmatmul.bf16.gmra.mxu0 %v5067
    %v6656 = vpop.f32.mrf.mxu0
    %v6657 = vpop.f32.mrf.mxu0
    %6658 = vmatmul.bf16.gmra.mxu0 %v3982
    %v6659 = vpop.f32.mrf.mxu0
    %v6660 = vadd.f32 0.0, %v6659
    %v6661 = vpop.f32.mrf.mxu0
    %v6662 = vadd.f32 0.0, %v6661
    %6663 = vmatmul.bf16.gmra.mxu0 %v5070
    %v6664 = vpop.f32.mrf.mxu0
    %v6665 = vadd.f32 0.0, %v6664
    %v6666 = vpop.f32.mrf.mxu0
    %v6667 = vadd.f32 0.0, %v6666
    %6668 = vmatmul.bf16.gmra.mxu0 %v5073
    %v6669 = vpop.f32.mrf.mxu0
    %v6670 = vadd.f32 0.0, %v6669
    %v6671 = vpop.f32.mrf.mxu0
    %v6672 = vadd.f32 0.0, %v6671
    %6673 = vmatmul.bf16.gmra.mxu0 %v5076
    %v6674 = vpop.f32.mrf.mxu0
    %v6675 = vadd.f32 0.0, %v6674
    %v6676 = vpop.f32.mrf.mxu0
    %v6677 = vadd.f32 0.0, %v6676
    %6678 = vmatmul.bf16.gmra.mxu0 %v5079
    %v6679 = vpop.f32.mrf.mxu0
    %v6680 = vadd.f32 0.0, %v6679
    %v6681 = vpop.f32.mrf.mxu0
    %v6682 = vadd.f32 0.0, %v6681
    %6683 = vmatmul.bf16.gmra.mxu0 %v5082
    %v6684 = vpop.f32.mrf.mxu0
    %v6685 = vpop.f32.mrf.mxu0
    %6686 = vmatmul.bf16.gmra.mxu0 %v3982
    %v6687 = vpop.f32.mrf.mxu0
    %v6688 = vpop.f32.mrf.mxu0
    %6689 = vmatmul.bf16.gmra.mxu0 %v5085
    %v6690 = vpop.f32.mrf.mxu0
    %v6691 = vpop.f32.mrf.mxu0
    %6692 = vmatmul.bf16.gmra.mxu0 %v5088
    %v6693 = vpop.f32.mrf.mxu0
    %v6694 = vpop.f32.mrf.mxu0
    %6695 = vmatmul.bf16.gmra.mxu0 %v5091
    %v6696 = vpop.f32.mrf.mxu0
    %v6697 = vpop.f32.mrf.mxu0
    %6698 = vmatmul.bf16.gmra.mxu0 %v5094
    %v6699 = vpop.f32.mrf.mxu0
    %v6700 = vpop.f32.mrf.mxu0
    %6701 = vmatmul.bf16.gmra.mxu0 %v5097
    %v6702 = vpop.f32.mrf.mxu0
    %v6703 = vpop.f32.mrf.mxu0
    %6704 = vdwg.mxu0
    %v6705 = vadd.f32 %v6207, %v6359
    %v6706 = vadd.f32 %v6208, %v6548
    %v6707 = vadd.f32 %v6209, %v6361
    %v6708 = vadd.f32 %v6210, %v6550
    %v6709 = vadd.f32 %v6211, %v6364
    %v6710 = vadd.f32 %v6212, %v6553
    %v6711 = vadd.f32 %v6213, %v6366
    %v6712 = vadd.f32 %v6214, %v6555
    %v6713 = vadd.f32 %v6215, %v6369
    %v6714 = vadd.f32 %v6216, %v6558
    %v6715 = vadd.f32 %v6217, %v6371
    %v6716 = vadd.f32 %v6218, %v6560
    %v6717 = vadd.f32 %v6219, %v6374
    %v6718 = vadd.f32 %v6220, %v6563
    %v6719 = vadd.f32 %v6221, %v6376
    %v6720 = vadd.f32 %v6222, %v6565
    %v6721 = vadd.f32 %v6223, %v6379
    %v6722 = vadd.f32 %v6224, %v6568
    %v6723 = vadd.f32 %v6225, %v6381
    %v6724 = vadd.f32 %v6226, %v6570
    %v6725 = vadd.f32 %v6227, %v6384
    %v6726 = vadd.f32 %v6228, %v6386
    %v6727 = vadd.f32 %v6229, %v6389
    %v6728 = vadd.f32 %v6230, %v6576
    %v6729 = vadd.f32 %v6231, %v6391
    %v6730 = vadd.f32 %v6232, %v6578
    %v6731 = vadd.f32 %v6233, %v6394
    %v6732 = vadd.f32 %v6234, %v6581
    %v6733 = vadd.f32 %v6235, %v6396
    %v6734 = vadd.f32 %v6236, %v6583
    %v6735 = vadd.f32 %v6237, %v6399
    %v6736 = vadd.f32 %v6238, %v6586
    %v6737 = vadd.f32 %v6239, %v6401
    %v6738 = vadd.f32 %v6240, %v6588
    %v6739 = vadd.f32 %v6241, %v6404
    %v6740 = vadd.f32 %v6242, %v6591
    %v6741 = vadd.f32 %v6243, %v6406
    %v6742 = vadd.f32 %v6244, %v6593
    %v6743 = vadd.f32 %v6245, %v6409
    %v6744 = vadd.f32 %v6246, %v6596
    %v6745 = vadd.f32 %v6247, %v6411
    %v6746 = vadd.f32 %v6248, %v6598
    %v6747 = vadd.f32 %v6249, %v6414
    %v6748 = vadd.f32 %v6250, %v6416
    %v6749 = vadd.f32 %v6251, %v6419
    %v6750 = vadd.f32 %v6252, %v6604
    %v6751 = vadd.f32 %v6253, %v6421
    %v6752 = vadd.f32 %v6254, %v6606
    %v6753 = vadd.f32 %v6255, %v6424
    %v6754 = vadd.f32 %v6256, %v6609
    %v6755 = vadd.f32 %v6257, %v6426
    %v6756 = vadd.f32 %v6258, %v6611
    %v6757 = vadd.f32 %v6259, %v6429
    %v6758 = vadd.f32 %v6260, %v6614
    %v6759 = vadd.f32 %v6261, %v6431
    %v6760 = vadd.f32 %v6262, %v6616
    %v6761 = vadd.f32 %v6263, %v6434
    %v6762 = vadd.f32 %v6264, %v6619
    %v6763 = vadd.f32 %v6265, %v6436
    %v6764 = vadd.f32 %v6266, %v6621
    %v6765 = vadd.f32 %v6267, %v6439
    %v6766 = vadd.f32 %v6268, %v6624
    %v6767 = vadd.f32 %v6269, %v6441
    %v6768 = vadd.f32 %v6270, %v6626
    %v6769 = vadd.f32 %v6271, %v6444
    %v6770 = vadd.f32 %v6272, %v6446
    %v6771 = vadd.f32 %v6273, %v6449
    %v6772 = vadd.f32 %v6274, %v6632
    %v6773 = vadd.f32 %v6275, %v6451
    %v6774 = vadd.f32 %v6276, %v6634
    %v6775 = vadd.f32 %v6277, %v6454
    %v6776 = vadd.f32 %v6278, %v6637
    %v6777 = vadd.f32 %v6279, %v6456
    %v6778 = vadd.f32 %v6280, %v6639
    %v6779 = vadd.f32 %v6281, %v6459
    %v6780 = vadd.f32 %v6282, %v6642
    %v6781 = vadd.f32 %v6283, %v6461
    %v6782 = vadd.f32 %v6284, %v6644
    %v6783 = vadd.f32 %v6285, %v6464
    %v6784 = vadd.f32 %v6286, %v6647
    %v6785 = vadd.f32 %v6287, %v6466
    %v6786 = vadd.f32 %v6288, %v6649
    %v6787 = vadd.f32 %v6289, %v6469
    %v6788 = vadd.f32 %v6290, %v6652
    %v6789 = vadd.f32 %v6291, %v6471
    %v6790 = vadd.f32 %v6292, %v6654
    %v6791 = vadd.f32 %v6293, %v6474
    %v6792 = vadd.f32 %v6294, %v6476
    %v6793 = vadd.f32 %v6295, %v6479
    %v6794 = vadd.f32 %v6296, %v6660
    %v6795 = vadd.f32 %v6297, %v6481
    %v6796 = vadd.f32 %v6298, %v6662
    %v6797 = vadd.f32 %v6299, %v6484
    %v6798 = vadd.f32 %v6300, %v6665
    %v6799 = vadd.f32 %v6301, %v6486
    %v6800 = vadd.f32 %v6302, %v6667
    %v6801 = vadd.f32 %v6303, %v6489
    %v6802 = vadd.f32 %v6304, %v6670
    %v6803 = vadd.f32 %v6305, %v6491
    %v6804 = vadd.f32 %v6306, %v6672
    %v6805 = vadd.f32 %v6307, %v6494
    %v6806 = vadd.f32 %v6308, %v6675
    %v6807 = vadd.f32 %v6309, %v6496
    %v6808 = vadd.f32 %v6310, %v6677
    %v6809 = vadd.f32 %v6311, %v6499
    %v6810 = vadd.f32 %v6312, %v6680
    %v6811 = vadd.f32 %v6313, %v6501
    %v6812 = vadd.f32 %v6314, %v6682
    %v6813 = vadd.f32 %v6315, %v6504
    %v6814 = vadd.f32 %v6316, %v6506
    %v6815 = vadd.f32 %v6317, %v6509
    %v6816 = vadd.f32 %v6318, %v6511
    %v6817 = vadd.f32 %v6319, %v6514
    %v6818 = vadd.f32 %v6320, %v6516
    %v6819 = vadd.f32 %v6321, %v6519
    %v6820 = vadd.f32 %v6322, %v6521
    %v6821 = vadd.f32 %v6323, %v6524
    %v6822 = vadd.f32 %v6324, %v6526
    %v6823 = vadd.f32 %v6325, %v6529
    %v6824 = vadd.f32 %v6326, %v6531
    %v6825 = vadd.f32 %v6327, %v6534
    %v6826 = vadd.f32 %v6328, %v6536
    %v6828 = vperm.slane %v3895, 1
    %v6829 = vperm.slane %v3895, 3
    %v6832 = vperm.slane %v6828, 1
    %v6833 = vperm.slane %v6829, 1
    %v6834 = vadd.f32 %v6705, %v6832
    %v6835 = vadd.f32 %v6706, %v6833
    %v6836 = vadd.f32 %v6707, %v6832
    %v6837 = vadd.f32 %v6708, %v6833
    %v6838 = vadd.f32 %v6709, %v6832
    %v6839 = vadd.f32 %v6710, %v6833
    %v6840 = vadd.f32 %v6711, %v6832
    %v6841 = vadd.f32 %v6712, %v6833
    %v6842 = vadd.f32 %v6713, %v6832
    %v6843 = vadd.f32 %v6714, %v6833
    %v6844 = vadd.f32 %v6715, %v6832
    %v6845 = vadd.f32 %v6716, %v6833
    %v6846 = vadd.f32 %v6717, %v6832
    %v6847 = vadd.f32 %v6718, %v6833
    %v6848 = vadd.f32 %v6719, %v6832
    %v6849 = vadd.f32 %v6720, %v6833
    %v6850 = vadd.f32 %v6721, %v6832
    %v6851 = vadd.f32 %v6722, %v6833
    %v6852 = vadd.f32 %v6723, %v6832
    %v6853 = vadd.f32 %v6724, %v6833
    %v6854 = vadd.f32 %v6725, %v6832
    %v6855 = vadd.f32 %v6726, %v6832
    %v6856 = vadd.f32 %v6727, %v6832
    %v6857 = vadd.f32 %v6728, %v6833
    %v6858 = vadd.f32 %v6729, %v6832
    %v6859 = vadd.f32 %v6730, %v6833
    %v6860 = vadd.f32 %v6731, %v6832
    %v6861 = vadd.f32 %v6732, %v6833
    %v6862 = vadd.f32 %v6733, %v6832
    %v6863 = vadd.f32 %v6734, %v6833
    %v6864 = vadd.f32 %v6735, %v6832
    %v6865 = vadd.f32 %v6736, %v6833
    %v6866 = vadd.f32 %v6737, %v6832
    %v6867 = vadd.f32 %v6738, %v6833
    %v6868 = vadd.f32 %v6739, %v6832
    %v6869 = vadd.f32 %v6740, %v6833
    %v6870 = vadd.f32 %v6741, %v6832
    %v6871 = vadd.f32 %v6742, %v6833
    %v6872 = vadd.f32 %v6743, %v6832
    %v6873 = vadd.f32 %v6744, %v6833
    %v6874 = vadd.f32 %v6745, %v6832
    %v6875 = vadd.f32 %v6746, %v6833
    %v6876 = vadd.f32 %v6747, %v6832
    %v6877 = vadd.f32 %v6748, %v6832
    %v6878 = vadd.f32 %v6749, %v6832
    %v6879 = vadd.f32 %v6750, %v6833
    %v6880 = vadd.f32 %v6751, %v6832
    %v6881 = vadd.f32 %v6752, %v6833
    %v6882 = vadd.f32 %v6753, %v6832
    %v6883 = vadd.f32 %v6754, %v6833
    %v6884 = vadd.f32 %v6755, %v6832
    %v6885 = vadd.f32 %v6756, %v6833
    %v6886 = vadd.f32 %v6757, %v6832
    %v6887 = vadd.f32 %v6758, %v6833
    %v6888 = vadd.f32 %v6759, %v6832
    %v6889 = vadd.f32 %v6760, %v6833
    %v6890 = vadd.f32 %v6761, %v6832
    %v6891 = vadd.f32 %v6762, %v6833
    %v6892 = vadd.f32 %v6763, %v6832
    %v6893 = vadd.f32 %v6764, %v6833
    %v6894 = vadd.f32 %v6765, %v6832
    %v6895 = vadd.f32 %v6766, %v6833
    %v6896 = vadd.f32 %v6767, %v6832
    %v6897 = vadd.f32 %v6768, %v6833
    %v6898 = vadd.f32 %v6769, %v6832
    %v6899 = vadd.f32 %v6770, %v6832
    %v6900 = vadd.f32 %v6771, %v6832
    %v6901 = vadd.f32 %v6772, %v6833
    %v6902 = vadd.f32 %v6773, %v6832
    %v6903 = vadd.f32 %v6774, %v6833
    %v6904 = vadd.f32 %v6775, %v6832
    %v6905 = vadd.f32 %v6776, %v6833
    %v6906 = vadd.f32 %v6777, %v6832
    %v6907 = vadd.f32 %v6778, %v6833
    %v6908 = vadd.f32 %v6779, %v6832
    %v6909 = vadd.f32 %v6780, %v6833
    %v6910 = vadd.f32 %v6781, %v6832
    %v6911 = vadd.f32 %v6782, %v6833
    %v6912 = vadd.f32 %v6783, %v6832
    %v6913 = vadd.f32 %v6784, %v6833
    %v6914 = vadd.f32 %v6785, %v6832
    %v6915 = vadd.f32 %v6786, %v6833
    %v6916 = vadd.f32 %v6787, %v6832
    %v6917 = vadd.f32 %v6788, %v6833
    %v6918 = vadd.f32 %v6789, %v6832
    %v6919 = vadd.f32 %v6790, %v6833
    %v6920 = vadd.f32 %v6791, %v6832
    %v6921 = vadd.f32 %v6792, %v6832
    %v6922 = vadd.f32 %v6793, %v6832
    %v6923 = vadd.f32 %v6794, %v6833
    %v6924 = vadd.f32 %v6795, %v6832
    %v6925 = vadd.f32 %v6796, %v6833
    %v6926 = vadd.f32 %v6797, %v6832
    %v6927 = vadd.f32 %v6798, %v6833
    %v6928 = vadd.f32 %v6799, %v6832
    %v6929 = vadd.f32 %v6800, %v6833
    %v6930 = vadd.f32 %v6801, %v6832
    %v6931 = vadd.f32 %v6802, %v6833
    %v6932 = vadd.f32 %v6803, %v6832
    %v6933 = vadd.f32 %v6804, %v6833
    %v6934 = vadd.f32 %v6805, %v6832
    %v6935 = vadd.f32 %v6806, %v6833
    %v6936 = vadd.f32 %v6807, %v6832
    %v6937 = vadd.f32 %v6808, %v6833
    %v6938 = vadd.f32 %v6809, %v6832
    %v6939 = vadd.f32 %v6810, %v6833
    %v6940 = vadd.f32 %v6811, %v6832
    %v6941 = vadd.f32 %v6812, %v6833
    %v6942 = vadd.f32 %v6813, %v6832
    %v6943 = vadd.f32 %v6814, %v6832
    %v6944 = vadd.f32 %v6815, %v6832
    %v6945 = vadd.f32 %v6816, %v6832
    %v6946 = vadd.f32 %v6817, %v6832
    %v6947 = vadd.f32 %v6818, %v6832
    %v6948 = vadd.f32 %v6819, %v6832
    %v6949 = vadd.f32 %v6820, %v6832
    %v6950 = vadd.f32 %v6821, %v6832
    %v6951 = vadd.f32 %v6822, %v6832
    %v6952 = vadd.f32 %v6823, %v6832
    %v6953 = vadd.f32 %v6824, %v6832
    %v6954 = vadd.f32 %v6825, %v6832
    %v6955 = vadd.f32 %v6826, %v6832
    %v6956 = vmul.f32 %v6834, 0.2
    %v6957 = vmul.f32 %v6835, 0.2
    %v6958 = vmul.f32 %v6836, 0.2
    %v6959 = vmul.f32 %v6837, 0.2
    %v6960 = vmul.f32 %v6838, 0.2
    %v6961 = vmul.f32 %v6839, 0.2
    %v6962 = vmul.f32 %v6840, 0.2
    %v6963 = vmul.f32 %v6841, 0.2
    %v6964 = vmul.f32 %v6842, 0.2
    %v6965 = vmul.f32 %v6843, 0.2
    %v6966 = vmul.f32 %v6844, 0.2
    %v6967 = vmul.f32 %v6845, 0.2
    %v6968 = vmul.f32 %v6846, 0.2
    %v6969 = vmul.f32 %v6847, 0.2
    %v6970 = vmul.f32 %v6848, 0.2
    %v6971 = vmul.f32 %v6849, 0.2
    %v6972 = vmul.f32 %v6850, 0.2
    %v6973 = vmul.f32 %v6851, 0.2
    %v6974 = vmul.f32 %v6852, 0.2
    %v6975 = vmul.f32 %v6853, 0.2
    %v6976 = vmul.f32 %v6854, 0.2
    %v6977 = vmul.f32 %v6855, 0.2
    %v6978 = vmul.f32 %v6856, 0.2
    %v6979 = vmul.f32 %v6857, 0.2
    %v6980 = vmul.f32 %v6858, 0.2
    %v6981 = vmul.f32 %v6859, 0.2
    %v6982 = vmul.f32 %v6860, 0.2
    %v6983 = vmul.f32 %v6861, 0.2
    %v6984 = vmul.f32 %v6862, 0.2
    %v6985 = vmul.f32 %v6863, 0.2
    %v6986 = vmul.f32 %v6864, 0.2
    %v6987 = vmul.f32 %v6865, 0.2
    %v6988 = vmul.f32 %v6866, 0.2
    %v6989 = vmul.f32 %v6867, 0.2
    %v6990 = vmul.f32 %v6868, 0.2
    %v6991 = vmul.f32 %v6869, 0.2
    %v6992 = vmul.f32 %v6870, 0.2
    %v6993 = vmul.f32 %v6871, 0.2
    %v6994 = vmul.f32 %v6872, 0.2
    %v6995 = vmul.f32 %v6873, 0.2
    %v6996 = vmul.f32 %v6874, 0.2
    %v6997 = vmul.f32 %v6875, 0.2
    %v6998 = vmul.f32 %v6876, 0.2
    %v6999 = vmul.f32 %v6877, 0.2
    %v7000 = vmul.f32 %v6878, 0.2
    %v7001 = vmul.f32 %v6879, 0.2
    %v7002 = vmul.f32 %v6880, 0.2
    %v7003 = vmul.f32 %v6881, 0.2
    %v7004 = vmul.f32 %v6882, 0.2
    %v7005 = vmul.f32 %v6883, 0.2
    %v7006 = vmul.f32 %v6884, 0.2
    %v7007 = vmul.f32 %v6885, 0.2
    %v7008 = vmul.f32 %v6886, 0.2
    %v7009 = vmul.f32 %v6887, 0.2
    %v7010 = vmul.f32 %v6888, 0.2
    %v7011 = vmul.f32 %v6889, 0.2
    %v7012 = vmul.f32 %v6890, 0.2
    %v7013 = vmul.f32 %v6891, 0.2
    %v7014 = vmul.f32 %v6892, 0.2
    %v7015 = vmul.f32 %v6893, 0.2
    %v7016 = vmul.f32 %v6894, 0.2
    %v7017 = vmul.f32 %v6895, 0.2
    %v7018 = vmul.f32 %v6896, 0.2
    %v7019 = vmul.f32 %v6897, 0.2
    %v7020 = vmul.f32 %v6898, 0.2
    %v7021 = vmul.f32 %v6899, 0.2
    %v7022 = vmul.f32 %v6900, 0.2
    %v7023 = vmul.f32 %v6901, 0.2
    %v7024 = vmul.f32 %v6902, 0.2
    %v7025 = vmul.f32 %v6903, 0.2
    %v7026 = vmul.f32 %v6904, 0.2
    %v7027 = vmul.f32 %v6905, 0.2
    %v7028 = vmul.f32 %v6906, 0.2
    %v7029 = vmul.f32 %v6907, 0.2
    %v7030 = vmul.f32 %v6908, 0.2
    %v7031 = vmul.f32 %v6909, 0.2
    %v7032 = vmul.f32 %v6910, 0.2
    %v7033 = vmul.f32 %v6911, 0.2
    %v7034 = vmul.f32 %v6912, 0.2
    %v7035 = vmul.f32 %v6913, 0.2
    %v7036 = vmul.f32 %v6914, 0.2
    %v7037 = vmul.f32 %v6915, 0.2
    %v7038 = vmul.f32 %v6916, 0.2
    %v7039 = vmul.f32 %v6917, 0.2
    %v7040 = vmul.f32 %v6918, 0.2
    %v7041 = vmul.f32 %v6919, 0.2
    %v7042 = vmul.f32 %v6920, 0.2
    %v7043 = vmul.f32 %v6921, 0.2
    %v7044 = vmul.f32 %v6922, 0.2
    %v7045 = vmul.f32 %v6923, 0.2
    %v7046 = vmul.f32 %v6924, 0.2
    %v7047 = vmul.f32 %v6925, 0.2
    %v7048 = vmul.f32 %v6926, 0.2
    %v7049 = vmul.f32 %v6927, 0.2
    %v7050 = vmul.f32 %v6928, 0.2
    %v7051 = vmul.f32 %v6929, 0.2
    %v7052 = vmul.f32 %v6930, 0.2
    %v7053 = vmul.f32 %v6931, 0.2
    %v7054 = vmul.f32 %v6932, 0.2
    %v7055 = vmul.f32 %v6933, 0.2
    %v7056 = vmul.f32 %v6934, 0.2
    %v7057 = vmul.f32 %v6935, 0.2
    %v7058 = vmul.f32 %v6936, 0.2
    %v7059 = vmul.f32 %v6937, 0.2
    %v7060 = vmul.f32 %v6938, 0.2
    %v7061 = vmul.f32 %v6939, 0.2
    %v7062 = vmul.f32 %v6940, 0.2
    %v7063 = vmul.f32 %v6941, 0.2
    %v7064 = vmul.f32 %v6942, 0.2
    %v7065 = vmul.f32 %v6943, 0.2
    %v7066 = vmul.f32 %v6944, 0.2
    %v7067 = vmul.f32 %v6945, 0.2
    %v7068 = vmul.f32 %v6946, 0.2
    %v7069 = vmul.f32 %v6947, 0.2
    %v7070 = vmul.f32 %v6948, 0.2
    %v7071 = vmul.f32 %v6949, 0.2
    %v7072 = vmul.f32 %v6950, 0.2
    %v7073 = vmul.f32 %v6951, 0.2
    %v7074 = vmul.f32 %v6952, 0.2
    %v7075 = vmul.f32 %v6953, 0.2
    %v7076 = vmul.f32 %v6954, 0.2
    %v7077 = vmul.f32 %v6955, 0.2
    %v7078 = vmax.f32 %v6834, %v6956
    %v7079 = vmax.f32 %v6835, %v6957
    %v7080 = vmax.f32 %v6836, %v6958
    %v7081 = vmax.f32 %v6837, %v6959
    %v7082 = vmax.f32 %v6838, %v6960
    %v7083 = vmax.f32 %v6839, %v6961
    %v7084 = vmax.f32 %v6840, %v6962
    %v7085 = vmax.f32 %v6841, %v6963
    %v7086 = vmax.f32 %v6842, %v6964
    %v7087 = vmax.f32 %v6843, %v6965
    %v7088 = vmax.f32 %v6844, %v6966
    %v7089 = vmax.f32 %v6845, %v6967
    %v7090 = vmax.f32 %v6846, %v6968
    %v7091 = vmax.f32 %v6847, %v6969
    %v7092 = vmax.f32 %v6848, %v6970
    %v7093 = vmax.f32 %v6849, %v6971
    %v7094 = vmax.f32 %v6850, %v6972
    %v7095 = vmax.f32 %v6851, %v6973
    %v7096 = vmax.f32 %v6852, %v6974
    %v7097 = vmax.f32 %v6853, %v6975
    %v7098 = vmax.f32 %v6854, %v6976
    %v7099 = vmax.f32 %v6855, %v6977
    %v7100 = vmax.f32 %v6856, %v6978
    %v7101 = vmax.f32 %v6857, %v6979
    %v7102 = vmax.f32 %v6858, %v6980
    %v7103 = vmax.f32 %v6859, %v6981
    %v7104 = vmax.f32 %v6860, %v6982
    %v7105 = vmax.f32 %v6861, %v6983
    %v7106 = vmax.f32 %v6862, %v6984
    %v7107 = vmax.f32 %v6863, %v6985
    %v7108 = vmax.f32 %v6864, %v6986
    %v7109 = vmax.f32 %v6865, %v6987
    %v7110 = vmax.f32 %v6866, %v6988
    %v7111 = vmax.f32 %v6867, %v6989
    %v7112 = vmax.f32 %v6868, %v6990
    %v7113 = vmax.f32 %v6869, %v6991
    %v7114 = vmax.f32 %v6870, %v6992
    %v7115 = vmax.f32 %v6871, %v6993
    %v7116 = vmax.f32 %v6872, %v6994
    %v7117 = vmax.f32 %v6873, %v6995
    %v7118 = vmax.f32 %v6874, %v6996
    %v7119 = vmax.f32 %v6875, %v6997
    %v7120 = vmax.f32 %v6876, %v6998
    %v7121 = vmax.f32 %v6877, %v6999
    %v7122 = vmax.f32 %v6878, %v7000
    %v7123 = vmax.f32 %v6879, %v7001
    %v7124 = vmax.f32 %v6880, %v7002
    %v7125 = vmax.f32 %v6881, %v7003
    %v7126 = vmax.f32 %v6882, %v7004
    %v7127 = vmax.f32 %v6883, %v7005
    %v7128 = vmax.f32 %v6884, %v7006
    %v7129 = vmax.f32 %v6885, %v7007
    %v7130 = vmax.f32 %v6886, %v7008
    %v7131 = vmax.f32 %v6887, %v7009
    %v7132 = vmax.f32 %v6888, %v7010
    %v7133 = vmax.f32 %v6889, %v7011
    %v7134 = vmax.f32 %v6890, %v7012
    %v7135 = vmax.f32 %v6891, %v7013
    %v7136 = vmax.f32 %v6892, %v7014
    %v7137 = vmax.f32 %v6893, %v7015
    %v7138 = vmax.f32 %v6894, %v7016
    %v7139 = vmax.f32 %v6895, %v7017
    %v7140 = vmax.f32 %v6896, %v7018
    %v7141 = vmax.f32 %v6897, %v7019
    %v7142 = vmax.f32 %v6898, %v7020
    %v7143 = vmax.f32 %v6899, %v7021
    %v7144 = vmax.f32 %v6900, %v7022
    %v7145 = vmax.f32 %v6901, %v7023
    %v7146 = vmax.f32 %v6902, %v7024
    %v7147 = vmax.f32 %v6903, %v7025
    %v7148 = vmax.f32 %v6904, %v7026
    %v7149 = vmax.f32 %v6905, %v7027
    %v7150 = vmax.f32 %v6906, %v7028
    %v7151 = vmax.f32 %v6907, %v7029
    %v7152 = vmax.f32 %v6908, %v7030
    %v7153 = vmax.f32 %v6909, %v7031
    %v7154 = vmax.f32 %v6910, %v7032
    %v7155 = vmax.f32 %v6911, %v7033
    %v7156 = vmax.f32 %v6912, %v7034
    %v7157 = vmax.f32 %v6913, %v7035
    %v7158 = vmax.f32 %v6914, %v7036
    %v7159 = vmax.f32 %v6915, %v7037
    %v7160 = vmax.f32 %v6916, %v7038
    %v7161 = vmax.f32 %v6917, %v7039
    %v7162 = vmax.f32 %v6918, %v7040
    %v7163 = vmax.f32 %v6919, %v7041
    %v7164 = vmax.f32 %v6920, %v7042
    %v7165 = vmax.f32 %v6921, %v7043
    %v7166 = vmax.f32 %v6922, %v7044
    %v7167 = vmax.f32 %v6923, %v7045
    %v7168 = vmax.f32 %v6924, %v7046
    %v7169 = vmax.f32 %v6925, %v7047
    %v7170 = vmax.f32 %v6926, %v7048
    %v7171 = vmax.f32 %v6927, %v7049
    %v7172 = vmax.f32 %v6928, %v7050
    %v7173 = vmax.f32 %v6929, %v7051
    %v7174 = vmax.f32 %v6930, %v7052
    %v7175 = vmax.f32 %v6931, %v7053
    %v7176 = vmax.f32 %v6932, %v7054
    %v7177 = vmax.f32 %v6933, %v7055
    %v7178 = vmax.f32 %v6934, %v7056
    %v7179 = vmax.f32 %v6935, %v7057
    %v7180 = vmax.f32 %v6936, %v7058
    %v7181 = vmax.f32 %v6937, %v7059
    %v7182 = vmax.f32 %v6938, %v7060
    %v7183 = vmax.f32 %v6939, %v7061
    %v7184 = vmax.f32 %v6940, %v7062
    %v7185 = vmax.f32 %v6941, %v7063
    %v7186 = vmax.f32 %v6942, %v7064
    %v7187 = vmax.f32 %v6943, %v7065
    %v7188 = vmax.f32 %v6944, %v7066
    %v7189 = vmax.f32 %v6945, %v7067
    %v7190 = vmax.f32 %v6946, %v7068
    %v7191 = vmax.f32 %v6947, %v7069
    %v7192 = vmax.f32 %v6948, %v7070
    %v7193 = vmax.f32 %v6949, %v7071
    %v7194 = vmax.f32 %v6950, %v7072
    %v7195 = vmax.f32 %v6951, %v7073
    %v7196 = vmax.f32 %v6952, %v7074
    %v7197 = vmax.f32 %v6953, %v7075
    %v7198 = vmax.f32 %v6954, %v7076
    %v7199 = vmax.f32 %v6955, %v7077
    %7250 = vrot.lane.b32.xlu0 %v7082, 80
    %v7251 = vpop.permute.xlu0 %7250
    %7252 = vrot.lane.b32.xlu0 %v7084, 80
    %v7253 = vpop.permute.xlu0 %7252
    %7254 = vrot.lane.b32.xlu0 %v7086, 80
    %v7255 = vpop.permute.xlu0 %7254
    %7256 = vrot.lane.b32.xlu0 %v7088, 80
    %v7257 = vpop.permute.xlu0 %7256
    %7258 = vrot.lane.b32.xlu0 %v7090, 80
    %v7259 = vpop.permute.xlu0 %7258
    %7260 = vrot.lane.b32.xlu0 %v7092, 80
    %v7261 = vpop.permute.xlu0 %7260
    %7262 = vrot.lane.b32.xlu0 %v7094, 80
    %v7263 = vpop.permute.xlu0 %7262
    %7264 = vrot.lane.b32.xlu0 %v7096, 80
    %v7265 = vpop.permute.xlu0 %7264
    %7266 = vrot.lane.b32.xlu0 %v7098, 80
    %v7267 = vpop.permute.xlu0 %7266
    %7268 = vrot.lane.b32.xlu0 %v7099, 80
    %v7269 = vpop.permute.xlu0 %7268
    %7270 = vrot.lane.b32.xlu0 %v7104, 80
    %v7271 = vpop.permute.xlu0 %7270
    %7272 = vrot.lane.b32.xlu0 %v7106, 80
    %v7273 = vpop.permute.xlu0 %7272
    %7274 = vrot.lane.b32.xlu0 %v7108, 80
    %v7275 = vpop.permute.xlu0 %7274
    %7276 = vrot.lane.b32.xlu0 %v7110, 80
    %v7277 = vpop.permute.xlu0 %7276
    %7278 = vrot.lane.b32.xlu0 %v7112, 80
    %v7279 = vpop.permute.xlu0 %7278
    %7280 = vrot.lane.b32.xlu0 %v7114, 80
    %v7281 = vpop.permute.xlu0 %7280
    %7282 = vrot.lane.b32.xlu0 %v7116, 80
    %v7283 = vpop.permute.xlu0 %7282
    %7284 = vrot.lane.b32.xlu0 %v7118, 80
    %v7285 = vpop.permute.xlu0 %7284
    %7286 = vrot.lane.b32.xlu0 %v7120, 80
    %v7287 = vpop.permute.xlu0 %7286
    %7288 = vrot.lane.b32.xlu0 %v7121, 80
    %v7289 = vpop.permute.xlu0 %7288
    %7290 = vrot.lane.b32.xlu0 %v7126, 80
    %v7291 = vpop.permute.xlu0 %7290
    %7292 = vrot.lane.b32.xlu0 %v7128, 80
    %v7293 = vpop.permute.xlu0 %7292
    %7294 = vrot.lane.b32.xlu0 %v7130, 80
    %v7295 = vpop.permute.xlu0 %7294
    %7296 = vrot.lane.b32.xlu0 %v7132, 80
    %v7297 = vpop.permute.xlu0 %7296
    %7298 = vrot.lane.b32.xlu0 %v7134, 80
    %v7299 = vpop.permute.xlu0 %7298
    %7300 = vrot.lane.b32.xlu0 %v7136, 80
    %v7301 = vpop.permute.xlu0 %7300
    %7302 = vrot.lane.b32.xlu0 %v7138, 80
    %v7303 = vpop.permute.xlu0 %7302
    %7304 = vrot.lane.b32.xlu0 %v7140, 80
    %v7305 = vpop.permute.xlu0 %7304
    %7306 = vrot.lane.b32.xlu0 %v7142, 80
    %v7307 = vpop.permute.xlu0 %7306
    %7308 = vrot.lane.b32.xlu0 %v7143, 80
    %v7309 = vpop.permute.xlu0 %7308
    %7310 = vrot.lane.b32.xlu0 %v7148, 80
    %v7311 = vpop.permute.xlu0 %7310
    %7312 = vrot.lane.b32.xlu0 %v7150, 80
    %v7313 = vpop.permute.xlu0 %7312
    %7314 = vrot.lane.b32.xlu0 %v7152, 80
    %v7315 = vpop.permute.xlu0 %7314
    %7316 = vrot.lane.b32.xlu0 %v7154, 80
    %v7317 = vpop.permute.xlu0 %7316
    %7318 = vrot.lane.b32.xlu0 %v7156, 80
    %v7319 = vpop.permute.xlu0 %7318
    %7320 = vrot.lane.b32.xlu0 %v7158, 80
    %v7321 = vpop.permute.xlu0 %7320
    %7322 = vrot.lane.b32.xlu0 %v7160, 80
    %v7323 = vpop.permute.xlu0 %7322
    %7324 = vrot.lane.b32.xlu0 %v7162, 80
    %v7325 = vpop.permute.xlu0 %7324
    %7326 = vrot.lane.b32.xlu0 %v7164, 80
    %v7327 = vpop.permute.xlu0 %7326
    %7328 = vrot.lane.b32.xlu0 %v7165, 80
    %v7329 = vpop.permute.xlu0 %7328
    %7330 = vrot.lane.b32.xlu0 %v7170, 80
    %v7331 = vpop.permute.xlu0 %7330
    %7332 = vrot.lane.b32.xlu0 %v7172, 80
    %v7333 = vpop.permute.xlu0 %7332
    %7334 = vrot.lane.b32.xlu0 %v7174, 80
    %v7335 = vpop.permute.xlu0 %7334
    %7336 = vrot.lane.b32.xlu0 %v7176, 80
    %v7337 = vpop.permute.xlu0 %7336
    %7338 = vrot.lane.b32.xlu0 %v7178, 80
    %v7339 = vpop.permute.xlu0 %7338
    %7340 = vrot.lane.b32.xlu0 %v7180, 80
    %v7341 = vpop.permute.xlu0 %7340
    %7342 = vrot.lane.b32.xlu0 %v7182, 80
    %v7343 = vpop.permute.xlu0 %7342
    %7344 = vrot.lane.b32.xlu0 %v7184, 80
    %v7345 = vpop.permute.xlu0 %7344
    %7346 = vrot.lane.b32.xlu0 %v7186, 80
    %v7347 = vpop.permute.xlu0 %7346
    %7348 = vrot.lane.b32.xlu0 %v7187, 80
    %v7349 = vpop.permute.xlu0 %7348
    %7360 = vrot.lane.b32.xlu0 %v7082, 32
    %v7361 = vpop.permute.xlu0 %7360
    %7362 = vrot.lane.b32.xlu0 %v7084, 32
    %v7363 = vpop.permute.xlu0 %7362
    %7364 = vrot.lane.b32.xlu0 %v7086, 32
    %v7365 = vpop.permute.xlu0 %7364
    %7366 = vrot.lane.b32.xlu0 %v7088, 32
    %v7367 = vpop.permute.xlu0 %7366
    %7368 = vrot.lane.b32.xlu0 %v7090, 32
    %v7369 = vpop.permute.xlu0 %7368
    %7370 = vrot.lane.b32.xlu0 %v7092, 32
    %v7371 = vpop.permute.xlu0 %7370
    %7372 = vrot.lane.b32.xlu0 %v7094, 32
    %v7373 = vpop.permute.xlu0 %7372
    %7374 = vrot.lane.b32.xlu0 %v7096, 32
    %v7375 = vpop.permute.xlu0 %7374
    %7376 = vrot.lane.b32.xlu0 %v7098, 32
    %v7377 = vpop.permute.xlu0 %7376
    %7378 = vrot.lane.b32.xlu0 %v7099, 32
    %v7379 = vpop.permute.xlu0 %7378
    %7380 = vrot.lane.b32.xlu0 %v7104, 32
    %v7381 = vpop.permute.xlu0 %7380
    %7382 = vrot.lane.b32.xlu0 %v7106, 32
    %v7383 = vpop.permute.xlu0 %7382
    %7384 = vrot.lane.b32.xlu0 %v7108, 32
    %v7385 = vpop.permute.xlu0 %7384
    %7386 = vrot.lane.b32.xlu0 %v7110, 32
    %v7387 = vpop.permute.xlu0 %7386
    %7388 = vrot.lane.b32.xlu0 %v7112, 32
    %v7389 = vpop.permute.xlu0 %7388
    %7390 = vrot.lane.b32.xlu0 %v7114, 32
    %v7391 = vpop.permute.xlu0 %7390
    %7392 = vrot.lane.b32.xlu0 %v7116, 32
    %v7393 = vpop.permute.xlu0 %7392
    %7394 = vrot.lane.b32.xlu0 %v7118, 32
    %v7395 = vpop.permute.xlu0 %7394
    %7396 = vrot.lane.b32.xlu0 %v7120, 32
    %v7397 = vpop.permute.xlu0 %7396
    %7398 = vrot.lane.b32.xlu0 %v7121, 32
    %v7399 = vpop.permute.xlu0 %7398
    %7400 = vrot.lane.b32.xlu0 %v7126, 32
    %v7401 = vpop.permute.xlu0 %7400
    %7402 = vrot.lane.b32.xlu0 %v7128, 32
    %v7403 = vpop.permute.xlu0 %7402
    %7404 = vrot.lane.b32.xlu0 %v7130, 32
    %v7405 = vpop.permute.xlu0 %7404
    %7406 = vrot.lane.b32.xlu0 %v7132, 32
    %v7407 = vpop.permute.xlu0 %7406
    %7408 = vrot.lane.b32.xlu0 %v7134, 32
    %v7409 = vpop.permute.xlu0 %7408
    %7410 = vrot.lane.b32.xlu0 %v7136, 32
    %v7411 = vpop.permute.xlu0 %7410
    %7412 = vrot.lane.b32.xlu0 %v7138, 32
    %v7413 = vpop.permute.xlu0 %7412
    %7414 = vrot.lane.b32.xlu0 %v7140, 32
    %v7415 = vpop.permute.xlu0 %7414
    %7416 = vrot.lane.b32.xlu0 %v7142, 32
    %v7417 = vpop.permute.xlu0 %7416
    %7418 = vrot.lane.b32.xlu0 %v7143, 32
    %v7419 = vpop.permute.xlu0 %7418
    %7420 = vrot.lane.b32.xlu0 %v7148, 32
    %v7421 = vpop.permute.xlu0 %7420
    %7422 = vrot.lane.b32.xlu0 %v7150, 32
    %v7423 = vpop.permute.xlu0 %7422
    %7424 = vrot.lane.b32.xlu0 %v7152, 32
    %v7425 = vpop.permute.xlu0 %7424
    %7426 = vrot.lane.b32.xlu0 %v7154, 32
    %v7427 = vpop.permute.xlu0 %7426
    %7428 = vrot.lane.b32.xlu0 %v7156, 32
    %v7429 = vpop.permute.xlu0 %7428
    %7430 = vrot.lane.b32.xlu0 %v7158, 32
    %v7431 = vpop.permute.xlu0 %7430
    %7432 = vrot.lane.b32.xlu0 %v7160, 32
    %v7433 = vpop.permute.xlu0 %7432
    %7434 = vrot.lane.b32.xlu0 %v7162, 32
    %v7435 = vpop.permute.xlu0 %7434
    %7436 = vrot.lane.b32.xlu0 %v7164, 32
    %v7437 = vpop.permute.xlu0 %7436
    %7438 = vrot.lane.b32.xlu0 %v7165, 32
    %v7439 = vpop.permute.xlu0 %7438
    %7440 = vrot.lane.b32.xlu0 %v7170, 32
    %v7441 = vpop.permute.xlu0 %7440
    %7442 = vrot.lane.b32.xlu0 %v7172, 32
    %v7443 = vpop.permute.xlu0 %7442
    %7444 = vrot.lane.b32.xlu0 %v7174, 32
    %v7445 = vpop.permute.xlu0 %7444
    %7446 = vrot.lane.b32.xlu0 %v7176, 32
    %v7447 = vpop.permute.xlu0 %7446
    %7448 = vrot.lane.b32.xlu0 %v7178, 32
    %v7449 = vpop.permute.xlu0 %7448
    %7450 = vrot.lane.b32.xlu0 %v7180, 32
    %v7451 = vpop.permute.xlu0 %7450
    %7452 = vrot.lane.b32.xlu0 %v7182, 32
    %v7453 = vpop.permute.xlu0 %7452
    %7454 = vrot.lane.b32.xlu0 %v7184, 32
    %v7455 = vpop.permute.xlu0 %7454
    %7456 = vrot.lane.b32.xlu0 %v7186, 32
    %v7457 = vpop.permute.xlu0 %7456
    %7458 = vrot.lane.b32.xlu0 %v7187, 32
    %v7459 = vpop.permute.xlu0 %7458
    %7480 = vrot.lane.b32.xlu0 %v7078, 80
    %v7481 = vpop.permute.xlu0 %7480
    %7482 = vrot.lane.b32.xlu0 %v7080, 80
    %v7483 = vpop.permute.xlu0 %7482
    %7484 = vrot.lane.b32.xlu0 %v7100, 80
    %v7485 = vpop.permute.xlu0 %7484
    %7486 = vrot.lane.b32.xlu0 %v7102, 80
    %v7487 = vpop.permute.xlu0 %7486
    %7488 = vrot.lane.b32.xlu0 %v7122, 80
    %v7489 = vpop.permute.xlu0 %7488
    %7490 = vrot.lane.b32.xlu0 %v7124, 80
    %v7491 = vpop.permute.xlu0 %7490
    %7492 = vrot.lane.b32.xlu0 %v7144, 80
    %v7493 = vpop.permute.xlu0 %7492
    %7494 = vrot.lane.b32.xlu0 %v7146, 80
    %v7495 = vpop.permute.xlu0 %7494
    %7496 = vrot.lane.b32.xlu0 %v7166, 80
    %v7497 = vpop.permute.xlu0 %7496
    %7498 = vrot.lane.b32.xlu0 %v7168, 80
    %v7499 = vpop.permute.xlu0 %7498
    %7500 = vrot.lane.b32.xlu0 %v7078, 32
    %v7501 = vpop.permute.xlu0 %7500
    %7502 = vrot.lane.b32.xlu0 %v7080, 32
    %v7503 = vpop.permute.xlu0 %7502
    %7504 = vrot.lane.b32.xlu0 %v7100, 32
    %v7505 = vpop.permute.xlu0 %7504
    %7506 = vrot.lane.b32.xlu0 %v7102, 32
    %v7507 = vpop.permute.xlu0 %7506
    %7508 = vrot.lane.b32.xlu0 %v7122, 32
    %v7509 = vpop.permute.xlu0 %7508
    %7510 = vrot.lane.b32.xlu0 %v7124, 32
    %v7511 = vpop.permute.xlu0 %7510
    %7512 = vrot.lane.b32.xlu0 %v7144, 32
    %v7513 = vpop.permute.xlu0 %7512
    %7514 = vrot.lane.b32.xlu0 %v7146, 32
    %v7515 = vpop.permute.xlu0 %7514
    %7516 = vrot.lane.b32.xlu0 %v7166, 32
    %v7517 = vpop.permute.xlu0 %7516
    %7518 = vrot.lane.b32.xlu0 %v7168, 32
    %v7519 = vpop.permute.xlu0 %7518
    %7570 = vrot.lane.b32.xlu0 %v7079, 32
    %v7571 = vpop.permute.xlu0 %7570
    %7572 = vrot.lane.b32.xlu0 %v7081, 32
    %v7573 = vpop.permute.xlu0 %7572
    %7574 = vrot.lane.b32.xlu0 %v7083, 32
    %v7575 = vpop.permute.xlu0 %7574
    %7576 = vrot.lane.b32.xlu0 %v7085, 32
    %v7577 = vpop.permute.xlu0 %7576
    %7578 = vrot.lane.b32.xlu0 %v7087, 32
    %v7579 = vpop.permute.xlu0 %7578
    %7580 = vrot.lane.b32.xlu0 %v7089, 32
    %v7581 = vpop.permute.xlu0 %7580
    %7582 = vrot.lane.b32.xlu0 %v7091, 32
    %v7583 = vpop.permute.xlu0 %7582
    %7584 = vrot.lane.b32.xlu0 %v7093, 32
    %v7585 = vpop.permute.xlu0 %7584
    %7586 = vrot.lane.b32.xlu0 %v7095, 32
    %v7587 = vpop.permute.xlu0 %7586
    %7588 = vrot.lane.b32.xlu0 %v7097, 32
    %v7589 = vpop.permute.xlu0 %7588
    %7590 = vrot.lane.b32.xlu0 %v7101, 32
    %v7591 = vpop.permute.xlu0 %7590
    %7592 = vrot.lane.b32.xlu0 %v7103, 32
    %v7593 = vpop.permute.xlu0 %7592
    %7594 = vrot.lane.b32.xlu0 %v7105, 32
    %v7595 = vpop.permute.xlu0 %7594
    %7596 = vrot.lane.b32.xlu0 %v7107, 32
    %v7597 = vpop.permute.xlu0 %7596
    %7598 = vrot.lane.b32.xlu0 %v7109, 32
    %v7599 = vpop.permute.xlu0 %7598
    %7600 = vrot.lane.b32.xlu0 %v7111, 32
    %v7601 = vpop.permute.xlu0 %7600
    %7602 = vrot.lane.b32.xlu0 %v7113, 32
    %v7603 = vpop.permute.xlu0 %7602
    %7604 = vrot.lane.b32.xlu0 %v7115, 32
    %v7605 = vpop.permute.xlu0 %7604
    %7606 = vrot.lane.b32.xlu0 %v7117, 32
    %v7607 = vpop.permute.xlu0 %7606
    %7608 = vrot.lane.b32.xlu0 %v7119, 32
    %v7609 = vpop.permute.xlu0 %7608
    %7610 = vrot.lane.b32.xlu0 %v7123, 32
    %v7611 = vpop.permute.xlu0 %7610
    %7612 = vrot.lane.b32.xlu0 %v7125, 32
    %v7613 = vpop.permute.xlu0 %7612
    %7614 = vrot.lane.b32.xlu0 %v7127, 32
    %v7615 = vpop.permute.xlu0 %7614
    %7616 = vrot.lane.b32.xlu0 %v7129, 32
    %v7617 = vpop.permute.xlu0 %7616
    %7618 = vrot.lane.b32.xlu0 %v7131, 32
    %v7619 = vpop.permute.xlu0 %7618
    %7620 = vrot.lane.b32.xlu0 %v7133, 32
    %v7621 = vpop.permute.xlu0 %7620
    %7622 = vrot.lane.b32.xlu0 %v7135, 32
    %v7623 = vpop.permute.xlu0 %7622
    %7624 = vrot.lane.b32.xlu0 %v7137, 32
    %v7625 = vpop.permute.xlu0 %7624
    %7626 = vrot.lane.b32.xlu0 %v7139, 32
    %v7627 = vpop.permute.xlu0 %7626
    %7628 = vrot.lane.b32.xlu0 %v7141, 32
    %v7629 = vpop.permute.xlu0 %7628
    %7630 = vrot.lane.b32.xlu0 %v7145, 32
    %v7631 = vpop.permute.xlu0 %7630
    %7632 = vrot.lane.b32.xlu0 %v7147, 32
    %v7633 = vpop.permute.xlu0 %7632
    %7634 = vrot.lane.b32.xlu0 %v7149, 32
    %v7635 = vpop.permute.xlu0 %7634
    %7636 = vrot.lane.b32.xlu0 %v7151, 32
    %v7637 = vpop.permute.xlu0 %7636
    %7638 = vrot.lane.b32.xlu0 %v7153, 32
    %v7639 = vpop.permute.xlu0 %7638
    %7640 = vrot.lane.b32.xlu0 %v7155, 32
    %v7641 = vpop.permute.xlu0 %7640
    %7642 = vrot.lane.b32.xlu0 %v7157, 32
    %v7643 = vpop.permute.xlu0 %7642
    %7644 = vrot.lane.b32.xlu0 %v7159, 32
    %v7645 = vpop.permute.xlu0 %7644
    %7646 = vrot.lane.b32.xlu0 %v7161, 32
    %v7647 = vpop.permute.xlu0 %7646
    %7648 = vrot.lane.b32.xlu0 %v7163, 32
    %v7649 = vpop.permute.xlu0 %7648
    %7650 = vrot.lane.b32.xlu0 %v7167, 32
    %v7651 = vpop.permute.xlu0 %7650
    %7652 = vrot.lane.b32.xlu0 %v7169, 32
    %v7653 = vpop.permute.xlu0 %7652
    %7654 = vrot.lane.b32.xlu0 %v7171, 32
    %v7655 = vpop.permute.xlu0 %7654
    %7656 = vrot.lane.b32.xlu0 %v7173, 32
    %v7657 = vpop.permute.xlu0 %7656
    %7658 = vrot.lane.b32.xlu0 %v7175, 32
    %v7659 = vpop.permute.xlu0 %7658
    %7660 = vrot.lane.b32.xlu0 %v7177, 32
    %v7661 = vpop.permute.xlu0 %7660
    %7662 = vrot.lane.b32.xlu0 %v7179, 32
    %v7663 = vpop.permute.xlu0 %7662
    %7664 = vrot.lane.b32.xlu0 %v7181, 32
    %v7665 = vpop.permute.xlu0 %7664
    %7666 = vrot.lane.b32.xlu0 %v7183, 32
    %v7667 = vpop.permute.xlu0 %7666
    %7668 = vrot.lane.b32.xlu0 %v7185, 32
    %v7669 = vpop.permute.xlu0 %7668
    %7680 = vrot.lane.b32.xlu0 %v7481, 112
    %v7681 = vpop.permute.xlu0 %7680
    %7682 = vrot.lane.b32.xlu0 %v7483, 112
    %v7683 = vpop.permute.xlu0 %7682
    %7684 = vrot.lane.b32.xlu0 %v7251, 112
    %v7685 = vpop.permute.xlu0 %7684
    %7686 = vrot.lane.b32.xlu0 %v7253, 112
    %v7687 = vpop.permute.xlu0 %7686
    %7688 = vrot.lane.b32.xlu0 %v7255, 112
    %v7689 = vpop.permute.xlu0 %7688
    %7690 = vrot.lane.b32.xlu0 %v7257, 112
    %v7691 = vpop.permute.xlu0 %7690
    %7692 = vrot.lane.b32.xlu0 %v7259, 112
    %v7693 = vpop.permute.xlu0 %7692
    %7694 = vrot.lane.b32.xlu0 %v7261, 112
    %v7695 = vpop.permute.xlu0 %7694
    %7696 = vrot.lane.b32.xlu0 %v7263, 112
    %v7697 = vpop.permute.xlu0 %7696
    %7698 = vrot.lane.b32.xlu0 %v7265, 112
    %v7699 = vpop.permute.xlu0 %7698
    %7700 = vrot.lane.b32.xlu0 %v7501, 112
    %v7701 = vpop.permute.xlu0 %7700
    %7702 = vrot.lane.b32.xlu0 %v7503, 112
    %v7703 = vpop.permute.xlu0 %7702
    %7704 = vrot.lane.b32.xlu0 %v7361, 112
    %v7705 = vpop.permute.xlu0 %7704
    %7706 = vrot.lane.b32.xlu0 %v7363, 112
    %v7707 = vpop.permute.xlu0 %7706
    %7708 = vrot.lane.b32.xlu0 %v7365, 112
    %v7709 = vpop.permute.xlu0 %7708
    %7710 = vrot.lane.b32.xlu0 %v7367, 112
    %v7711 = vpop.permute.xlu0 %7710
    %7712 = vrot.lane.b32.xlu0 %v7369, 112
    %v7713 = vpop.permute.xlu0 %7712
    %7714 = vrot.lane.b32.xlu0 %v7371, 112
    %v7715 = vpop.permute.xlu0 %7714
    %7716 = vrot.lane.b32.xlu0 %v7373, 112
    %v7717 = vpop.permute.xlu0 %7716
    %7718 = vrot.lane.b32.xlu0 %v7375, 112
    %v7719 = vpop.permute.xlu0 %7718
    %7720 = vrot.lane.b32.xlu0 %v7100, 112
    %v7721 = vpop.permute.xlu0 %7720
    %7722 = vrot.lane.b32.xlu0 %v7102, 112
    %v7723 = vpop.permute.xlu0 %7722
    %7724 = vrot.lane.b32.xlu0 %v7104, 112
    %v7725 = vpop.permute.xlu0 %7724
    %7726 = vrot.lane.b32.xlu0 %v7106, 112
    %v7727 = vpop.permute.xlu0 %7726
    %7728 = vrot.lane.b32.xlu0 %v7108, 112
    %v7729 = vpop.permute.xlu0 %7728
    %7730 = vrot.lane.b32.xlu0 %v7110, 112
    %v7731 = vpop.permute.xlu0 %7730
    %7732 = vrot.lane.b32.xlu0 %v7112, 112
    %v7733 = vpop.permute.xlu0 %7732
    %7734 = vrot.lane.b32.xlu0 %v7114, 112
    %v7735 = vpop.permute.xlu0 %7734
    %7736 = vrot.lane.b32.xlu0 %v7116, 112
    %v7737 = vpop.permute.xlu0 %7736
    %7738 = vrot.lane.b32.xlu0 %v7118, 112
    %v7739 = vpop.permute.xlu0 %7738
    %7740 = vrot.lane.b32.xlu0 %v7485, 112
    %v7741 = vpop.permute.xlu0 %7740
    %7742 = vrot.lane.b32.xlu0 %v7487, 112
    %v7743 = vpop.permute.xlu0 %7742
    %7744 = vrot.lane.b32.xlu0 %v7271, 112
    %v7745 = vpop.permute.xlu0 %7744
    %7746 = vrot.lane.b32.xlu0 %v7273, 112
    %v7747 = vpop.permute.xlu0 %7746
    %7748 = vrot.lane.b32.xlu0 %v7275, 112
    %v7749 = vpop.permute.xlu0 %7748
    %7750 = vrot.lane.b32.xlu0 %v7277, 112
    %v7751 = vpop.permute.xlu0 %7750
    %7752 = vrot.lane.b32.xlu0 %v7279, 112
    %v7753 = vpop.permute.xlu0 %7752
    %7754 = vrot.lane.b32.xlu0 %v7281, 112
    %v7755 = vpop.permute.xlu0 %7754
    %7756 = vrot.lane.b32.xlu0 %v7283, 112
    %v7757 = vpop.permute.xlu0 %7756
    %7758 = vrot.lane.b32.xlu0 %v7285, 112
    %v7759 = vpop.permute.xlu0 %7758
    %7760 = vrot.lane.b32.xlu0 %v7505, 112
    %v7761 = vpop.permute.xlu0 %7760
    %7762 = vrot.lane.b32.xlu0 %v7507, 112
    %v7763 = vpop.permute.xlu0 %7762
    %7764 = vrot.lane.b32.xlu0 %v7381, 112
    %v7765 = vpop.permute.xlu0 %7764
    %7766 = vrot.lane.b32.xlu0 %v7383, 112
    %v7767 = vpop.permute.xlu0 %7766
    %7768 = vrot.lane.b32.xlu0 %v7385, 112
    %v7769 = vpop.permute.xlu0 %7768
    %7770 = vrot.lane.b32.xlu0 %v7387, 112
    %v7771 = vpop.permute.xlu0 %7770
    %7772 = vrot.lane.b32.xlu0 %v7389, 112
    %v7773 = vpop.permute.xlu0 %7772
    %7774 = vrot.lane.b32.xlu0 %v7391, 112
    %v7775 = vpop.permute.xlu0 %7774
    %7776 = vrot.lane.b32.xlu0 %v7393, 112
    %v7777 = vpop.permute.xlu0 %7776
    %7778 = vrot.lane.b32.xlu0 %v7395, 112
    %v7779 = vpop.permute.xlu0 %7778
    %7780 = vrot.lane.b32.xlu0 %v7122, 112
    %v7781 = vpop.permute.xlu0 %7780
    %7782 = vrot.lane.b32.xlu0 %v7124, 112
    %v7783 = vpop.permute.xlu0 %7782
    %7784 = vrot.lane.b32.xlu0 %v7126, 112
    %v7785 = vpop.permute.xlu0 %7784
    %7786 = vrot.lane.b32.xlu0 %v7128, 112
    %v7787 = vpop.permute.xlu0 %7786
    %7788 = vrot.lane.b32.xlu0 %v7130, 112
    %v7789 = vpop.permute.xlu0 %7788
    %7790 = vrot.lane.b32.xlu0 %v7132, 112
    %v7791 = vpop.permute.xlu0 %7790
    %7792 = vrot.lane.b32.xlu0 %v7134, 112
    %v7793 = vpop.permute.xlu0 %7792
    %7794 = vrot.lane.b32.xlu0 %v7136, 112
    %v7795 = vpop.permute.xlu0 %7794
    %7796 = vrot.lane.b32.xlu0 %v7138, 112
    %v7797 = vpop.permute.xlu0 %7796
    %7798 = vrot.lane.b32.xlu0 %v7140, 112
    %v7799 = vpop.permute.xlu0 %7798
    %7800 = vrot.lane.b32.xlu0 %v7489, 112
    %v7801 = vpop.permute.xlu0 %7800
    %7802 = vrot.lane.b32.xlu0 %v7491, 112
    %v7803 = vpop.permute.xlu0 %7802
    %7804 = vrot.lane.b32.xlu0 %v7291, 112
    %v7805 = vpop.permute.xlu0 %7804
    %7806 = vrot.lane.b32.xlu0 %v7293, 112
    %v7807 = vpop.permute.xlu0 %7806
    %7808 = vrot.lane.b32.xlu0 %v7295, 112
    %v7809 = vpop.permute.xlu0 %7808
    %7810 = vrot.lane.b32.xlu0 %v7297, 112
    %v7811 = vpop.permute.xlu0 %7810
    %7812 = vrot.lane.b32.xlu0 %v7299, 112
    %v7813 = vpop.permute.xlu0 %7812
    %7814 = vrot.lane.b32.xlu0 %v7301, 112
    %v7815 = vpop.permute.xlu0 %7814
    %7816 = vrot.lane.b32.xlu0 %v7303, 112
    %v7817 = vpop.permute.xlu0 %7816
    %7818 = vrot.lane.b32.xlu0 %v7305, 112
    %v7819 = vpop.permute.xlu0 %7818
    %7820 = vrot.lane.b32.xlu0 %v7509, 112
    %v7821 = vpop.permute.xlu0 %7820
    %7822 = vrot.lane.b32.xlu0 %v7511, 112
    %v7823 = vpop.permute.xlu0 %7822
    %7824 = vrot.lane.b32.xlu0 %v7401, 112
    %v7825 = vpop.permute.xlu0 %7824
    %7826 = vrot.lane.b32.xlu0 %v7403, 112
    %v7827 = vpop.permute.xlu0 %7826
    %7828 = vrot.lane.b32.xlu0 %v7405, 112
    %v7829 = vpop.permute.xlu0 %7828
    %7830 = vrot.lane.b32.xlu0 %v7407, 112
    %v7831 = vpop.permute.xlu0 %7830
    %7832 = vrot.lane.b32.xlu0 %v7409, 112
    %v7833 = vpop.permute.xlu0 %7832
    %7834 = vrot.lane.b32.xlu0 %v7411, 112
    %v7835 = vpop.permute.xlu0 %7834
    %7836 = vrot.lane.b32.xlu0 %v7413, 112
    %v7837 = vpop.permute.xlu0 %7836
    %7838 = vrot.lane.b32.xlu0 %v7415, 112
    %v7839 = vpop.permute.xlu0 %7838
    %7840 = vrot.lane.b32.xlu0 %v7144, 112
    %v7841 = vpop.permute.xlu0 %7840
    %7842 = vrot.lane.b32.xlu0 %v7146, 112
    %v7843 = vpop.permute.xlu0 %7842
    %7844 = vrot.lane.b32.xlu0 %v7148, 112
    %v7845 = vpop.permute.xlu0 %7844
    %7846 = vrot.lane.b32.xlu0 %v7150, 112
    %v7847 = vpop.permute.xlu0 %7846
    %7848 = vrot.lane.b32.xlu0 %v7152, 112
    %v7849 = vpop.permute.xlu0 %7848
    %7850 = vrot.lane.b32.xlu0 %v7154, 112
    %v7851 = vpop.permute.xlu0 %7850
    %7852 = vrot.lane.b32.xlu0 %v7156, 112
    %v7853 = vpop.permute.xlu0 %7852
    %7854 = vrot.lane.b32.xlu0 %v7158, 112
    %v7855 = vpop.permute.xlu0 %7854
    %7856 = vrot.lane.b32.xlu0 %v7160, 112
    %v7857 = vpop.permute.xlu0 %7856
    %7858 = vrot.lane.b32.xlu0 %v7162, 112
    %v7859 = vpop.permute.xlu0 %7858
    %7860 = vrot.lane.b32.xlu0 %v7493, 112
    %v7861 = vpop.permute.xlu0 %7860
    %7862 = vrot.lane.b32.xlu0 %v7495, 112
    %v7863 = vpop.permute.xlu0 %7862
    %7864 = vrot.lane.b32.xlu0 %v7311, 112
    %v7865 = vpop.permute.xlu0 %7864
    %7866 = vrot.lane.b32.xlu0 %v7313, 112
    %v7867 = vpop.permute.xlu0 %7866
    %7868 = vrot.lane.b32.xlu0 %v7315, 112
    %v7869 = vpop.permute.xlu0 %7868
    %7870 = vrot.lane.b32.xlu0 %v7317, 112
    %v7871 = vpop.permute.xlu0 %7870
    %7872 = vrot.lane.b32.xlu0 %v7319, 112
    %v7873 = vpop.permute.xlu0 %7872
    %7874 = vrot.lane.b32.xlu0 %v7321, 112
    %v7875 = vpop.permute.xlu0 %7874
    %7876 = vrot.lane.b32.xlu0 %v7323, 112
    %v7877 = vpop.permute.xlu0 %7876
    %7878 = vrot.lane.b32.xlu0 %v7325, 112
    %v7879 = vpop.permute.xlu0 %7878
    %7880 = vrot.lane.b32.xlu0 %v7513, 112
    %v7881 = vpop.permute.xlu0 %7880
    %7882 = vrot.lane.b32.xlu0 %v7515, 112
    %v7883 = vpop.permute.xlu0 %7882
    %7884 = vrot.lane.b32.xlu0 %v7421, 112
    %v7885 = vpop.permute.xlu0 %7884
    %7886 = vrot.lane.b32.xlu0 %v7423, 112
    %v7887 = vpop.permute.xlu0 %7886
    %7888 = vrot.lane.b32.xlu0 %v7425, 112
    %v7889 = vpop.permute.xlu0 %7888
    %7890 = vrot.lane.b32.xlu0 %v7427, 112
    %v7891 = vpop.permute.xlu0 %7890
    %7892 = vrot.lane.b32.xlu0 %v7429, 112
    %v7893 = vpop.permute.xlu0 %7892
    %7894 = vrot.lane.b32.xlu0 %v7431, 112
    %v7895 = vpop.permute.xlu0 %7894
    %7896 = vrot.lane.b32.xlu0 %v7433, 112
    %v7897 = vpop.permute.xlu0 %7896
    %7898 = vrot.lane.b32.xlu0 %v7435, 112
    %v7899 = vpop.permute.xlu0 %7898
    %7900 = vrot.lane.b32.xlu0 %v7166, 112
    %v7901 = vpop.permute.xlu0 %7900
    %7902 = vrot.lane.b32.xlu0 %v7168, 112
    %v7903 = vpop.permute.xlu0 %7902
    %7904 = vrot.lane.b32.xlu0 %v7170, 112
    %v7905 = vpop.permute.xlu0 %7904
    %7906 = vrot.lane.b32.xlu0 %v7172, 112
    %v7907 = vpop.permute.xlu0 %7906
    %7908 = vrot.lane.b32.xlu0 %v7174, 112
    %v7909 = vpop.permute.xlu0 %7908
    %7910 = vrot.lane.b32.xlu0 %v7176, 112
    %v7911 = vpop.permute.xlu0 %7910
    %7912 = vrot.lane.b32.xlu0 %v7178, 112
    %v7913 = vpop.permute.xlu0 %7912
    %7914 = vrot.lane.b32.xlu0 %v7180, 112
    %v7915 = vpop.permute.xlu0 %7914
    %7916 = vrot.lane.b32.xlu0 %v7182, 112
    %v7917 = vpop.permute.xlu0 %7916
    %7918 = vrot.lane.b32.xlu0 %v7184, 112
    %v7919 = vpop.permute.xlu0 %7918
    %7920 = vrot.lane.b32.xlu0 %v7497, 112
    %v7921 = vpop.permute.xlu0 %7920
    %7922 = vrot.lane.b32.xlu0 %v7499, 112
    %v7923 = vpop.permute.xlu0 %7922
    %7924 = vrot.lane.b32.xlu0 %v7331, 112
    %v7925 = vpop.permute.xlu0 %7924
    %7926 = vrot.lane.b32.xlu0 %v7333, 112
    %v7927 = vpop.permute.xlu0 %7926
    %7928 = vrot.lane.b32.xlu0 %v7335, 112
    %v7929 = vpop.permute.xlu0 %7928
    %7930 = vrot.lane.b32.xlu0 %v7337, 112
    %v7931 = vpop.permute.xlu0 %7930
    %7932 = vrot.lane.b32.xlu0 %v7339, 112
    %v7933 = vpop.permute.xlu0 %7932
    %7934 = vrot.lane.b32.xlu0 %v7341, 112
    %v7935 = vpop.permute.xlu0 %7934
    %7936 = vrot.lane.b32.xlu0 %v7343, 112
    %v7937 = vpop.permute.xlu0 %7936
    %7938 = vrot.lane.b32.xlu0 %v7345, 112
    %v7939 = vpop.permute.xlu0 %7938
    %7940 = vrot.lane.b32.xlu0 %v7517, 112
    %v7941 = vpop.permute.xlu0 %7940
    %7942 = vrot.lane.b32.xlu0 %v7519, 112
    %v7943 = vpop.permute.xlu0 %7942
    %7944 = vrot.lane.b32.xlu0 %v7441, 112
    %v7945 = vpop.permute.xlu0 %7944
    %7946 = vrot.lane.b32.xlu0 %v7443, 112
    %v7947 = vpop.permute.xlu0 %7946
    %7948 = vrot.lane.b32.xlu0 %v7445, 112
    %v7949 = vpop.permute.xlu0 %7948
    %7950 = vrot.lane.b32.xlu0 %v7447, 112
    %v7951 = vpop.permute.xlu0 %7950
    %7952 = vrot.lane.b32.xlu0 %v7449, 112
    %v7953 = vpop.permute.xlu0 %7952
    %7954 = vrot.lane.b32.xlu0 %v7451, 112
    %v7955 = vpop.permute.xlu0 %7954
    %7956 = vrot.lane.b32.xlu0 %v7453, 112
    %v7957 = vpop.permute.xlu0 %7956
    %7958 = vrot.lane.b32.xlu0 %v7455, 112
    %v7959 = vpop.permute.xlu0 %7958
    %7960 = vrot.lane.b32.xlu0 %v7188, 112
    %v7961 = vpop.permute.xlu0 %7960
    %7962 = vrot.lane.b32.xlu0 %v7189, 112
    %v7963 = vpop.permute.xlu0 %7962
    %7964 = vrot.lane.b32.xlu0 %v7190, 112
    %v7965 = vpop.permute.xlu0 %7964
    %7966 = vrot.lane.b32.xlu0 %v7191, 112
    %v7967 = vpop.permute.xlu0 %7966
    %7968 = vrot.lane.b32.xlu0 %v7192, 112
    %v7969 = vpop.permute.xlu0 %7968
    %7970 = vrot.lane.b32.xlu0 %v7193, 112
    %v7971 = vpop.permute.xlu0 %7970
    %7972 = vrot.lane.b32.xlu0 %v7194, 112
    %v7973 = vpop.permute.xlu0 %7972
    %7974 = vrot.lane.b32.xlu0 %v7195, 112
    %v7975 = vpop.permute.xlu0 %7974
    %7976 = vrot.lane.b32.xlu0 %v7196, 112
    %v7977 = vpop.permute.xlu0 %7976
    %7978 = vrot.lane.b32.xlu0 %v7197, 112
    %v7979 = vpop.permute.xlu0 %7978
    %8010 = vrot.lane.b32.xlu0 %v7481, 96
    %v8011 = vpop.permute.xlu0 %8010
    %8012 = vrot.lane.b32.xlu0 %v7483, 96
    %v8013 = vpop.permute.xlu0 %8012
    %8014 = vrot.lane.b32.xlu0 %v7251, 96
    %v8015 = vpop.permute.xlu0 %8014
    %8016 = vrot.lane.b32.xlu0 %v7253, 96
    %v8017 = vpop.permute.xlu0 %8016
    %8018 = vrot.lane.b32.xlu0 %v7255, 96
    %v8019 = vpop.permute.xlu0 %8018
    %8020 = vrot.lane.b32.xlu0 %v7257, 96
    %v8021 = vpop.permute.xlu0 %8020
    %8022 = vrot.lane.b32.xlu0 %v7259, 96
    %v8023 = vpop.permute.xlu0 %8022
    %8024 = vrot.lane.b32.xlu0 %v7261, 96
    %v8025 = vpop.permute.xlu0 %8024
    %8026 = vrot.lane.b32.xlu0 %v7263, 96
    %v8027 = vpop.permute.xlu0 %8026
    %8028 = vrot.lane.b32.xlu0 %v7265, 96
    %v8029 = vpop.permute.xlu0 %8028
    %8030 = vrot.lane.b32.xlu0 %v7571, 96
    %v8031 = vpop.permute.xlu0 %8030
    %8032 = vrot.lane.b32.xlu0 %v7573, 96
    %v8033 = vpop.permute.xlu0 %8032
    %8034 = vrot.lane.b32.xlu0 %v7575, 96
    %v8035 = vpop.permute.xlu0 %8034
    %8036 = vrot.lane.b32.xlu0 %v7577, 96
    %v8037 = vpop.permute.xlu0 %8036
    %8038 = vrot.lane.b32.xlu0 %v7579, 96
    %v8039 = vpop.permute.xlu0 %8038
    %8040 = vrot.lane.b32.xlu0 %v7581, 96
    %v8041 = vpop.permute.xlu0 %8040
    %8042 = vrot.lane.b32.xlu0 %v7583, 96
    %v8043 = vpop.permute.xlu0 %8042
    %8044 = vrot.lane.b32.xlu0 %v7585, 96
    %v8045 = vpop.permute.xlu0 %8044
    %8046 = vrot.lane.b32.xlu0 %v7587, 96
    %v8047 = vpop.permute.xlu0 %8046
    %8048 = vrot.lane.b32.xlu0 %v7589, 96
    %v8049 = vpop.permute.xlu0 %8048
    %8050 = vrot.lane.b32.xlu0 %v7100, 96
    %v8051 = vpop.permute.xlu0 %8050
    %8052 = vrot.lane.b32.xlu0 %v7102, 96
    %v8053 = vpop.permute.xlu0 %8052
    %8054 = vrot.lane.b32.xlu0 %v7104, 96
    %v8055 = vpop.permute.xlu0 %8054
    %8056 = vrot.lane.b32.xlu0 %v7106, 96
    %v8057 = vpop.permute.xlu0 %8056
    %8058 = vrot.lane.b32.xlu0 %v7108, 96
    %v8059 = vpop.permute.xlu0 %8058
    %8060 = vrot.lane.b32.xlu0 %v7110, 96
    %v8061 = vpop.permute.xlu0 %8060
    %8062 = vrot.lane.b32.xlu0 %v7112, 96
    %v8063 = vpop.permute.xlu0 %8062
    %8064 = vrot.lane.b32.xlu0 %v7114, 96
    %v8065 = vpop.permute.xlu0 %8064
    %8066 = vrot.lane.b32.xlu0 %v7116, 96
    %v8067 = vpop.permute.xlu0 %8066
    %8068 = vrot.lane.b32.xlu0 %v7118, 96
    %v8069 = vpop.permute.xlu0 %8068
    %8070 = vrot.lane.b32.xlu0 %v7485, 96
    %v8071 = vpop.permute.xlu0 %8070
    %8072 = vrot.lane.b32.xlu0 %v7487, 96
    %v8073 = vpop.permute.xlu0 %8072
    %8074 = vrot.lane.b32.xlu0 %v7271, 96
    %v8075 = vpop.permute.xlu0 %8074
    %8076 = vrot.lane.b32.xlu0 %v7273, 96
    %v8077 = vpop.permute.xlu0 %8076
    %8078 = vrot.lane.b32.xlu0 %v7275, 96
    %v8079 = vpop.permute.xlu0 %8078
    %8080 = vrot.lane.b32.xlu0 %v7277, 96
    %v8081 = vpop.permute.xlu0 %8080
    %8082 = vrot.lane.b32.xlu0 %v7279, 96
    %v8083 = vpop.permute.xlu0 %8082
    %8084 = vrot.lane.b32.xlu0 %v7281, 96
    %v8085 = vpop.permute.xlu0 %8084
    %8086 = vrot.lane.b32.xlu0 %v7283, 96
    %v8087 = vpop.permute.xlu0 %8086
    %8088 = vrot.lane.b32.xlu0 %v7285, 96
    %v8089 = vpop.permute.xlu0 %8088
    %8090 = vrot.lane.b32.xlu0 %v7591, 96
    %v8091 = vpop.permute.xlu0 %8090
    %8092 = vrot.lane.b32.xlu0 %v7593, 96
    %v8093 = vpop.permute.xlu0 %8092
    %8094 = vrot.lane.b32.xlu0 %v7595, 96
    %v8095 = vpop.permute.xlu0 %8094
    %8096 = vrot.lane.b32.xlu0 %v7597, 96
    %v8097 = vpop.permute.xlu0 %8096
    %8098 = vrot.lane.b32.xlu0 %v7599, 96
    %v8099 = vpop.permute.xlu0 %8098
    %8100 = vrot.lane.b32.xlu0 %v7601, 96
    %v8101 = vpop.permute.xlu0 %8100
    %8102 = vrot.lane.b32.xlu0 %v7603, 96
    %v8103 = vpop.permute.xlu0 %8102
    %8104 = vrot.lane.b32.xlu0 %v7605, 96
    %v8105 = vpop.permute.xlu0 %8104
    %8106 = vrot.lane.b32.xlu0 %v7607, 96
    %v8107 = vpop.permute.xlu0 %8106
    %8108 = vrot.lane.b32.xlu0 %v7609, 96
    %v8109 = vpop.permute.xlu0 %8108
    %8110 = vrot.lane.b32.xlu0 %v7122, 96
    %v8111 = vpop.permute.xlu0 %8110
    %8112 = vrot.lane.b32.xlu0 %v7124, 96
    %v8113 = vpop.permute.xlu0 %8112
    %8114 = vrot.lane.b32.xlu0 %v7126, 96
    %v8115 = vpop.permute.xlu0 %8114
    %8116 = vrot.lane.b32.xlu0 %v7128, 96
    %v8117 = vpop.permute.xlu0 %8116
    %8118 = vrot.lane.b32.xlu0 %v7130, 96
    %v8119 = vpop.permute.xlu0 %8118
    %8120 = vrot.lane.b32.xlu0 %v7132, 96
    %v8121 = vpop.permute.xlu0 %8120
    %8122 = vrot.lane.b32.xlu0 %v7134, 96
    %v8123 = vpop.permute.xlu0 %8122
    %8124 = vrot.lane.b32.xlu0 %v7136, 96
    %v8125 = vpop.permute.xlu0 %8124
    %8126 = vrot.lane.b32.xlu0 %v7138, 96
    %v8127 = vpop.permute.xlu0 %8126
    %8128 = vrot.lane.b32.xlu0 %v7140, 96
    %v8129 = vpop.permute.xlu0 %8128
    %8130 = vrot.lane.b32.xlu0 %v7489, 96
    %v8131 = vpop.permute.xlu0 %8130
    %8132 = vrot.lane.b32.xlu0 %v7491, 96
    %v8133 = vpop.permute.xlu0 %8132
    %8134 = vrot.lane.b32.xlu0 %v7291, 96
    %v8135 = vpop.permute.xlu0 %8134
    %8136 = vrot.lane.b32.xlu0 %v7293, 96
    %v8137 = vpop.permute.xlu0 %8136
    %8138 = vrot.lane.b32.xlu0 %v7295, 96
    %v8139 = vpop.permute.xlu0 %8138
    %8140 = vrot.lane.b32.xlu0 %v7297, 96
    %v8141 = vpop.permute.xlu0 %8140
    %8142 = vrot.lane.b32.xlu0 %v7299, 96
    %v8143 = vpop.permute.xlu0 %8142
    %8144 = vrot.lane.b32.xlu0 %v7301, 96
    %v8145 = vpop.permute.xlu0 %8144
    %8146 = vrot.lane.b32.xlu0 %v7303, 96
    %v8147 = vpop.permute.xlu0 %8146
    %8148 = vrot.lane.b32.xlu0 %v7305, 96
    %v8149 = vpop.permute.xlu0 %8148
    %8150 = vrot.lane.b32.xlu0 %v7611, 96
    %v8151 = vpop.permute.xlu0 %8150
    %8152 = vrot.lane.b32.xlu0 %v7613, 96
    %v8153 = vpop.permute.xlu0 %8152
    %8154 = vrot.lane.b32.xlu0 %v7615, 96
    %v8155 = vpop.permute.xlu0 %8154
    %8156 = vrot.lane.b32.xlu0 %v7617, 96
    %v8157 = vpop.permute.xlu0 %8156
    %8158 = vrot.lane.b32.xlu0 %v7619, 96
    %v8159 = vpop.permute.xlu0 %8158
    %8160 = vrot.lane.b32.xlu0 %v7621, 96
    %v8161 = vpop.permute.xlu0 %8160
    %8162 = vrot.lane.b32.xlu0 %v7623, 96
    %v8163 = vpop.permute.xlu0 %8162
    %8164 = vrot.lane.b32.xlu0 %v7625, 96
    %v8165 = vpop.permute.xlu0 %8164
    %8166 = vrot.lane.b32.xlu0 %v7627, 96
    %v8167 = vpop.permute.xlu0 %8166
    %8168 = vrot.lane.b32.xlu0 %v7629, 96
    %v8169 = vpop.permute.xlu0 %8168
    %8170 = vrot.lane.b32.xlu0 %v7144, 96
    %v8171 = vpop.permute.xlu0 %8170
    %8172 = vrot.lane.b32.xlu0 %v7146, 96
    %v8173 = vpop.permute.xlu0 %8172
    %8174 = vrot.lane.b32.xlu0 %v7148, 96
    %v8175 = vpop.permute.xlu0 %8174
    %8176 = vrot.lane.b32.xlu0 %v7150, 96
    %v8177 = vpop.permute.xlu0 %8176
    %8178 = vrot.lane.b32.xlu0 %v7152, 96
    %v8179 = vpop.permute.xlu0 %8178
    %8180 = vrot.lane.b32.xlu0 %v7154, 96
    %v8181 = vpop.permute.xlu0 %8180
    %8182 = vrot.lane.b32.xlu0 %v7156, 96
    %v8183 = vpop.permute.xlu0 %8182
    %8184 = vrot.lane.b32.xlu0 %v7158, 96
    %v8185 = vpop.permute.xlu0 %8184
    %8186 = vrot.lane.b32.xlu0 %v7160, 96
    %v8187 = vpop.permute.xlu0 %8186
    %8188 = vrot.lane.b32.xlu0 %v7162, 96
    %v8189 = vpop.permute.xlu0 %8188
    %8190 = vrot.lane.b32.xlu0 %v7493, 96
    %v8191 = vpop.permute.xlu0 %8190
    %8192 = vrot.lane.b32.xlu0 %v7495, 96
    %v8193 = vpop.permute.xlu0 %8192
    %8194 = vrot.lane.b32.xlu0 %v7311, 96
    %v8195 = vpop.permute.xlu0 %8194
    %8196 = vrot.lane.b32.xlu0 %v7313, 96
    %v8197 = vpop.permute.xlu0 %8196
    %8198 = vrot.lane.b32.xlu0 %v7315, 96
    %v8199 = vpop.permute.xlu0 %8198
    %8200 = vrot.lane.b32.xlu0 %v7317, 96
    %v8201 = vpop.permute.xlu0 %8200
    %8202 = vrot.lane.b32.xlu0 %v7319, 96
    %v8203 = vpop.permute.xlu0 %8202
    %8204 = vrot.lane.b32.xlu0 %v7321, 96
    %v8205 = vpop.permute.xlu0 %8204
    %8206 = vrot.lane.b32.xlu0 %v7323, 96
    %v8207 = vpop.permute.xlu0 %8206
    %8208 = vrot.lane.b32.xlu0 %v7325, 96
    %v8209 = vpop.permute.xlu0 %8208
    %8210 = vrot.lane.b32.xlu0 %v7631, 96
    %v8211 = vpop.permute.xlu0 %8210
    %8212 = vrot.lane.b32.xlu0 %v7633, 96
    %v8213 = vpop.permute.xlu0 %8212
    %8214 = vrot.lane.b32.xlu0 %v7635, 96
    %v8215 = vpop.permute.xlu0 %8214
    %8216 = vrot.lane.b32.xlu0 %v7637, 96
    %v8217 = vpop.permute.xlu0 %8216
    %8218 = vrot.lane.b32.xlu0 %v7639, 96
    %v8219 = vpop.permute.xlu0 %8218
    %8220 = vrot.lane.b32.xlu0 %v7641, 96
    %v8221 = vpop.permute.xlu0 %8220
    %8222 = vrot.lane.b32.xlu0 %v7643, 96
    %v8223 = vpop.permute.xlu0 %8222
    %8224 = vrot.lane.b32.xlu0 %v7645, 96
    %v8225 = vpop.permute.xlu0 %8224
    %8226 = vrot.lane.b32.xlu0 %v7647, 96
    %v8227 = vpop.permute.xlu0 %8226
    %8228 = vrot.lane.b32.xlu0 %v7649, 96
    %v8229 = vpop.permute.xlu0 %8228
    %8230 = vrot.lane.b32.xlu0 %v7166, 96
    %v8231 = vpop.permute.xlu0 %8230
    %8232 = vrot.lane.b32.xlu0 %v7168, 96
    %v8233 = vpop.permute.xlu0 %8232
    %8234 = vrot.lane.b32.xlu0 %v7170, 96
    %v8235 = vpop.permute.xlu0 %8234
    %8236 = vrot.lane.b32.xlu0 %v7172, 96
    %v8237 = vpop.permute.xlu0 %8236
    %8238 = vrot.lane.b32.xlu0 %v7174, 96
    %v8239 = vpop.permute.xlu0 %8238
    %8240 = vrot.lane.b32.xlu0 %v7176, 96
    %v8241 = vpop.permute.xlu0 %8240
    %8242 = vrot.lane.b32.xlu0 %v7178, 96
    %v8243 = vpop.permute.xlu0 %8242
    %8244 = vrot.lane.b32.xlu0 %v7180, 96
    %v8245 = vpop.permute.xlu0 %8244
    %8246 = vrot.lane.b32.xlu0 %v7182, 96
    %v8247 = vpop.permute.xlu0 %8246
    %8248 = vrot.lane.b32.xlu0 %v7184, 96
    %v8249 = vpop.permute.xlu0 %8248
    %8250 = vrot.lane.b32.xlu0 %v7497, 96
    %v8251 = vpop.permute.xlu0 %8250
    %8252 = vrot.lane.b32.xlu0 %v7499, 96
    %v8253 = vpop.permute.xlu0 %8252
    %8254 = vrot.lane.b32.xlu0 %v7331, 96
    %v8255 = vpop.permute.xlu0 %8254
    %8256 = vrot.lane.b32.xlu0 %v7333, 96
    %v8257 = vpop.permute.xlu0 %8256
    %8258 = vrot.lane.b32.xlu0 %v7335, 96
    %v8259 = vpop.permute.xlu0 %8258
    %8260 = vrot.lane.b32.xlu0 %v7337, 96
    %v8261 = vpop.permute.xlu0 %8260
    %8262 = vrot.lane.b32.xlu0 %v7339, 96
    %v8263 = vpop.permute.xlu0 %8262
    %8264 = vrot.lane.b32.xlu0 %v7341, 96
    %v8265 = vpop.permute.xlu0 %8264
    %8266 = vrot.lane.b32.xlu0 %v7343, 96
    %v8267 = vpop.permute.xlu0 %8266
    %8268 = vrot.lane.b32.xlu0 %v7345, 96
    %v8269 = vpop.permute.xlu0 %8268
    %8270 = vrot.lane.b32.xlu0 %v7651, 96
    %v8271 = vpop.permute.xlu0 %8270
    %8272 = vrot.lane.b32.xlu0 %v7653, 96
    %v8273 = vpop.permute.xlu0 %8272
    %8274 = vrot.lane.b32.xlu0 %v7655, 96
    %v8275 = vpop.permute.xlu0 %8274
    %8276 = vrot.lane.b32.xlu0 %v7657, 96
    %v8277 = vpop.permute.xlu0 %8276
    %8278 = vrot.lane.b32.xlu0 %v7659, 96
    %v8279 = vpop.permute.xlu0 %8278
    %8280 = vrot.lane.b32.xlu0 %v7661, 96
    %v8281 = vpop.permute.xlu0 %8280
    %8282 = vrot.lane.b32.xlu0 %v7663, 96
    %v8283 = vpop.permute.xlu0 %8282
    %8284 = vrot.lane.b32.xlu0 %v7665, 96
    %v8285 = vpop.permute.xlu0 %8284
    %8286 = vrot.lane.b32.xlu0 %v7667, 96
    %v8287 = vpop.permute.xlu0 %8286
    %8288 = vrot.lane.b32.xlu0 %v7669, 96
    %v8289 = vpop.permute.xlu0 %8288
    %8290 = vrot.lane.b32.xlu0 %v7188, 96
    %v8291 = vpop.permute.xlu0 %8290
    %8292 = vrot.lane.b32.xlu0 %v7189, 96
    %v8293 = vpop.permute.xlu0 %8292
    %8294 = vrot.lane.b32.xlu0 %v7190, 96
    %v8295 = vpop.permute.xlu0 %8294
    %8296 = vrot.lane.b32.xlu0 %v7191, 96
    %v8297 = vpop.permute.xlu0 %8296
    %8298 = vrot.lane.b32.xlu0 %v7192, 96
    %v8299 = vpop.permute.xlu0 %8298
    %8300 = vrot.lane.b32.xlu0 %v7193, 96
    %v8301 = vpop.permute.xlu0 %8300
    %8302 = vrot.lane.b32.xlu0 %v7194, 96
    %v8303 = vpop.permute.xlu0 %8302
    %8304 = vrot.lane.b32.xlu0 %v7195, 96
    %v8305 = vpop.permute.xlu0 %8304
    %8306 = vrot.lane.b32.xlu0 %v7196, 96
    %v8307 = vpop.permute.xlu0 %8306
    %8308 = vrot.lane.b32.xlu0 %v7197, 96
    %v8309 = vpop.permute.xlu0 %8308
    %8310 = vrot.lane.b32.xlu0 %v8011, 16
    %v8311 = vpop.permute.xlu0 %8310
    %8312 = vrot.lane.b32.xlu0 %v8013, 16
    %v8313 = vpop.permute.xlu0 %8312
    %8314 = vrot.lane.b32.xlu0 %v8031, 16
    %v8315 = vpop.permute.xlu0 %8314
    %8316 = vrot.lane.b32.xlu0 %v8033, 16
    %v8317 = vpop.permute.xlu0 %8316
    %8318 = vrot.lane.b32.xlu0 %v8051, 16
    %v8319 = vpop.permute.xlu0 %8318
    %8320 = vrot.lane.b32.xlu0 %v8053, 16
    %v8321 = vpop.permute.xlu0 %8320
    %8322 = vrot.lane.b32.xlu0 %v8071, 16
    %v8323 = vpop.permute.xlu0 %8322
    %8324 = vrot.lane.b32.xlu0 %v8073, 16
    %v8325 = vpop.permute.xlu0 %8324
    %8326 = vrot.lane.b32.xlu0 %v8091, 16
    %v8327 = vpop.permute.xlu0 %8326
    %8328 = vrot.lane.b32.xlu0 %v8093, 16
    %v8329 = vpop.permute.xlu0 %8328
    %8330 = vrot.lane.b32.xlu0 %v8111, 16
    %v8331 = vpop.permute.xlu0 %8330
    %8332 = vrot.lane.b32.xlu0 %v8113, 16
    %v8333 = vpop.permute.xlu0 %8332
    %8334 = vrot.lane.b32.xlu0 %v8131, 16
    %v8335 = vpop.permute.xlu0 %8334
    %8336 = vrot.lane.b32.xlu0 %v8133, 16
    %v8337 = vpop.permute.xlu0 %8336
    %8338 = vrot.lane.b32.xlu0 %v8151, 16
    %v8339 = vpop.permute.xlu0 %8338
    %8340 = vrot.lane.b32.xlu0 %v8153, 16
    %v8341 = vpop.permute.xlu0 %8340
    %8342 = vrot.lane.b32.xlu0 %v8171, 16
    %v8343 = vpop.permute.xlu0 %8342
    %8344 = vrot.lane.b32.xlu0 %v8173, 16
    %v8345 = vpop.permute.xlu0 %8344
    %8346 = vrot.lane.b32.xlu0 %v8191, 16
    %v8347 = vpop.permute.xlu0 %8346
    %8348 = vrot.lane.b32.xlu0 %v8193, 16
    %v8349 = vpop.permute.xlu0 %8348
    %8350 = vrot.lane.b32.xlu0 %v8211, 16
    %v8351 = vpop.permute.xlu0 %8350
    %8352 = vrot.lane.b32.xlu0 %v8213, 16
    %v8353 = vpop.permute.xlu0 %8352
    %8354 = vrot.lane.b32.xlu0 %v8231, 16
    %v8355 = vpop.permute.xlu0 %8354
    %8356 = vrot.lane.b32.xlu0 %v8233, 16
    %v8357 = vpop.permute.xlu0 %8356
    %8358 = vrot.lane.b32.xlu0 %v8251, 16
    %v8359 = vpop.permute.xlu0 %8358
    %8360 = vrot.lane.b32.xlu0 %v8253, 16
    %v8361 = vpop.permute.xlu0 %8360
    %8362 = vrot.lane.b32.xlu0 %v8271, 16
    %v8363 = vpop.permute.xlu0 %8362
    %8364 = vrot.lane.b32.xlu0 %v8273, 16
    %v8365 = vpop.permute.xlu0 %8364
    %8366 = vrot.lane.b32.xlu0 %v8291, 16
    %v8367 = vpop.permute.xlu0 %8366
    %8368 = vrot.lane.b32.xlu0 %v8293, 16
    %v8369 = vpop.permute.xlu0 %8368
    %8400 = vrot.lane.b32.xlu0 %v7251, 32
    %v8401 = vpop.permute.xlu0 %8400
    %8402 = vrot.lane.b32.xlu0 %v7253, 32
    %v8403 = vpop.permute.xlu0 %8402
    %8404 = vrot.lane.b32.xlu0 %v7361, 32
    %v8405 = vpop.permute.xlu0 %8404
    %8406 = vrot.lane.b32.xlu0 %v7363, 32
    %v8407 = vpop.permute.xlu0 %8406
    %8408 = vrot.lane.b32.xlu0 %v7271, 32
    %v8409 = vpop.permute.xlu0 %8408
    %8410 = vrot.lane.b32.xlu0 %v7273, 32
    %v8411 = vpop.permute.xlu0 %8410
    %8412 = vrot.lane.b32.xlu0 %v7381, 32
    %v8413 = vpop.permute.xlu0 %8412
    %8414 = vrot.lane.b32.xlu0 %v7383, 32
    %v8415 = vpop.permute.xlu0 %8414
    %8416 = vrot.lane.b32.xlu0 %v7291, 32
    %v8417 = vpop.permute.xlu0 %8416
    %8418 = vrot.lane.b32.xlu0 %v7293, 32
    %v8419 = vpop.permute.xlu0 %8418
    %8420 = vrot.lane.b32.xlu0 %v7401, 32
    %v8421 = vpop.permute.xlu0 %8420
    %8422 = vrot.lane.b32.xlu0 %v7403, 32
    %v8423 = vpop.permute.xlu0 %8422
    %8424 = vrot.lane.b32.xlu0 %v7311, 32
    %v8425 = vpop.permute.xlu0 %8424
    %8426 = vrot.lane.b32.xlu0 %v7313, 32
    %v8427 = vpop.permute.xlu0 %8426
    %8428 = vrot.lane.b32.xlu0 %v7421, 32
    %v8429 = vpop.permute.xlu0 %8428
    %8430 = vrot.lane.b32.xlu0 %v7423, 32
    %v8431 = vpop.permute.xlu0 %8430
    %8432 = vrot.lane.b32.xlu0 %v7331, 32
    %v8433 = vpop.permute.xlu0 %8432
    %8434 = vrot.lane.b32.xlu0 %v7333, 32
    %v8435 = vpop.permute.xlu0 %8434
    %8436 = vrot.lane.b32.xlu0 %v7441, 32
    %v8437 = vpop.permute.xlu0 %8436
    %8438 = vrot.lane.b32.xlu0 %v7443, 32
    %v8439 = vpop.permute.xlu0 %8438
    %8440 = vrot.lane.b32.xlu0 %v7190, 32
    %v8441 = vpop.permute.xlu0 %8440
    %8442 = vrot.lane.b32.xlu0 %v7191, 32
    %v8443 = vpop.permute.xlu0 %8442
    %8474 = vrot.lane.b32.xlu0 %v7685, 48
    %v8475 = vpop.permute.xlu0 %8474
    %8476 = vrot.lane.b32.xlu0 %v7687, 48
    %v8477 = vpop.permute.xlu0 %8476
    %8478 = vrot.lane.b32.xlu0 %v7705, 48
    %v8479 = vpop.permute.xlu0 %8478
    %8480 = vrot.lane.b32.xlu0 %v7707, 48
    %v8481 = vpop.permute.xlu0 %8480
    %8482 = vrot.lane.b32.xlu0 %v7725, 48
    %v8483 = vpop.permute.xlu0 %8482
    %8484 = vrot.lane.b32.xlu0 %v7727, 48
    %v8485 = vpop.permute.xlu0 %8484
    %8486 = vrot.lane.b32.xlu0 %v7745, 48
    %v8487 = vpop.permute.xlu0 %8486
    %8488 = vrot.lane.b32.xlu0 %v7747, 48
    %v8489 = vpop.permute.xlu0 %8488
    %8490 = vrot.lane.b32.xlu0 %v7765, 48
    %v8491 = vpop.permute.xlu0 %8490
    %8492 = vrot.lane.b32.xlu0 %v7767, 48
    %v8493 = vpop.permute.xlu0 %8492
    %8494 = vrot.lane.b32.xlu0 %v7785, 48
    %v8495 = vpop.permute.xlu0 %8494
    %8496 = vrot.lane.b32.xlu0 %v7787, 48
    %v8497 = vpop.permute.xlu0 %8496
    %8498 = vrot.lane.b32.xlu0 %v7805, 48
    %v8499 = vpop.permute.xlu0 %8498
    %8500 = vrot.lane.b32.xlu0 %v7807, 48
    %v8501 = vpop.permute.xlu0 %8500
    %8502 = vrot.lane.b32.xlu0 %v7825, 48
    %v8503 = vpop.permute.xlu0 %8502
    %8504 = vrot.lane.b32.xlu0 %v7827, 48
    %v8505 = vpop.permute.xlu0 %8504
    %8506 = vrot.lane.b32.xlu0 %v7845, 48
    %v8507 = vpop.permute.xlu0 %8506
    %8508 = vrot.lane.b32.xlu0 %v7847, 48
    %v8509 = vpop.permute.xlu0 %8508
    %8510 = vrot.lane.b32.xlu0 %v7865, 48
    %v8511 = vpop.permute.xlu0 %8510
    %8512 = vrot.lane.b32.xlu0 %v7867, 48
    %v8513 = vpop.permute.xlu0 %8512
    %8514 = vrot.lane.b32.xlu0 %v7885, 48
    %v8515 = vpop.permute.xlu0 %8514
    %8516 = vrot.lane.b32.xlu0 %v7887, 48
    %v8517 = vpop.permute.xlu0 %8516
    %8518 = vrot.lane.b32.xlu0 %v7905, 48
    %v8519 = vpop.permute.xlu0 %8518
    %8520 = vrot.lane.b32.xlu0 %v7907, 48
    %v8521 = vpop.permute.xlu0 %8520
    %8522 = vrot.lane.b32.xlu0 %v7925, 48
    %v8523 = vpop.permute.xlu0 %8522
    %8524 = vrot.lane.b32.xlu0 %v7927, 48
    %v8525 = vpop.permute.xlu0 %8524
    %8526 = vrot.lane.b32.xlu0 %v7945, 48
    %v8527 = vpop.permute.xlu0 %8526
    %8528 = vrot.lane.b32.xlu0 %v7947, 48
    %v8529 = vpop.permute.xlu0 %8528
    %8530 = vrot.lane.b32.xlu0 %v7965, 48
    %v8531 = vpop.permute.xlu0 %8530
    %8532 = vrot.lane.b32.xlu0 %v7967, 48
    %v8533 = vpop.permute.xlu0 %8532
    %8564 = vrot.lane.b32.xlu0 %v8015, 64
    %v8565 = vpop.permute.xlu0 %8564
    %8566 = vrot.lane.b32.xlu0 %v8017, 64
    %v8567 = vpop.permute.xlu0 %8566
    %8568 = vrot.lane.b32.xlu0 %v8035, 64
    %v8569 = vpop.permute.xlu0 %8568
    %8570 = vrot.lane.b32.xlu0 %v8037, 64
    %v8571 = vpop.permute.xlu0 %8570
    %8572 = vrot.lane.b32.xlu0 %v8055, 64
    %v8573 = vpop.permute.xlu0 %8572
    %8574 = vrot.lane.b32.xlu0 %v8057, 64
    %v8575 = vpop.permute.xlu0 %8574
    %8576 = vrot.lane.b32.xlu0 %v8075, 64
    %v8577 = vpop.permute.xlu0 %8576
    %8578 = vrot.lane.b32.xlu0 %v8077, 64
    %v8579 = vpop.permute.xlu0 %8578
    %8580 = vrot.lane.b32.xlu0 %v8095, 64
    %v8581 = vpop.permute.xlu0 %8580
    %8582 = vrot.lane.b32.xlu0 %v8097, 64
    %v8583 = vpop.permute.xlu0 %8582
    %8584 = vrot.lane.b32.xlu0 %v8115, 64
    %v8585 = vpop.permute.xlu0 %8584
    %8586 = vrot.lane.b32.xlu0 %v8117, 64
    %v8587 = vpop.permute.xlu0 %8586
    %8588 = vrot.lane.b32.xlu0 %v8135, 64
    %v8589 = vpop.permute.xlu0 %8588
    %8590 = vrot.lane.b32.xlu0 %v8137, 64
    %v8591 = vpop.permute.xlu0 %8590
    %8592 = vrot.lane.b32.xlu0 %v8155, 64
    %v8593 = vpop.permute.xlu0 %8592
    %8594 = vrot.lane.b32.xlu0 %v8157, 64
    %v8595 = vpop.permute.xlu0 %8594
    %8596 = vrot.lane.b32.xlu0 %v8175, 64
    %v8597 = vpop.permute.xlu0 %8596
    %8598 = vrot.lane.b32.xlu0 %v8177, 64
    %v8599 = vpop.permute.xlu0 %8598
    %8600 = vrot.lane.b32.xlu0 %v8195, 64
    %v8601 = vpop.permute.xlu0 %8600
    %8602 = vrot.lane.b32.xlu0 %v8197, 64
    %v8603 = vpop.permute.xlu0 %8602
    %8604 = vrot.lane.b32.xlu0 %v8215, 64
    %v8605 = vpop.permute.xlu0 %8604
    %8606 = vrot.lane.b32.xlu0 %v8217, 64
    %v8607 = vpop.permute.xlu0 %8606
    %8608 = vrot.lane.b32.xlu0 %v8235, 64
    %v8609 = vpop.permute.xlu0 %8608
    %8610 = vrot.lane.b32.xlu0 %v8237, 64
    %v8611 = vpop.permute.xlu0 %8610
    %8612 = vrot.lane.b32.xlu0 %v8255, 64
    %v8613 = vpop.permute.xlu0 %8612
    %8614 = vrot.lane.b32.xlu0 %v8257, 64
    %v8615 = vpop.permute.xlu0 %8614
    %8616 = vrot.lane.b32.xlu0 %v8275, 64
    %v8617 = vpop.permute.xlu0 %8616
    %8618 = vrot.lane.b32.xlu0 %v8277, 64
    %v8619 = vpop.permute.xlu0 %8618
    %8620 = vrot.lane.b32.xlu0 %v8295, 64
    %v8621 = vpop.permute.xlu0 %8620
    %8622 = vrot.lane.b32.xlu0 %v8297, 64
    %v8623 = vpop.permute.xlu0 %8622
    %8654 = vrot.lane.b32.xlu0 %v7255, 80
    %v8655 = vpop.permute.xlu0 %8654
    %8656 = vrot.lane.b32.xlu0 %v7257, 80
    %v8657 = vpop.permute.xlu0 %8656
    %8658 = vrot.lane.b32.xlu0 %v7365, 80
    %v8659 = vpop.permute.xlu0 %8658
    %8660 = vrot.lane.b32.xlu0 %v7367, 80
    %v8661 = vpop.permute.xlu0 %8660
    %8662 = vrot.lane.b32.xlu0 %v7275, 80
    %v8663 = vpop.permute.xlu0 %8662
    %8664 = vrot.lane.b32.xlu0 %v7277, 80
    %v8665 = vpop.permute.xlu0 %8664
    %8666 = vrot.lane.b32.xlu0 %v7385, 80
    %v8667 = vpop.permute.xlu0 %8666
    %8668 = vrot.lane.b32.xlu0 %v7387, 80
    %v8669 = vpop.permute.xlu0 %8668
    %8670 = vrot.lane.b32.xlu0 %v7295, 80
    %v8671 = vpop.permute.xlu0 %8670
    %8672 = vrot.lane.b32.xlu0 %v7297, 80
    %v8673 = vpop.permute.xlu0 %8672
    %8674 = vrot.lane.b32.xlu0 %v7405, 80
    %v8675 = vpop.permute.xlu0 %8674
    %8676 = vrot.lane.b32.xlu0 %v7407, 80
    %v8677 = vpop.permute.xlu0 %8676
    %8678 = vrot.lane.b32.xlu0 %v7315, 80
    %v8679 = vpop.permute.xlu0 %8678
    %8680 = vrot.lane.b32.xlu0 %v7317, 80
    %v8681 = vpop.permute.xlu0 %8680
    %8682 = vrot.lane.b32.xlu0 %v7425, 80
    %v8683 = vpop.permute.xlu0 %8682
    %8684 = vrot.lane.b32.xlu0 %v7427, 80
    %v8685 = vpop.permute.xlu0 %8684
    %8686 = vrot.lane.b32.xlu0 %v7335, 80
    %v8687 = vpop.permute.xlu0 %8686
    %8688 = vrot.lane.b32.xlu0 %v7337, 80
    %v8689 = vpop.permute.xlu0 %8688
    %8690 = vrot.lane.b32.xlu0 %v7445, 80
    %v8691 = vpop.permute.xlu0 %8690
    %8692 = vrot.lane.b32.xlu0 %v7447, 80
    %v8693 = vpop.permute.xlu0 %8692
    %8694 = vrot.lane.b32.xlu0 %v7192, 80
    %v8695 = vpop.permute.xlu0 %8694
    %8696 = vrot.lane.b32.xlu0 %v7193, 80
    %v8697 = vpop.permute.xlu0 %8696
    %8728 = vrot.lane.b32.xlu0 %v7689, 96
    %v8729 = vpop.permute.xlu0 %8728
    %8730 = vrot.lane.b32.xlu0 %v7691, 96
    %v8731 = vpop.permute.xlu0 %8730
    %8732 = vrot.lane.b32.xlu0 %v7709, 96
    %v8733 = vpop.permute.xlu0 %8732
    %8734 = vrot.lane.b32.xlu0 %v7711, 96
    %v8735 = vpop.permute.xlu0 %8734
    %8736 = vrot.lane.b32.xlu0 %v7729, 96
    %v8737 = vpop.permute.xlu0 %8736
    %8738 = vrot.lane.b32.xlu0 %v7731, 96
    %v8739 = vpop.permute.xlu0 %8738
    %8740 = vrot.lane.b32.xlu0 %v7749, 96
    %v8741 = vpop.permute.xlu0 %8740
    %8742 = vrot.lane.b32.xlu0 %v7751, 96
    %v8743 = vpop.permute.xlu0 %8742
    %8744 = vrot.lane.b32.xlu0 %v7769, 96
    %v8745 = vpop.permute.xlu0 %8744
    %8746 = vrot.lane.b32.xlu0 %v7771, 96
    %v8747 = vpop.permute.xlu0 %8746
    %8748 = vrot.lane.b32.xlu0 %v7789, 96
    %v8749 = vpop.permute.xlu0 %8748
    %8750 = vrot.lane.b32.xlu0 %v7791, 96
    %v8751 = vpop.permute.xlu0 %8750
    %8752 = vrot.lane.b32.xlu0 %v7809, 96
    %v8753 = vpop.permute.xlu0 %8752
    %8754 = vrot.lane.b32.xlu0 %v7811, 96
    %v8755 = vpop.permute.xlu0 %8754
    %8756 = vrot.lane.b32.xlu0 %v7829, 96
    %v8757 = vpop.permute.xlu0 %8756
    %8758 = vrot.lane.b32.xlu0 %v7831, 96
    %v8759 = vpop.permute.xlu0 %8758
    %8760 = vrot.lane.b32.xlu0 %v7849, 96
    %v8761 = vpop.permute.xlu0 %8760
    %8762 = vrot.lane.b32.xlu0 %v7851, 96
    %v8763 = vpop.permute.xlu0 %8762
    %8764 = vrot.lane.b32.xlu0 %v7869, 96
    %v8765 = vpop.permute.xlu0 %8764
    %8766 = vrot.lane.b32.xlu0 %v7871, 96
    %v8767 = vpop.permute.xlu0 %8766
    %8768 = vrot.lane.b32.xlu0 %v7889, 96
    %v8769 = vpop.permute.xlu0 %8768
    %8770 = vrot.lane.b32.xlu0 %v7891, 96
    %v8771 = vpop.permute.xlu0 %8770
    %8772 = vrot.lane.b32.xlu0 %v7909, 96
    %v8773 = vpop.permute.xlu0 %8772
    %8774 = vrot.lane.b32.xlu0 %v7911, 96
    %v8775 = vpop.permute.xlu0 %8774
    %8776 = vrot.lane.b32.xlu0 %v7929, 96
    %v8777 = vpop.permute.xlu0 %8776
    %8778 = vrot.lane.b32.xlu0 %v7931, 96
    %v8779 = vpop.permute.xlu0 %8778
    %8780 = vrot.lane.b32.xlu0 %v7949, 96
    %v8781 = vpop.permute.xlu0 %8780
    %8782 = vrot.lane.b32.xlu0 %v7951, 96
    %v8783 = vpop.permute.xlu0 %8782
    %8784 = vrot.lane.b32.xlu0 %v7969, 96
    %v8785 = vpop.permute.xlu0 %8784
    %8786 = vrot.lane.b32.xlu0 %v7971, 96
    %v8787 = vpop.permute.xlu0 %8786
    %8818 = vrot.lane.b32.xlu0 %v8019, 112
    %v8819 = vpop.permute.xlu0 %8818
    %8820 = vrot.lane.b32.xlu0 %v8021, 112
    %v8821 = vpop.permute.xlu0 %8820
    %8822 = vrot.lane.b32.xlu0 %v8039, 112
    %v8823 = vpop.permute.xlu0 %8822
    %8824 = vrot.lane.b32.xlu0 %v8041, 112
    %v8825 = vpop.permute.xlu0 %8824
    %8826 = vrot.lane.b32.xlu0 %v8059, 112
    %v8827 = vpop.permute.xlu0 %8826
    %8828 = vrot.lane.b32.xlu0 %v8061, 112
    %v8829 = vpop.permute.xlu0 %8828
    %8830 = vrot.lane.b32.xlu0 %v8079, 112
    %v8831 = vpop.permute.xlu0 %8830
    %8832 = vrot.lane.b32.xlu0 %v8081, 112
    %v8833 = vpop.permute.xlu0 %8832
    %8834 = vrot.lane.b32.xlu0 %v8099, 112
    %v8835 = vpop.permute.xlu0 %8834
    %8836 = vrot.lane.b32.xlu0 %v8101, 112
    %v8837 = vpop.permute.xlu0 %8836
    %8838 = vrot.lane.b32.xlu0 %v8119, 112
    %v8839 = vpop.permute.xlu0 %8838
    %8840 = vrot.lane.b32.xlu0 %v8121, 112
    %v8841 = vpop.permute.xlu0 %8840
    %8842 = vrot.lane.b32.xlu0 %v8139, 112
    %v8843 = vpop.permute.xlu0 %8842
    %8844 = vrot.lane.b32.xlu0 %v8141, 112
    %v8845 = vpop.permute.xlu0 %8844
    %8846 = vrot.lane.b32.xlu0 %v8159, 112
    %v8847 = vpop.permute.xlu0 %8846
    %8848 = vrot.lane.b32.xlu0 %v8161, 112
    %v8849 = vpop.permute.xlu0 %8848
    %8850 = vrot.lane.b32.xlu0 %v8179, 112
    %v8851 = vpop.permute.xlu0 %8850
    %8852 = vrot.lane.b32.xlu0 %v8181, 112
    %v8853 = vpop.permute.xlu0 %8852
    %8854 = vrot.lane.b32.xlu0 %v8199, 112
    %v8855 = vpop.permute.xlu0 %8854
    %8856 = vrot.lane.b32.xlu0 %v8201, 112
    %v8857 = vpop.permute.xlu0 %8856
    %8858 = vrot.lane.b32.xlu0 %v8219, 112
    %v8859 = vpop.permute.xlu0 %8858
    %8860 = vrot.lane.b32.xlu0 %v8221, 112
    %v8861 = vpop.permute.xlu0 %8860
    %8862 = vrot.lane.b32.xlu0 %v8239, 112
    %v8863 = vpop.permute.xlu0 %8862
    %8864 = vrot.lane.b32.xlu0 %v8241, 112
    %v8865 = vpop.permute.xlu0 %8864
    %8866 = vrot.lane.b32.xlu0 %v8259, 112
    %v8867 = vpop.permute.xlu0 %8866
    %8868 = vrot.lane.b32.xlu0 %v8261, 112
    %v8869 = vpop.permute.xlu0 %8868
    %8870 = vrot.lane.b32.xlu0 %v8279, 112
    %v8871 = vpop.permute.xlu0 %8870
    %8872 = vrot.lane.b32.xlu0 %v8281, 112
    %v8873 = vpop.permute.xlu0 %8872
    %8874 = vrot.lane.b32.xlu0 %v8299, 112
    %v8875 = vpop.permute.xlu0 %8874
    %8876 = vrot.lane.b32.xlu0 %v8301, 112
    %v8877 = vpop.permute.xlu0 %8876
    %8908 = vrot.lane.b32.xlu0 %v7693, 16
    %v8909 = vpop.permute.xlu0 %8908
    %8910 = vrot.lane.b32.xlu0 %v7695, 16
    %v8911 = vpop.permute.xlu0 %8910
    %8912 = vrot.lane.b32.xlu0 %v7713, 16
    %v8913 = vpop.permute.xlu0 %8912
    %8914 = vrot.lane.b32.xlu0 %v7715, 16
    %v8915 = vpop.permute.xlu0 %8914
    %8916 = vrot.lane.b32.xlu0 %v7733, 16
    %v8917 = vpop.permute.xlu0 %8916
    %8918 = vrot.lane.b32.xlu0 %v7735, 16
    %v8919 = vpop.permute.xlu0 %8918
    %8920 = vrot.lane.b32.xlu0 %v7753, 16
    %v8921 = vpop.permute.xlu0 %8920
    %8922 = vrot.lane.b32.xlu0 %v7755, 16
    %v8923 = vpop.permute.xlu0 %8922
    %8924 = vrot.lane.b32.xlu0 %v7773, 16
    %v8925 = vpop.permute.xlu0 %8924
    %8926 = vrot.lane.b32.xlu0 %v7775, 16
    %v8927 = vpop.permute.xlu0 %8926
    %8928 = vrot.lane.b32.xlu0 %v7793, 16
    %v8929 = vpop.permute.xlu0 %8928
    %8930 = vrot.lane.b32.xlu0 %v7795, 16
    %v8931 = vpop.permute.xlu0 %8930
    %8932 = vrot.lane.b32.xlu0 %v7813, 16
    %v8933 = vpop.permute.xlu0 %8932
    %8934 = vrot.lane.b32.xlu0 %v7815, 16
    %v8935 = vpop.permute.xlu0 %8934
    %8936 = vrot.lane.b32.xlu0 %v7833, 16
    %v8937 = vpop.permute.xlu0 %8936
    %8938 = vrot.lane.b32.xlu0 %v7835, 16
    %v8939 = vpop.permute.xlu0 %8938
    %8940 = vrot.lane.b32.xlu0 %v7853, 16
    %v8941 = vpop.permute.xlu0 %8940
    %8942 = vrot.lane.b32.xlu0 %v7855, 16
    %v8943 = vpop.permute.xlu0 %8942
    %8944 = vrot.lane.b32.xlu0 %v7873, 16
    %v8945 = vpop.permute.xlu0 %8944
    %8946 = vrot.lane.b32.xlu0 %v7875, 16
    %v8947 = vpop.permute.xlu0 %8946
    %8948 = vrot.lane.b32.xlu0 %v7893, 16
    %v8949 = vpop.permute.xlu0 %8948
    %8950 = vrot.lane.b32.xlu0 %v7895, 16
    %v8951 = vpop.permute.xlu0 %8950
    %8952 = vrot.lane.b32.xlu0 %v7913, 16
    %v8953 = vpop.permute.xlu0 %8952
    %8954 = vrot.lane.b32.xlu0 %v7915, 16
    %v8955 = vpop.permute.xlu0 %8954
    %8956 = vrot.lane.b32.xlu0 %v7933, 16
    %v8957 = vpop.permute.xlu0 %8956
    %8958 = vrot.lane.b32.xlu0 %v7935, 16
    %v8959 = vpop.permute.xlu0 %8958
    %8960 = vrot.lane.b32.xlu0 %v7953, 16
    %v8961 = vpop.permute.xlu0 %8960
    %8962 = vrot.lane.b32.xlu0 %v7955, 16
    %v8963 = vpop.permute.xlu0 %8962
    %8964 = vrot.lane.b32.xlu0 %v7973, 16
    %v8965 = vpop.permute.xlu0 %8964
    %8966 = vrot.lane.b32.xlu0 %v7975, 16
    %v8967 = vpop.permute.xlu0 %8966
    %8998 = vrot.lane.b32.xlu0 %v8023, 32
    %v8999 = vpop.permute.xlu0 %8998
    %9000 = vrot.lane.b32.xlu0 %v8025, 32
    %v9001 = vpop.permute.xlu0 %9000
    %9002 = vrot.lane.b32.xlu0 %v8043, 32
    %v9003 = vpop.permute.xlu0 %9002
    %9004 = vrot.lane.b32.xlu0 %v8045, 32
    %v9005 = vpop.permute.xlu0 %9004
    %9006 = vrot.lane.b32.xlu0 %v8063, 32
    %v9007 = vpop.permute.xlu0 %9006
    %9008 = vrot.lane.b32.xlu0 %v8065, 32
    %v9009 = vpop.permute.xlu0 %9008
    %9010 = vrot.lane.b32.xlu0 %v8083, 32
    %v9011 = vpop.permute.xlu0 %9010
    %9012 = vrot.lane.b32.xlu0 %v8085, 32
    %v9013 = vpop.permute.xlu0 %9012
    %9014 = vrot.lane.b32.xlu0 %v8103, 32
    %v9015 = vpop.permute.xlu0 %9014
    %9016 = vrot.lane.b32.xlu0 %v8105, 32
    %v9017 = vpop.permute.xlu0 %9016
    %9018 = vrot.lane.b32.xlu0 %v8123, 32
    %v9019 = vpop.permute.xlu0 %9018
    %9020 = vrot.lane.b32.xlu0 %v8125, 32
    %v9021 = vpop.permute.xlu0 %9020
    %9022 = vrot.lane.b32.xlu0 %v8143, 32
    %v9023 = vpop.permute.xlu0 %9022
    %9024 = vrot.lane.b32.xlu0 %v8145, 32
    %v9025 = vpop.permute.xlu0 %9024
    %9026 = vrot.lane.b32.xlu0 %v8163, 32
    %v9027 = vpop.permute.xlu0 %9026
    %9028 = vrot.lane.b32.xlu0 %v8165, 32
    %v9029 = vpop.permute.xlu0 %9028
    %9030 = vrot.lane.b32.xlu0 %v8183, 32
    %v9031 = vpop.permute.xlu0 %9030
    %9032 = vrot.lane.b32.xlu0 %v8185, 32
    %v9033 = vpop.permute.xlu0 %9032
    %9034 = vrot.lane.b32.xlu0 %v8203, 32
    %v9035 = vpop.permute.xlu0 %9034
    %9036 = vrot.lane.b32.xlu0 %v8205, 32
    %v9037 = vpop.permute.xlu0 %9036
    %9038 = vrot.lane.b32.xlu0 %v8223, 32
    %v9039 = vpop.permute.xlu0 %9038
    %9040 = vrot.lane.b32.xlu0 %v8225, 32
    %v9041 = vpop.permute.xlu0 %9040
    %9042 = vrot.lane.b32.xlu0 %v8243, 32
    %v9043 = vpop.permute.xlu0 %9042
    %9044 = vrot.lane.b32.xlu0 %v8245, 32
    %v9045 = vpop.permute.xlu0 %9044
    %9046 = vrot.lane.b32.xlu0 %v8263, 32
    %v9047 = vpop.permute.xlu0 %9046
    %9048 = vrot.lane.b32.xlu0 %v8265, 32
    %v9049 = vpop.permute.xlu0 %9048
    %9050 = vrot.lane.b32.xlu0 %v8283, 32
    %v9051 = vpop.permute.xlu0 %9050
    %9052 = vrot.lane.b32.xlu0 %v8285, 32
    %v9053 = vpop.permute.xlu0 %9052
    %9054 = vrot.lane.b32.xlu0 %v8303, 32
    %v9055 = vpop.permute.xlu0 %9054
    %9056 = vrot.lane.b32.xlu0 %v8305, 32
    %v9057 = vpop.permute.xlu0 %9056
    %9088 = vrot.lane.b32.xlu0 %v7263, 48
    %v9089 = vpop.permute.xlu0 %9088
    %9090 = vrot.lane.b32.xlu0 %v7265, 48
    %v9091 = vpop.permute.xlu0 %9090
    %9092 = vrot.lane.b32.xlu0 %v7373, 48
    %v9093 = vpop.permute.xlu0 %9092
    %9094 = vrot.lane.b32.xlu0 %v7375, 48
    %v9095 = vpop.permute.xlu0 %9094
    %9096 = vrot.lane.b32.xlu0 %v7116, 48
    %v9097 = vpop.permute.xlu0 %9096
    %9098 = vrot.lane.b32.xlu0 %v7118, 48
    %v9099 = vpop.permute.xlu0 %9098
    %9100 = vrot.lane.b32.xlu0 %v7283, 48
    %v9101 = vpop.permute.xlu0 %9100
    %9102 = vrot.lane.b32.xlu0 %v7285, 48
    %v9103 = vpop.permute.xlu0 %9102
    %9104 = vrot.lane.b32.xlu0 %v7393, 48
    %v9105 = vpop.permute.xlu0 %9104
    %9106 = vrot.lane.b32.xlu0 %v7395, 48
    %v9107 = vpop.permute.xlu0 %9106
    %9108 = vrot.lane.b32.xlu0 %v7138, 48
    %v9109 = vpop.permute.xlu0 %9108
    %9110 = vrot.lane.b32.xlu0 %v7140, 48
    %v9111 = vpop.permute.xlu0 %9110
    %9112 = vrot.lane.b32.xlu0 %v7303, 48
    %v9113 = vpop.permute.xlu0 %9112
    %9114 = vrot.lane.b32.xlu0 %v7305, 48
    %v9115 = vpop.permute.xlu0 %9114
    %9116 = vrot.lane.b32.xlu0 %v7413, 48
    %v9117 = vpop.permute.xlu0 %9116
    %9118 = vrot.lane.b32.xlu0 %v7415, 48
    %v9119 = vpop.permute.xlu0 %9118
    %9120 = vrot.lane.b32.xlu0 %v7160, 48
    %v9121 = vpop.permute.xlu0 %9120
    %9122 = vrot.lane.b32.xlu0 %v7162, 48
    %v9123 = vpop.permute.xlu0 %9122
    %9124 = vrot.lane.b32.xlu0 %v7323, 48
    %v9125 = vpop.permute.xlu0 %9124
    %9126 = vrot.lane.b32.xlu0 %v7325, 48
    %v9127 = vpop.permute.xlu0 %9126
    %9128 = vrot.lane.b32.xlu0 %v7433, 48
    %v9129 = vpop.permute.xlu0 %9128
    %9130 = vrot.lane.b32.xlu0 %v7435, 48
    %v9131 = vpop.permute.xlu0 %9130
    %9132 = vrot.lane.b32.xlu0 %v7182, 48
    %v9133 = vpop.permute.xlu0 %9132
    %9134 = vrot.lane.b32.xlu0 %v7184, 48
    %v9135 = vpop.permute.xlu0 %9134
    %9136 = vrot.lane.b32.xlu0 %v7343, 48
    %v9137 = vpop.permute.xlu0 %9136
    %9138 = vrot.lane.b32.xlu0 %v7345, 48
    %v9139 = vpop.permute.xlu0 %9138
    %9140 = vrot.lane.b32.xlu0 %v7453, 48
    %v9141 = vpop.permute.xlu0 %9140
    %9142 = vrot.lane.b32.xlu0 %v7455, 48
    %v9143 = vpop.permute.xlu0 %9142
    %9144 = vrot.lane.b32.xlu0 %v7196, 48
    %v9145 = vpop.permute.xlu0 %9144
    %9146 = vrot.lane.b32.xlu0 %v7197, 48
    %v9147 = vpop.permute.xlu0 %9146
    %9178 = vrot.lane.b32.xlu0 %v7697, 64
    %v9179 = vpop.permute.xlu0 %9178
    %9180 = vrot.lane.b32.xlu0 %v7699, 64
    %v9181 = vpop.permute.xlu0 %9180
    %9182 = vrot.lane.b32.xlu0 %v7717, 64
    %v9183 = vpop.permute.xlu0 %9182
    %9184 = vrot.lane.b32.xlu0 %v7719, 64
    %v9185 = vpop.permute.xlu0 %9184
    %9186 = vrot.lane.b32.xlu0 %v7737, 64
    %v9187 = vpop.permute.xlu0 %9186
    %9188 = vrot.lane.b32.xlu0 %v7739, 64
    %v9189 = vpop.permute.xlu0 %9188
    %9190 = vrot.lane.b32.xlu0 %v7757, 64
    %v9191 = vpop.permute.xlu0 %9190
    %9192 = vrot.lane.b32.xlu0 %v7759, 64
    %v9193 = vpop.permute.xlu0 %9192
    %9194 = vrot.lane.b32.xlu0 %v7777, 64
    %v9195 = vpop.permute.xlu0 %9194
    %9196 = vrot.lane.b32.xlu0 %v7779, 64
    %v9197 = vpop.permute.xlu0 %9196
    %9198 = vrot.lane.b32.xlu0 %v7797, 64
    %v9199 = vpop.permute.xlu0 %9198
    %9200 = vrot.lane.b32.xlu0 %v7799, 64
    %v9201 = vpop.permute.xlu0 %9200
    %9202 = vrot.lane.b32.xlu0 %v7817, 64
    %v9203 = vpop.permute.xlu0 %9202
    %9204 = vrot.lane.b32.xlu0 %v7819, 64
    %v9205 = vpop.permute.xlu0 %9204
    %9206 = vrot.lane.b32.xlu0 %v7837, 64
    %v9207 = vpop.permute.xlu0 %9206
    %9208 = vrot.lane.b32.xlu0 %v7839, 64
    %v9209 = vpop.permute.xlu0 %9208
    %9210 = vrot.lane.b32.xlu0 %v7857, 64
    %v9211 = vpop.permute.xlu0 %9210
    %9212 = vrot.lane.b32.xlu0 %v7859, 64
    %v9213 = vpop.permute.xlu0 %9212
    %9214 = vrot.lane.b32.xlu0 %v7877, 64
    %v9215 = vpop.permute.xlu0 %9214
    %9216 = vrot.lane.b32.xlu0 %v7879, 64
    %v9217 = vpop.permute.xlu0 %9216
    %9218 = vrot.lane.b32.xlu0 %v7897, 64
    %v9219 = vpop.permute.xlu0 %9218
    %9220 = vrot.lane.b32.xlu0 %v7899, 64
    %v9221 = vpop.permute.xlu0 %9220
    %9222 = vrot.lane.b32.xlu0 %v7917, 64
    %v9223 = vpop.permute.xlu0 %9222
    %9224 = vrot.lane.b32.xlu0 %v7919, 64
    %v9225 = vpop.permute.xlu0 %9224
    %9226 = vrot.lane.b32.xlu0 %v7937, 64
    %v9227 = vpop.permute.xlu0 %9226
    %9228 = vrot.lane.b32.xlu0 %v7939, 64
    %v9229 = vpop.permute.xlu0 %9228
    %9230 = vrot.lane.b32.xlu0 %v7957, 64
    %v9231 = vpop.permute.xlu0 %9230
    %9232 = vrot.lane.b32.xlu0 %v7959, 64
    %v9233 = vpop.permute.xlu0 %9232
    %9234 = vrot.lane.b32.xlu0 %v7977, 64
    %v9235 = vpop.permute.xlu0 %9234
    %9236 = vrot.lane.b32.xlu0 %v7979, 64
    %v9237 = vpop.permute.xlu0 %9236
    %9268 = vrot.lane.b32.xlu0 %v8027, 80
    %v9269 = vpop.permute.xlu0 %9268
    %9270 = vrot.lane.b32.xlu0 %v8029, 80
    %v9271 = vpop.permute.xlu0 %9270
    %9272 = vrot.lane.b32.xlu0 %v8047, 80
    %v9273 = vpop.permute.xlu0 %9272
    %9274 = vrot.lane.b32.xlu0 %v8049, 80
    %v9275 = vpop.permute.xlu0 %9274
    %9276 = vrot.lane.b32.xlu0 %v8067, 80
    %v9277 = vpop.permute.xlu0 %9276
    %9278 = vrot.lane.b32.xlu0 %v8069, 80
    %v9279 = vpop.permute.xlu0 %9278
    %9280 = vrot.lane.b32.xlu0 %v8087, 80
    %v9281 = vpop.permute.xlu0 %9280
    %9282 = vrot.lane.b32.xlu0 %v8089, 80
    %v9283 = vpop.permute.xlu0 %9282
    %9284 = vrot.lane.b32.xlu0 %v8107, 80
    %v9285 = vpop.permute.xlu0 %9284
    %9286 = vrot.lane.b32.xlu0 %v8109, 80
    %v9287 = vpop.permute.xlu0 %9286
    %9288 = vrot.lane.b32.xlu0 %v8127, 80
    %v9289 = vpop.permute.xlu0 %9288
    %9290 = vrot.lane.b32.xlu0 %v8129, 80
    %v9291 = vpop.permute.xlu0 %9290
    %9292 = vrot.lane.b32.xlu0 %v8147, 80
    %v9293 = vpop.permute.xlu0 %9292
    %9294 = vrot.lane.b32.xlu0 %v8149, 80
    %v9295 = vpop.permute.xlu0 %9294
    %9296 = vrot.lane.b32.xlu0 %v8167, 80
    %v9297 = vpop.permute.xlu0 %9296
    %9298 = vrot.lane.b32.xlu0 %v8169, 80
    %v9299 = vpop.permute.xlu0 %9298
    %9300 = vrot.lane.b32.xlu0 %v8187, 80
    %v9301 = vpop.permute.xlu0 %9300
    %9302 = vrot.lane.b32.xlu0 %v8189, 80
    %v9303 = vpop.permute.xlu0 %9302
    %9304 = vrot.lane.b32.xlu0 %v8207, 80
    %v9305 = vpop.permute.xlu0 %9304
    %9306 = vrot.lane.b32.xlu0 %v8209, 80
    %v9307 = vpop.permute.xlu0 %9306
    %9308 = vrot.lane.b32.xlu0 %v8227, 80
    %v9309 = vpop.permute.xlu0 %9308
    %9310 = vrot.lane.b32.xlu0 %v8229, 80
    %v9311 = vpop.permute.xlu0 %9310
    %9312 = vrot.lane.b32.xlu0 %v8247, 80
    %v9313 = vpop.permute.xlu0 %9312
    %9314 = vrot.lane.b32.xlu0 %v8249, 80
    %v9315 = vpop.permute.xlu0 %9314
    %9316 = vrot.lane.b32.xlu0 %v8267, 80
    %v9317 = vpop.permute.xlu0 %9316
    %9318 = vrot.lane.b32.xlu0 %v8269, 80
    %v9319 = vpop.permute.xlu0 %9318
    %9320 = vrot.lane.b32.xlu0 %v8287, 80
    %v9321 = vpop.permute.xlu0 %9320
    %9322 = vrot.lane.b32.xlu0 %v8289, 80
    %v9323 = vpop.permute.xlu0 %9322
    %9324 = vrot.lane.b32.xlu0 %v8307, 80
    %v9325 = vpop.permute.xlu0 %9324
    %9326 = vrot.lane.b32.xlu0 %v8309, 80
    %v9327 = vpop.permute.xlu0 %9326
    %9360 = vrot.lane.b32.xlu0 %v7267, 96
    %v9361 = vpop.permute.xlu0 %9360
    %9362 = vrot.lane.b32.xlu0 %v7269, 96
    %v9363 = vpop.permute.xlu0 %9362
    %9364 = vrot.lane.b32.xlu0 %v7377, 96
    %v9365 = vpop.permute.xlu0 %9364
    %9366 = vrot.lane.b32.xlu0 %v7379, 96
    %v9367 = vpop.permute.xlu0 %9366
    %9368 = vrot.lane.b32.xlu0 %v7120, 96
    %v9369 = vpop.permute.xlu0 %9368
    %9370 = vrot.lane.b32.xlu0 %v7121, 96
    %v9371 = vpop.permute.xlu0 %9370
    %9372 = vrot.lane.b32.xlu0 %v7287, 96
    %v9373 = vpop.permute.xlu0 %9372
    %9374 = vrot.lane.b32.xlu0 %v7289, 96
    %v9375 = vpop.permute.xlu0 %9374
    %9376 = vrot.lane.b32.xlu0 %v7397, 96
    %v9377 = vpop.permute.xlu0 %9376
    %9378 = vrot.lane.b32.xlu0 %v7399, 96
    %v9379 = vpop.permute.xlu0 %9378
    %9380 = vrot.lane.b32.xlu0 %v7142, 96
    %v9381 = vpop.permute.xlu0 %9380
    %9382 = vrot.lane.b32.xlu0 %v7143, 96
    %v9383 = vpop.permute.xlu0 %9382
    %9384 = vrot.lane.b32.xlu0 %v7307, 96
    %v9385 = vpop.permute.xlu0 %9384
    %9386 = vrot.lane.b32.xlu0 %v7309, 96
    %v9387 = vpop.permute.xlu0 %9386
    %9388 = vrot.lane.b32.xlu0 %v7417, 96
    %v9389 = vpop.permute.xlu0 %9388
    %9390 = vrot.lane.b32.xlu0 %v7419, 96
    %v9391 = vpop.permute.xlu0 %9390
    %9392 = vrot.lane.b32.xlu0 %v7164, 96
    %v9393 = vpop.permute.xlu0 %9392
    %9394 = vrot.lane.b32.xlu0 %v7165, 96
    %v9395 = vpop.permute.xlu0 %9394
    %9396 = vrot.lane.b32.xlu0 %v7327, 96
    %v9397 = vpop.permute.xlu0 %9396
    %9398 = vrot.lane.b32.xlu0 %v7329, 96
    %v9399 = vpop.permute.xlu0 %9398
    %9400 = vrot.lane.b32.xlu0 %v7437, 96
    %v9401 = vpop.permute.xlu0 %9400
    %9402 = vrot.lane.b32.xlu0 %v7439, 96
    %v9403 = vpop.permute.xlu0 %9402
    %9404 = vrot.lane.b32.xlu0 %v7186, 96
    %v9405 = vpop.permute.xlu0 %9404
    %9406 = vrot.lane.b32.xlu0 %v7187, 96
    %v9407 = vpop.permute.xlu0 %9406
    %9408 = vrot.lane.b32.xlu0 %v7347, 96
    %v9409 = vpop.permute.xlu0 %9408
    %9410 = vrot.lane.b32.xlu0 %v7349, 96
    %v9411 = vpop.permute.xlu0 %9410
    %9412 = vrot.lane.b32.xlu0 %v7457, 96
    %v9413 = vpop.permute.xlu0 %9412
    %9414 = vrot.lane.b32.xlu0 %v7459, 96
    %v9415 = vpop.permute.xlu0 %9414
    %9416 = vrot.lane.b32.xlu0 %v7198, 96
    %v9417 = vpop.permute.xlu0 %9416
    %9418 = vrot.lane.b32.xlu0 %v7199, 96
    %v9419 = vpop.permute.xlu0 %9418
    %vm9450 = vcmask 130048
    %v9451 = vsel %vm9450, %v7681, %v8311
    %v9452 = vsel %vm9450, %v7683, %v8313
    %v9453 = vsel %vm9450, %v7701, %v8315
    %v9454 = vsel %vm9450, %v7703, %v8317
    %v9455 = vsel %vm9450, %v7721, %v8319
    %v9456 = vsel %vm9450, %v7723, %v8321
    %v9457 = vsel %vm9450, %v7741, %v8323
    %v9458 = vsel %vm9450, %v7743, %v8325
    %v9459 = vsel %vm9450, %v7761, %v8327
    %v9460 = vsel %vm9450, %v7763, %v8329
    %v9461 = vsel %vm9450, %v7781, %v8331
    %v9462 = vsel %vm9450, %v7783, %v8333
    %v9463 = vsel %vm9450, %v7801, %v8335
    %v9464 = vsel %vm9450, %v7803, %v8337
    %v9465 = vsel %vm9450, %v7821, %v8339
    %v9466 = vsel %vm9450, %v7823, %v8341
    %v9467 = vsel %vm9450, %v7841, %v8343
    %v9468 = vsel %vm9450, %v7843, %v8345
    %v9469 = vsel %vm9450, %v7861, %v8347
    %v9470 = vsel %vm9450, %v7863, %v8349
    %v9471 = vsel %vm9450, %v7881, %v8351
    %v9472 = vsel %vm9450, %v7883, %v8353
    %v9473 = vsel %vm9450, %v7901, %v8355
    %v9474 = vsel %vm9450, %v7903, %v8357
    %v9475 = vsel %vm9450, %v7921, %v8359
    %v9476 = vsel %vm9450, %v7923, %v8361
    %v9477 = vsel %vm9450, %v7941, %v8363
    %v9478 = vsel %vm9450, %v7943, %v8365
    %v9479 = vsel %vm9450, %v7961, %v8367
    %v9480 = vsel %vm9450, %v7963, %v8369
    %v9481 = vsel %vm3608, %v9451, %v8401
    %v9482 = vsel %vm3608, %v9452, %v8403
    %v9483 = vsel %vm3608, %v9453, %v8405
    %v9484 = vsel %vm3608, %v9454, %v8407
    %v9485 = vsel %vm3608, %v9455, %v7381
    %v9486 = vsel %vm3608, %v9456, %v7383
    %v9487 = vsel %vm3608, %v9457, %v8409
    %v9488 = vsel %vm3608, %v9458, %v8411
    %v9489 = vsel %vm3608, %v9459, %v8413
    %v9490 = vsel %vm3608, %v9460, %v8415
    %v9491 = vsel %vm3608, %v9461, %v7401
    %v9492 = vsel %vm3608, %v9462, %v7403
    %v9493 = vsel %vm3608, %v9463, %v8417
    %v9494 = vsel %vm3608, %v9464, %v8419
    %v9495 = vsel %vm3608, %v9465, %v8421
    %v9496 = vsel %vm3608, %v9466, %v8423
    %v9497 = vsel %vm3608, %v9467, %v7421
    %v9498 = vsel %vm3608, %v9468, %v7423
    %v9499 = vsel %vm3608, %v9469, %v8425
    %v9500 = vsel %vm3608, %v9470, %v8427
    %v9501 = vsel %vm3608, %v9471, %v8429
    %v9502 = vsel %vm3608, %v9472, %v8431
    %v9503 = vsel %vm3608, %v9473, %v7441
    %v9504 = vsel %vm3608, %v9474, %v7443
    %v9505 = vsel %vm3608, %v9475, %v8433
    %v9506 = vsel %vm3608, %v9476, %v8435
    %v9507 = vsel %vm3608, %v9477, %v8437
    %v9508 = vsel %vm3608, %v9478, %v8439
    %v9509 = vsel %vm3608, %v9479, %v8441
    %v9510 = vsel %vm3608, %v9480, %v8443
    %vm9511 = vcmask 392192
    %v9512 = vsel %vm9511, %v9481, %v8475
    %v9513 = vsel %vm9511, %v9482, %v8477
    %v9514 = vsel %vm9511, %v9483, %v8479
    %v9515 = vsel %vm9511, %v9484, %v8481
    %v9516 = vsel %vm9511, %v9485, %v8483
    %v9517 = vsel %vm9511, %v9486, %v8485
    %v9518 = vsel %vm9511, %v9487, %v8487
    %v9519 = vsel %vm9511, %v9488, %v8489
    %v9520 = vsel %vm9511, %v9489, %v8491
    %v9521 = vsel %vm9511, %v9490, %v8493
    %v9522 = vsel %vm9511, %v9491, %v8495
    %v9523 = vsel %vm9511, %v9492, %v8497
    %v9524 = vsel %vm9511, %v9493, %v8499
    %v9525 = vsel %vm9511, %v9494, %v8501
    %v9526 = vsel %vm9511, %v9495, %v8503
    %v9527 = vsel %vm9511, %v9496, %v8505
    %v9528 = vsel %vm9511, %v9497, %v8507
    %v9529 = vsel %vm9511, %v9498, %v8509
    %v9530 = vsel %vm9511, %v9499, %v8511
    %v9531 = vsel %vm9511, %v9500, %v8513
    %v9532 = vsel %vm9511, %v9501, %v8515
    %v9533 = vsel %vm9511, %v9502, %v8517
    %v9534 = vsel %vm9511, %v9503, %v8519
    %v9535 = vsel %vm9511, %v9504, %v8521
    %v9536 = vsel %vm9511, %v9505, %v8523
    %v9537 = vsel %vm9511, %v9506, %v8525
    %v9538 = vsel %vm9511, %v9507, %v8527
    %v9539 = vsel %vm9511, %v9508, %v8529
    %v9540 = vsel %vm9511, %v9509, %v8531
    %v9541 = vsel %vm9511, %v9510, %v8533
    %v9542 = vsel %vm2527, %v9512, %v8565
    %v9543 = vsel %vm2527, %v9513, %v8567
    %v9544 = vsel %vm2527, %v9514, %v8569
    %v9545 = vsel %vm2527, %v9515, %v8571
    %v9546 = vsel %vm2527, %v9516, %v8573
    %v9547 = vsel %vm2527, %v9517, %v8575
    %v9548 = vsel %vm2527, %v9518, %v8577
    %v9549 = vsel %vm2527, %v9519, %v8579
    %v9550 = vsel %vm2527, %v9520, %v8581
    %v9551 = vsel %vm2527, %v9521, %v8583
    %v9552 = vsel %vm2527, %v9522, %v8585
    %v9553 = vsel %vm2527, %v9523, %v8587
    %v9554 = vsel %vm2527, %v9524, %v8589
    %v9555 = vsel %vm2527, %v9525, %v8591
    %v9556 = vsel %vm2527, %v9526, %v8593
    %v9557 = vsel %vm2527, %v9527, %v8595
    %v9558 = vsel %vm2527, %v9528, %v8597
    %v9559 = vsel %vm2527, %v9529, %v8599
    %v9560 = vsel %vm2527, %v9530, %v8601
    %v9561 = vsel %vm2527, %v9531, %v8603
    %v9562 = vsel %vm2527, %v9532, %v8605
    %v9563 = vsel %vm2527, %v9533, %v8607
    %v9564 = vsel %vm2527, %v9534, %v8609
    %v9565 = vsel %vm2527, %v9535, %v8611
    %v9566 = vsel %vm2527, %v9536, %v8613
    %v9567 = vsel %vm2527, %v9537, %v8615
    %v9568 = vsel %vm2527, %v9538, %v8617
    %v9569 = vsel %vm2527, %v9539, %v8619
    %v9570 = vsel %vm2527, %v9540, %v8621
    %v9571 = vsel %vm2527, %v9541, %v8623
    %vm9572 = vcmask 654336
    %v9573 = vsel %vm9572, %v9542, %v8655
    %v9574 = vsel %vm9572, %v9543, %v8657
    %v9575 = vsel %vm9572, %v9544, %v8659
    %v9576 = vsel %vm9572, %v9545, %v8661
    %v9577 = vsel %vm9572, %v9546, %v7275
    %v9578 = vsel %vm9572, %v9547, %v7277
    %v9579 = vsel %vm9572, %v9548, %v8663
    %v9580 = vsel %vm9572, %v9549, %v8665
    %v9581 = vsel %vm9572, %v9550, %v8667
    %v9582 = vsel %vm9572, %v9551, %v8669
    %v9583 = vsel %vm9572, %v9552, %v7295
    %v9584 = vsel %vm9572, %v9553, %v7297
    %v9585 = vsel %vm9572, %v9554, %v8671
    %v9586 = vsel %vm9572, %v9555, %v8673
    %v9587 = vsel %vm9572, %v9556, %v8675
    %v9588 = vsel %vm9572, %v9557, %v8677
    %v9589 = vsel %vm9572, %v9558, %v7315
    %v9590 = vsel %vm9572, %v9559, %v7317
    %v9591 = vsel %vm9572, %v9560, %v8679
    %v9592 = vsel %vm9572, %v9561, %v8681
    %v9593 = vsel %vm9572, %v9562, %v8683
    %v9594 = vsel %vm9572, %v9563, %v8685
    %v9595 = vsel %vm9572, %v9564, %v7335
    %v9596 = vsel %vm9572, %v9565, %v7337
    %v9597 = vsel %vm9572, %v9566, %v8687
    %v9598 = vsel %vm9572, %v9567, %v8689
    %v9599 = vsel %vm9572, %v9568, %v8691
    %v9600 = vsel %vm9572, %v9569, %v8693
    %v9601 = vsel %vm9572, %v9570, %v8695
    %v9602 = vsel %vm9572, %v9571, %v8697
    %v9603 = vsel %vm3613, %v9573, %v8729
    %v9604 = vsel %vm3613, %v9574, %v8731
    %v9605 = vsel %vm3613, %v9575, %v8733
    %v9606 = vsel %vm3613, %v9576, %v8735
    %v9607 = vsel %vm3613, %v9577, %v8737
    %v9608 = vsel %vm3613, %v9578, %v8739
    %v9609 = vsel %vm3613, %v9579, %v8741
    %v9610 = vsel %vm3613, %v9580, %v8743
    %v9611 = vsel %vm3613, %v9581, %v8745
    %v9612 = vsel %vm3613, %v9582, %v8747
    %v9613 = vsel %vm3613, %v9583, %v8749
    %v9614 = vsel %vm3613, %v9584, %v8751
    %v9615 = vsel %vm3613, %v9585, %v8753
    %v9616 = vsel %vm3613, %v9586, %v8755
    %v9617 = vsel %vm3613, %v9587, %v8757
    %v9618 = vsel %vm3613, %v9588, %v8759
    %v9619 = vsel %vm3613, %v9589, %v8761
    %v9620 = vsel %vm3613, %v9590, %v8763
    %v9621 = vsel %vm3613, %v9591, %v8765
    %v9622 = vsel %vm3613, %v9592, %v8767
    %v9623 = vsel %vm3613, %v9593, %v8769
    %v9624 = vsel %vm3613, %v9594, %v8771
    %v9625 = vsel %vm3613, %v9595, %v8773
    %v9626 = vsel %vm3613, %v9596, %v8775
    %v9627 = vsel %vm3613, %v9597, %v8777
    %v9628 = vsel %vm3613, %v9598, %v8779
    %v9629 = vsel %vm3613, %v9599, %v8781
    %v9630 = vsel %vm3613, %v9600, %v8783
    %v9631 = vsel %vm3613, %v9601, %v8785
    %v9632 = vsel %vm3613, %v9602, %v8787
    %vm9633 = vcmask 916480
    %v9634 = vsel %vm9633, %v9603, %v8819
    %v9635 = vsel %vm9633, %v9604, %v8821
    %v9636 = vsel %vm9633, %v9605, %v8823
    %v9637 = vsel %vm9633, %v9606, %v8825
    %v9638 = vsel %vm9633, %v9607, %v8827
    %v9639 = vsel %vm9633, %v9608, %v8829
    %v9640 = vsel %vm9633, %v9609, %v8831
    %v9641 = vsel %vm9633, %v9610, %v8833
    %v9642 = vsel %vm9633, %v9611, %v8835
    %v9643 = vsel %vm9633, %v9612, %v8837
    %v9644 = vsel %vm9633, %v9613, %v8839
    %v9645 = vsel %vm9633, %v9614, %v8841
    %v9646 = vsel %vm9633, %v9615, %v8843
    %v9647 = vsel %vm9633, %v9616, %v8845
    %v9648 = vsel %vm9633, %v9617, %v8847
    %v9649 = vsel %vm9633, %v9618, %v8849
    %v9650 = vsel %vm9633, %v9619, %v8851
    %v9651 = vsel %vm9633, %v9620, %v8853
    %v9652 = vsel %vm9633, %v9621, %v8855
    %v9653 = vsel %vm9633, %v9622, %v8857
    %v9654 = vsel %vm9633, %v9623, %v8859
    %v9655 = vsel %vm9633, %v9624, %v8861
    %v9656 = vsel %vm9633, %v9625, %v8863
    %v9657 = vsel %vm9633, %v9626, %v8865
    %v9658 = vsel %vm9633, %v9627, %v8867
    %v9659 = vsel %vm9633, %v9628, %v8869
    %v9660 = vsel %vm9633, %v9629, %v8871
    %v9661 = vsel %vm9633, %v9630, %v8873
    %v9662 = vsel %vm9633, %v9631, %v8875
    %v9663 = vsel %vm9633, %v9632, %v8877
    %v9664 = vsel %vm9450, %v7259, %v8909
    %v9665 = vsel %vm9450, %v7261, %v8911
    %v9666 = vsel %vm9450, %v7369, %v8913
    %v9667 = vsel %vm9450, %v7371, %v8915
    %v9668 = vsel %vm9450, %v7112, %v8917
    %v9669 = vsel %vm9450, %v7114, %v8919
    %v9670 = vsel %vm9450, %v7279, %v8921
    %v9671 = vsel %vm9450, %v7281, %v8923
    %v9672 = vsel %vm9450, %v7389, %v8925
    %v9673 = vsel %vm9450, %v7391, %v8927
    %v9674 = vsel %vm9450, %v7134, %v8929
    %v9675 = vsel %vm9450, %v7136, %v8931
    %v9676 = vsel %vm9450, %v7299, %v8933
    %v9677 = vsel %vm9450, %v7301, %v8935
    %v9678 = vsel %vm9450, %v7409, %v8937
    %v9679 = vsel %vm9450, %v7411, %v8939
    %v9680 = vsel %vm9450, %v7156, %v8941
    %v9681 = vsel %vm9450, %v7158, %v8943
    %v9682 = vsel %vm9450, %v7319, %v8945
    %v9683 = vsel %vm9450, %v7321, %v8947
    %v9684 = vsel %vm9450, %v7429, %v8949
    %v9685 = vsel %vm9450, %v7431, %v8951
    %v9686 = vsel %vm9450, %v7178, %v8953
    %v9687 = vsel %vm9450, %v7180, %v8955
    %v9688 = vsel %vm9450, %v7339, %v8957
    %v9689 = vsel %vm9450, %v7341, %v8959
    %v9690 = vsel %vm9450, %v7449, %v8961
    %v9691 = vsel %vm9450, %v7451, %v8963
    %v9692 = vsel %vm9450, %v7194, %v8965
    %v9693 = vsel %vm9450, %v7195, %v8967
    %v9694 = vsel %vm3608, %v9664, %v8999
    %v9695 = vsel %vm3608, %v9665, %v9001
    %v9696 = vsel %vm3608, %v9666, %v9003
    %v9697 = vsel %vm3608, %v9667, %v9005
    %v9698 = vsel %vm3608, %v9668, %v9007
    %v9699 = vsel %vm3608, %v9669, %v9009
    %v9700 = vsel %vm3608, %v9670, %v9011
    %v9701 = vsel %vm3608, %v9671, %v9013
    %v9702 = vsel %vm3608, %v9672, %v9015
    %v9703 = vsel %vm3608, %v9673, %v9017
    %v9704 = vsel %vm3608, %v9674, %v9019
    %v9705 = vsel %vm3608, %v9675, %v9021
    %v9706 = vsel %vm3608, %v9676, %v9023
    %v9707 = vsel %vm3608, %v9677, %v9025
    %v9708 = vsel %vm3608, %v9678, %v9027
    %v9709 = vsel %vm3608, %v9679, %v9029
    %v9710 = vsel %vm3608, %v9680, %v9031
    %v9711 = vsel %vm3608, %v9681, %v9033
    %v9712 = vsel %vm3608, %v9682, %v9035
    %v9713 = vsel %vm3608, %v9683, %v9037
    %v9714 = vsel %vm3608, %v9684, %v9039
    %v9715 = vsel %vm3608, %v9685, %v9041
    %v9716 = vsel %vm3608, %v9686, %v9043
    %v9717 = vsel %vm3608, %v9687, %v9045
    %v9718 = vsel %vm3608, %v9688, %v9047
    %v9719 = vsel %vm3608, %v9689, %v9049
    %v9720 = vsel %vm3608, %v9690, %v9051
    %v9721 = vsel %vm3608, %v9691, %v9053
    %v9722 = vsel %vm3608, %v9692, %v9055
    %v9723 = vsel %vm3608, %v9693, %v9057
    %v9724 = vsel %vm9511, %v9694, %v9089
    %v9725 = vsel %vm9511, %v9695, %v9091
    %v9726 = vsel %vm9511, %v9696, %v9093
    %v9727 = vsel %vm9511, %v9697, %v9095
    %v9728 = vsel %vm9511, %v9698, %v9097
    %v9729 = vsel %vm9511, %v9699, %v9099
    %v9730 = vsel %vm9511, %v9700, %v9101
    %v9731 = vsel %vm9511, %v9701, %v9103
    %v9732 = vsel %vm9511, %v9702, %v9105
    %v9733 = vsel %vm9511, %v9703, %v9107
    %v9734 = vsel %vm9511, %v9704, %v9109
    %v9735 = vsel %vm9511, %v9705, %v9111
    %v9736 = vsel %vm9511, %v9706, %v9113
    %v9737 = vsel %vm9511, %v9707, %v9115
    %v9738 = vsel %vm9511, %v9708, %v9117
    %v9739 = vsel %vm9511, %v9709, %v9119
    %v9740 = vsel %vm9511, %v9710, %v9121
    %v9741 = vsel %vm9511, %v9711, %v9123
    %v9742 = vsel %vm9511, %v9712, %v9125
    %v9743 = vsel %vm9511, %v9713, %v9127
    %v9744 = vsel %vm9511, %v9714, %v9129
    %v9745 = vsel %vm9511, %v9715, %v9131
    %v9746 = vsel %vm9511, %v9716, %v9133
    %v9747 = vsel %vm9511, %v9717, %v9135
    %v9748 = vsel %vm9511, %v9718, %v9137
    %v9749 = vsel %vm9511, %v9719, %v9139
    %v9750 = vsel %vm9511, %v9720, %v9141
    %v9751 = vsel %vm9511, %v9721, %v9143
    %v9752 = vsel %vm9511, %v9722, %v9145
    %v9753 = vsel %vm9511, %v9723, %v9147
    %v9754 = vsel %vm2527, %v9724, %v9179
    %v9755 = vsel %vm2527, %v9725, %v9181
    %v9756 = vsel %vm2527, %v9726, %v9183
    %v9757 = vsel %vm2527, %v9727, %v9185
    %v9758 = vsel %vm2527, %v9728, %v9187
    %v9759 = vsel %vm2527, %v9729, %v9189
    %v9760 = vsel %vm2527, %v9730, %v9191
    %v9761 = vsel %vm2527, %v9731, %v9193
    %v9762 = vsel %vm2527, %v9732, %v9195
    %v9763 = vsel %vm2527, %v9733, %v9197
    %v9764 = vsel %vm2527, %v9734, %v9199
    %v9765 = vsel %vm2527, %v9735, %v9201
    %v9766 = vsel %vm2527, %v9736, %v9203
    %v9767 = vsel %vm2527, %v9737, %v9205
    %v9768 = vsel %vm2527, %v9738, %v9207
    %v9769 = vsel %vm2527, %v9739, %v9209
    %v9770 = vsel %vm2527, %v9740, %v9211
    %v9771 = vsel %vm2527, %v9741, %v9213
    %v9772 = vsel %vm2527, %v9742, %v9215
    %v9773 = vsel %vm2527, %v9743, %v9217
    %v9774 = vsel %vm2527, %v9744, %v9219
    %v9775 = vsel %vm2527, %v9745, %v9221
    %v9776 = vsel %vm2527, %v9746, %v9223
    %v9777 = vsel %vm2527, %v9747, %v9225
    %v9778 = vsel %vm2527, %v9748, %v9227
    %v9779 = vsel %vm2527, %v9749, %v9229
    %v9780 = vsel %vm2527, %v9750, %v9231
    %v9781 = vsel %vm2527, %v9751, %v9233
    %v9782 = vsel %vm2527, %v9752, %v9235
    %v9783 = vsel %vm2527, %v9753, %v9237
    %v9784 = vsel %vm9572, %v9754, %v9269
    %v9785 = vsel %vm9572, %v9755, %v9271
    %v9786 = vsel %vm9572, %v9756, %v9273
    %v9787 = vsel %vm9572, %v9757, %v9275
    %v9788 = vsel %vm9572, %v9758, %v9277
    %v9789 = vsel %vm9572, %v9759, %v9279
    %v9790 = vsel %vm9572, %v9760, %v9281
    %v9791 = vsel %vm9572, %v9761, %v9283
    %v9792 = vsel %vm9572, %v9762, %v9285
    %v9793 = vsel %vm9572, %v9763, %v9287
    %v9794 = vsel %vm9572, %v9764, %v9289
    %v9795 = vsel %vm9572, %v9765, %v9291
    %v9796 = vsel %vm9572, %v9766, %v9293
    %v9797 = vsel %vm9572, %v9767, %v9295
    %v9798 = vsel %vm9572, %v9768, %v9297
    %v9799 = vsel %vm9572, %v9769, %v9299
    %v9800 = vsel %vm9572, %v9770, %v9301
    %v9801 = vsel %vm9572, %v9771, %v9303
    %v9802 = vsel %vm9572, %v9772, %v9305
    %v9803 = vsel %vm9572, %v9773, %v9307
    %v9804 = vsel %vm9572, %v9774, %v9309
    %v9805 = vsel %vm9572, %v9775, %v9311
    %v9806 = vsel %vm9572, %v9776, %v9313
    %v9807 = vsel %vm9572, %v9777, %v9315
    %v9808 = vsel %vm9572, %v9778, %v9317
    %v9809 = vsel %vm9572, %v9779, %v9319
    %v9810 = vsel %vm9572, %v9780, %v9321
    %v9811 = vsel %vm9572, %v9781, %v9323
    %v9812 = vsel %vm9572, %v9782, %v9325
    %v9813 = vsel %vm9572, %v9783, %v9327
    %v9814 = vsel %vm3613, %v9784, %v9361
    %v9815 = vsel %vm3613, %v9785, %v9363
    %v9816 = vsel %vm3613, %v9786, %v9365
    %v9817 = vsel %vm3613, %v9787, %v9367
    %v9818 = vsel %vm3613, %v9788, %v9369
    %v9819 = vsel %vm3613, %v9789, %v9371
    %v9820 = vsel %vm3613, %v9790, %v9373
    %v9821 = vsel %vm3613, %v9791, %v9375
    %v9822 = vsel %vm3613, %v9792, %v9377
    %v9823 = vsel %vm3613, %v9793, %v9379
    %v9824 = vsel %vm3613, %v9794, %v9381
    %v9825 = vsel %vm3613, %v9795, %v9383
    %v9826 = vsel %vm3613, %v9796, %v9385
    %v9827 = vsel %vm3613, %v9797, %v9387
    %v9828 = vsel %vm3613, %v9798, %v9389
    %v9829 = vsel %vm3613, %v9799, %v9391
    %v9830 = vsel %vm3613, %v9800, %v9393
    %v9831 = vsel %vm3613, %v9801, %v9395
    %v9832 = vsel %vm3613, %v9802, %v9397
    %v9833 = vsel %vm3613, %v9803, %v9399
    %v9834 = vsel %vm3613, %v9804, %v9401
    %v9835 = vsel %vm3613, %v9805, %v9403
    %v9836 = vsel %vm3613, %v9806, %v9405
    %v9837 = vsel %vm3613, %v9807, %v9407
    %v9838 = vsel %vm3613, %v9808, %v9409
    %v9839 = vsel %vm3613, %v9809, %v9411
    %v9840 = vsel %vm3613, %v9810, %v9413
    %v9841 = vsel %vm3613, %v9811, %v9415
    %v9842 = vsel %vm3613, %v9812, %v9417
    %v9843 = vsel %vm3613, %v9813, %v9419
    %v9844 = vpack.c.bf16 %v9635, %v9634
    %v9845 = vpack.c.bf16 %v9815, %v9814
    %v9846 = vpack.c.bf16 %v9637, %v9636
    %v9847 = vpack.c.bf16 %v9817, %v9816
    %v9848 = vpack.c.bf16 %v9639, %v9638
    %v9849 = vpack.c.bf16 %v9819, %v9818
    %v9850 = vpack.c.bf16 %v9641, %v9640
    %v9851 = vpack.c.bf16 %v9821, %v9820
    %v9852 = vpack.c.bf16 %v9643, %v9642
    %v9853 = vpack.c.bf16 %v9823, %v9822
    %v9854 = vpack.c.bf16 %v9645, %v9644
    %v9855 = vpack.c.bf16 %v9825, %v9824
    %v9856 = vpack.c.bf16 %v9647, %v9646
    %v9857 = vpack.c.bf16 %v9827, %v9826
    %v9858 = vpack.c.bf16 %v9649, %v9648
    %v9859 = vpack.c.bf16 %v9829, %v9828
    %v9860 = vpack.c.bf16 %v9651, %v9650
    %v9861 = vpack.c.bf16 %v9831, %v9830
    %v9862 = vpack.c.bf16 %v9653, %v9652
    %v9863 = vpack.c.bf16 %v9833, %v9832
    %v9864 = vpack.c.bf16 %v9655, %v9654
    %v9865 = vpack.c.bf16 %v9835, %v9834
    %v9866 = vpack.c.bf16 %v9657, %v9656
    %v9867 = vpack.c.bf16 %v9837, %v9836
    %v9868 = vpack.c.bf16 %v9659, %v9658
    %v9869 = vpack.c.bf16 %v9839, %v9838
    %v9870 = vpack.c.bf16 %v9661, %v9660
    %v9871 = vpack.c.bf16 %v9841, %v9840
    %v9872 = vpack.c.bf16 %v9663, %v9662
    %v9873 = vpack.c.bf16 %v9843, %v9842
    %v9874 = vld [vmem:[%s15] sm:$0xf]
    %v9875 = vld [vmem:[%s15 + $0x4] sm:$0xf]
    %v9876 = vld [vmem:[%s15 + $0x8] sm:$0xf]
    %v9877 = vld [vmem:[%s15 + $0xc] sm:$0xf]
    %v9878 = vld [vmem:[%s15 + $0x10] sm:$0xf]
    %v9879 = vld [vmem:[%s15 + $0x14] sm:$0xf]
    %v9880 = vld [vmem:[%s15 + $0x18] sm:$0xf]
    %v9881 = vld [vmem:[%s15 + $0x1c] sm:$0xf]
    %v9882 = vld [vmem:[%s15 + $0x20] sm:$0xf]
    %v9883 = vld [vmem:[%s15 + $0x24] sm:$0xf]
    %v9884 = vld [vmem:[%s15 + $0x28] sm:$0xf]
    %v9885 = vld [vmem:[%s15 + $0x2c] sm:$0xf]
    %v9886 = vld [vmem:[%s15 + $0x30] sm:$0xf]
    %v9887 = vld [vmem:[%s15 + $0x34] sm:$0xf]
    %v9888 = vld [vmem:[%s15 + $0x38] sm:$0xf]
    %v9889 = vld [vmem:[%s15 + $0x3c] sm:$0xf]
    %v9890 = vld [vmem:[%s15 + $0x40] sm:$0xf]
    %v9891 = vld [vmem:[%s15 + $0x44] sm:$0xf]
    %v9892 = vld [vmem:[%s15 + $0x48] sm:$0xf]
    %v9893 = vld [vmem:[%s15 + $0x4c] sm:$0xf]
    %v9894 = vld [vmem:[%s15 + $0x50] sm:$0xf]
    %v9895 = vld [vmem:[%s15 + $0x54] sm:$0xf]
    %v9896 = vld [vmem:[%s15 + $0x58] sm:$0xf]
    %v9897 = vld [vmem:[%s15 + $0x5c] sm:$0xf]
    %v9898 = vld [vmem:[%s15 + $0x60] sm:$0xf]
    %v9899 = vld [vmem:[%s15 + $0x64] sm:$0xf]
    %v9900 = vld [vmem:[%s15 + $0x68] sm:$0xf]
    %v9901 = vld [vmem:[%s15 + $0x6c] sm:$0xf]
    %v9902 = vld [vmem:[%s15 + $0x70] sm:$0xf]
    %v9903 = vld [vmem:[%s15 + $0x74] sm:$0xf]
    %v9934 = vunpack.c.l.b16 %v9874
    %v9935 = vunpack.c.l.b16 %v9875
    %v9936 = vunpack.c.l.b16 %v9876
    %v9937 = vunpack.c.l.b16 %v9877
    %v9938 = vunpack.c.l.b16 %v9878
    %v9939 = vunpack.c.l.b16 %v9879
    %v9940 = vunpack.c.l.b16 %v9880
    %v9941 = vunpack.c.l.b16 %v9881
    %v9942 = vunpack.c.l.b16 %v9882
    %v9943 = vunpack.c.l.b16 %v9883
    %v9944 = vunpack.c.l.b16 %v9884
    %v9945 = vunpack.c.l.b16 %v9885
    %v9946 = vunpack.c.l.b16 %v9886
    %v9947 = vunpack.c.l.b16 %v9887
    %v9948 = vunpack.c.l.b16 %v9888
    %v9949 = vunpack.c.l.b16 %v9889
    %v9950 = vunpack.c.l.b16 %v9890
    %v9951 = vunpack.c.l.b16 %v9891
    %v9952 = vunpack.c.l.b16 %v9892
    %v9953 = vunpack.c.l.b16 %v9893
    %v9954 = vunpack.c.l.b16 %v9894
    %v9955 = vunpack.c.l.b16 %v9895
    %v9956 = vunpack.c.l.b16 %v9896
    %v9957 = vunpack.c.l.b16 %v9897
    %v9958 = vunpack.c.l.b16 %v9898
    %v9959 = vunpack.c.l.b16 %v9899
    %v9960 = vunpack.c.l.b16 %v9900
    %v9961 = vunpack.c.l.b16 %v9901
    %v9962 = vunpack.c.l.b16 %v9902
    %v9963 = vunpack.c.l.b16 %v9903
    %v9964 = vpack.c.b16 %v9935, %v9934
    %v9965 = vpack.c.b16 %v9937, %v9936
    %v9966 = vpack.c.b16 %v9939, %v9938
    %v9967 = vpack.c.b16 %v9941, %v9940
    %v9968 = vpack.c.b16 %v9943, %v9942
    %v9969 = vpack.c.b16 %v9945, %v9944
    %v9970 = vpack.c.b16 %v9947, %v9946
    %v9971 = vpack.c.b16 %v9949, %v9948
    %v9972 = vpack.c.b16 %v9951, %v9950
    %v9973 = vpack.c.b16 %v9953, %v9952
    %v9974 = vpack.c.b16 %v9955, %v9954
    %v9975 = vpack.c.b16 %v9957, %v9956
    %v9976 = vpack.c.b16 %v9959, %v9958
    %v9977 = vpack.c.b16 %v9961, %v9960
    %v9978 = vpack.c.b16 %v9963, %v9962
    %v9995 = vsel %vm9633, %v9845, 0
    %v9998 = vsel %vm9633, %v9847, 0
    %v10001 = vsel %vm9633, %v9849, 0
    %v10004 = vsel %vm9633, %v9851, 0
    %v10007 = vsel %vm9633, %v9853, 0
    %v10010 = vsel %vm9633, %v9855, 0
    %v10013 = vsel %vm9633, %v9857, 0
    %v10016 = vsel %vm9633, %v9859, 0
    %v10019 = vsel %vm9633, %v9861, 0
    %v10022 = vsel %vm9633, %v9863, 0
    %v10025 = vsel %vm9633, %v9865, 0
    %v10028 = vsel %vm9633, %v9867, 0
    %v10031 = vsel %vm9633, %v9869, 0
    %v10034 = vsel %vm9633, %v9871, 0
    %v10037 = vsel %vm9633, %v9873, 0
    %10039 = vmatpush.bf16.msra.mxu0 %v9971
    %10040 = vmatpush.bf16.msra.mxu0 %v9970
    %10041 = vmatpush.bf16.msra.mxu0 %v9969
    %10042 = vmatpush.bf16.msra.mxu0 %v9968
    %10043 = vmatpush.bf16.msra.mxu0 %v9967
    %10044 = vmatpush.bf16.msra.mxu0 %v9966
    %10045 = vmatpush.bf16.msra.mxu0 %v9965
    %10046 = vmatpush.bf16.msra.mxu0 %v9964
    %10047 = vmatmul.bf16.gmra.mxu0 %v9844
    %v10048 = vpop.f32.mrf.mxu0
    %v10049 = vadd.f32 0.0, %v10048
    %v10050 = vpop.f32.mrf.mxu0
    %v10051 = vadd.f32 0.0, %v10050
    %10052 = vmatmul.bf16.gmra.mxu0 %v9846
    %v10053 = vpop.f32.mrf.mxu0
    %v10054 = vadd.f32 0.0, %v10053
    %v10055 = vpop.f32.mrf.mxu0
    %v10056 = vadd.f32 0.0, %v10055
    %10057 = vmatmul.bf16.gmra.mxu0 %v9848
    %v10058 = vpop.f32.mrf.mxu0
    %v10059 = vadd.f32 0.0, %v10058
    %v10060 = vpop.f32.mrf.mxu0
    %v10061 = vadd.f32 0.0, %v10060
    %10062 = vmatmul.bf16.gmra.mxu0 %v9850
    %v10063 = vpop.f32.mrf.mxu0
    %v10064 = vadd.f32 0.0, %v10063
    %v10065 = vpop.f32.mrf.mxu0
    %v10066 = vadd.f32 0.0, %v10065
    %10067 = vmatmul.bf16.gmra.mxu0 %v9852
    %v10068 = vpop.f32.mrf.mxu0
    %v10069 = vadd.f32 0.0, %v10068
    %v10070 = vpop.f32.mrf.mxu0
    %v10071 = vadd.f32 0.0, %v10070
    %10072 = vmatmul.bf16.gmra.mxu0 %v9854
    %v10073 = vpop.f32.mrf.mxu0
    %v10074 = vadd.f32 0.0, %v10073
    %v10075 = vpop.f32.mrf.mxu0
    %v10076 = vadd.f32 0.0, %v10075
    %10077 = vmatmul.bf16.gmra.mxu0 %v9856
    %v10078 = vpop.f32.mrf.mxu0
    %v10079 = vadd.f32 0.0, %v10078
    %v10080 = vpop.f32.mrf.mxu0
    %v10081 = vadd.f32 0.0, %v10080
    %10082 = vmatmul.bf16.gmra.mxu0 %v9858
    %v10083 = vpop.f32.mrf.mxu0
    %v10084 = vadd.f32 0.0, %v10083
    %v10085 = vpop.f32.mrf.mxu0
    %v10086 = vadd.f32 0.0, %v10085
    %10087 = vmatmul.bf16.gmra.mxu0 %v9860
    %v10088 = vpop.f32.mrf.mxu0
    %v10089 = vadd.f32 0.0, %v10088
    %v10090 = vpop.f32.mrf.mxu0
    %v10091 = vadd.f32 0.0, %v10090
    %10092 = vmatmul.bf16.gmra.mxu0 %v9862
    %v10093 = vpop.f32.mrf.mxu0
    %v10094 = vadd.f32 0.0, %v10093
    %v10095 = vpop.f32.mrf.mxu0
    %v10096 = vadd.f32 0.0, %v10095
    %10097 = vmatmul.bf16.gmra.mxu0 %v9864
    %v10098 = vpop.f32.mrf.mxu0
    %v10099 = vadd.f32 0.0, %v10098
    %v10100 = vpop.f32.mrf.mxu0
    %v10101 = vadd.f32 0.0, %v10100
    %10102 = vmatmul.bf16.gmra.mxu0 %v9866
    %v10103 = vpop.f32.mrf.mxu0
    %v10104 = vadd.f32 0.0, %v10103
    %v10105 = vpop.f32.mrf.mxu0
    %v10106 = vadd.f32 0.0, %v10105
    %10107 = vmatmul.bf16.gmra.mxu0 %v9868
    %v10108 = vpop.f32.mrf.mxu0
    %v10109 = vadd.f32 0.0, %v10108
    %v10110 = vpop.f32.mrf.mxu0
    %v10111 = vadd.f32 0.0, %v10110
    %10112 = vmatmul.bf16.gmra.mxu0 %v9870
    %v10113 = vpop.f32.mrf.mxu0
    %v10114 = vadd.f32 0.0, %v10113
    %v10115 = vpop.f32.mrf.mxu0
    %v10116 = vadd.f32 0.0, %v10115
    %10117 = vmatmul.bf16.gmra.mxu0 %v9872
    %v10118 = vpop.f32.mrf.mxu0
    %v10119 = vadd.f32 0.0, %v10118
    %v10120 = vpop.f32.mrf.mxu0
    %v10121 = vadd.f32 0.0, %v10120
    %10122 = vdwg.mxu0
    %10123 = vmatpush.bf16.msra.mxu0 0
    %10124 = vmatpush.bf16.msra.mxu0 %v9978
    %10125 = vmatpush.bf16.msra.mxu0 %v9977
    %10126 = vmatpush.bf16.msra.mxu0 %v9976
    %10127 = vmatpush.bf16.msra.mxu0 %v9975
    %10128 = vmatpush.bf16.msra.mxu0 %v9974
    %10129 = vmatpush.bf16.msra.mxu0 %v9973
    %10130 = vmatpush.bf16.msra.mxu0 %v9972
    %10131 = vmatmul.bf16.gmra.mxu0 %v9995
    %v10132 = vpop.f32.mrf.mxu0
    %v10133 = vadd.f32 %v10049, %v10132
    %v10134 = vpop.f32.mrf.mxu0
    %v10135 = vadd.f32 %v10051, %v10134
    %10136 = vmatmul.bf16.gmra.mxu0 %v9998
    %v10137 = vpop.f32.mrf.mxu0
    %v10138 = vadd.f32 %v10054, %v10137
    %v10139 = vpop.f32.mrf.mxu0
    %v10140 = vadd.f32 %v10056, %v10139
    %10141 = vmatmul.bf16.gmra.mxu0 %v10001
    %v10142 = vpop.f32.mrf.mxu0
    %v10143 = vadd.f32 %v10059, %v10142
    %v10144 = vpop.f32.mrf.mxu0
    %v10145 = vadd.f32 %v10061, %v10144
    %10146 = vmatmul.bf16.gmra.mxu0 %v10004
    %v10147 = vpop.f32.mrf.mxu0
    %v10148 = vadd.f32 %v10064, %v10147
    %v10149 = vpop.f32.mrf.mxu0
    %v10150 = vadd.f32 %v10066, %v10149
    %10151 = vmatmul.bf16.gmra.mxu0 %v10007
    %v10152 = vpop.f32.mrf.mxu0
    %v10153 = vadd.f32 %v10069, %v10152
    %v10154 = vpop.f32.mrf.mxu0
    %v10155 = vadd.f32 %v10071, %v10154
    %10156 = vmatmul.bf16.gmra.mxu0 %v10010
    %v10157 = vpop.f32.mrf.mxu0
    %v10158 = vadd.f32 %v10074, %v10157
    %v10159 = vpop.f32.mrf.mxu0
    %v10160 = vadd.f32 %v10076, %v10159
    %10161 = vmatmul.bf16.gmra.mxu0 %v10013
    %v10162 = vpop.f32.mrf.mxu0
    %v10163 = vadd.f32 %v10079, %v10162
    %v10164 = vpop.f32.mrf.mxu0
    %v10165 = vadd.f32 %v10081, %v10164
    %10166 = vmatmul.bf16.gmra.mxu0 %v10016
    %v10167 = vpop.f32.mrf.mxu0
    %v10168 = vadd.f32 %v10084, %v10167
    %v10169 = vpop.f32.mrf.mxu0
    %v10170 = vadd.f32 %v10086, %v10169
    %10171 = vmatmul.bf16.gmra.mxu0 %v10019
    %v10172 = vpop.f32.mrf.mxu0
    %v10173 = vadd.f32 %v10089, %v10172
    %v10174 = vpop.f32.mrf.mxu0
    %v10175 = vadd.f32 %v10091, %v10174
    %10176 = vmatmul.bf16.gmra.mxu0 %v10022
    %v10177 = vpop.f32.mrf.mxu0
    %v10178 = vadd.f32 %v10094, %v10177
    %v10179 = vpop.f32.mrf.mxu0
    %v10180 = vadd.f32 %v10096, %v10179
    %10181 = vmatmul.bf16.gmra.mxu0 %v10025
    %v10182 = vpop.f32.mrf.mxu0
    %v10183 = vadd.f32 %v10099, %v10182
    %v10184 = vpop.f32.mrf.mxu0
    %v10185 = vadd.f32 %v10101, %v10184
    %10186 = vmatmul.bf16.gmra.mxu0 %v10028
    %v10187 = vpop.f32.mrf.mxu0
    %v10188 = vadd.f32 %v10104, %v10187
    %v10189 = vpop.f32.mrf.mxu0
    %v10190 = vadd.f32 %v10106, %v10189
    %10191 = vmatmul.bf16.gmra.mxu0 %v10031
    %v10192 = vpop.f32.mrf.mxu0
    %v10193 = vadd.f32 %v10109, %v10192
    %v10194 = vpop.f32.mrf.mxu0
    %v10195 = vadd.f32 %v10111, %v10194
    %10196 = vmatmul.bf16.gmra.mxu0 %v10034
    %v10197 = vpop.f32.mrf.mxu0
    %v10198 = vadd.f32 %v10114, %v10197
    %v10199 = vpop.f32.mrf.mxu0
    %v10200 = vadd.f32 %v10116, %v10199
    %10201 = vmatmul.bf16.gmra.mxu0 %v10037
    %v10202 = vpop.f32.mrf.mxu0
    %v10203 = vadd.f32 %v10119, %v10202
    %v10204 = vpop.f32.mrf.mxu0
    %v10205 = vadd.f32 %v10121, %v10204
    %10206 = vdwg.mxu0
    %10209 = vrot.lane.b32.xlu0 %v10133, 100
    %v10210 = vpop.permute.xlu0 %10209
    %10211 = vrot.lane.b32.xlu0 %v10135, 100
    %v10212 = vpop.permute.xlu0 %10211
    %10217 = vrot.lane.b32.xlu0 %v10138, 28
    %v10218 = vpop.permute.xlu0 %10217
    %10219 = vrot.lane.b32.xlu0 %v10140, 28
    %v10220 = vpop.permute.xlu0 %10219
    %10225 = vrot.lane.b32.xlu0 %v10143, 84
    %v10226 = vpop.permute.xlu0 %10225
    %10227 = vrot.lane.b32.xlu0 %v10145, 84
    %v10228 = vpop.permute.xlu0 %10227
    %10233 = vrot.lane.b32.xlu0 %v10148, 12
    %v10234 = vpop.permute.xlu0 %10233
    %10235 = vrot.lane.b32.xlu0 %v10150, 12
    %v10236 = vpop.permute.xlu0 %10235
    %10241 = vrot.lane.b32.xlu0 %v10153, 68
    %v10242 = vpop.permute.xlu0 %10241
    %10243 = vrot.lane.b32.xlu0 %v10155, 68
    %v10244 = vpop.permute.xlu0 %10243
    %10249 = vrot.lane.b32.xlu0 %v10158, 124
    %v10250 = vpop.permute.xlu0 %10249
    %10251 = vrot.lane.b32.xlu0 %v10160, 124
    %v10252 = vpop.permute.xlu0 %10251
    %10257 = vrot.lane.b32.xlu0 %v10163, 52
    %v10258 = vpop.permute.xlu0 %10257
    %10259 = vrot.lane.b32.xlu0 %v10165, 52
    %v10260 = vpop.permute.xlu0 %10259
    %10265 = vrot.lane.b32.xlu0 %v10168, 108
    %v10266 = vpop.permute.xlu0 %10265
    %10267 = vrot.lane.b32.xlu0 %v10170, 108
    %v10268 = vpop.permute.xlu0 %10267
    %10273 = vrot.lane.b32.xlu0 %v10173, 36
    %v10274 = vpop.permute.xlu0 %10273
    %10275 = vrot.lane.b32.xlu0 %v10175, 36
    %v10276 = vpop.permute.xlu0 %10275
    %10281 = vrot.lane.b32.xlu0 %v10178, 92
    %v10282 = vpop.permute.xlu0 %10281
    %10283 = vrot.lane.b32.xlu0 %v10180, 92
    %v10284 = vpop.permute.xlu0 %10283
    %10289 = vrot.lane.b32.xlu0 %v10183, 20
    %v10290 = vpop.permute.xlu0 %10289
    %10291 = vrot.lane.b32.xlu0 %v10185, 20
    %v10292 = vpop.permute.xlu0 %10291
    %10297 = vrot.lane.b32.xlu0 %v10188, 76
    %v10298 = vpop.permute.xlu0 %10297
    %10299 = vrot.lane.b32.xlu0 %v10190, 76
    %v10300 = vpop.permute.xlu0 %10299
    %10305 = vrot.lane.b32.xlu0 %v10193, 4
    %v10306 = vpop.permute.xlu0 %10305
    %10307 = vrot.lane.b32.xlu0 %v10195, 4
    %v10308 = vpop.permute.xlu0 %10307
    %10313 = vrot.lane.b32.xlu0 %v10198, 60
    %v10314 = vpop.permute.xlu0 %10313
    %10315 = vrot.lane.b32.xlu0 %v10200, 60
    %v10316 = vpop.permute.xlu0 %10315
    %10321 = vrot.lane.b32.xlu0 %v10203, 116
    %v10322 = vpop.permute.xlu0 %10321
    %10323 = vrot.lane.b32.xlu0 %v10205, 116
    %v10324 = vpop.permute.xlu0 %10323
    %vm10327 = vcmask 228352
    %v10328 = vsel %vm10327, %v10210, %v10218
    %v10329 = vsel %vm10327, %v10212, %v10220
    %vm10330 = vcmask 687104
    %v10331 = vsel %vm10330, %v10328, %v10226
    %v10332 = vsel %vm10330, %v10329, %v10228
    %vm10333 = vcmask 97280
    %v10334 = vsel %vm10333, %v10226, %v10234
    %v10335 = vsel %vm10333, %v10228, %v10236
    %vm10336 = vcmask 556032
    %v10337 = vsel %vm10336, %v10334, %v10242
    %v10338 = vsel %vm10336, %v10335, %v10244
    %vm10339 = vcmask 1014784
    %v10340 = vsel %vm10339, %v10337, %v10250
    %v10341 = vsel %vm10339, %v10338, %v10252
    %vm10342 = vcmask 424960
    %v10343 = vsel %vm10342, %v10250, %v10258
    %v10344 = vsel %vm10342, %v10252, %v10260
    %vm10345 = vcmask 883712
    %v10346 = vsel %vm10345, %v10343, %v10266
    %v10347 = vsel %vm10345, %v10344, %v10268
    %vm10348 = vcmask 293888
    %v10349 = vsel %vm10348, %v10266, %v10274
    %v10350 = vsel %vm10348, %v10268, %v10276
    %vm10351 = vcmask 752640
    %v10352 = vsel %vm10351, %v10349, %v10282
    %v10353 = vsel %vm10351, %v10350, %v10284
    %vm10354 = vcmask 162816
    %v10355 = vsel %vm10354, %v10282, %v10290
    %v10356 = vsel %vm10354, %v10284, %v10292
    %vm10357 = vcmask 621568
    %v10358 = vsel %vm10357, %v10355, %v10298
    %v10359 = vsel %vm10357, %v10356, %v10300
    %vm10360 = vcmask 31744
    %v10361 = vsel %vm10360, %v10298, %v10306
    %v10362 = vsel %vm10360, %v10300, %v10308
    %vm10363 = vcmask 490496
    %v10364 = vsel %vm10363, %v10361, %v10314
    %v10365 = vsel %vm10363, %v10362, %v10316
    %vm10366 = vcmask 949248
    %v10367 = vsel %vm10366, %v10364, %v10322
    %v10368 = vsel %vm10366, %v10365, %v10324
    %v10369 = vstv %s70
    %v10370 = vadd.f32 %v10331, %v10369
    %v10371 = vadd.f32 %v10340, %v10369
    %v10372 = vadd.f32 %v10346, %v10369
    %v10373 = vadd.f32 %v10352, %v10369
    %v10374 = vadd.f32 %v10358, %v10369
    %v10375 = vadd.f32 %v10367, %v10369
    %v10376 = vadd.f32 %v10322, %v10369
    %v10377 = vadd.f32 %v10332, %v10369
    %v10378 = vadd.f32 %v10341, %v10369
    %v10379 = vadd.f32 %v10347, %v10369
    %v10380 = vadd.f32 %v10353, %v10369
    %v10381 = vadd.f32 %v10359, %v10369
    %v10382 = vadd.f32 %v10368, %v10369
    %v10383 = vadd.f32 %v10324, %v10369
    %v10384 = vld [vmem:[%s1] sm:$0xff]
    %v10385 = vld [vmem:[%s1 + $0x8] sm:$0xff]
    %v10386 = vld [vmem:[%s1 + $0x10] sm:$0xff]
    %v10387 = vld [vmem:[%s1 + $0x18] sm:$0xff]
    %v10388 = vld [vmem:[%s1 + $0x20] sm:$0xff]
    %v10389 = vld [vmem:[%s1 + $0x28] sm:$0xff]
    %v10390 = vld [vmem:[%s1 + $0x30] sm:$0xff]
    %v10391 = vld [vmem:[%s1 + $0x38] sm:$0xff]
    %v10392 = vld [vmem:[%s1 + $0x40] sm:$0xff]
    %v10393 = vld [vmem:[%s1 + $0x48] sm:$0xff]
    %v10394 = vld [vmem:[%s1 + $0x50] sm:$0xff]
    %v10395 = vld [vmem:[%s1 + $0x58] sm:$0xff]
    %v10396 = vld [vmem:[%s1 + $0x60] sm:$0xff]
    %v10397 = vld [vmem:[%s1 + $0x68] sm:$0xff]
    %v10398 = vtanh.pop %v10370
    %v10399 = vtanh.pop %v10371
    %v10400 = vtanh.pop %v10372
    %v10401 = vtanh.pop %v10373
    %v10402 = vtanh.pop %v10374
    %v10403 = vtanh.pop %v10375
    %v10404 = vtanh.pop %v10376
    %v10405 = vtanh.pop %v10377
    %v10406 = vtanh.pop %v10378
    %v10407 = vtanh.pop %v10379
    %v10408 = vtanh.pop %v10380
    %v10409 = vtanh.pop %v10381
    %v10410 = vtanh.pop %v10382
    %v10411 = vtanh.pop %v10383
    %v10412 = vadd.f32 %v10398, 1.0
    %v10413 = vadd.f32 %v10399, 1.0
    %v10414 = vadd.f32 %v10400, 1.0
    %v10415 = vadd.f32 %v10401, 1.0
    %v10416 = vadd.f32 %v10402, 1.0
    %v10417 = vadd.f32 %v10403, 1.0
    %v10418 = vadd.f32 %v10404, 1.0
    %v10419 = vadd.f32 %v10405, 1.0
    %v10420 = vadd.f32 %v10406, 1.0
    %v10421 = vadd.f32 %v10407, 1.0
    %v10422 = vadd.f32 %v10408, 1.0
    %v10423 = vadd.f32 %v10409, 1.0
    %v10424 = vadd.f32 %v10410, 1.0
    %v10425 = vadd.f32 %v10411, 1.0
    %v10426 = vmul.f32 %v10412, 0.5
    %v10427 = vmul.f32 %v10413, 0.5
    %v10428 = vmul.f32 %v10414, 0.5
    %v10429 = vmul.f32 %v10415, 0.5
    %v10430 = vmul.f32 %v10416, 0.5
    %v10431 = vmul.f32 %v10417, 0.5
    %v10432 = vmul.f32 %v10418, 0.5
    %v10433 = vmul.f32 %v10419, 0.5
    %v10434 = vmul.f32 %v10420, 0.5
    %v10435 = vmul.f32 %v10421, 0.5
    %v10436 = vmul.f32 %v10422, 0.5
    %v10437 = vmul.f32 %v10423, 0.5
    %v10438 = vmul.f32 %v10424, 0.5
    %v10439 = vmul.f32 %v10425, 0.5
    %v10440 = vsub.f32 %v10426, %v10384
    %v10441 = vsub.f32 %v10427, %v10385
    %v10442 = vsub.f32 %v10428, %v10386
    %v10443 = vsub.f32 %v10429, %v10387
    %v10444 = vsub.f32 %v10430, %v10388
    %v10445 = vsub.f32 %v10431, %v10389
    %v10446 = vsub.f32 %v10432, %v10390
    %v10447 = vsub.f32 %v10433, %v10391
    %v10448 = vsub.f32 %v10434, %v10392
    %v10449 = vsub.f32 %v10435, %v10393
    %v10450 = vsub.f32 %v10436, %v10394
    %v10451 = vsub.f32 %v10437, %v10395
    %v10452 = vsub.f32 %v10438, %v10396
    %v10453 = vsub.f32 %v10439, %v10397
    %v10454 = vmul.f32 %v3632, %v10440
    %v10455 = vmul.f32 %v3632, %v10441
    %v10456 = vmul.f32 %v3632, %v10442
    %v10457 = vmul.f32 %v3632, %v10443
    %v10458 = vmul.f32 %v3632, %v10444
    %v10459 = vmul.f32 %v3632, %v10445
    %v10460 = vmul.f32 %v3632, %v10446
    %v10461 = vmul.f32 %v3632, %v10447
    %v10462 = vmul.f32 %v3632, %v10448
    %v10463 = vmul.f32 %v3632, %v10449
    %v10464 = vmul.f32 %v3632, %v10450
    %v10465 = vmul.f32 %v3632, %v10451
    %v10466 = vmul.f32 %v3632, %v10452
    %v10467 = vmul.f32 %v3632, %v10453
    %v10468 = vadd.f32 %v10384, %v10454
    %v10469 = vadd.f32 %v10385, %v10455
    %v10470 = vadd.f32 %v10386, %v10456
    %v10471 = vadd.f32 %v10387, %v10457
    %v10472 = vadd.f32 %v10388, %v10458
    %v10473 = vadd.f32 %v10389, %v10459
    %v10474 = vadd.f32 %v10390, %v10460
    %v10475 = vadd.f32 %v10391, %v10461
    %v10476 = vadd.f32 %v10392, %v10462
    %v10477 = vadd.f32 %v10393, %v10463
    %v10478 = vadd.f32 %v10394, %v10464
    %v10479 = vadd.f32 %v10395, %v10465
    %v10480 = vadd.f32 %v10396, %v10466
    %v10481 = vadd.f32 %v10397, %v10467
    %10482 = vst [vmem:[%s16] sm:$0xff] %v10468
    %10483 = vst [vmem:[%s16 + $0x8] sm:$0xff] %v10469
    %10484 = vst [vmem:[%s16 + $0x10] sm:$0xff] %v10470
    %10485 = vst [vmem:[%s16 + $0x18] sm:$0xff] %v10471
    %10486 = vst [vmem:[%s16 + $0x20] sm:$0xff] %v10472
    %10487 = vst [vmem:[%s16 + $0x28] sm:$0xff] %v10473
    %10488 = vst.msk [vmem:[%s16 + $0x30] sm:$0xff] %vm9450, %v10474
    %10489 = vst [vmem:[%s16 + $0x38] sm:$0xff] %v10475
    %10490 = vst [vmem:[%s16 + $0x40] sm:$0xff] %v10476
    %10491 = vst [vmem:[%s16 + $0x48] sm:$0xff] %v10477
    %10492 = vst [vmem:[%s16 + $0x50] sm:$0xff] %v10478
    %10493 = vst [vmem:[%s16 + $0x58] sm:$0xff] %v10479
    %10494 = vst [vmem:[%s16 + $0x60] sm:$0xff] %v10480
    %10495 = vst.msk [vmem:[%s16 + $0x68] sm:$0xff] %vm9450, %v10481
    // Predicated region
    $region70: #{mnist_generator_forward.1} parent=1 // pred_check
      _
    $region71: #{mnist_generator_forward.1} parent=1 // pred_check_branch
      %10497 = sbr.rel (0) target = $region73
    $region72: #{mnist_generator_forward.1} parent=1 // pred_region
      _
    $region73: #{mnist_generator_forward.1} parent=1 // pred_fallthru
      _
    // Predicated region
    $region74: #{mnist_generator_forward.1} parent=1 // pred_check
      _
    $region75: #{mnist_generator_forward.1} parent=1 // pred_check_branch
      %10499 = sbr.rel (0) target = $region77
    $region76: #{mnist_generator_forward.1} parent=1 // pred_region
      _
    $region77: #{mnist_generator_forward.1} parent=1 // pred_fallthru
      _
    // Predicated region
    $region78: #{mnist_generator_forward.1} parent=1 // pred_check
      _
    $region79: #{mnist_generator_forward.1} parent=1 // pred_check_branch
      %10501 = sbr.rel (0) target = $region81
    $region80: #{mnist_generator_forward.1} parent=1 // pred_region
      _
    $region81: #{mnist_generator_forward.1} parent=1 // pred_fallthru
      _
    // Predicated region
    $region82: #{mnist_generator_forward.1} parent=1 // pred_check
      _
    $region83: #{mnist_generator_forward.1} parent=1 // pred_check_branch
      %10503 = sbr.rel (0) target = $region85
    $region84: #{mnist_generator_forward.1} parent=1 // pred_region
      _
    $region85: #{mnist_generator_forward.1} parent=1 // pred_fallthru
      _
    %10504 = vsyncpa [#allocation3], 1

</llo_original>
